<compile_context>
chip_gen: v7x
topology: tpu7x:2x2x1
jax: 0.10.0
libtpu: 0.0.40
codegen_flags: <defaults>
</compile_context>

<pallas_src>
import numpy as np

import jax
import jax.numpy as jnp
from jax.experimental import pallas as pl
from jax.experimental.pallas import tpu as pltpu


# ------------------------------ fused kernel -------------------------------

def _net_kernel(xr_ref, w1_ref, b1_ref, w2_ref, b2_ref,
                wf1_ref, bf1_ref, wf2_ref, bf2_ref,
                out_ref, x1_s, x2_s):
    f32 = jnp.float32
    TB = out_ref.shape[0]

    # ---- Stage 1: conv1 as 5 row-slab matmuls per (dy, dx), fused 2x2 maxpool.
    # xr_ref: (1, 48*TB, 28).  Slab s (= dy+ki) holds image rows 2*h12+s with
    # h12 in parity-grouped order [0,2,4,6,8,10,1,3,5,7,9,11], batch-minor, so
    # it is one contiguous TB-aligned slice, and conv1's output rows land
    # directly in the parity-grouped (h12-block, batch) layout conv2 wants.
    def slab(s):
        start = (s % 2) * 24 + 6 * (s // 2)
        return xr_ref[0, pl.ds(start * TB, 12 * TB), :]          # (12*TB, 28)

    first = True
    for dy in range(2):
        for dx in range(2):
            acc = jnp.dot(slab(dy), w1_ref[dx * 5],
                          preferred_element_type=f32)
            for ki in range(1, 5):
                acc = acc + jnp.dot(slab(dy + ki), w1_ref[dx * 5 + ki],
                                    preferred_element_type=f32)
            x1_s[...] = acc if first else jnp.maximum(x1_s[...], acc)
            first = False
    # pool-before-bias/relu is valid: bias is per-channel constant, relu monotone
    x1_s[...] = jnp.maximum(x1_s[...] + b1_ref[...], 0.0)        # (12*TB, 120)

    # ---- Stage 2: conv2 as 5 matmuls per (dy, dx), fused 2x2 maxpool.
    # x1_s row block j (TB rows) holds pooled conv1 row h12 = pg12[j]; the 4
    # row blocks needed for (dy, ki) are contiguous and start at multiples of TB
    # (8-aligned), so no sublane shuffles.
    first = True
    for dy in range(2):
        for dx in range(2):
            acc = None
            for ki in range(5):
                s = dy + ki
                lhs = x1_s[pl.ds(((s % 2) * 6 + s // 2) * TB, 4 * TB), :]
                t = jnp.dot(lhs, w2_ref[ki * 2 + dx],
                            preferred_element_type=f32)
                acc = t if acc is None else acc + t
            x2_s[...] = acc if first else jnp.maximum(x2_s[...], acc)
            first = False
    x2_s[...] = jnp.maximum(x2_s[...] + b2_ref[...], 0.0)        # (4*TB, 80)

    # ---- Stage 3: fc1 + relu as 4 accumulating (TB,80)x(80,50) dots
    # (x2_s rows are (h4, b), so each h4 block is a full M=TB slab per image).
    h = jnp.dot(x2_s[pl.ds(0, TB), :], wf1_ref[0], preferred_element_type=f32)
    for h4 in range(1, 4):
        h = h + jnp.dot(x2_s[pl.ds(h4 * TB, TB), :], wf1_ref[h4],
                        preferred_element_type=f32)
    h = jnp.maximum(h + bf1_ref[...], 0.0)                       # (TB, 50)

    # ---- Stage 4: fc2 + log_softmax (transcendentals ride the EUP slot).
    logits = jnp.dot(h, wf2_ref[...], preferred_element_type=f32) + bf2_ref[...]
    m = jnp.max(logits, axis=-1, keepdims=True)
    lse = jnp.log(jnp.sum(jnp.exp(logits - m), axis=-1, keepdims=True)) + m
    out_ref[...] = logits - lse                                  # (TB, 10)


# --------------------------- wrapper-side prep -----------------------------

# Image-row gather (48 rows/image, ~1.7x duplication of the raw 28 rows) such
# that for every s = dy+ki in {0..5} the 12 rows [2*h12+s, h12 in parity-grouped
# order] are a contiguous run starting at position (s%2)*24 + 6*(s//2).
_ROW_GATHER = np.concatenate(
    [np.arange(s, s + 24, 4) for s in (0, 2, 4, 6)]
    + [np.arange(s, s + 24, 4) for s in (1, 3, 5, 7)]).astype(np.int32)


def _round_up(n, m):
    return ((n + m - 1) // m) * m


def prep_params(params):
    """One-time rearrangement of PyTorch-layout weights into the kernel's fused
    Toeplitz layouts.  Call once and pass the result to net_forward (hoisted out
    of the per-call path)."""
    f32 = jnp.float32

    # conv1 -> per-(dx, ki) slabs [28(w_in), 120(w12, c1)], stacked (10, 28, 120).
    w1 = params["conv1_w"].astype(f32)[:, 0]                    # [10, 5, 5]
    sel1 = np.zeros((2, 28, 12, 5), np.float32)                 # [dx, w_in, w12, kj]
    for dx in range(2):
        for v in range(12):
            for j in range(5):
                sel1[dx, 2 * v + dx + j, v, j] = 1.0
    w1blk = jnp.einsum("xwvj,cij->xiwvc", jnp.asarray(sel1), w1)  # [2,5,28,12,10]
    w1blk = w1blk.reshape(10, 28, 120)                          # index = dx*5 + ki

    # conv2 -> per-(ki, dx) slabs [120(w12, c1), 80(w4, c2)], stacked (10, 120, 80).
    w2 = params["conv2_w"].astype(f32)                          # [20, 10, 5, 5]
    sel2 = np.zeros((2, 12, 4, 5), np.float32)                  # [dx, w12, w4, kj]
    for dx in range(2):
        for u in range(4):
            for j in range(5):
                sel2[dx, 2 * u + dx + j, u, j] = 1.0
    w2blk = jnp.einsum("xwuj,dckj->kxwcud", jnp.asarray(sel2), w2)  # [5,2,12,10,4,20]
    w2blk = w2blk.reshape(10, 120, 80)                          # index = ki*2 + dx

    b1t = jnp.tile(params["conv1_b"].astype(f32), 12).reshape(1, 120)
    b2t = jnp.tile(params["conv2_b"].astype(f32), 4).reshape(1, 80)

    # fc1 weight permuted so its K axis matches the kernel's per-h4 (w4, c2) lanes.
    wf1 = params["fc1_w"].astype(f32).reshape(50, 20, 4, 4)     # [f, c2, h4, w4]
    wf1 = wf1.transpose(2, 3, 1, 0).reshape(4, 80, 50)          # [h4, (w4, c2), f]
    bf1 = params["fc1_b"].astype(f32).reshape(1, 50)
    wf2 = params["fc2_w"].astype(f32).T                         # [50, 10]
    bf2 = params["fc2_b"].astype(f32).reshape(1, 10)
    return w1blk, b1t, w2blk, b2t, wf1, bf1, wf2, bf2


def net_forward(x, prepped, *, tb=256):
    """x: (B, 1, 28, 28) float32; prepped = prep_params(params)."""
    w1blk, b1t, w2blk, b2t, wf1, bf1, wf2, bf2 = prepped
    B = x.shape[0]

    # Sub-batch per grid step: tb>=256 fills the v6e/v7x MXU (128 is enough on
    # v5e); batches > tb get multiple "parallel" grid steps (both v7x TCs busy).
    # TB is rounded to a multiple of 8 so every in-kernel slice is 8-aligned,
    # and balanced across steps so batch padding stays small.
    n_steps = max(1, -(-B // tb))
    TB = _round_up(-(-B // n_steps), 8)
    B_pad = TB * n_steps

    img = x.reshape(B, 28, 28).astype(jnp.float32)
    if B_pad != B:
        img = jnp.pad(img, ((0, B_pad - B), (0, 0), (0, 0)))

    # Raw pixels only (no im2col amplification): duplicate/reorder rows so every
    # conv1 row window is a contiguous in-kernel slice, batch-minor on sublanes,
    # pre-flattened per grid step so each block is a contiguous HBM DMA.
    xr = img[:, _ROW_GATHER, :]                                  # (B_pad, 48, 28)
    xr = xr.reshape(n_steps, TB, 48, 28).transpose(0, 2, 1, 3)
    xr = xr.reshape(n_steps, 48 * TB, 28)

    out = pl.pallas_call(
        _net_kernel,
        out_shape=jax.ShapeDtypeStruct((B_pad, 10), jnp.float32),
        grid=(n_steps,),
        in_specs=[
            pl.BlockSpec((1, 48 * TB, 28), lambda g: (g, 0, 0)),   # raw pixel rows
            pl.BlockSpec((10, 28, 120), lambda g: (0, 0, 0)),      # conv1 slabs
            pl.BlockSpec((1, 120), lambda g: (0, 0)),              # conv1 bias (tiled)
            pl.BlockSpec((10, 120, 80), lambda g: (0, 0, 0)),      # conv2 slabs
            pl.BlockSpec((1, 80), lambda g: (0, 0)),               # conv2 bias (tiled)
            pl.BlockSpec((4, 80, 50), lambda g: (0, 0, 0)),        # fc1 weight blocks
            pl.BlockSpec((1, 50), lambda g: (0, 0)),               # fc1 bias
            pl.BlockSpec((50, 10), lambda g: (0, 0)),              # fc2 weight (K, N)
            pl.BlockSpec((1, 10), lambda g: (0, 0)),               # fc2 bias
        ],
        out_specs=pl.BlockSpec((TB, 10), lambda g: (g, 0)),
        scratch_shapes=[
            pltpu.VMEM((12 * TB, 120), jnp.float32),               # pooled conv1 acts
            pltpu.VMEM((4 * TB, 80), jnp.float32),                 # pooled conv2 acts
        ],
        compiler_params=pltpu.CompilerParams(
            dimension_semantics=("parallel",),
            vmem_limit_bytes=32 * 1024 * 1024),
    )(xr, w1blk, b1t, w2blk, b2t, wf1, bf1, wf2, bf2)
    return out[:B]


# ----------------------------- reference & init ----------------------------

def _reference_forward(x, params):
    """Plain-JAX reference matching the PyTorch module in eval mode."""
    y = jax.lax.conv_general_dilated(
        x, params["conv1_w"], (1, 1), "VALID",
        dimension_numbers=("NCHW", "OIHW", "NCHW"))
    y = y + params["conv1_b"][None, :, None, None]
    y = jax.lax.reduce_window(y, -jnp.inf, jax.lax.max,
                              (1, 1, 2, 2), (1, 1, 2, 2), "VALID")
    y = jnp.maximum(y, 0.0)
    y = jax.lax.conv_general_dilated(
        y, params["conv2_w"], (1, 1), "VALID",
        dimension_numbers=("NCHW", "OIHW", "NCHW"))
    y = y + params["conv2_b"][None, :, None, None]
    y = jax.lax.reduce_window(y, -jnp.inf, jax.lax.max,
                              (1, 1, 2, 2), (1, 1, 2, 2), "VALID")
    y = jnp.maximum(y, 0.0)
    y = y.reshape(x.shape[0], 320)
    y = jnp.maximum(y @ params["fc1_w"].T + params["fc1_b"], 0.0)
    y = y @ params["fc2_w"].T + params["fc2_b"]
    return jax.nn.log_softmax(y, axis=-1)


def init_params(key):
    ks = jax.random.split(key, 8)
    s = 0.05
    return {
        "conv1_w": s * jax.random.normal(ks[0], (10, 1, 5, 5), jnp.float32),
        "conv1_b": s * jax.random.normal(ks[1], (10,), jnp.float32),
        "conv2_w": s * jax.random.normal(ks[2], (20, 10, 5, 5), jnp.float32),
        "conv2_b": s * jax.random.normal(ks[3], (20,), jnp.float32),
        "fc1_w": s * jax.random.normal(ks[4], (50, 320), jnp.float32),
        "fc1_b": s * jax.random.normal(ks[5], (50,), jnp.float32),
        "fc2_w": s * jax.random.normal(ks[6], (10, 50), jnp.float32),
        "fc2_b": s * jax.random.normal(ks[7], (10,), jnp.float32),
    }


if __name__ == "__main__":
    key = jax.random.PRNGKey(0)
    kx, kp = jax.random.split(key)
    # MNIST geometry is forced by fc1's 320 input features: 28x28 single-channel.
    x = jax.random.normal(kx, (2, 1, 28, 28), jnp.float32)
    params = init_params(kp)

    prepped = prep_params(params)              # one-time weight prep (hoisted)
    fwd = jax.jit(net_forward)

    out = jax.block_until_ready(fwd(x, prepped))
    ref = jax.block_until_ready(jax.jit(_reference_forward)(x, params))

    assert out.shape == (2, 10) and out.dtype == jnp.float32
    # log_softmax rows should exp-sum to 1 and match the plain-JAX reference.
    assert jnp.allclose(jnp.exp(out).sum(axis=1), 1.0, atol=1e-4)
    assert jnp.allclose(out, ref, atol=2e-4, rtol=2e-4)
    print("KERNEL_OK")
</pallas_src>

<mosaic_0001>
module attributes {stable_mosaic.version = 11 : i64} {
  func.func @_net_kernel(%arg0: i32, %arg1: memref<1x384x28xf32, #tpu.memory_space<vmem>>, %arg2: memref<10x28x120xf32, #tpu.memory_space<vmem>>, %arg3: memref<1x120xf32, #tpu.memory_space<vmem>>, %arg4: memref<10x120x80xf32, #tpu.memory_space<vmem>>, %arg5: memref<1x80xf32, #tpu.memory_space<vmem>>, %arg6: memref<4x80x50xf32, #tpu.memory_space<vmem>>, %arg7: memref<1x50xf32, #tpu.memory_space<vmem>>, %arg8: memref<50x10xf32, #tpu.memory_space<vmem>>, %arg9: memref<1x10xf32, #tpu.memory_space<vmem>>, %arg10: memref<8x10xf32, #tpu.memory_space<vmem>>, %arg11: memref<96x120xf32, #tpu.memory_space<vmem>>, %arg12: memref<32x80xf32, #tpu.memory_space<vmem>>) attributes {dimension_semantics = [#tpu.dimension_semantics<parallel>], iteration_bounds = array<i64: 1>, scalar_prefetch = 0 : i64, scratch_operands = 2 : i64, tpu.core_type = #tpu.core_type<tc>, window_params = [{transform_indices = @transform_0, window_bounds = array<i64: 1, 384, 28>}, {pipeline_mode = #tpu.pipeline_mode<synchronous>, transform_indices = @transform_1, window_bounds = array<i64: 10, 28, 120>}, {pipeline_mode = #tpu.pipeline_mode<synchronous>, transform_indices = @transform_2, window_bounds = array<i64: 1, 120>}, {pipeline_mode = #tpu.pipeline_mode<synchronous>, transform_indices = @transform_3, window_bounds = array<i64: 10, 120, 80>}, {pipeline_mode = #tpu.pipeline_mode<synchronous>, transform_indices = @transform_4, window_bounds = array<i64: 1, 80>}, {pipeline_mode = #tpu.pipeline_mode<synchronous>, transform_indices = @transform_5, window_bounds = array<i64: 4, 80, 50>}, {pipeline_mode = #tpu.pipeline_mode<synchronous>, transform_indices = @transform_6, window_bounds = array<i64: 1, 50>}, {pipeline_mode = #tpu.pipeline_mode<synchronous>, transform_indices = @transform_7, window_bounds = array<i64: 50, 10>}, {pipeline_mode = #tpu.pipeline_mode<synchronous>, transform_indices = @transform_8, window_bounds = array<i64: 1, 10>}, {transform_indices = @transform_9, window_bounds = array<i64: 8, 10>}]} {
    %c0 = arith.constant 0 : index
    %c0_0 = arith.constant 0 : index
    %c0_1 = arith.constant 0 : index
    %0 = vector.load %arg1[%c0, %c0_0, %c0_1] : memref<1x384x28xf32, #tpu.memory_space<vmem>>, vector<1x96x28xf32>
    %1 = vector.shape_cast %0 : vector<1x96x28xf32> to vector<96x28xf32>
    %c0_2 = arith.constant 0 : index
    %c0_3 = arith.constant 0 : index
    %c0_4 = arith.constant 0 : index
    %2 = vector.load %arg2[%c0_2, %c0_3, %c0_4] : memref<10x28x120xf32, #tpu.memory_space<vmem>>, vector<1x28x120xf32>
    %3 = vector.shape_cast %2 : vector<1x28x120xf32> to vector<28x120xf32>
    %cst = arith.constant dense<0.000000e+00> : vector<96x120xf32>
    %4 = tpu.matmul %1, %3, %cst {dimension_numbers = #tpu.dot_dimension_numbers<[1], [0], [0], [1], [0, 0, 1, 1], [], []>} : vector<96x28xf32>, vector<28x120xf32>, vector<96x120xf32> -> vector<96x120xf32>
    %c0_5 = arith.constant 0 : index
    %c192 = arith.constant 192 : index
    %c0_6 = arith.constant 0 : index
    %5 = vector.load %arg1[%c0_5, %c192, %c0_6] : memref<1x384x28xf32, #tpu.memory_space<vmem>>, vector<1x96x28xf32>
    %6 = vector.shape_cast %5 : vector<1x96x28xf32> to vector<96x28xf32>
    %c1 = arith.constant 1 : index
    %c0_7 = arith.constant 0 : index
    %c0_8 = arith.constant 0 : index
    %7 = vector.load %arg2[%c1, %c0_7, %c0_8] : memref<10x28x120xf32, #tpu.memory_space<vmem>>, vector<1x28x120xf32>
    %8 = vector.shape_cast %7 : vector<1x28x120xf32> to vector<28x120xf32>
    %cst_9 = arith.constant dense<0.000000e+00> : vector<96x120xf32>
    %9 = tpu.matmul %6, %8, %cst_9 {dimension_numbers = #tpu.dot_dimension_numbers<[1], [0], [0], [1], [0, 0, 1, 1], [], []>} : vector<96x28xf32>, vector<28x120xf32>, vector<96x120xf32> -> vector<96x120xf32>
    %10 = arith.addf %4, %9 : vector<96x120xf32>
    %c0_10 = arith.constant 0 : index
    %c48 = arith.constant 48 : index
    %c0_11 = arith.constant 0 : index
    %11 = vector.load %arg1[%c0_10, %c48, %c0_11] : memref<1x384x28xf32, #tpu.memory_space<vmem>>, vector<1x96x28xf32>
    %12 = vector.shape_cast %11 : vector<1x96x28xf32> to vector<96x28xf32>
    %c2 = arith.constant 2 : index
    %c0_12 = arith.constant 0 : index
    %c0_13 = arith.constant 0 : index
    %13 = vector.load %arg2[%c2, %c0_12, %c0_13] : memref<10x28x120xf32, #tpu.memory_space<vmem>>, vector<1x28x120xf32>
    %14 = vector.shape_cast %13 : vector<1x28x120xf32> to vector<28x120xf32>
    %cst_14 = arith.constant dense<0.000000e+00> : vector<96x120xf32>
    %15 = tpu.matmul %12, %14, %cst_14 {dimension_numbers = #tpu.dot_dimension_numbers<[1], [0], [0], [1], [0, 0, 1, 1], [], []>} : vector<96x28xf32>, vector<28x120xf32>, vector<96x120xf32> -> vector<96x120xf32>
    %16 = arith.addf %10, %15 : vector<96x120xf32>
    %c0_15 = arith.constant 0 : index
    %c240 = arith.constant 240 : index
    %c0_16 = arith.constant 0 : index
    %17 = vector.load %arg1[%c0_15, %c240, %c0_16] : memref<1x384x28xf32, #tpu.memory_space<vmem>>, vector<1x96x28xf32>
    %18 = vector.shape_cast %17 : vector<1x96x28xf32> to vector<96x28xf32>
    %c3 = arith.constant 3 : index
    %c0_17 = arith.constant 0 : index
    %c0_18 = arith.constant 0 : index
    %19 = vector.load %arg2[%c3, %c0_17, %c0_18] : memref<10x28x120xf32, #tpu.memory_space<vmem>>, vector<1x28x120xf32>
    %20 = vector.shape_cast %19 : vector<1x28x120xf32> to vector<28x120xf32>
    %cst_19 = arith.constant dense<0.000000e+00> : vector<96x120xf32>
    %21 = tpu.matmul %18, %20, %cst_19 {dimension_numbers = #tpu.dot_dimension_numbers<[1], [0], [0], [1], [0, 0, 1, 1], [], []>} : vector<96x28xf32>, vector<28x120xf32>, vector<96x120xf32> -> vector<96x120xf32>
    %22 = arith.addf %16, %21 : vector<96x120xf32>
    %c0_20 = arith.constant 0 : index
    %c96 = arith.constant 96 : index
    %c0_21 = arith.constant 0 : index
    %23 = vector.load %arg1[%c0_20, %c96, %c0_21] : memref<1x384x28xf32, #tpu.memory_space<vmem>>, vector<1x96x28xf32>
    %24 = vector.shape_cast %23 : vector<1x96x28xf32> to vector<96x28xf32>
    %c4 = arith.constant 4 : index
    %c0_22 = arith.constant 0 : index
    %c0_23 = arith.constant 0 : index
    %25 = vector.load %arg2[%c4, %c0_22, %c0_23] : memref<10x28x120xf32, #tpu.memory_space<vmem>>, vector<1x28x120xf32>
    %26 = vector.shape_cast %25 : vector<1x28x120xf32> to vector<28x120xf32>
    %cst_24 = arith.constant dense<0.000000e+00> : vector<96x120xf32>
    %27 = tpu.matmul %24, %26, %cst_24 {dimension_numbers = #tpu.dot_dimension_numbers<[1], [0], [0], [1], [0, 0, 1, 1], [], []>} : vector<96x28xf32>, vector<28x120xf32>, vector<96x120xf32> -> vector<96x120xf32>
    %28 = arith.addf %22, %27 : vector<96x120xf32>
    %c0_25 = arith.constant 0 : index
    %c0_26 = arith.constant 0 : index
    %29 = vector.load %arg11[%c0_25, %c0_26] : memref<96x120xf32, #tpu.memory_space<vmem>>, vector<96x120xf32>
    tpu.vector_store %arg11[%c0_25, %c0_26], %28 {strides = array<i32>} : memref<96x120xf32, #tpu.memory_space<vmem>>, vector<96x120xf32>,
    %c0_27 = arith.constant 0 : index
    %c0_28 = arith.constant 0 : index
    %c0_29 = arith.constant 0 : index
    %30 = vector.load %arg1[%c0_27, %c0_28, %c0_29] : memref<1x384x28xf32, #tpu.memory_space<vmem>>, vector<1x96x28xf32>
    %31 = vector.shape_cast %30 : vector<1x96x28xf32> to vector<96x28xf32>
    %c5 = arith.constant 5 : index
    %c0_30 = arith.constant 0 : index
    %c0_31 = arith.constant 0 : index
    %32 = vector.load %arg2[%c5, %c0_30, %c0_31] : memref<10x28x120xf32, #tpu.memory_space<vmem>>, vector<1x28x120xf32>
    %33 = vector.shape_cast %32 : vector<1x28x120xf32> to vector<28x120xf32>
    %cst_32 = arith.constant dense<0.000000e+00> : vector<96x120xf32>
    %34 = tpu.matmul %31, %33, %cst_32 {dimension_numbers = #tpu.dot_dimension_numbers<[1], [0], [0], [1], [0, 0, 1, 1], [], []>} : vector<96x28xf32>, vector<28x120xf32>, vector<96x120xf32> -> vector<96x120xf32>
    %c0_33 = arith.constant 0 : index
    %c192_34 = arith.constant 192 : index
    %c0_35 = arith.constant 0 : index
    %35 = vector.load %arg1[%c0_33, %c192_34, %c0_35] : memref<1x384x28xf32, #tpu.memory_space<vmem>>, vector<1x96x28xf32>
    %36 = vector.shape_cast %35 : vector<1x96x28xf32> to vector<96x28xf32>
    %c6 = arith.constant 6 : index
    %c0_36 = arith.constant 0 : index
    %c0_37 = arith.constant 0 : index
    %37 = vector.load %arg2[%c6, %c0_36, %c0_37] : memref<10x28x120xf32, #tpu.memory_space<vmem>>, vector<1x28x120xf32>
    %38 = vector.shape_cast %37 : vector<1x28x120xf32> to vector<28x120xf32>
    %cst_38 = arith.constant dense<0.000000e+00> : vector<96x120xf32>
    %39 = tpu.matmul %36, %38, %cst_38 {dimension_numbers = #tpu.dot_dimension_numbers<[1], [0], [0], [1], [0, 0, 1, 1], [], []>} : vector<96x28xf32>, vector<28x120xf32>, vector<96x120xf32> -> vector<96x120xf32>
    %40 = arith.addf %34, %39 : vector<96x120xf32>
    %c0_39 = arith.constant 0 : index
    %c48_40 = arith.constant 48 : index
    %c0_41 = arith.constant 0 : index
    %41 = vector.load %arg1[%c0_39, %c48_40, %c0_41] : memref<1x384x28xf32, #tpu.memory_space<vmem>>, vector<1x96x28xf32>
    %42 = vector.shape_cast %41 : vector<1x96x28xf32> to vector<96x28xf32>
    %c7 = arith.constant 7 : index
    %c0_42 = arith.constant 0 : index
    %c0_43 = arith.constant 0 : index
    %43 = vector.load %arg2[%c7, %c0_42, %c0_43] : memref<10x28x120xf32, #tpu.memory_space<vmem>>, vector<1x28x120xf32>
    %44 = vector.shape_cast %43 : vector<1x28x120xf32> to vector<28x120xf32>
    %cst_44 = arith.constant dense<0.000000e+00> : vector<96x120xf32>
    %45 = tpu.matmul %42, %44, %cst_44 {dimension_numbers = #tpu.dot_dimension_numbers<[1], [0], [0], [1], [0, 0, 1, 1], [], []>} : vector<96x28xf32>, vector<28x120xf32>, vector<96x120xf32> -> vector<96x120xf32>
    %46 = arith.addf %40, %45 : vector<96x120xf32>
    %c0_45 = arith.constant 0 : index
    %c240_46 = arith.constant 240 : index
    %c0_47 = arith.constant 0 : index
    %47 = vector.load %arg1[%c0_45, %c240_46, %c0_47] : memref<1x384x28xf32, #tpu.memory_space<vmem>>, vector<1x96x28xf32>
    %48 = vector.shape_cast %47 : vector<1x96x28xf32> to vector<96x28xf32>
    %c8 = arith.constant 8 : index
    %c0_48 = arith.constant 0 : index
    %c0_49 = arith.constant 0 : index
    %49 = vector.load %arg2[%c8, %c0_48, %c0_49] : memref<10x28x120xf32, #tpu.memory_space<vmem>>, vector<1x28x120xf32>
    %50 = vector.shape_cast %49 : vector<1x28x120xf32> to vector<28x120xf32>
    %cst_50 = arith.constant dense<0.000000e+00> : vector<96x120xf32>
    %51 = tpu.matmul %48, %50, %cst_50 {dimension_numbers = #tpu.dot_dimension_numbers<[1], [0], [0], [1], [0, 0, 1, 1], [], []>} : vector<96x28xf32>, vector<28x120xf32>, vector<96x120xf32> -> vector<96x120xf32>
    %52 = arith.addf %46, %51 : vector<96x120xf32>
    %c0_51 = arith.constant 0 : index
    %c96_52 = arith.constant 96 : index
    %c0_53 = arith.constant 0 : index
    %53 = vector.load %arg1[%c0_51, %c96_52, %c0_53] : memref<1x384x28xf32, #tpu.memory_space<vmem>>, vector<1x96x28xf32>
    %54 = vector.shape_cast %53 : vector<1x96x28xf32> to vector<96x28xf32>
    %c9 = arith.constant 9 : index
    %c0_54 = arith.constant 0 : index
    %c0_55 = arith.constant 0 : index
    %55 = vector.load %arg2[%c9, %c0_54, %c0_55] : memref<10x28x120xf32, #tpu.memory_space<vmem>>, vector<1x28x120xf32>
    %56 = vector.shape_cast %55 : vector<1x28x120xf32> to vector<28x120xf32>
    %cst_56 = arith.constant dense<0.000000e+00> : vector<96x120xf32>
    %57 = tpu.matmul %54, %56, %cst_56 {dimension_numbers = #tpu.dot_dimension_numbers<[1], [0], [0], [1], [0, 0, 1, 1], [], []>} : vector<96x28xf32>, vector<28x120xf32>, vector<96x120xf32> -> vector<96x120xf32>
    %58 = arith.addf %52, %57 : vector<96x120xf32>
    %c0_57 = arith.constant 0 : index
    %c0_58 = arith.constant 0 : index
    %59 = vector.load %arg11[%c0_57, %c0_58] : memref<96x120xf32, #tpu.memory_space<vmem>>, vector<96x120xf32>
    %60 = arith.maximumf %59, %58 : vector<96x120xf32>
    %c0_59 = arith.constant 0 : index
    %c0_60 = arith.constant 0 : index
    %61 = vector.load %arg11[%c0_59, %c0_60] : memref<96x120xf32, #tpu.memory_space<vmem>>, vector<96x120xf32>
    tpu.vector_store %arg11[%c0_59, %c0_60], %60 {strides = array<i32>} : memref<96x120xf32, #tpu.memory_space<vmem>>, vector<96x120xf32>,
    %c0_61 = arith.constant 0 : index
    %c192_62 = arith.constant 192 : index
    %c0_63 = arith.constant 0 : index
    %62 = vector.load %arg1[%c0_61, %c192_62, %c0_63] : memref<1x384x28xf32, #tpu.memory_space<vmem>>, vector<1x96x28xf32>
    %63 = vector.shape_cast %62 : vector<1x96x28xf32> to vector<96x28xf32>
    %c0_64 = arith.constant 0 : index
    %c0_65 = arith.constant 0 : index
    %c0_66 = arith.constant 0 : index
    %64 = vector.load %arg2[%c0_64, %c0_65, %c0_66] : memref<10x28x120xf32, #tpu.memory_space<vmem>>, vector<1x28x120xf32>
    %65 = vector.shape_cast %64 : vector<1x28x120xf32> to vector<28x120xf32>
    %cst_67 = arith.constant dense<0.000000e+00> : vector<96x120xf32>
    %66 = tpu.matmul %63, %65, %cst_67 {dimension_numbers = #tpu.dot_dimension_numbers<[1], [0], [0], [1], [0, 0, 1, 1], [], []>} : vector<96x28xf32>, vector<28x120xf32>, vector<96x120xf32> -> vector<96x120xf32>
    %c0_68 = arith.constant 0 : index
    %c48_69 = arith.constant 48 : index
    %c0_70 = arith.constant 0 : index
    %67 = vector.load %arg1[%c0_68, %c48_69, %c0_70] : memref<1x384x28xf32, #tpu.memory_space<vmem>>, vector<1x96x28xf32>
    %68 = vector.shape_cast %67 : vector<1x96x28xf32> to vector<96x28xf32>
    %c1_71 = arith.constant 1 : index
    %c0_72 = arith.constant 0 : index
    %c0_73 = arith.constant 0 : index
    %69 = vector.load %arg2[%c1_71, %c0_72, %c0_73] : memref<10x28x120xf32, #tpu.memory_space<vmem>>, vector<1x28x120xf32>
    %70 = vector.shape_cast %69 : vector<1x28x120xf32> to vector<28x120xf32>
    %cst_74 = arith.constant dense<0.000000e+00> : vector<96x120xf32>
    %71 = tpu.matmul %68, %70, %cst_74 {dimension_numbers = #tpu.dot_dimension_numbers<[1], [0], [0], [1], [0, 0, 1, 1], [], []>} : vector<96x28xf32>, vector<28x120xf32>, vector<96x120xf32> -> vector<96x120xf32>
    %72 = arith.addf %66, %71 : vector<96x120xf32>
    %c0_75 = arith.constant 0 : index
    %c240_76 = arith.constant 240 : index
    %c0_77 = arith.constant 0 : index
    %73 = vector.load %arg1[%c0_75, %c240_76, %c0_77] : memref<1x384x28xf32, #tpu.memory_space<vmem>>, vector<1x96x28xf32>
    %74 = vector.shape_cast %73 : vector<1x96x28xf32> to vector<96x28xf32>
    %c2_78 = arith.constant 2 : index
    %c0_79 = arith.constant 0 : index
    %c0_80 = arith.constant 0 : index
    %75 = vector.load %arg2[%c2_78, %c0_79, %c0_80] : memref<10x28x120xf32, #tpu.memory_space<vmem>>, vector<1x28x120xf32>
    %76 = vector.shape_cast %75 : vector<1x28x120xf32> to vector<28x120xf32>
    %cst_81 = arith.constant dense<0.000000e+00> : vector<96x120xf32>
    %77 = tpu.matmul %74, %76, %cst_81 {dimension_numbers = #tpu.dot_dimension_numbers<[1], [0], [0], [1], [0, 0, 1, 1], [], []>} : vector<96x28xf32>, vector<28x120xf32>, vector<96x120xf32> -> vector<96x120xf32>
    %78 = arith.addf %72, %77 : vector<96x120xf32>
    %c0_82 = arith.constant 0 : index
    %c96_83 = arith.constant 96 : index
    %c0_84 = arith.constant 0 : index
    %79 = vector.load %arg1[%c0_82, %c96_83, %c0_84] : memref<1x384x28xf32, #tpu.memory_space<vmem>>, vector<1x96x28xf32>
    %80 = vector.shape_cast %79 : vector<1x96x28xf32> to vector<96x28xf32>
    %c3_85 = arith.constant 3 : index
    %c0_86 = arith.constant 0 : index
    %c0_87 = arith.constant 0 : index
    %81 = vector.load %arg2[%c3_85, %c0_86, %c0_87] : memref<10x28x120xf32, #tpu.memory_space<vmem>>, vector<1x28x120xf32>
    %82 = vector.shape_cast %81 : vector<1x28x120xf32> to vector<28x120xf32>
    %cst_88 = arith.constant dense<0.000000e+00> : vector<96x120xf32>
    %83 = tpu.matmul %80, %82, %cst_88 {dimension_numbers = #tpu.dot_dimension_numbers<[1], [0], [0], [1], [0, 0, 1, 1], [], []>} : vector<96x28xf32>, vector<28x120xf32>, vector<96x120xf32> -> vector<96x120xf32>
    %84 = arith.addf %78, %83 : vector<96x120xf32>
    %c0_89 = arith.constant 0 : index
    %c288 = arith.constant 288 : index
    %c0_90 = arith.constant 0 : index
    %85 = vector.load %arg1[%c0_89, %c288, %c0_90] : memref<1x384x28xf32, #tpu.memory_space<vmem>>, vector<1x96x28xf32>
    %86 = vector.shape_cast %85 : vector<1x96x28xf32> to vector<96x28xf32>
    %c4_91 = arith.constant 4 : index
    %c0_92 = arith.constant 0 : index
    %c0_93 = arith.constant 0 : index
    %87 = vector.load %arg2[%c4_91, %c0_92, %c0_93] : memref<10x28x120xf32, #tpu.memory_space<vmem>>, vector<1x28x120xf32>
    %88 = vector.shape_cast %87 : vector<1x28x120xf32> to vector<28x120xf32>
    %cst_94 = arith.constant dense<0.000000e+00> : vector<96x120xf32>
    %89 = tpu.matmul %86, %88, %cst_94 {dimension_numbers = #tpu.dot_dimension_numbers<[1], [0], [0], [1], [0, 0, 1, 1], [], []>} : vector<96x28xf32>, vector<28x120xf32>, vector<96x120xf32> -> vector<96x120xf32>
    %90 = arith.addf %84, %89 : vector<96x120xf32>
    %c0_95 = arith.constant 0 : index
    %c0_96 = arith.constant 0 : index
    %91 = vector.load %arg11[%c0_95, %c0_96] : memref<96x120xf32, #tpu.memory_space<vmem>>, vector<96x120xf32>
    %92 = arith.maximumf %91, %90 : vector<96x120xf32>
    %c0_97 = arith.constant 0 : index
    %c0_98 = arith.constant 0 : index
    %93 = vector.load %arg11[%c0_97, %c0_98] : memref<96x120xf32, #tpu.memory_space<vmem>>, vector<96x120xf32>
    tpu.vector_store %arg11[%c0_97, %c0_98], %92 {strides = array<i32>} : memref<96x120xf32, #tpu.memory_space<vmem>>, vector<96x120xf32>,
    %c0_99 = arith.constant 0 : index
    %c192_100 = arith.constant 192 : index
    %c0_101 = arith.constant 0 : index
    %94 = vector.load %arg1[%c0_99, %c192_100, %c0_101] : memref<1x384x28xf32, #tpu.memory_space<vmem>>, vector<1x96x28xf32>
    %95 = vector.shape_cast %94 : vector<1x96x28xf32> to vector<96x28xf32>
    %c5_102 = arith.constant 5 : index
    %c0_103 = arith.constant 0 : index
    %c0_104 = arith.constant 0 : index
    %96 = vector.load %arg2[%c5_102, %c0_103, %c0_104] : memref<10x28x120xf32, #tpu.memory_space<vmem>>, vector<1x28x120xf32>
    %97 = vector.shape_cast %96 : vector<1x28x120xf32> to vector<28x120xf32>
    %cst_105 = arith.constant dense<0.000000e+00> : vector<96x120xf32>
    %98 = tpu.matmul %95, %97, %cst_105 {dimension_numbers = #tpu.dot_dimension_numbers<[1], [0], [0], [1], [0, 0, 1, 1], [], []>} : vector<96x28xf32>, vector<28x120xf32>, vector<96x120xf32> -> vector<96x120xf32>
    %c0_106 = arith.constant 0 : index
    %c48_107 = arith.constant 48 : index
    %c0_108 = arith.constant 0 : index
    %99 = vector.load %arg1[%c0_106, %c48_107, %c0_108] : memref<1x384x28xf32, #tpu.memory_space<vmem>>, vector<1x96x28xf32>
    %100 = vector.shape_cast %99 : vector<1x96x28xf32> to vector<96x28xf32>
    %c6_109 = arith.constant 6 : index
    %c0_110 = arith.constant 0 : index
    %c0_111 = arith.constant 0 : index
    %101 = vector.load %arg2[%c6_109, %c0_110, %c0_111] : memref<10x28x120xf32, #tpu.memory_space<vmem>>, vector<1x28x120xf32>
    %102 = vector.shape_cast %101 : vector<1x28x120xf32> to vector<28x120xf32>
    %cst_112 = arith.constant dense<0.000000e+00> : vector<96x120xf32>
    %103 = tpu.matmul %100, %102, %cst_112 {dimension_numbers = #tpu.dot_dimension_numbers<[1], [0], [0], [1], [0, 0, 1, 1], [], []>} : vector<96x28xf32>, vector<28x120xf32>, vector<96x120xf32> -> vector<96x120xf32>
    %104 = arith.addf %98, %103 : vector<96x120xf32>
    %c0_113 = arith.constant 0 : index
    %c240_114 = arith.constant 240 : index
    %c0_115 = arith.constant 0 : index
    %105 = vector.load %arg1[%c0_113, %c240_114, %c0_115] : memref<1x384x28xf32, #tpu.memory_space<vmem>>, vector<1x96x28xf32>
    %106 = vector.shape_cast %105 : vector<1x96x28xf32> to vector<96x28xf32>
    %c7_116 = arith.constant 7 : index
    %c0_117 = arith.constant 0 : index
    %c0_118 = arith.constant 0 : index
    %107 = vector.load %arg2[%c7_116, %c0_117, %c0_118] : memref<10x28x120xf32, #tpu.memory_space<vmem>>, vector<1x28x120xf32>
    %108 = vector.shape_cast %107 : vector<1x28x120xf32> to vector<28x120xf32>
    %cst_119 = arith.constant dense<0.000000e+00> : vector<96x120xf32>
    %109 = tpu.matmul %106, %108, %cst_119 {dimension_numbers = #tpu.dot_dimension_numbers<[1], [0], [0], [1], [0, 0, 1, 1], [], []>} : vector<96x28xf32>, vector<28x120xf32>, vector<96x120xf32> -> vector<96x120xf32>
    %110 = arith.addf %104, %109 : vector<96x120xf32>
    %c0_120 = arith.constant 0 : index
    %c96_121 = arith.constant 96 : index
    %c0_122 = arith.constant 0 : index
    %111 = vector.load %arg1[%c0_120, %c96_121, %c0_122] : memref<1x384x28xf32, #tpu.memory_space<vmem>>, vector<1x96x28xf32>
    %112 = vector.shape_cast %111 : vector<1x96x28xf32> to vector<96x28xf32>
    %c8_123 = arith.constant 8 : index
    %c0_124 = arith.constant 0 : index
    %c0_125 = arith.constant 0 : index
    %113 = vector.load %arg2[%c8_123, %c0_124, %c0_125] : memref<10x28x120xf32, #tpu.memory_space<vmem>>, vector<1x28x120xf32>
    %114 = vector.shape_cast %113 : vector<1x28x120xf32> to vector<28x120xf32>
    %cst_126 = arith.constant dense<0.000000e+00> : vector<96x120xf32>
    %115 = tpu.matmul %112, %114, %cst_126 {dimension_numbers = #tpu.dot_dimension_numbers<[1], [0], [0], [1], [0, 0, 1, 1], [], []>} : vector<96x28xf32>, vector<28x120xf32>, vector<96x120xf32> -> vector<96x120xf32>
    %116 = arith.addf %110, %115 : vector<96x120xf32>
    %c0_127 = arith.constant 0 : index
    %c288_128 = arith.constant 288 : index
    %c0_129 = arith.constant 0 : index
    %117 = vector.load %arg1[%c0_127, %c288_128, %c0_129] : memref<1x384x28xf32, #tpu.memory_space<vmem>>, vector<1x96x28xf32>
    %118 = vector.shape_cast %117 : vector<1x96x28xf32> to vector<96x28xf32>
    %c9_130 = arith.constant 9 : index
    %c0_131 = arith.constant 0 : index
    %c0_132 = arith.constant 0 : index
    %119 = vector.load %arg2[%c9_130, %c0_131, %c0_132] : memref<10x28x120xf32, #tpu.memory_space<vmem>>, vector<1x28x120xf32>
    %120 = vector.shape_cast %119 : vector<1x28x120xf32> to vector<28x120xf32>
    %cst_133 = arith.constant dense<0.000000e+00> : vector<96x120xf32>
    %121 = tpu.matmul %118, %120, %cst_133 {dimension_numbers = #tpu.dot_dimension_numbers<[1], [0], [0], [1], [0, 0, 1, 1], [], []>} : vector<96x28xf32>, vector<28x120xf32>, vector<96x120xf32> -> vector<96x120xf32>
    %122 = arith.addf %116, %121 : vector<96x120xf32>
    %c0_134 = arith.constant 0 : index
    %c0_135 = arith.constant 0 : index
    %123 = vector.load %arg11[%c0_134, %c0_135] : memref<96x120xf32, #tpu.memory_space<vmem>>, vector<96x120xf32>
    %124 = arith.maximumf %123, %122 : vector<96x120xf32>
    %c0_136 = arith.constant 0 : index
    %c0_137 = arith.constant 0 : index
    %125 = vector.load %arg11[%c0_136, %c0_137] : memref<96x120xf32, #tpu.memory_space<vmem>>, vector<96x120xf32>
    tpu.vector_store %arg11[%c0_136, %c0_137], %124 {strides = array<i32>} : memref<96x120xf32, #tpu.memory_space<vmem>>, vector<96x120xf32>,
    %c0_138 = arith.constant 0 : index
    %c0_139 = arith.constant 0 : index
    %126 = vector.load %arg11[%c0_138, %c0_139] : memref<96x120xf32, #tpu.memory_space<vmem>>, vector<96x120xf32>
    %c0_140 = arith.constant 0 : index
    %c0_141 = arith.constant 0 : index
    %127 = vector.load %arg3[%c0_140, %c0_141] : memref<1x120xf32, #tpu.memory_space<vmem>>, vector<1x120xf32>
    %128 = vector.broadcast %127 : vector<1x120xf32> to vector<96x120xf32>
    %129 = arith.addf %126, %128 : vector<96x120xf32>
    %cst_142 = arith.constant 0.000000e+00 : f32
    %130 = vector.broadcast %cst_142 : f32 to vector<96x120xf32>
    %131 = arith.maximumf %129, %130 : vector<96x120xf32>
    %c0_143 = arith.constant 0 : index
    %c0_144 = arith.constant 0 : index
    %132 = vector.load %arg11[%c0_143, %c0_144] : memref<96x120xf32, #tpu.memory_space<vmem>>, vector<96x120xf32>
    tpu.vector_store %arg11[%c0_143, %c0_144], %131 {strides = array<i32>} : memref<96x120xf32, #tpu.memory_space<vmem>>, vector<96x120xf32>,
    %c0_145 = arith.constant 0 : index
    %c0_146 = arith.constant 0 : index
    %133 = vector.load %arg11[%c0_145, %c0_146] : memref<96x120xf32, #tpu.memory_space<vmem>>, vector<32x120xf32>
    %c0_147 = arith.constant 0 : index
    %c0_148 = arith.constant 0 : index
    %c0_149 = arith.constant 0 : index
    %134 = vector.load %arg4[%c0_147, %c0_148, %c0_149] : memref<10x120x80xf32, #tpu.memory_space<vmem>>, vector<1x120x80xf32>
    %135 = vector.shape_cast %134 : vector<1x120x80xf32> to vector<120x80xf32>
    %cst_150 = arith.constant dense<0.000000e+00> : vector<32x80xf32>
    %136 = tpu.matmul %133, %135, %cst_150 {dimension_numbers = #tpu.dot_dimension_numbers<[1], [0], [0], [1], [0, 0, 1, 1], [], []>} : vector<32x120xf32>, vector<120x80xf32>, vector<32x80xf32> -> vector<32x80xf32>
    %c48_151 = arith.constant 48 : index
    %c0_152 = arith.constant 0 : index
    %137 = vector.load %arg11[%c48_151, %c0_152] : memref<96x120xf32, #tpu.memory_space<vmem>>, vector<32x120xf32>
    %c2_153 = arith.constant 2 : index
    %c0_154 = arith.constant 0 : index
    %c0_155 = arith.constant 0 : index
    %138 = vector.load %arg4[%c2_153, %c0_154, %c0_155] : memref<10x120x80xf32, #tpu.memory_space<vmem>>, vector<1x120x80xf32>
    %139 = vector.shape_cast %138 : vector<1x120x80xf32> to vector<120x80xf32>
    %cst_156 = arith.constant dense<0.000000e+00> : vector<32x80xf32>
    %140 = tpu.matmul %137, %139, %cst_156 {dimension_numbers = #tpu.dot_dimension_numbers<[1], [0], [0], [1], [0, 0, 1, 1], [], []>} : vector<32x120xf32>, vector<120x80xf32>, vector<32x80xf32> -> vector<32x80xf32>
    %141 = arith.addf %136, %140 : vector<32x80xf32>
    %c8_157 = arith.constant 8 : index
    %c0_158 = arith.constant 0 : index
    %142 = vector.load %arg11[%c8_157, %c0_158] : memref<96x120xf32, #tpu.memory_space<vmem>>, vector<32x120xf32>
    %c4_159 = arith.constant 4 : index
    %c0_160 = arith.constant 0 : index
    %c0_161 = arith.constant 0 : index
    %143 = vector.load %arg4[%c4_159, %c0_160, %c0_161] : memref<10x120x80xf32, #tpu.memory_space<vmem>>, vector<1x120x80xf32>
    %144 = vector.shape_cast %143 : vector<1x120x80xf32> to vector<120x80xf32>
    %cst_162 = arith.constant dense<0.000000e+00> : vector<32x80xf32>
    %145 = tpu.matmul %142, %144, %cst_162 {dimension_numbers = #tpu.dot_dimension_numbers<[1], [0], [0], [1], [0, 0, 1, 1], [], []>} : vector<32x120xf32>, vector<120x80xf32>, vector<32x80xf32> -> vector<32x80xf32>
    %146 = arith.addf %141, %145 : vector<32x80xf32>
    %c56 = arith.constant 56 : index
    %c0_163 = arith.constant 0 : index
    %147 = vector.load %arg11[%c56, %c0_163] : memref<96x120xf32, #tpu.memory_space<vmem>>, vector<32x120xf32>
    %c6_164 = arith.constant 6 : index
    %c0_165 = arith.constant 0 : index
    %c0_166 = arith.constant 0 : index
    %148 = vector.load %arg4[%c6_164, %c0_165, %c0_166] : memref<10x120x80xf32, #tpu.memory_space<vmem>>, vector<1x120x80xf32>
    %149 = vector.shape_cast %148 : vector<1x120x80xf32> to vector<120x80xf32>
    %cst_167 = arith.constant dense<0.000000e+00> : vector<32x80xf32>
    %150 = tpu.matmul %147, %149, %cst_167 {dimension_numbers = #tpu.dot_dimension_numbers<[1], [0], [0], [1], [0, 0, 1, 1], [], []>} : vector<32x120xf32>, vector<120x80xf32>, vector<32x80xf32> -> vector<32x80xf32>
    %151 = arith.addf %146, %150 : vector<32x80xf32>
    %c16 = arith.constant 16 : index
    %c0_168 = arith.constant 0 : index
    %152 = vector.load %arg11[%c16, %c0_168] : memref<96x120xf32, #tpu.memory_space<vmem>>, vector<32x120xf32>
    %c8_169 = arith.constant 8 : index
    %c0_170 = arith.constant 0 : index
    %c0_171 = arith.constant 0 : index
    %153 = vector.load %arg4[%c8_169, %c0_170, %c0_171] : memref<10x120x80xf32, #tpu.memory_space<vmem>>, vector<1x120x80xf32>
    %154 = vector.shape_cast %153 : vector<1x120x80xf32> to vector<120x80xf32>
    %cst_172 = arith.constant dense<0.000000e+00> : vector<32x80xf32>
    %155 = tpu.matmul %152, %154, %cst_172 {dimension_numbers = #tpu.dot_dimension_numbers<[1], [0], [0], [1], [0, 0, 1, 1], [], []>} : vector<32x120xf32>, vector<120x80xf32>, vector<32x80xf32> -> vector<32x80xf32>
    %156 = arith.addf %151, %155 : vector<32x80xf32>
    %c0_173 = arith.constant 0 : index
    %c0_174 = arith.constant 0 : index
    %157 = vector.load %arg12[%c0_173, %c0_174] : memref<32x80xf32, #tpu.memory_space<vmem>>, vector<32x80xf32>
    tpu.vector_store %arg12[%c0_173, %c0_174], %156 {strides = array<i32>} : memref<32x80xf32, #tpu.memory_space<vmem>>, vector<32x80xf32>,
    %c0_175 = arith.constant 0 : index
    %c0_176 = arith.constant 0 : index
    %158 = vector.load %arg11[%c0_175, %c0_176] : memref<96x120xf32, #tpu.memory_space<vmem>>, vector<32x120xf32>
    %c1_177 = arith.constant 1 : index
    %c0_178 = arith.constant 0 : index
    %c0_179 = arith.constant 0 : index
    %159 = vector.load %arg4[%c1_177, %c0_178, %c0_179] : memref<10x120x80xf32, #tpu.memory_space<vmem>>, vector<1x120x80xf32>
    %160 = vector.shape_cast %159 : vector<1x120x80xf32> to vector<120x80xf32>
    %cst_180 = arith.constant dense<0.000000e+00> : vector<32x80xf32>
    %161 = tpu.matmul %158, %160, %cst_180 {dimension_numbers = #tpu.dot_dimension_numbers<[1], [0], [0], [1], [0, 0, 1, 1], [], []>} : vector<32x120xf32>, vector<120x80xf32>, vector<32x80xf32> -> vector<32x80xf32>
    %c48_181 = arith.constant 48 : index
    %c0_182 = arith.constant 0 : index
    %162 = vector.load %arg11[%c48_181, %c0_182] : memref<96x120xf32, #tpu.memory_space<vmem>>, vector<32x120xf32>
    %c3_183 = arith.constant 3 : index
    %c0_184 = arith.constant 0 : index
    %c0_185 = arith.constant 0 : index
    %163 = vector.load %arg4[%c3_183, %c0_184, %c0_185] : memref<10x120x80xf32, #tpu.memory_space<vmem>>, vector<1x120x80xf32>
    %164 = vector.shape_cast %163 : vector<1x120x80xf32> to vector<120x80xf32>
    %cst_186 = arith.constant dense<0.000000e+00> : vector<32x80xf32>
    %165 = tpu.matmul %162, %164, %cst_186 {dimension_numbers = #tpu.dot_dimension_numbers<[1], [0], [0], [1], [0, 0, 1, 1], [], []>} : vector<32x120xf32>, vector<120x80xf32>, vector<32x80xf32> -> vector<32x80xf32>
    %166 = arith.addf %161, %165 : vector<32x80xf32>
    %c8_187 = arith.constant 8 : index
    %c0_188 = arith.constant 0 : index
    %167 = vector.load %arg11[%c8_187, %c0_188] : memref<96x120xf32, #tpu.memory_space<vmem>>, vector<32x120xf32>
    %c5_189 = arith.constant 5 : index
    %c0_190 = arith.constant 0 : index
    %c0_191 = arith.constant 0 : index
    %168 = vector.load %arg4[%c5_189, %c0_190, %c0_191] : memref<10x120x80xf32, #tpu.memory_space<vmem>>, vector<1x120x80xf32>
    %169 = vector.shape_cast %168 : vector<1x120x80xf32> to vector<120x80xf32>
    %cst_192 = arith.constant dense<0.000000e+00> : vector<32x80xf32>
    %170 = tpu.matmul %167, %169, %cst_192 {dimension_numbers = #tpu.dot_dimension_numbers<[1], [0], [0], [1], [0, 0, 1, 1], [], []>} : vector<32x120xf32>, vector<120x80xf32>, vector<32x80xf32> -> vector<32x80xf32>
    %171 = arith.addf %166, %170 : vector<32x80xf32>
    %c56_193 = arith.constant 56 : index
    %c0_194 = arith.constant 0 : index
    %172 = vector.load %arg11[%c56_193, %c0_194] : memref<96x120xf32, #tpu.memory_space<vmem>>, vector<32x120xf32>
    %c7_195 = arith.constant 7 : index
    %c0_196 = arith.constant 0 : index
    %c0_197 = arith.constant 0 : index
    %173 = vector.load %arg4[%c7_195, %c0_196, %c0_197] : memref<10x120x80xf32, #tpu.memory_space<vmem>>, vector<1x120x80xf32>
    %174 = vector.shape_cast %173 : vector<1x120x80xf32> to vector<120x80xf32>
    %cst_198 = arith.constant dense<0.000000e+00> : vector<32x80xf32>
    %175 = tpu.matmul %172, %174, %cst_198 {dimension_numbers = #tpu.dot_dimension_numbers<[1], [0], [0], [1], [0, 0, 1, 1], [], []>} : vector<32x120xf32>, vector<120x80xf32>, vector<32x80xf32> -> vector<32x80xf32>
    %176 = arith.addf %171, %175 : vector<32x80xf32>
    %c16_199 = arith.constant 16 : index
    %c0_200 = arith.constant 0 : index
    %177 = vector.load %arg11[%c16_199, %c0_200] : memref<96x120xf32, #tpu.memory_space<vmem>>, vector<32x120xf32>
    %c9_201 = arith.constant 9 : index
    %c0_202 = arith.constant 0 : index
    %c0_203 = arith.constant 0 : index
    %178 = vector.load %arg4[%c9_201, %c0_202, %c0_203] : memref<10x120x80xf32, #tpu.memory_space<vmem>>, vector<1x120x80xf32>
    %179 = vector.shape_cast %178 : vector<1x120x80xf32> to vector<120x80xf32>
    %cst_204 = arith.constant dense<0.000000e+00> : vector<32x80xf32>
    %180 = tpu.matmul %177, %179, %cst_204 {dimension_numbers = #tpu.dot_dimension_numbers<[1], [0], [0], [1], [0, 0, 1, 1], [], []>} : vector<32x120xf32>, vector<120x80xf32>, vector<32x80xf32> -> vector<32x80xf32>
    %181 = arith.addf %176, %180 : vector<32x80xf32>
    %c0_205 = arith.constant 0 : index
    %c0_206 = arith.constant 0 : index
    %182 = vector.load %arg12[%c0_205, %c0_206] : memref<32x80xf32, #tpu.memory_space<vmem>>, vector<32x80xf32>
    %183 = arith.maximumf %182, %181 : vector<32x80xf32>
    %c0_207 = arith.constant 0 : index
    %c0_208 = arith.constant 0 : index
    %184 = vector.load %arg12[%c0_207, %c0_208] : memref<32x80xf32, #tpu.memory_space<vmem>>, vector<32x80xf32>
    tpu.vector_store %arg12[%c0_207, %c0_208], %183 {strides = array<i32>} : memref<32x80xf32, #tpu.memory_space<vmem>>, vector<32x80xf32>,
    %c48_209 = arith.constant 48 : index
    %c0_210 = arith.constant 0 : index
    %185 = vector.load %arg11[%c48_209, %c0_210] : memref<96x120xf32, #tpu.memory_space<vmem>>, vector<32x120xf32>
    %c0_211 = arith.constant 0 : index
    %c0_212 = arith.constant 0 : index
    %c0_213 = arith.constant 0 : index
    %186 = vector.load %arg4[%c0_211, %c0_212, %c0_213] : memref<10x120x80xf32, #tpu.memory_space<vmem>>, vector<1x120x80xf32>
    %187 = vector.shape_cast %186 : vector<1x120x80xf32> to vector<120x80xf32>
    %cst_214 = arith.constant dense<0.000000e+00> : vector<32x80xf32>
    %188 = tpu.matmul %185, %187, %cst_214 {dimension_numbers = #tpu.dot_dimension_numbers<[1], [0], [0], [1], [0, 0, 1, 1], [], []>} : vector<32x120xf32>, vector<120x80xf32>, vector<32x80xf32> -> vector<32x80xf32>
    %c8_215 = arith.constant 8 : index
    %c0_216 = arith.constant 0 : index
    %189 = vector.load %arg11[%c8_215, %c0_216] : memref<96x120xf32, #tpu.memory_space<vmem>>, vector<32x120xf32>
    %c2_217 = arith.constant 2 : index
    %c0_218 = arith.constant 0 : index
    %c0_219 = arith.constant 0 : index
    %190 = vector.load %arg4[%c2_217, %c0_218, %c0_219] : memref<10x120x80xf32, #tpu.memory_space<vmem>>, vector<1x120x80xf32>
    %191 = vector.shape_cast %190 : vector<1x120x80xf32> to vector<120x80xf32>
    %cst_220 = arith.constant dense<0.000000e+00> : vector<32x80xf32>
    %192 = tpu.matmul %189, %191, %cst_220 {dimension_numbers = #tpu.dot_dimension_numbers<[1], [0], [0], [1], [0, 0, 1, 1], [], []>} : vector<32x120xf32>, vector<120x80xf32>, vector<32x80xf32> -> vector<32x80xf32>
    %193 = arith.addf %188, %192 : vector<32x80xf32>
    %c56_221 = arith.constant 56 : index
    %c0_222 = arith.constant 0 : index
    %194 = vector.load %arg11[%c56_221, %c0_222] : memref<96x120xf32, #tpu.memory_space<vmem>>, vector<32x120xf32>
    %c4_223 = arith.constant 4 : index
    %c0_224 = arith.constant 0 : index
    %c0_225 = arith.constant 0 : index
    %195 = vector.load %arg4[%c4_223, %c0_224, %c0_225] : memref<10x120x80xf32, #tpu.memory_space<vmem>>, vector<1x120x80xf32>
    %196 = vector.shape_cast %195 : vector<1x120x80xf32> to vector<120x80xf32>
    %cst_226 = arith.constant dense<0.000000e+00> : vector<32x80xf32>
    %197 = tpu.matmul %194, %196, %cst_226 {dimension_numbers = #tpu.dot_dimension_numbers<[1], [0], [0], [1], [0, 0, 1, 1], [], []>} : vector<32x120xf32>, vector<120x80xf32>, vector<32x80xf32> -> vector<32x80xf32>
    %198 = arith.addf %193, %197 : vector<32x80xf32>
    %c16_227 = arith.constant 16 : index
    %c0_228 = arith.constant 0 : index
    %199 = vector.load %arg11[%c16_227, %c0_228] : memref<96x120xf32, #tpu.memory_space<vmem>>, vector<32x120xf32>
    %c6_229 = arith.constant 6 : index
    %c0_230 = arith.constant 0 : index
    %c0_231 = arith.constant 0 : index
    %200 = vector.load %arg4[%c6_229, %c0_230, %c0_231] : memref<10x120x80xf32, #tpu.memory_space<vmem>>, vector<1x120x80xf32>
    %201 = vector.shape_cast %200 : vector<1x120x80xf32> to vector<120x80xf32>
    %cst_232 = arith.constant dense<0.000000e+00> : vector<32x80xf32>
    %202 = tpu.matmul %199, %201, %cst_232 {dimension_numbers = #tpu.dot_dimension_numbers<[1], [0], [0], [1], [0, 0, 1, 1], [], []>} : vector<32x120xf32>, vector<120x80xf32>, vector<32x80xf32> -> vector<32x80xf32>
    %203 = arith.addf %198, %202 : vector<32x80xf32>
    %c64 = arith.constant 64 : index
    %c0_233 = arith.constant 0 : index
    %204 = vector.load %arg11[%c64, %c0_233] : memref<96x120xf32, #tpu.memory_space<vmem>>, vector<32x120xf32>
    %c8_234 = arith.constant 8 : index
    %c0_235 = arith.constant 0 : index
    %c0_236 = arith.constant 0 : index
    %205 = vector.load %arg4[%c8_234, %c0_235, %c0_236] : memref<10x120x80xf32, #tpu.memory_space<vmem>>, vector<1x120x80xf32>
    %206 = vector.shape_cast %205 : vector<1x120x80xf32> to vector<120x80xf32>
    %cst_237 = arith.constant dense<0.000000e+00> : vector<32x80xf32>
    %207 = tpu.matmul %204, %206, %cst_237 {dimension_numbers = #tpu.dot_dimension_numbers<[1], [0], [0], [1], [0, 0, 1, 1], [], []>} : vector<32x120xf32>, vector<120x80xf32>, vector<32x80xf32> -> vector<32x80xf32>
    %208 = arith.addf %203, %207 : vector<32x80xf32>
    %c0_238 = arith.constant 0 : index
    %c0_239 = arith.constant 0 : index
    %209 = vector.load %arg12[%c0_238, %c0_239] : memref<32x80xf32, #tpu.memory_space<vmem>>, vector<32x80xf32>
    %210 = arith.maximumf %209, %208 : vector<32x80xf32>
    %c0_240 = arith.constant 0 : index
    %c0_241 = arith.constant 0 : index
    %211 = vector.load %arg12[%c0_240, %c0_241] : memref<32x80xf32, #tpu.memory_space<vmem>>, vector<32x80xf32>
    tpu.vector_store %arg12[%c0_240, %c0_241], %210 {strides = array<i32>} : memref<32x80xf32, #tpu.memory_space<vmem>>, vector<32x80xf32>,
    %c48_242 = arith.constant 48 : index
    %c0_243 = arith.constant 0 : index
    %212 = vector.load %arg11[%c48_242, %c0_243] : memref<96x120xf32, #tpu.memory_space<vmem>>, vector<32x120xf32>
    %c1_244 = arith.constant 1 : index
    %c0_245 = arith.constant 0 : index
    %c0_246 = arith.constant 0 : index
    %213 = vector.load %arg4[%c1_244, %c0_245, %c0_246] : memref<10x120x80xf32, #tpu.memory_space<vmem>>, vector<1x120x80xf32>
    %214 = vector.shape_cast %213 : vector<1x120x80xf32> to vector<120x80xf32>
    %cst_247 = arith.constant dense<0.000000e+00> : vector<32x80xf32>
    %215 = tpu.matmul %212, %214, %cst_247 {dimension_numbers = #tpu.dot_dimension_numbers<[1], [0], [0], [1], [0, 0, 1, 1], [], []>} : vector<32x120xf32>, vector<120x80xf32>, vector<32x80xf32> -> vector<32x80xf32>
    %c8_248 = arith.constant 8 : index
    %c0_249 = arith.constant 0 : index
    %216 = vector.load %arg11[%c8_248, %c0_249] : memref<96x120xf32, #tpu.memory_space<vmem>>, vector<32x120xf32>
    %c3_250 = arith.constant 3 : index
    %c0_251 = arith.constant 0 : index
    %c0_252 = arith.constant 0 : index
    %217 = vector.load %arg4[%c3_250, %c0_251, %c0_252] : memref<10x120x80xf32, #tpu.memory_space<vmem>>, vector<1x120x80xf32>
    %218 = vector.shape_cast %217 : vector<1x120x80xf32> to vector<120x80xf32>
    %cst_253 = arith.constant dense<0.000000e+00> : vector<32x80xf32>
    %219 = tpu.matmul %216, %218, %cst_253 {dimension_numbers = #tpu.dot_dimension_numbers<[1], [0], [0], [1], [0, 0, 1, 1], [], []>} : vector<32x120xf32>, vector<120x80xf32>, vector<32x80xf32> -> vector<32x80xf32>
    %220 = arith.addf %215, %219 : vector<32x80xf32>
    %c56_254 = arith.constant 56 : index
    %c0_255 = arith.constant 0 : index
    %221 = vector.load %arg11[%c56_254, %c0_255] : memref<96x120xf32, #tpu.memory_space<vmem>>, vector<32x120xf32>
    %c5_256 = arith.constant 5 : index
    %c0_257 = arith.constant 0 : index
    %c0_258 = arith.constant 0 : index
    %222 = vector.load %arg4[%c5_256, %c0_257, %c0_258] : memref<10x120x80xf32, #tpu.memory_space<vmem>>, vector<1x120x80xf32>
    %223 = vector.shape_cast %222 : vector<1x120x80xf32> to vector<120x80xf32>
    %cst_259 = arith.constant dense<0.000000e+00> : vector<32x80xf32>
    %224 = tpu.matmul %221, %223, %cst_259 {dimension_numbers = #tpu.dot_dimension_numbers<[1], [0], [0], [1], [0, 0, 1, 1], [], []>} : vector<32x120xf32>, vector<120x80xf32>, vector<32x80xf32> -> vector<32x80xf32>
    %225 = arith.addf %220, %224 : vector<32x80xf32>
    %c16_260 = arith.constant 16 : index
    %c0_261 = arith.constant 0 : index
    %226 = vector.load %arg11[%c16_260, %c0_261] : memref<96x120xf32, #tpu.memory_space<vmem>>, vector<32x120xf32>
    %c7_262 = arith.constant 7 : index
    %c0_263 = arith.constant 0 : index
    %c0_264 = arith.constant 0 : index
    %227 = vector.load %arg4[%c7_262, %c0_263, %c0_264] : memref<10x120x80xf32, #tpu.memory_space<vmem>>, vector<1x120x80xf32>
    %228 = vector.shape_cast %227 : vector<1x120x80xf32> to vector<120x80xf32>
    %cst_265 = arith.constant dense<0.000000e+00> : vector<32x80xf32>
    %229 = tpu.matmul %226, %228, %cst_265 {dimension_numbers = #tpu.dot_dimension_numbers<[1], [0], [0], [1], [0, 0, 1, 1], [], []>} : vector<32x120xf32>, vector<120x80xf32>, vector<32x80xf32> -> vector<32x80xf32>
    %230 = arith.addf %225, %229 : vector<32x80xf32>
    %c64_266 = arith.constant 64 : index
    %c0_267 = arith.constant 0 : index
    %231 = vector.load %arg11[%c64_266, %c0_267] : memref<96x120xf32, #tpu.memory_space<vmem>>, vector<32x120xf32>
    %c9_268 = arith.constant 9 : index
    %c0_269 = arith.constant 0 : index
    %c0_270 = arith.constant 0 : index
    %232 = vector.load %arg4[%c9_268, %c0_269, %c0_270] : memref<10x120x80xf32, #tpu.memory_space<vmem>>, vector<1x120x80xf32>
    %233 = vector.shape_cast %232 : vector<1x120x80xf32> to vector<120x80xf32>
    %cst_271 = arith.constant dense<0.000000e+00> : vector<32x80xf32>
    %234 = tpu.matmul %231, %233, %cst_271 {dimension_numbers = #tpu.dot_dimension_numbers<[1], [0], [0], [1], [0, 0, 1, 1], [], []>} : vector<32x120xf32>, vector<120x80xf32>, vector<32x80xf32> -> vector<32x80xf32>
    %235 = arith.addf %230, %234 : vector<32x80xf32>
    %c0_272 = arith.constant 0 : index
    %c0_273 = arith.constant 0 : index
    %236 = vector.load %arg12[%c0_272, %c0_273] : memref<32x80xf32, #tpu.memory_space<vmem>>, vector<32x80xf32>
    %237 = arith.maximumf %236, %235 : vector<32x80xf32>
    %c0_274 = arith.constant 0 : index
    %c0_275 = arith.constant 0 : index
    %238 = vector.load %arg12[%c0_274, %c0_275] : memref<32x80xf32, #tpu.memory_space<vmem>>, vector<32x80xf32>
    tpu.vector_store %arg12[%c0_274, %c0_275], %237 {strides = array<i32>} : memref<32x80xf32, #tpu.memory_space<vmem>>, vector<32x80xf32>,
    %c0_276 = arith.constant 0 : index
    %c0_277 = arith.constant 0 : index
    %239 = vector.load %arg12[%c0_276, %c0_277] : memref<32x80xf32, #tpu.memory_space<vmem>>, vector<32x80xf32>
    %c0_278 = arith.constant 0 : index
    %c0_279 = arith.constant 0 : index
    %240 = vector.load %arg5[%c0_278, %c0_279] : memref<1x80xf32, #tpu.memory_space<vmem>>, vector<1x80xf32>
    %241 = vector.broadcast %240 : vector<1x80xf32> to vector<32x80xf32>
    %242 = arith.addf %239, %241 : vector<32x80xf32>
    %cst_280 = arith.constant 0.000000e+00 : f32
    %243 = vector.broadcast %cst_280 : f32 to vector<32x80xf32>
    %244 = arith.maximumf %242, %243 : vector<32x80xf32>
    %c0_281 = arith.constant 0 : index
    %c0_282 = arith.constant 0 : index
    %245 = vector.load %arg12[%c0_281, %c0_282] : memref<32x80xf32, #tpu.memory_space<vmem>>, vector<32x80xf32>
    tpu.vector_store %arg12[%c0_281, %c0_282], %244 {strides = array<i32>} : memref<32x80xf32, #tpu.memory_space<vmem>>, vector<32x80xf32>,
    %c0_283 = arith.constant 0 : index
    %c0_284 = arith.constant 0 : index
    %246 = vector.load %arg12[%c0_283, %c0_284] : memref<32x80xf32, #tpu.memory_space<vmem>>, vector<8x80xf32>
    %c0_285 = arith.constant 0 : index
    %c0_286 = arith.constant 0 : index
    %c0_287 = arith.constant 0 : index
    %247 = vector.load %arg6[%c0_285, %c0_286, %c0_287] : memref<4x80x50xf32, #tpu.memory_space<vmem>>, vector<1x80x50xf32>
    %248 = vector.shape_cast %247 : vector<1x80x50xf32> to vector<80x50xf32>
    %cst_288 = arith.constant dense<0.000000e+00> : vector<8x50xf32>
    %249 = tpu.matmul %246, %248, %cst_288 {dimension_numbers = #tpu.dot_dimension_numbers<[1], [0], [0], [1], [0, 0, 1, 1], [], []>} : vector<8x80xf32>, vector<80x50xf32>, vector<8x50xf32> -> vector<8x50xf32>
    %c8_289 = arith.constant 8 : index
    %c0_290 = arith.constant 0 : index
    %250 = vector.load %arg12[%c8_289, %c0_290] : memref<32x80xf32, #tpu.memory_space<vmem>>, vector<8x80xf32>
    %c1_291 = arith.constant 1 : index
    %c0_292 = arith.constant 0 : index
    %c0_293 = arith.constant 0 : index
    %251 = vector.load %arg6[%c1_291, %c0_292, %c0_293] : memref<4x80x50xf32, #tpu.memory_space<vmem>>, vector<1x80x50xf32>
    %252 = vector.shape_cast %251 : vector<1x80x50xf32> to vector<80x50xf32>
    %cst_294 = arith.constant dense<0.000000e+00> : vector<8x50xf32>
    %253 = tpu.matmul %250, %252, %cst_294 {dimension_numbers = #tpu.dot_dimension_numbers<[1], [0], [0], [1], [0, 0, 1, 1], [], []>} : vector<8x80xf32>, vector<80x50xf32>, vector<8x50xf32> -> vector<8x50xf32>
    %254 = arith.addf %249, %253 : vector<8x50xf32>
    %c16_295 = arith.constant 16 : index
    %c0_296 = arith.constant 0 : index
    %255 = vector.load %arg12[%c16_295, %c0_296] : memref<32x80xf32, #tpu.memory_space<vmem>>, vector<8x80xf32>
    %c2_297 = arith.constant 2 : index
    %c0_298 = arith.constant 0 : index
    %c0_299 = arith.constant 0 : index
    %256 = vector.load %arg6[%c2_297, %c0_298, %c0_299] : memref<4x80x50xf32, #tpu.memory_space<vmem>>, vector<1x80x50xf32>
    %257 = vector.shape_cast %256 : vector<1x80x50xf32> to vector<80x50xf32>
    %cst_300 = arith.constant dense<0.000000e+00> : vector<8x50xf32>
    %258 = tpu.matmul %255, %257, %cst_300 {dimension_numbers = #tpu.dot_dimension_numbers<[1], [0], [0], [1], [0, 0, 1, 1], [], []>} : vector<8x80xf32>, vector<80x50xf32>, vector<8x50xf32> -> vector<8x50xf32>
    %259 = arith.addf %254, %258 : vector<8x50xf32>
    %c24 = arith.constant 24 : index
    %c0_301 = arith.constant 0 : index
    %260 = vector.load %arg12[%c24, %c0_301] : memref<32x80xf32, #tpu.memory_space<vmem>>, vector<8x80xf32>
    %c3_302 = arith.constant 3 : index
    %c0_303 = arith.constant 0 : index
    %c0_304 = arith.constant 0 : index
    %261 = vector.load %arg6[%c3_302, %c0_303, %c0_304] : memref<4x80x50xf32, #tpu.memory_space<vmem>>, vector<1x80x50xf32>
    %262 = vector.shape_cast %261 : vector<1x80x50xf32> to vector<80x50xf32>
    %cst_305 = arith.constant dense<0.000000e+00> : vector<8x50xf32>
    %263 = tpu.matmul %260, %262, %cst_305 {dimension_numbers = #tpu.dot_dimension_numbers<[1], [0], [0], [1], [0, 0, 1, 1], [], []>} : vector<8x80xf32>, vector<80x50xf32>, vector<8x50xf32> -> vector<8x50xf32>
    %264 = arith.addf %259, %263 : vector<8x50xf32>
    %c0_306 = arith.constant 0 : index
    %c0_307 = arith.constant 0 : index
    %265 = vector.load %arg7[%c0_306, %c0_307] : memref<1x50xf32, #tpu.memory_space<vmem>>, vector<1x50xf32>
    %266 = vector.broadcast %265 : vector<1x50xf32> to vector<8x50xf32>
    %267 = arith.addf %264, %266 : vector<8x50xf32>
    %cst_308 = arith.constant 0.000000e+00 : f32
    %268 = vector.broadcast %cst_308 : f32 to vector<8x50xf32>
    %269 = arith.maximumf %267, %268 : vector<8x50xf32>
    %c0_309 = arith.constant 0 : index
    %c0_310 = arith.constant 0 : index
    %270 = vector.load %arg8[%c0_309, %c0_310] : memref<50x10xf32, #tpu.memory_space<vmem>>, vector<50x10xf32>
    %cst_311 = arith.constant dense<0.000000e+00> : vector<8x10xf32>
    %271 = tpu.matmul %269, %270, %cst_311 {dimension_numbers = #tpu.dot_dimension_numbers<[1], [0], [0], [1], [0, 0, 1, 1], [], []>} : vector<8x50xf32>, vector<50x10xf32>, vector<8x10xf32> -> vector<8x10xf32>
    %c0_312 = arith.constant 0 : index
    %c0_313 = arith.constant 0 : index
    %272 = vector.load %arg9[%c0_312, %c0_313] : memref<1x10xf32, #tpu.memory_space<vmem>>, vector<1x10xf32>
    %273 = vector.broadcast %272 : vector<1x10xf32> to vector<8x10xf32>
    %274 = arith.addf %271, %273 : vector<8x10xf32>
    %cst_314 = arith.constant dense<0xFF800000> : vector<8xf32>
    %275 = vector.multi_reduction <maximumf>, %274, %cst_314 [1] : vector<8x10xf32> to vector<8xf32>
    %276 = vector.shape_cast %275 : vector<8xf32> to vector<8x1xf32>
    %277 = vector.broadcast %276 : vector<8x1xf32> to vector<8x10xf32>
    %278 = arith.subf %274, %277 : vector<8x10xf32>
    %279 = math.exp %278 : vector<8x10xf32>
    %cst_315 = arith.constant dense<0.000000e+00> : vector<8xf32>
    %280 = vector.multi_reduction <add>, %279, %cst_315 [1] : vector<8x10xf32> to vector<8xf32>
    %281 = vector.shape_cast %280 : vector<8xf32> to vector<8x1xf32>
    %282 = math.log %281 : vector<8x1xf32>
    %283 = arith.addf %282, %276 : vector<8x1xf32>
    %284 = vector.broadcast %283 : vector<8x1xf32> to vector<8x10xf32>
    %285 = arith.subf %274, %284 : vector<8x10xf32>
    %c0_316 = arith.constant 0 : index
    %c0_317 = arith.constant 0 : index
    %286 = vector.load %arg10[%c0_316, %c0_317] : memref<8x10xf32, #tpu.memory_space<vmem>>, vector<8x10xf32>
    tpu.vector_store %arg10[%c0_316, %c0_317], %285 {strides = array<i32>} : memref<8x10xf32, #tpu.memory_space<vmem>>, vector<8x10xf32>,
    return
  }
  func.func @transform_0(%arg0: i32) -> (i32, i32, i32) {
    %c0_i32 = arith.constant 0 : i32
    %c0_i32_0 = arith.constant 0 : i32
    %c0_i32_1 = arith.constant 0 : i32
    return %arg0, %c0_i32, %c0_i32_0 : i32, i32, i32
  }
  func.func @transform_1(%arg0: i32) -> (i32, i32, i32) {
    %c0_i32 = arith.constant 0 : i32
    %c0_i32_0 = arith.constant 0 : i32
    %c0_i32_1 = arith.constant 0 : i32
    %c0_i32_2 = arith.constant 0 : i32
    return %c0_i32, %c0_i32_0, %c0_i32_1 : i32, i32, i32
  }
  func.func @transform_2(%arg0: i32) -> (i32, i32) {
    %c0_i32 = arith.constant 0 : i32
    %c0_i32_0 = arith.constant 0 : i32
    %c0_i32_1 = arith.constant 0 : i32
    return %c0_i32, %c0_i32_0 : i32, i32
  }
  func.func @transform_3(%arg0: i32) -> (i32, i32, i32) {
    %c0_i32 = arith.constant 0 : i32
    %c0_i32_0 = arith.constant 0 : i32
    %c0_i32_1 = arith.constant 0 : i32
    %c0_i32_2 = arith.constant 0 : i32
    return %c0_i32, %c0_i32_0, %c0_i32_1 : i32, i32, i32
  }
  func.func @transform_4(%arg0: i32) -> (i32, i32) {
    %c0_i32 = arith.constant 0 : i32
    %c0_i32_0 = arith.constant 0 : i32
    %c0_i32_1 = arith.constant 0 : i32
    return %c0_i32, %c0_i32_0 : i32, i32
  }
  func.func @transform_5(%arg0: i32) -> (i32, i32, i32) {
    %c0_i32 = arith.constant 0 : i32
    %c0_i32_0 = arith.constant 0 : i32
    %c0_i32_1 = arith.constant 0 : i32
    %c0_i32_2 = arith.constant 0 : i32
    return %c0_i32, %c0_i32_0, %c0_i32_1 : i32, i32, i32
  }
  func.func @transform_6(%arg0: i32) -> (i32, i32) {
    %c0_i32 = arith.constant 0 : i32
    %c0_i32_0 = arith.constant 0 : i32
    %c0_i32_1 = arith.constant 0 : i32
    return %c0_i32, %c0_i32_0 : i32, i32
  }
  func.func @transform_7(%arg0: i32) -> (i32, i32) {
    %c0_i32 = arith.constant 0 : i32
    %c0_i32_0 = arith.constant 0 : i32
    %c0_i32_1 = arith.constant 0 : i32
    return %c0_i32, %c0_i32_0 : i32, i32
  }
  func.func @transform_8(%arg0: i32) -> (i32, i32) {
    %c0_i32 = arith.constant 0 : i32
    %c0_i32_0 = arith.constant 0 : i32
    %c0_i32_1 = arith.constant 0 : i32
    return %c0_i32, %c0_i32_0 : i32, i32
  }
  func.func @transform_9(%arg0: i32) -> (i32, i32) {
    %c0_i32 = arith.constant 0 : i32
    %c0_i32_0 = arith.constant 0 : i32
    return %arg0, %c0_i32 : i32, i32
  }
}

</mosaic_0001>

<llo_original>
// kernel: net_forward.1
$region0: #{net_forward.1}
  #allocation0 [shape = 'u32[]', space=smem, size = 0x4, offset = 0x4, fixed_abs, tag = 'smem constant byte address 0x4 - core index']
  #allocation1 [shape = 'u32[144,128]{1,0:T(1,128)}', space=vmem, size = 0x12000, scoped, tag = 'internal scratch']
  #allocation2 [shape = 'f32[96,120]{1,0:T(8,128)}', space=vmem, size = 0xc000, scoped, tag = 'scratch operand']
  #allocation3 [shape = 'f32[32,80]{1,0:T(8,128)}', space=vmem, size = 0x4000, scoped, tag = 'scratch operand']
  %s0 = inlined_call_operand.vmem [shape: f32[1,384,28], index: 0, kind: input, shape index: {}]
  %s1 = inlined_call_operand.vmem [shape: f32[10,28,120], index: 1, kind: input, shape index: {}]
  %s2 = inlined_call_operand.vmem [shape: f32[1,120], index: 2, kind: input, shape index: {}]
  %s3 = inlined_call_operand.vmem [shape: f32[10,120,80], index: 3, kind: input, shape index: {}]
  %s4 = inlined_call_operand.vmem [shape: f32[1,80], index: 4, kind: input, shape index: {}]
  %s5 = inlined_call_operand.vmem [shape: f32[4,80,50], index: 5, kind: input, shape index: {}]
  %s6 = inlined_call_operand.vmem [shape: f32[1,50], index: 6, kind: input, shape index: {}]
  %s7 = inlined_call_operand.vmem [shape: f32[50,10], index: 7, kind: input, shape index: {}]
  %s8 = inlined_call_operand.vmem [shape: f32[1,10], index: 8, kind: input, shape index: {}]
  %s9 = inlined_call_operand.vmem [shape: f32[8,10], index: 9, kind: output, shape index: {}]
  %s10 = sld [smem:[#allocation0]]
  $region46: #{net_forward.1} parent=0
    _
  %s12 = ssub.s32 1, %s10
  %s13 = scalar_select 0, %s12, %s10
  // Predicated region
  $region2: #{net_forward.1} parent=0 // pred_check
    _
  $region3: #{net_forward.1} parent=0 // pred_check_branch
    %15 = sbr.rel (0) target = $region5
  $region4: #{net_forward.1} parent=0 // pred_region
    _
  $region5: #{net_forward.1} parent=0 // pred_fallthru
    _
  // Predicated region
  $region6: #{net_forward.1} parent=0 // pred_check
    _
  $region7: #{net_forward.1} parent=0 // pred_check_branch
    %17 = sbr.rel (0) target = $region9
  $region8: #{net_forward.1} parent=0 // pred_region
    _
  $region9: #{net_forward.1} parent=0 // pred_fallthru
    _
  // Predicated region
  $region10: #{net_forward.1} parent=0 // pred_check
    _
  $region11: #{net_forward.1} parent=0 // pred_check_branch
    %19 = sbr.rel (0) target = $region13
  $region12: #{net_forward.1} parent=0 // pred_region
    _
  $region13: #{net_forward.1} parent=0 // pred_fallthru
    _
  // Predicated region
  $region14: #{net_forward.1} parent=0 // pred_check
    _
  $region15: #{net_forward.1} parent=0 // pred_check_branch
    %21 = sbr.rel (0) target = $region17
  $region16: #{net_forward.1} parent=0 // pred_region
    _
  $region17: #{net_forward.1} parent=0 // pred_fallthru
    _
  // Predicated region
  $region18: #{net_forward.1} parent=0 // pred_check
    _
  $region19: #{net_forward.1} parent=0 // pred_check_branch
    %23 = sbr.rel (0) target = $region21
  $region20: #{net_forward.1} parent=0 // pred_region
    _
  $region21: #{net_forward.1} parent=0 // pred_fallthru
    _
  // Predicated region
  $region22: #{net_forward.1} parent=0 // pred_check
    _
  $region23: #{net_forward.1} parent=0 // pred_check_branch
    %25 = sbr.rel (0) target = $region25
  $region24: #{net_forward.1} parent=0 // pred_region
    _
  $region25: #{net_forward.1} parent=0 // pred_fallthru
    _
  // Predicated region
  $region26: #{net_forward.1} parent=0 // pred_check
    _
  $region27: #{net_forward.1} parent=0 // pred_check_branch
    %27 = sbr.rel (0) target = $region29
  $region28: #{net_forward.1} parent=0 // pred_region
    _
  $region29: #{net_forward.1} parent=0 // pred_fallthru
    _
  // Predicated region
  $region30: #{net_forward.1} parent=0 // pred_check
    _
  $region31: #{net_forward.1} parent=0 // pred_check_branch
    %29 = sbr.rel (0) target = $region33
  $region32: #{net_forward.1} parent=0 // pred_region
    _
  $region33: #{net_forward.1} parent=0 // pred_fallthru
    _
  // Predicated region
  $region34: #{net_forward.1} parent=0 // pred_check
    _
  $region35: #{net_forward.1} parent=0 // pred_check_branch
    %31 = sbr.rel (0) target = $region37
  $region36: #{net_forward.1} parent=0 // pred_region
    _
  $region37: #{net_forward.1} parent=0 // pred_fallthru
    _
  %v32 = vld [vmem:[%s0] sm:$0xff]
  %v33 = vld [vmem:[%s0 + $0x8] sm:$0xff]
  %v34 = vld [vmem:[%s0 + $0x10] sm:$0xff]
  %v35 = vld [vmem:[%s0 + $0x18] sm:$0xff]
  %v36 = vld [vmem:[%s0 + $0x20] sm:$0xff]
  %v37 = vld [vmem:[%s0 + $0x28] sm:$0xff]
  %v38 = vld [vmem:[%s0 + $0x30] sm:$0xff]
  %v39 = vld [vmem:[%s0 + $0x38] sm:$0xff]
  %v40 = vld [vmem:[%s0 + $0x40] sm:$0xff]
  %v41 = vld [vmem:[%s0 + $0x48] sm:$0xff]
  %v42 = vld [vmem:[%s0 + $0x50] sm:$0xff]
  %v43 = vld [vmem:[%s0 + $0x58] sm:$0xff]
  %v44 = vld [vmem:[%s1] sm:$0xff]
  %v45 = vld [vmem:[%s1 + $0x8] sm:$0xff]
  %v46 = vld [vmem:[%s1 + $0x10] sm:$0xff]
  %v47 = vld [vmem:[%s1 + $0x18] sm:$0xf]
  %v48 = vld [vmem:[%s0 + $0xc0] sm:$0xff]
  %v49 = vld [vmem:[%s0 + $0xc8] sm:$0xff]
  %v50 = vld [vmem:[%s0 + $0xd0] sm:$0xff]
  %v51 = vld [vmem:[%s0 + $0xd8] sm:$0xff]
  %v52 = vld [vmem:[%s0 + $0xe0] sm:$0xff]
  %v53 = vld [vmem:[%s0 + $0xe8] sm:$0xff]
  %v54 = vld [vmem:[%s0 + $0xf0] sm:$0xff]
  %v55 = vld [vmem:[%s0 + $0xf8] sm:$0xff]
  %v56 = vld [vmem:[%s0 + $0x100] sm:$0xff]
  %v57 = vld [vmem:[%s0 + $0x108] sm:$0xff]
  %v58 = vld [vmem:[%s0 + $0x110] sm:$0xff]
  %v59 = vld [vmem:[%s0 + $0x118] sm:$0xff]
  %s60 = scalar_lea.vmem %s1, 32
  %v61 = vld [vmem:[%s60] sm:$0xff]
  %v62 = vld [vmem:[%s60 + $0x8] sm:$0xff]
  %v63 = vld [vmem:[%s60 + $0x10] sm:$0xff]
  %v64 = vld [vmem:[%s60 + $0x18] sm:$0xf]
  %vm65 = vcmask 228352
  %v67 = vsel %vm65, %v48, 0
  %v70 = vsel %vm65, %v49, 0
  %v73 = vsel %vm65, %v50, 0
  %v76 = vsel %vm65, %v51, 0
  %v79 = vsel %vm65, %v52, 0
  %v82 = vsel %vm65, %v53, 0
  %v85 = vsel %vm65, %v54, 0
  %v88 = vsel %vm65, %v55, 0
  %v91 = vsel %vm65, %v56, 0
  %v94 = vsel %vm65, %v57, 0
  %v97 = vsel %vm65, %v58, 0
  %v100 = vsel %vm65, %v59, 0
  %vm102 = vcmask 1043456
  %v104 = vsel %vm102, %v64, 0
  %106 = vmatprep.subr.mxu0 0.0
  %107 = vmatpush1.msra.mxu0 %v61
  %108 = vmatprep.subr.mxu0 0.0
  %109 = vmatpush1.msra.mxu0 %v62
  %110 = vmatprep.subr.mxu0 0.0
  %111 = vmatpush1.msra.mxu0 %v63
  %112 = vmatprep.subr.mxu0 0.0
  %113 = vmatpush1.msra.mxu0 %v104
  %114 = vmatprep.subr.mxu0 0.0
  %115 = vmatpush1.msra.mxu0 0.0
  %116 = vmatprep.subr.mxu0 0.0
  %117 = vmatpush1.msra.mxu0 0.0
  %118 = vmatprep.subr.mxu0 0.0
  %119 = vmatpush1.msra.mxu0 0.0
  %120 = vmatprep.subr.mxu0 0.0
  %121 = vmatpush1.msra.mxu0 0.0
  %122 = vmatprep.subr.mxu0 0.0
  %123 = vmatpush1.msra.mxu0 0.0
  %124 = vmatprep.subr.mxu0 0.0
  %125 = vmatpush1.msra.mxu0 0.0
  %126 = vmatprep.subr.mxu0 0.0
  %127 = vmatpush1.msra.mxu0 0.0
  %128 = vmatprep.subr.mxu0 0.0
  %129 = vmatpush1.msra.mxu0 0.0
  %130 = vmatprep.subr.mxu0 0.0
  %131 = vmatpush1.msra.mxu0 0.0
  %132 = vmatprep.subr.mxu0 0.0
  %133 = vmatpush1.msra.mxu0 0.0
  %134 = vmatprep.subr.mxu0 0.0
  %135 = vmatpush1.msra.mxu0 0.0
  %136 = vmatprep.subr.mxu0 0.0
  %137 = vmatpush1.msra.mxu0 0.0
  %138 = vmatprep.subr.mxu0 0.0
  %139 = vmatpush1.msra.mxu0 0.0
  %140 = vmatprep.subr.mxu0 0.0
  %141 = vmatpush1.msra.mxu0 0.0
  %142 = vmatprep.subr.mxu0 0.0
  %143 = vmatpush1.msra.mxu0 0.0
  %144 = vmatprep.subr.mxu0 0.0
  %145 = vmatpush1.msra.mxu0 0.0
  %146 = vmatprep.subr.mxu0 0.0
  %147 = vmatpush1.msra.mxu0 0.0
  %148 = vmatprep.subr.mxu0 0.0
  %149 = vmatpush1.msra.mxu0 0.0
  %150 = vmatprep.subr.mxu0 0.0
  %151 = vmatpush1.msra.mxu0 0.0
  %152 = vmatprep.subr.mxu0 0.0
  %153 = vmatpush1.msra.mxu0 0.0
  %154 = vmatprep.subr.mxu0 0.0
  %155 = vmatpush1.msra.mxu0 0.0
  %156 = vmatprep.subr.mxu0 0.0
  %157 = vmatpush1.msra.mxu0 0.0
  %158 = vmatprep.subr.mxu0 0.0
  %159 = vmatpush1.msra.mxu0 0.0
  %160 = vmatprep.subr.mxu0 0.0
  %161 = vmatpush1.msra.mxu0 0.0
  %162 = vmatprep.subr.mxu0 0.0
  %163 = vmatpush1.msra.mxu0 0.0
  %164 = vmatprep.subr.mxu0 0.0
  %165 = vmatpush1.msra.mxu0 0.0
  %166 = vmatprep.subr.mxu0 0.0
  %167 = vmatpush1.msra.mxu0 0.0
  %168 = vmatprep.subr.mxu0 0.0
  %169 = vmatpush1.msra.mxu0 0.0
  %170 = vmatprep.mubr.f32.mxu0 0.0
  %171 = vmatmul.mubr.f32.gmra.mrb[0].mxu0 %v67
  %v172 = vpop.f32.mrb[0].mxu0
  %v173 = vadd.f32 0.0, %v172
  %v174 = vpop.f32.mrb[0].mxu0
  %175 = vmatprep.mubr.f32.mxu0 0.0
  %176 = vmatmul.mubr.f32.gmra.mrb[0].mxu0 %v70
  %v177 = vpop.f32.mrb[0].mxu0
  %v178 = vadd.f32 0.0, %v177
  %v179 = vpop.f32.mrb[0].mxu0
  %180 = vmatprep.mubr.f32.mxu0 0.0
  %181 = vmatmul.mubr.f32.gmra.mrb[0].mxu0 %v73
  %v182 = vpop.f32.mrb[0].mxu0
  %v183 = vadd.f32 0.0, %v182
  %v184 = vpop.f32.mrb[0].mxu0
  %185 = vmatprep.mubr.f32.mxu0 0.0
  %186 = vmatmul.mubr.f32.gmra.mrb[0].mxu0 %v76
  %v187 = vpop.f32.mrb[0].mxu0
  %v188 = vadd.f32 0.0, %v187
  %v189 = vpop.f32.mrb[0].mxu0
  %190 = vmatprep.mubr.f32.mxu0 0.0
  %191 = vmatmul.mubr.f32.gmra.mrb[0].mxu0 %v79
  %v192 = vpop.f32.mrb[0].mxu0
  %v193 = vadd.f32 0.0, %v192
  %v194 = vpop.f32.mrb[0].mxu0
  %195 = vmatprep.mubr.f32.mxu0 0.0
  %196 = vmatmul.mubr.f32.gmra.mrb[0].mxu0 %v82
  %v197 = vpop.f32.mrb[0].mxu0
  %v198 = vadd.f32 0.0, %v197
  %v199 = vpop.f32.mrb[0].mxu0
  %200 = vmatprep.mubr.f32.mxu0 0.0
  %201 = vmatmul.mubr.f32.gmra.mrb[0].mxu0 %v85
  %v202 = vpop.f32.mrb[0].mxu0
  %v203 = vadd.f32 0.0, %v202
  %v204 = vpop.f32.mrb[0].mxu0
  %205 = vmatprep.mubr.f32.mxu0 0.0
  %206 = vmatmul.mubr.f32.gmra.mrb[0].mxu0 %v88
  %v207 = vpop.f32.mrb[0].mxu0
  %v208 = vadd.f32 0.0, %v207
  %v209 = vpop.f32.mrb[0].mxu0
  %210 = vmatprep.mubr.f32.mxu0 0.0
  %211 = vmatmul.mubr.f32.gmra.mrb[0].mxu0 %v91
  %v212 = vpop.f32.mrb[0].mxu0
  %v213 = vadd.f32 0.0, %v212
  %v214 = vpop.f32.mrb[0].mxu0
  %215 = vmatprep.mubr.f32.mxu0 0.0
  %216 = vmatmul.mubr.f32.gmra.mrb[0].mxu0 %v94
  %v217 = vpop.f32.mrb[0].mxu0
  %v218 = vadd.f32 0.0, %v217
  %v219 = vpop.f32.mrb[0].mxu0
  %220 = vmatprep.mubr.f32.mxu0 0.0
  %221 = vmatmul.mubr.f32.gmra.mrb[0].mxu0 %v97
  %v222 = vpop.f32.mrb[0].mxu0
  %v223 = vadd.f32 0.0, %v222
  %v224 = vpop.f32.mrb[0].mxu0
  %225 = vmatprep.mubr.f32.mxu0 0.0
  %226 = vmatmul.mubr.f32.gmra.mrb[0].mxu0 %v100
  %v227 = vpop.f32.mrb[0].mxu0
  %v228 = vadd.f32 0.0, %v227
  %v229 = vpop.f32.mrb[0].mxu0
  %230 = vdwg.mxu0
  %v232 = vsel %vm65, %v32, 0
  %v235 = vsel %vm65, %v33, 0
  %v238 = vsel %vm65, %v34, 0
  %v241 = vsel %vm65, %v35, 0
  %v244 = vsel %vm65, %v36, 0
  %v247 = vsel %vm65, %v37, 0
  %v250 = vsel %vm65, %v38, 0
  %v253 = vsel %vm65, %v39, 0
  %v256 = vsel %vm65, %v40, 0
  %v259 = vsel %vm65, %v41, 0
  %v262 = vsel %vm65, %v42, 0
  %v265 = vsel %vm65, %v43, 0
  %v268 = vsel %vm102, %v47, 0
  %270 = vmatprep.subr.mxu0 0.0
  %271 = vmatpush1.msra.mxu0 %v44
  %272 = vmatprep.subr.mxu0 0.0
  %273 = vmatpush1.msra.mxu0 %v45
  %274 = vmatprep.subr.mxu0 0.0
  %275 = vmatpush1.msra.mxu0 %v46
  %276 = vmatprep.subr.mxu0 0.0
  %277 = vmatpush1.msra.mxu0 %v268
  %278 = vmatprep.subr.mxu0 0.0
  %279 = vmatpush1.msra.mxu0 0.0
  %280 = vmatprep.subr.mxu0 0.0
  %281 = vmatpush1.msra.mxu0 0.0
  %282 = vmatprep.subr.mxu0 0.0
  %283 = vmatpush1.msra.mxu0 0.0
  %284 = vmatprep.subr.mxu0 0.0
  %285 = vmatpush1.msra.mxu0 0.0
  %286 = vmatprep.subr.mxu0 0.0
  %287 = vmatpush1.msra.mxu0 0.0
  %288 = vmatprep.subr.mxu0 0.0
  %289 = vmatpush1.msra.mxu0 0.0
  %290 = vmatprep.subr.mxu0 0.0
  %291 = vmatpush1.msra.mxu0 0.0
  %292 = vmatprep.subr.mxu0 0.0
  %293 = vmatpush1.msra.mxu0 0.0
  %294 = vmatprep.subr.mxu0 0.0
  %295 = vmatpush1.msra.mxu0 0.0
  %296 = vmatprep.subr.mxu0 0.0
  %297 = vmatpush1.msra.mxu0 0.0
  %298 = vmatprep.subr.mxu0 0.0
  %299 = vmatpush1.msra.mxu0 0.0
  %300 = vmatprep.subr.mxu0 0.0
  %301 = vmatpush1.msra.mxu0 0.0
  %302 = vmatprep.subr.mxu0 0.0
  %303 = vmatpush1.msra.mxu0 0.0
  %304 = vmatprep.subr.mxu0 0.0
  %305 = vmatpush1.msra.mxu0 0.0
  %306 = vmatprep.subr.mxu0 0.0
  %307 = vmatpush1.msra.mxu0 0.0
  %308 = vmatprep.subr.mxu0 0.0
  %309 = vmatpush1.msra.mxu0 0.0
  %310 = vmatprep.subr.mxu0 0.0
  %311 = vmatpush1.msra.mxu0 0.0
  %312 = vmatprep.subr.mxu0 0.0
  %313 = vmatpush1.msra.mxu0 0.0
  %314 = vmatprep.subr.mxu0 0.0
  %315 = vmatpush1.msra.mxu0 0.0
  %316 = vmatprep.subr.mxu0 0.0
  %317 = vmatpush1.msra.mxu0 0.0
  %318 = vmatprep.subr.mxu0 0.0
  %319 = vmatpush1.msra.mxu0 0.0
  %320 = vmatprep.subr.mxu0 0.0
  %321 = vmatpush1.msra.mxu0 0.0
  %322 = vmatprep.subr.mxu0 0.0
  %323 = vmatpush1.msra.mxu0 0.0
  %324 = vmatprep.subr.mxu0 0.0
  %325 = vmatpush1.msra.mxu0 0.0
  %326 = vmatprep.subr.mxu0 0.0
  %327 = vmatpush1.msra.mxu0 0.0
  %328 = vmatprep.subr.mxu0 0.0
  %329 = vmatpush1.msra.mxu0 0.0
  %330 = vmatprep.subr.mxu0 0.0
  %331 = vmatpush1.msra.mxu0 0.0
  %332 = vmatprep.subr.mxu0 0.0
  %333 = vmatpush1.msra.mxu0 0.0
  %334 = vmatprep.mubr.f32.mxu0 0.0
  %335 = vmatmul.mubr.f32.gmra.mrb[0].mxu0 %v232
  %v336 = vpop.f32.mrb[0].mxu0
  %v337 = vadd.f32 %v173, %v336
  %v338 = vpop.f32.mrb[0].mxu0
  %339 = vmatprep.mubr.f32.mxu0 0.0
  %340 = vmatmul.mubr.f32.gmra.mrb[0].mxu0 %v235
  %v341 = vpop.f32.mrb[0].mxu0
  %v342 = vadd.f32 %v178, %v341
  %v343 = vpop.f32.mrb[0].mxu0
  %344 = vmatprep.mubr.f32.mxu0 0.0
  %345 = vmatmul.mubr.f32.gmra.mrb[0].mxu0 %v238
  %v346 = vpop.f32.mrb[0].mxu0
  %v347 = vadd.f32 %v183, %v346
  %v348 = vpop.f32.mrb[0].mxu0
  %349 = vmatprep.mubr.f32.mxu0 0.0
  %350 = vmatmul.mubr.f32.gmra.mrb[0].mxu0 %v241
  %v351 = vpop.f32.mrb[0].mxu0
  %v352 = vadd.f32 %v188, %v351
  %v353 = vpop.f32.mrb[0].mxu0
  %354 = vmatprep.mubr.f32.mxu0 0.0
  %355 = vmatmul.mubr.f32.gmra.mrb[0].mxu0 %v244
  %v356 = vpop.f32.mrb[0].mxu0
  %v357 = vadd.f32 %v193, %v356
  %v358 = vpop.f32.mrb[0].mxu0
  %359 = vmatprep.mubr.f32.mxu0 0.0
  %360 = vmatmul.mubr.f32.gmra.mrb[0].mxu0 %v247
  %v361 = vpop.f32.mrb[0].mxu0
  %v362 = vadd.f32 %v198, %v361
  %v363 = vpop.f32.mrb[0].mxu0
  %364 = vmatprep.mubr.f32.mxu0 0.0
  %365 = vmatmul.mubr.f32.gmra.mrb[0].mxu0 %v250
  %v366 = vpop.f32.mrb[0].mxu0
  %v367 = vadd.f32 %v203, %v366
  %v368 = vpop.f32.mrb[0].mxu0
  %369 = vmatprep.mubr.f32.mxu0 0.0
  %370 = vmatmul.mubr.f32.gmra.mrb[0].mxu0 %v253
  %v371 = vpop.f32.mrb[0].mxu0
  %v372 = vadd.f32 %v208, %v371
  %v373 = vpop.f32.mrb[0].mxu0
  %374 = vmatprep.mubr.f32.mxu0 0.0
  %375 = vmatmul.mubr.f32.gmra.mrb[0].mxu0 %v256
  %v376 = vpop.f32.mrb[0].mxu0
  %v377 = vadd.f32 %v213, %v376
  %v378 = vpop.f32.mrb[0].mxu0
  %379 = vmatprep.mubr.f32.mxu0 0.0
  %380 = vmatmul.mubr.f32.gmra.mrb[0].mxu0 %v259
  %v381 = vpop.f32.mrb[0].mxu0
  %v382 = vadd.f32 %v218, %v381
  %v383 = vpop.f32.mrb[0].mxu0
  %384 = vmatprep.mubr.f32.mxu0 0.0
  %385 = vmatmul.mubr.f32.gmra.mrb[0].mxu0 %v262
  %v386 = vpop.f32.mrb[0].mxu0
  %v387 = vadd.f32 %v223, %v386
  %v388 = vpop.f32.mrb[0].mxu0
  %389 = vmatprep.mubr.f32.mxu0 0.0
  %390 = vmatmul.mubr.f32.gmra.mrb[0].mxu0 %v265
  %v391 = vpop.f32.mrb[0].mxu0
  %v392 = vadd.f32 %v228, %v391
  %v393 = vpop.f32.mrb[0].mxu0
  %394 = vdwg.mxu0
  %v395 = vld [vmem:[%s0 + $0x30] sm:$0xff]
  %v396 = vld [vmem:[%s0 + $0x38] sm:$0xff]
  %v397 = vld [vmem:[%s0 + $0x40] sm:$0xff]
  %v398 = vld [vmem:[%s0 + $0x48] sm:$0xff]
  %v399 = vld [vmem:[%s0 + $0x50] sm:$0xff]
  %v400 = vld [vmem:[%s0 + $0x58] sm:$0xff]
  %v401 = vld [vmem:[%s0 + $0x60] sm:$0xff]
  %v402 = vld [vmem:[%s0 + $0x68] sm:$0xff]
  %v403 = vld [vmem:[%s0 + $0x70] sm:$0xff]
  %v404 = vld [vmem:[%s0 + $0x78] sm:$0xff]
  %v405 = vld [vmem:[%s0 + $0x80] sm:$0xff]
  %v406 = vld [vmem:[%s0 + $0x88] sm:$0xff]
  %s407 = scalar_lea.vmem %s1, 64
  %v408 = vld [vmem:[%s407] sm:$0xff]
  %v409 = vld [vmem:[%s407 + $0x8] sm:$0xff]
  %v410 = vld [vmem:[%s407 + $0x10] sm:$0xff]
  %v411 = vld [vmem:[%s407 + $0x18] sm:$0xf]
  %v413 = vsel %vm65, %v395, 0
  %v416 = vsel %vm65, %v396, 0
  %v419 = vsel %vm65, %v397, 0
  %v422 = vsel %vm65, %v398, 0
  %v425 = vsel %vm65, %v399, 0
  %v428 = vsel %vm65, %v400, 0
  %v431 = vsel %vm65, %v401, 0
  %v434 = vsel %vm65, %v402, 0
  %v437 = vsel %vm65, %v403, 0
  %v440 = vsel %vm65, %v404, 0
  %v443 = vsel %vm65, %v405, 0
  %v446 = vsel %vm65, %v406, 0
  %v449 = vsel %vm102, %v411, 0
  %451 = vmatprep.subr.mxu0 0.0
  %452 = vmatpush1.msra.mxu0 %v408
  %453 = vmatprep.subr.mxu0 0.0
  %454 = vmatpush1.msra.mxu0 %v409
  %455 = vmatprep.subr.mxu0 0.0
  %456 = vmatpush1.msra.mxu0 %v410
  %457 = vmatprep.subr.mxu0 0.0
  %458 = vmatpush1.msra.mxu0 %v449
  %459 = vmatprep.subr.mxu0 0.0
  %460 = vmatpush1.msra.mxu0 0.0
  %461 = vmatprep.subr.mxu0 0.0
  %462 = vmatpush1.msra.mxu0 0.0
  %463 = vmatprep.subr.mxu0 0.0
  %464 = vmatpush1.msra.mxu0 0.0
  %465 = vmatprep.subr.mxu0 0.0
  %466 = vmatpush1.msra.mxu0 0.0
  %467 = vmatprep.subr.mxu0 0.0
  %468 = vmatpush1.msra.mxu0 0.0
  %469 = vmatprep.subr.mxu0 0.0
  %470 = vmatpush1.msra.mxu0 0.0
  %471 = vmatprep.subr.mxu0 0.0
  %472 = vmatpush1.msra.mxu0 0.0
  %473 = vmatprep.subr.mxu0 0.0
  %474 = vmatpush1.msra.mxu0 0.0
  %475 = vmatprep.subr.mxu0 0.0
  %476 = vmatpush1.msra.mxu0 0.0
  %477 = vmatprep.subr.mxu0 0.0
  %478 = vmatpush1.msra.mxu0 0.0
  %479 = vmatprep.subr.mxu0 0.0
  %480 = vmatpush1.msra.mxu0 0.0
  %481 = vmatprep.subr.mxu0 0.0
  %482 = vmatpush1.msra.mxu0 0.0
  %483 = vmatprep.subr.mxu0 0.0
  %484 = vmatpush1.msra.mxu0 0.0
  %485 = vmatprep.subr.mxu0 0.0
  %486 = vmatpush1.msra.mxu0 0.0
  %487 = vmatprep.subr.mxu0 0.0
  %488 = vmatpush1.msra.mxu0 0.0
  %489 = vmatprep.subr.mxu0 0.0
  %490 = vmatpush1.msra.mxu0 0.0
  %491 = vmatprep.subr.mxu0 0.0
  %492 = vmatpush1.msra.mxu0 0.0
  %493 = vmatprep.subr.mxu0 0.0
  %494 = vmatpush1.msra.mxu0 0.0
  %495 = vmatprep.subr.mxu0 0.0
  %496 = vmatpush1.msra.mxu0 0.0
  %497 = vmatprep.subr.mxu0 0.0
  %498 = vmatpush1.msra.mxu0 0.0
  %499 = vmatprep.subr.mxu0 0.0
  %500 = vmatpush1.msra.mxu0 0.0
  %501 = vmatprep.subr.mxu0 0.0
  %502 = vmatpush1.msra.mxu0 0.0
  %503 = vmatprep.subr.mxu0 0.0
  %504 = vmatpush1.msra.mxu0 0.0
  %505 = vmatprep.subr.mxu0 0.0
  %506 = vmatpush1.msra.mxu0 0.0
  %507 = vmatprep.subr.mxu0 0.0
  %508 = vmatpush1.msra.mxu0 0.0
  %509 = vmatprep.subr.mxu0 0.0
  %510 = vmatpush1.msra.mxu0 0.0
  %511 = vmatprep.subr.mxu0 0.0
  %512 = vmatpush1.msra.mxu0 0.0
  %513 = vmatprep.subr.mxu0 0.0
  %514 = vmatpush1.msra.mxu0 0.0
  %515 = vmatprep.mubr.f32.mxu0 0.0
  %516 = vmatmul.mubr.f32.gmra.mrb[0].mxu0 %v413
  %v517 = vpop.f32.mrb[0].mxu0
  %v518 = vadd.f32 0.0, %v517
  %v519 = vpop.f32.mrb[0].mxu0
  %520 = vmatprep.mubr.f32.mxu0 0.0
  %521 = vmatmul.mubr.f32.gmra.mrb[0].mxu0 %v416
  %v522 = vpop.f32.mrb[0].mxu0
  %v523 = vadd.f32 0.0, %v522
  %v524 = vpop.f32.mrb[0].mxu0
  %525 = vmatprep.mubr.f32.mxu0 0.0
  %526 = vmatmul.mubr.f32.gmra.mrb[0].mxu0 %v419
  %v527 = vpop.f32.mrb[0].mxu0
  %v528 = vadd.f32 0.0, %v527
  %v529 = vpop.f32.mrb[0].mxu0
  %530 = vmatprep.mubr.f32.mxu0 0.0
  %531 = vmatmul.mubr.f32.gmra.mrb[0].mxu0 %v422
  %v532 = vpop.f32.mrb[0].mxu0
  %v533 = vadd.f32 0.0, %v532
  %v534 = vpop.f32.mrb[0].mxu0
  %535 = vmatprep.mubr.f32.mxu0 0.0
  %536 = vmatmul.mubr.f32.gmra.mrb[0].mxu0 %v425
  %v537 = vpop.f32.mrb[0].mxu0
  %v538 = vadd.f32 0.0, %v537
  %v539 = vpop.f32.mrb[0].mxu0
  %540 = vmatprep.mubr.f32.mxu0 0.0
  %541 = vmatmul.mubr.f32.gmra.mrb[0].mxu0 %v428
  %v542 = vpop.f32.mrb[0].mxu0
  %v543 = vadd.f32 0.0, %v542
  %v544 = vpop.f32.mrb[0].mxu0
  %545 = vmatprep.mubr.f32.mxu0 0.0
  %546 = vmatmul.mubr.f32.gmra.mrb[0].mxu0 %v431
  %v547 = vpop.f32.mrb[0].mxu0
  %v548 = vadd.f32 0.0, %v547
  %v549 = vpop.f32.mrb[0].mxu0
  %550 = vmatprep.mubr.f32.mxu0 0.0
  %551 = vmatmul.mubr.f32.gmra.mrb[0].mxu0 %v434
  %v552 = vpop.f32.mrb[0].mxu0
  %v553 = vadd.f32 0.0, %v552
  %v554 = vpop.f32.mrb[0].mxu0
  %555 = vmatprep.mubr.f32.mxu0 0.0
  %556 = vmatmul.mubr.f32.gmra.mrb[0].mxu0 %v437
  %v557 = vpop.f32.mrb[0].mxu0
  %v558 = vadd.f32 0.0, %v557
  %v559 = vpop.f32.mrb[0].mxu0
  %560 = vmatprep.mubr.f32.mxu0 0.0
  %561 = vmatmul.mubr.f32.gmra.mrb[0].mxu0 %v440
  %v562 = vpop.f32.mrb[0].mxu0
  %v563 = vadd.f32 0.0, %v562
  %v564 = vpop.f32.mrb[0].mxu0
  %565 = vmatprep.mubr.f32.mxu0 0.0
  %566 = vmatmul.mubr.f32.gmra.mrb[0].mxu0 %v443
  %v567 = vpop.f32.mrb[0].mxu0
  %v568 = vadd.f32 0.0, %v567
  %v569 = vpop.f32.mrb[0].mxu0
  %570 = vmatprep.mubr.f32.mxu0 0.0
  %571 = vmatmul.mubr.f32.gmra.mrb[0].mxu0 %v446
  %v572 = vpop.f32.mrb[0].mxu0
  %v573 = vadd.f32 0.0, %v572
  %v574 = vpop.f32.mrb[0].mxu0
  %575 = vdwg.mxu0
  %v576 = vadd.f32 %v337, %v518
  %v577 = vadd.f32 %v342, %v523
  %v578 = vadd.f32 %v347, %v528
  %v579 = vadd.f32 %v352, %v533
  %v580 = vadd.f32 %v357, %v538
  %v581 = vadd.f32 %v362, %v543
  %v582 = vadd.f32 %v367, %v548
  %v583 = vadd.f32 %v372, %v553
  %v584 = vadd.f32 %v377, %v558
  %v585 = vadd.f32 %v382, %v563
  %v586 = vadd.f32 %v387, %v568
  %v587 = vadd.f32 %v392, %v573
  %v588 = vld [vmem:[%s0 + $0xf0] sm:$0xff]
  %v589 = vld [vmem:[%s0 + $0xf8] sm:$0xff]
  %v590 = vld [vmem:[%s0 + $0x100] sm:$0xff]
  %v591 = vld [vmem:[%s0 + $0x108] sm:$0xff]
  %v592 = vld [vmem:[%s0 + $0x110] sm:$0xff]
  %v593 = vld [vmem:[%s0 + $0x118] sm:$0xff]
  %v594 = vld [vmem:[%s0 + $0x120] sm:$0xff]
  %v595 = vld [vmem:[%s0 + $0x128] sm:$0xff]
  %v596 = vld [vmem:[%s0 + $0x130] sm:$0xff]
  %v597 = vld [vmem:[%s0 + $0x138] sm:$0xff]
  %v598 = vld [vmem:[%s0 + $0x140] sm:$0xff]
  %v599 = vld [vmem:[%s0 + $0x148] sm:$0xff]
  %s600 = scalar_lea.vmem %s1, 96
  %v601 = vld [vmem:[%s600] sm:$0xff]
  %v602 = vld [vmem:[%s600 + $0x8] sm:$0xff]
  %v603 = vld [vmem:[%s600 + $0x10] sm:$0xff]
  %v604 = vld [vmem:[%s600 + $0x18] sm:$0xf]
  %v606 = vsel %vm65, %v588, 0
  %v609 = vsel %vm65, %v589, 0
  %v612 = vsel %vm65, %v590, 0
  %v615 = vsel %vm65, %v591, 0
  %v618 = vsel %vm65, %v592, 0
  %v621 = vsel %vm65, %v593, 0
  %v624 = vsel %vm65, %v594, 0
  %v627 = vsel %vm65, %v595, 0
  %v630 = vsel %vm65, %v596, 0
  %v633 = vsel %vm65, %v597, 0
  %v636 = vsel %vm65, %v598, 0
  %v639 = vsel %vm65, %v599, 0
  %v642 = vsel %vm102, %v604, 0
  %644 = vmatprep.subr.mxu0 0.0
  %645 = vmatpush1.msra.mxu0 %v601
  %646 = vmatprep.subr.mxu0 0.0
  %647 = vmatpush1.msra.mxu0 %v602
  %648 = vmatprep.subr.mxu0 0.0
  %649 = vmatpush1.msra.mxu0 %v603
  %650 = vmatprep.subr.mxu0 0.0
  %651 = vmatpush1.msra.mxu0 %v642
  %652 = vmatprep.subr.mxu0 0.0
  %653 = vmatpush1.msra.mxu0 0.0
  %654 = vmatprep.subr.mxu0 0.0
  %655 = vmatpush1.msra.mxu0 0.0
  %656 = vmatprep.subr.mxu0 0.0
  %657 = vmatpush1.msra.mxu0 0.0
  %658 = vmatprep.subr.mxu0 0.0
  %659 = vmatpush1.msra.mxu0 0.0
  %660 = vmatprep.subr.mxu0 0.0
  %661 = vmatpush1.msra.mxu0 0.0
  %662 = vmatprep.subr.mxu0 0.0
  %663 = vmatpush1.msra.mxu0 0.0
  %664 = vmatprep.subr.mxu0 0.0
  %665 = vmatpush1.msra.mxu0 0.0
  %666 = vmatprep.subr.mxu0 0.0
  %667 = vmatpush1.msra.mxu0 0.0
  %668 = vmatprep.subr.mxu0 0.0
  %669 = vmatpush1.msra.mxu0 0.0
  %670 = vmatprep.subr.mxu0 0.0
  %671 = vmatpush1.msra.mxu0 0.0
  %672 = vmatprep.subr.mxu0 0.0
  %673 = vmatpush1.msra.mxu0 0.0
  %674 = vmatprep.subr.mxu0 0.0
  %675 = vmatpush1.msra.mxu0 0.0
  %676 = vmatprep.subr.mxu0 0.0
  %677 = vmatpush1.msra.mxu0 0.0
  %678 = vmatprep.subr.mxu0 0.0
  %679 = vmatpush1.msra.mxu0 0.0
  %680 = vmatprep.subr.mxu0 0.0
  %681 = vmatpush1.msra.mxu0 0.0
  %682 = vmatprep.subr.mxu0 0.0
  %683 = vmatpush1.msra.mxu0 0.0
  %684 = vmatprep.subr.mxu0 0.0
  %685 = vmatpush1.msra.mxu0 0.0
  %686 = vmatprep.subr.mxu0 0.0
  %687 = vmatpush1.msra.mxu0 0.0
  %688 = vmatprep.subr.mxu0 0.0
  %689 = vmatpush1.msra.mxu0 0.0
  %690 = vmatprep.subr.mxu0 0.0
  %691 = vmatpush1.msra.mxu0 0.0
  %692 = vmatprep.subr.mxu0 0.0
  %693 = vmatpush1.msra.mxu0 0.0
  %694 = vmatprep.subr.mxu0 0.0
  %695 = vmatpush1.msra.mxu0 0.0
  %696 = vmatprep.subr.mxu0 0.0
  %697 = vmatpush1.msra.mxu0 0.0
  %698 = vmatprep.subr.mxu0 0.0
  %699 = vmatpush1.msra.mxu0 0.0
  %700 = vmatprep.subr.mxu0 0.0
  %701 = vmatpush1.msra.mxu0 0.0
  %702 = vmatprep.subr.mxu0 0.0
  %703 = vmatpush1.msra.mxu0 0.0
  %704 = vmatprep.subr.mxu0 0.0
  %705 = vmatpush1.msra.mxu0 0.0
  %706 = vmatprep.subr.mxu0 0.0
  %707 = vmatpush1.msra.mxu0 0.0
  %708 = vmatprep.mubr.f32.mxu0 0.0
  %709 = vmatmul.mubr.f32.gmra.mrb[0].mxu0 %v606
  %v710 = vpop.f32.mrb[0].mxu0
  %v711 = vadd.f32 0.0, %v710
  %v712 = vpop.f32.mrb[0].mxu0
  %713 = vmatprep.mubr.f32.mxu0 0.0
  %714 = vmatmul.mubr.f32.gmra.mrb[0].mxu0 %v609
  %v715 = vpop.f32.mrb[0].mxu0
  %v716 = vadd.f32 0.0, %v715
  %v717 = vpop.f32.mrb[0].mxu0
  %718 = vmatprep.mubr.f32.mxu0 0.0
  %719 = vmatmul.mubr.f32.gmra.mrb[0].mxu0 %v612
  %v720 = vpop.f32.mrb[0].mxu0
  %v721 = vadd.f32 0.0, %v720
  %v722 = vpop.f32.mrb[0].mxu0
  %723 = vmatprep.mubr.f32.mxu0 0.0
  %724 = vmatmul.mubr.f32.gmra.mrb[0].mxu0 %v615
  %v725 = vpop.f32.mrb[0].mxu0
  %v726 = vadd.f32 0.0, %v725
  %v727 = vpop.f32.mrb[0].mxu0
  %728 = vmatprep.mubr.f32.mxu0 0.0
  %729 = vmatmul.mubr.f32.gmra.mrb[0].mxu0 %v618
  %v730 = vpop.f32.mrb[0].mxu0
  %v731 = vadd.f32 0.0, %v730
  %v732 = vpop.f32.mrb[0].mxu0
  %733 = vmatprep.mubr.f32.mxu0 0.0
  %734 = vmatmul.mubr.f32.gmra.mrb[0].mxu0 %v621
  %v735 = vpop.f32.mrb[0].mxu0
  %v736 = vadd.f32 0.0, %v735
  %v737 = vpop.f32.mrb[0].mxu0
  %738 = vmatprep.mubr.f32.mxu0 0.0
  %739 = vmatmul.mubr.f32.gmra.mrb[0].mxu0 %v624
  %v740 = vpop.f32.mrb[0].mxu0
  %v741 = vadd.f32 0.0, %v740
  %v742 = vpop.f32.mrb[0].mxu0
  %743 = vmatprep.mubr.f32.mxu0 0.0
  %744 = vmatmul.mubr.f32.gmra.mrb[0].mxu0 %v627
  %v745 = vpop.f32.mrb[0].mxu0
  %v746 = vadd.f32 0.0, %v745
  %v747 = vpop.f32.mrb[0].mxu0
  %748 = vmatprep.mubr.f32.mxu0 0.0
  %749 = vmatmul.mubr.f32.gmra.mrb[0].mxu0 %v630
  %v750 = vpop.f32.mrb[0].mxu0
  %v751 = vadd.f32 0.0, %v750
  %v752 = vpop.f32.mrb[0].mxu0
  %753 = vmatprep.mubr.f32.mxu0 0.0
  %754 = vmatmul.mubr.f32.gmra.mrb[0].mxu0 %v633
  %v755 = vpop.f32.mrb[0].mxu0
  %v756 = vadd.f32 0.0, %v755
  %v757 = vpop.f32.mrb[0].mxu0
  %758 = vmatprep.mubr.f32.mxu0 0.0
  %759 = vmatmul.mubr.f32.gmra.mrb[0].mxu0 %v636
  %v760 = vpop.f32.mrb[0].mxu0
  %v761 = vadd.f32 0.0, %v760
  %v762 = vpop.f32.mrb[0].mxu0
  %763 = vmatprep.mubr.f32.mxu0 0.0
  %764 = vmatmul.mubr.f32.gmra.mrb[0].mxu0 %v639
  %v765 = vpop.f32.mrb[0].mxu0
  %v766 = vadd.f32 0.0, %v765
  %v767 = vpop.f32.mrb[0].mxu0
  %768 = vdwg.mxu0
  %v769 = vadd.f32 %v576, %v711
  %v770 = vadd.f32 %v577, %v716
  %v771 = vadd.f32 %v578, %v721
  %v772 = vadd.f32 %v579, %v726
  %v773 = vadd.f32 %v580, %v731
  %v774 = vadd.f32 %v581, %v736
  %v775 = vadd.f32 %v582, %v741
  %v776 = vadd.f32 %v583, %v746
  %v777 = vadd.f32 %v584, %v751
  %v778 = vadd.f32 %v585, %v756
  %v779 = vadd.f32 %v586, %v761
  %v780 = vadd.f32 %v587, %v766
  %v781 = vld [vmem:[%s0 + $0x60] sm:$0xff]
  %v782 = vld [vmem:[%s0 + $0x68] sm:$0xff]
  %v783 = vld [vmem:[%s0 + $0x70] sm:$0xff]
  %v784 = vld [vmem:[%s0 + $0x78] sm:$0xff]
  %v785 = vld [vmem:[%s0 + $0x80] sm:$0xff]
  %v786 = vld [vmem:[%s0 + $0x88] sm:$0xff]
  %v787 = vld [vmem:[%s0 + $0x90] sm:$0xff]
  %v788 = vld [vmem:[%s0 + $0x98] sm:$0xff]
  %v789 = vld [vmem:[%s0 + $0xa0] sm:$0xff]
  %v790 = vld [vmem:[%s0 + $0xa8] sm:$0xff]
  %v791 = vld [vmem:[%s0 + $0xb0] sm:$0xff]
  %v792 = vld [vmem:[%s0 + $0xb8] sm:$0xff]
  %s793 = scalar_lea.vmem %s1, 128
  %v794 = vld [vmem:[%s793] sm:$0xff]
  %v795 = vld [vmem:[%s793 + $0x8] sm:$0xff]
  %v796 = vld [vmem:[%s793 + $0x10] sm:$0xff]
  %v797 = vld [vmem:[%s793 + $0x18] sm:$0xf]
  %v799 = vsel %vm65, %v781, 0
  %v802 = vsel %vm65, %v782, 0
  %v805 = vsel %vm65, %v783, 0
  %v808 = vsel %vm65, %v784, 0
  %v811 = vsel %vm65, %v785, 0
  %v814 = vsel %vm65, %v786, 0
  %v817 = vsel %vm65, %v787, 0
  %v820 = vsel %vm65, %v788, 0
  %v823 = vsel %vm65, %v789, 0
  %v826 = vsel %vm65, %v790, 0
  %v829 = vsel %vm65, %v791, 0
  %v832 = vsel %vm65, %v792, 0
  %v835 = vsel %vm102, %v797, 0
  %837 = vmatprep.subr.mxu0 0.0
  %838 = vmatpush1.msra.mxu0 %v794
  %839 = vmatprep.subr.mxu0 0.0
  %840 = vmatpush1.msra.mxu0 %v795
  %841 = vmatprep.subr.mxu0 0.0
  %842 = vmatpush1.msra.mxu0 %v796
  %843 = vmatprep.subr.mxu0 0.0
  %844 = vmatpush1.msra.mxu0 %v835
  %845 = vmatprep.subr.mxu0 0.0
  %846 = vmatpush1.msra.mxu0 0.0
  %847 = vmatprep.subr.mxu0 0.0
  %848 = vmatpush1.msra.mxu0 0.0
  %849 = vmatprep.subr.mxu0 0.0
  %850 = vmatpush1.msra.mxu0 0.0
  %851 = vmatprep.subr.mxu0 0.0
  %852 = vmatpush1.msra.mxu0 0.0
  %853 = vmatprep.subr.mxu0 0.0
  %854 = vmatpush1.msra.mxu0 0.0
  %855 = vmatprep.subr.mxu0 0.0
  %856 = vmatpush1.msra.mxu0 0.0
  %857 = vmatprep.subr.mxu0 0.0
  %858 = vmatpush1.msra.mxu0 0.0
  %859 = vmatprep.subr.mxu0 0.0
  %860 = vmatpush1.msra.mxu0 0.0
  %861 = vmatprep.subr.mxu0 0.0
  %862 = vmatpush1.msra.mxu0 0.0
  %863 = vmatprep.subr.mxu0 0.0
  %864 = vmatpush1.msra.mxu0 0.0
  %865 = vmatprep.subr.mxu0 0.0
  %866 = vmatpush1.msra.mxu0 0.0
  %867 = vmatprep.subr.mxu0 0.0
  %868 = vmatpush1.msra.mxu0 0.0
  %869 = vmatprep.subr.mxu0 0.0
  %870 = vmatpush1.msra.mxu0 0.0
  %871 = vmatprep.subr.mxu0 0.0
  %872 = vmatpush1.msra.mxu0 0.0
  %873 = vmatprep.subr.mxu0 0.0
  %874 = vmatpush1.msra.mxu0 0.0
  %875 = vmatprep.subr.mxu0 0.0
  %876 = vmatpush1.msra.mxu0 0.0
  %877 = vmatprep.subr.mxu0 0.0
  %878 = vmatpush1.msra.mxu0 0.0
  %879 = vmatprep.subr.mxu0 0.0
  %880 = vmatpush1.msra.mxu0 0.0
  %881 = vmatprep.subr.mxu0 0.0
  %882 = vmatpush1.msra.mxu0 0.0
  %883 = vmatprep.subr.mxu0 0.0
  %884 = vmatpush1.msra.mxu0 0.0
  %885 = vmatprep.subr.mxu0 0.0
  %886 = vmatpush1.msra.mxu0 0.0
  %887 = vmatprep.subr.mxu0 0.0
  %888 = vmatpush1.msra.mxu0 0.0
  %889 = vmatprep.subr.mxu0 0.0
  %890 = vmatpush1.msra.mxu0 0.0
  %891 = vmatprep.subr.mxu0 0.0
  %892 = vmatpush1.msra.mxu0 0.0
  %893 = vmatprep.subr.mxu0 0.0
  %894 = vmatpush1.msra.mxu0 0.0
  %895 = vmatprep.subr.mxu0 0.0
  %896 = vmatpush1.msra.mxu0 0.0
  %897 = vmatprep.subr.mxu0 0.0
  %898 = vmatpush1.msra.mxu0 0.0
  %899 = vmatprep.subr.mxu0 0.0
  %900 = vmatpush1.msra.mxu0 0.0
  %901 = vmatprep.mubr.f32.mxu0 0.0
  %902 = vmatmul.mubr.f32.gmra.mrb[0].mxu0 %v799
  %v903 = vpop.f32.mrb[0].mxu0
  %v904 = vadd.f32 0.0, %v903
  %v905 = vpop.f32.mrb[0].mxu0
  %906 = vmatprep.mubr.f32.mxu0 0.0
  %907 = vmatmul.mubr.f32.gmra.mrb[0].mxu0 %v802
  %v908 = vpop.f32.mrb[0].mxu0
  %v909 = vadd.f32 0.0, %v908
  %v910 = vpop.f32.mrb[0].mxu0
  %911 = vmatprep.mubr.f32.mxu0 0.0
  %912 = vmatmul.mubr.f32.gmra.mrb[0].mxu0 %v805
  %v913 = vpop.f32.mrb[0].mxu0
  %v914 = vadd.f32 0.0, %v913
  %v915 = vpop.f32.mrb[0].mxu0
  %916 = vmatprep.mubr.f32.mxu0 0.0
  %917 = vmatmul.mubr.f32.gmra.mrb[0].mxu0 %v808
  %v918 = vpop.f32.mrb[0].mxu0
  %v919 = vadd.f32 0.0, %v918
  %v920 = vpop.f32.mrb[0].mxu0
  %921 = vmatprep.mubr.f32.mxu0 0.0
  %922 = vmatmul.mubr.f32.gmra.mrb[0].mxu0 %v811
  %v923 = vpop.f32.mrb[0].mxu0
  %v924 = vadd.f32 0.0, %v923
  %v925 = vpop.f32.mrb[0].mxu0
  %926 = vmatprep.mubr.f32.mxu0 0.0
  %927 = vmatmul.mubr.f32.gmra.mrb[0].mxu0 %v814
  %v928 = vpop.f32.mrb[0].mxu0
  %v929 = vadd.f32 0.0, %v928
  %v930 = vpop.f32.mrb[0].mxu0
  %931 = vmatprep.mubr.f32.mxu0 0.0
  %932 = vmatmul.mubr.f32.gmra.mrb[0].mxu0 %v817
  %v933 = vpop.f32.mrb[0].mxu0
  %v934 = vadd.f32 0.0, %v933
  %v935 = vpop.f32.mrb[0].mxu0
  %936 = vmatprep.mubr.f32.mxu0 0.0
  %937 = vmatmul.mubr.f32.gmra.mrb[0].mxu0 %v820
  %v938 = vpop.f32.mrb[0].mxu0
  %v939 = vadd.f32 0.0, %v938
  %v940 = vpop.f32.mrb[0].mxu0
  %941 = vmatprep.mubr.f32.mxu0 0.0
  %942 = vmatmul.mubr.f32.gmra.mrb[0].mxu0 %v823
  %v943 = vpop.f32.mrb[0].mxu0
  %v944 = vadd.f32 0.0, %v943
  %v945 = vpop.f32.mrb[0].mxu0
  %946 = vmatprep.mubr.f32.mxu0 0.0
  %947 = vmatmul.mubr.f32.gmra.mrb[0].mxu0 %v826
  %v948 = vpop.f32.mrb[0].mxu0
  %v949 = vadd.f32 0.0, %v948
  %v950 = vpop.f32.mrb[0].mxu0
  %951 = vmatprep.mubr.f32.mxu0 0.0
  %952 = vmatmul.mubr.f32.gmra.mrb[0].mxu0 %v829
  %v953 = vpop.f32.mrb[0].mxu0
  %v954 = vadd.f32 0.0, %v953
  %v955 = vpop.f32.mrb[0].mxu0
  %956 = vmatprep.mubr.f32.mxu0 0.0
  %957 = vmatmul.mubr.f32.gmra.mrb[0].mxu0 %v832
  %v958 = vpop.f32.mrb[0].mxu0
  %v959 = vadd.f32 0.0, %v958
  %v960 = vpop.f32.mrb[0].mxu0
  %961 = vdwg.mxu0
  %v962 = vadd.f32 %v769, %v904
  %v963 = vadd.f32 %v770, %v909
  %v964 = vadd.f32 %v771, %v914
  %v965 = vadd.f32 %v772, %v919
  %v966 = vadd.f32 %v773, %v924
  %v967 = vadd.f32 %v774, %v929
  %v968 = vadd.f32 %v775, %v934
  %v969 = vadd.f32 %v776, %v939
  %v970 = vadd.f32 %v777, %v944
  %v971 = vadd.f32 %v778, %v949
  %v972 = vadd.f32 %v779, %v954
  %v973 = vadd.f32 %v780, %v959
  %vm974 = vcmask 982016
  %975 = vst.msk [vmem:[#allocation2] sm:$0xff] %vm974, %v962
  %976 = vst.msk [vmem:[#allocation2 + $0x8] sm:$0xff] %vm974, %v963
  %977 = vst.msk [vmem:[#allocation2 + $0x10] sm:$0xff] %vm974, %v964
  %978 = vst.msk [vmem:[#allocation2 + $0x18] sm:$0xff] %vm974, %v965
  %979 = vst.msk [vmem:[#allocation2 + $0x20] sm:$0xff] %vm974, %v966
  %980 = vst.msk [vmem:[#allocation2 + $0x28] sm:$0xff] %vm974, %v967
  %981 = vst.msk [vmem:[#allocation2 + $0x30] sm:$0xff] %vm974, %v968
  %982 = vst.msk [vmem:[#allocation2 + $0x38] sm:$0xff] %vm974, %v969
  %983 = vst.msk [vmem:[#allocation2 + $0x40] sm:$0xff] %vm974, %v970
  %984 = vst.msk [vmem:[#allocation2 + $0x48] sm:$0xff] %vm974, %v971
  %985 = vst.msk [vmem:[#allocation2 + $0x50] sm:$0xff] %vm974, %v972
  %986 = vst.msk [vmem:[#allocation2 + $0x58] sm:$0xff] %vm974, %v973
  %v987 = vld [vmem:[%s0] sm:$0xff]
  %v988 = vld [vmem:[%s0 + $0x8] sm:$0xff]
  %v989 = vld [vmem:[%s0 + $0x10] sm:$0xff]
  %v990 = vld [vmem:[%s0 + $0x18] sm:$0xff]
  %v991 = vld [vmem:[%s0 + $0x20] sm:$0xff]
  %v992 = vld [vmem:[%s0 + $0x28] sm:$0xff]
  %v993 = vld [vmem:[%s0 + $0x30] sm:$0xff]
  %v994 = vld [vmem:[%s0 + $0x38] sm:$0xff]
  %v995 = vld [vmem:[%s0 + $0x40] sm:$0xff]
  %v996 = vld [vmem:[%s0 + $0x48] sm:$0xff]
  %v997 = vld [vmem:[%s0 + $0x50] sm:$0xff]
  %v998 = vld [vmem:[%s0 + $0x58] sm:$0xff]
  %s999 = scalar_lea.vmem %s1, 160
  %v1000 = vld [vmem:[%s999] sm:$0xff]
  %v1001 = vld [vmem:[%s999 + $0x8] sm:$0xff]
  %v1002 = vld [vmem:[%s999 + $0x10] sm:$0xff]
  %v1003 = vld [vmem:[%s999 + $0x18] sm:$0xf]
  %v1004 = vld [vmem:[%s0 + $0xc0] sm:$0xff]
  %v1005 = vld [vmem:[%s0 + $0xc8] sm:$0xff]
  %v1006 = vld [vmem:[%s0 + $0xd0] sm:$0xff]
  %v1007 = vld [vmem:[%s0 + $0xd8] sm:$0xff]
  %v1008 = vld [vmem:[%s0 + $0xe0] sm:$0xff]
  %v1009 = vld [vmem:[%s0 + $0xe8] sm:$0xff]
  %v1010 = vld [vmem:[%s0 + $0xf0] sm:$0xff]
  %v1011 = vld [vmem:[%s0 + $0xf8] sm:$0xff]
  %v1012 = vld [vmem:[%s0 + $0x100] sm:$0xff]
  %v1013 = vld [vmem:[%s0 + $0x108] sm:$0xff]
  %v1014 = vld [vmem:[%s0 + $0x110] sm:$0xff]
  %v1015 = vld [vmem:[%s0 + $0x118] sm:$0xff]
  %s1016 = scalar_lea.vmem %s1, 192
  %v1017 = vld [vmem:[%s1016] sm:$0xff]
  %v1018 = vld [vmem:[%s1016 + $0x8] sm:$0xff]
  %v1019 = vld [vmem:[%s1016 + $0x10] sm:$0xff]
  %v1020 = vld [vmem:[%s1016 + $0x18] sm:$0xf]
  %v1022 = vsel %vm65, %v1004, 0
  %v1025 = vsel %vm65, %v1005, 0
  %v1028 = vsel %vm65, %v1006, 0
  %v1031 = vsel %vm65, %v1007, 0
  %v1034 = vsel %vm65, %v1008, 0
  %v1037 = vsel %vm65, %v1009, 0
  %v1040 = vsel %vm65, %v1010, 0
  %v1043 = vsel %vm65, %v1011, 0
  %v1046 = vsel %vm65, %v1012, 0
  %v1049 = vsel %vm65, %v1013, 0
  %v1052 = vsel %vm65, %v1014, 0
  %v1055 = vsel %vm65, %v1015, 0
  %v1058 = vsel %vm102, %v1020, 0
  %1060 = vmatprep.subr.mxu0 0.0
  %1061 = vmatpush1.msra.mxu0 %v1017
  %1062 = vmatprep.subr.mxu0 0.0
  %1063 = vmatpush1.msra.mxu0 %v1018
  %1064 = vmatprep.subr.mxu0 0.0
  %1065 = vmatpush1.msra.mxu0 %v1019
  %1066 = vmatprep.subr.mxu0 0.0
  %1067 = vmatpush1.msra.mxu0 %v1058
  %1068 = vmatprep.subr.mxu0 0.0
  %1069 = vmatpush1.msra.mxu0 0.0
  %1070 = vmatprep.subr.mxu0 0.0
  %1071 = vmatpush1.msra.mxu0 0.0
  %1072 = vmatprep.subr.mxu0 0.0
  %1073 = vmatpush1.msra.mxu0 0.0
  %1074 = vmatprep.subr.mxu0 0.0
  %1075 = vmatpush1.msra.mxu0 0.0
  %1076 = vmatprep.subr.mxu0 0.0
  %1077 = vmatpush1.msra.mxu0 0.0
  %1078 = vmatprep.subr.mxu0 0.0
  %1079 = vmatpush1.msra.mxu0 0.0
  %1080 = vmatprep.subr.mxu0 0.0
  %1081 = vmatpush1.msra.mxu0 0.0
  %1082 = vmatprep.subr.mxu0 0.0
  %1083 = vmatpush1.msra.mxu0 0.0
  %1084 = vmatprep.subr.mxu0 0.0
  %1085 = vmatpush1.msra.mxu0 0.0
  %1086 = vmatprep.subr.mxu0 0.0
  %1087 = vmatpush1.msra.mxu0 0.0
  %1088 = vmatprep.subr.mxu0 0.0
  %1089 = vmatpush1.msra.mxu0 0.0
  %1090 = vmatprep.subr.mxu0 0.0
  %1091 = vmatpush1.msra.mxu0 0.0
  %1092 = vmatprep.subr.mxu0 0.0
  %1093 = vmatpush1.msra.mxu0 0.0
  %1094 = vmatprep.subr.mxu0 0.0
  %1095 = vmatpush1.msra.mxu0 0.0
  %1096 = vmatprep.subr.mxu0 0.0
  %1097 = vmatpush1.msra.mxu0 0.0
  %1098 = vmatprep.subr.mxu0 0.0
  %1099 = vmatpush1.msra.mxu0 0.0
  %1100 = vmatprep.subr.mxu0 0.0
  %1101 = vmatpush1.msra.mxu0 0.0
  %1102 = vmatprep.subr.mxu0 0.0
  %1103 = vmatpush1.msra.mxu0 0.0
  %1104 = vmatprep.subr.mxu0 0.0
  %1105 = vmatpush1.msra.mxu0 0.0
  %1106 = vmatprep.subr.mxu0 0.0
  %1107 = vmatpush1.msra.mxu0 0.0
  %1108 = vmatprep.subr.mxu0 0.0
  %1109 = vmatpush1.msra.mxu0 0.0
  %1110 = vmatprep.subr.mxu0 0.0
  %1111 = vmatpush1.msra.mxu0 0.0
  %1112 = vmatprep.subr.mxu0 0.0
  %1113 = vmatpush1.msra.mxu0 0.0
  %1114 = vmatprep.subr.mxu0 0.0
  %1115 = vmatpush1.msra.mxu0 0.0
  %1116 = vmatprep.subr.mxu0 0.0
  %1117 = vmatpush1.msra.mxu0 0.0
  %1118 = vmatprep.subr.mxu0 0.0
  %1119 = vmatpush1.msra.mxu0 0.0
  %1120 = vmatprep.subr.mxu0 0.0
  %1121 = vmatpush1.msra.mxu0 0.0
  %1122 = vmatprep.subr.mxu0 0.0
  %1123 = vmatpush1.msra.mxu0 0.0
  %1124 = vmatprep.mubr.f32.mxu0 0.0
  %1125 = vmatmul.mubr.f32.gmra.mrb[0].mxu0 %v1022
  %v1126 = vpop.f32.mrb[0].mxu0
  %v1127 = vadd.f32 0.0, %v1126
  %v1128 = vpop.f32.mrb[0].mxu0
  %1129 = vmatprep.mubr.f32.mxu0 0.0
  %1130 = vmatmul.mubr.f32.gmra.mrb[0].mxu0 %v1025
  %v1131 = vpop.f32.mrb[0].mxu0
  %v1132 = vadd.f32 0.0, %v1131
  %v1133 = vpop.f32.mrb[0].mxu0
  %1134 = vmatprep.mubr.f32.mxu0 0.0
  %1135 = vmatmul.mubr.f32.gmra.mrb[0].mxu0 %v1028
  %v1136 = vpop.f32.mrb[0].mxu0
  %v1137 = vadd.f32 0.0, %v1136
  %v1138 = vpop.f32.mrb[0].mxu0
  %1139 = vmatprep.mubr.f32.mxu0 0.0
  %1140 = vmatmul.mubr.f32.gmra.mrb[0].mxu0 %v1031
  %v1141 = vpop.f32.mrb[0].mxu0
  %v1142 = vadd.f32 0.0, %v1141
  %v1143 = vpop.f32.mrb[0].mxu0
  %1144 = vmatprep.mubr.f32.mxu0 0.0
  %1145 = vmatmul.mubr.f32.gmra.mrb[0].mxu0 %v1034
  %v1146 = vpop.f32.mrb[0].mxu0
  %v1147 = vadd.f32 0.0, %v1146
  %v1148 = vpop.f32.mrb[0].mxu0
  %1149 = vmatprep.mubr.f32.mxu0 0.0
  %1150 = vmatmul.mubr.f32.gmra.mrb[0].mxu0 %v1037
  %v1151 = vpop.f32.mrb[0].mxu0
  %v1152 = vadd.f32 0.0, %v1151
  %v1153 = vpop.f32.mrb[0].mxu0
  %1154 = vmatprep.mubr.f32.mxu0 0.0
  %1155 = vmatmul.mubr.f32.gmra.mrb[0].mxu0 %v1040
  %v1156 = vpop.f32.mrb[0].mxu0
  %v1157 = vadd.f32 0.0, %v1156
  %v1158 = vpop.f32.mrb[0].mxu0
  %1159 = vmatprep.mubr.f32.mxu0 0.0
  %1160 = vmatmul.mubr.f32.gmra.mrb[0].mxu0 %v1043
  %v1161 = vpop.f32.mrb[0].mxu0
  %v1162 = vadd.f32 0.0, %v1161
  %v1163 = vpop.f32.mrb[0].mxu0
  %1164 = vmatprep.mubr.f32.mxu0 0.0
  %1165 = vmatmul.mubr.f32.gmra.mrb[0].mxu0 %v1046
  %v1166 = vpop.f32.mrb[0].mxu0
  %v1167 = vadd.f32 0.0, %v1166
  %v1168 = vpop.f32.mrb[0].mxu0
  %1169 = vmatprep.mubr.f32.mxu0 0.0
  %1170 = vmatmul.mubr.f32.gmra.mrb[0].mxu0 %v1049
  %v1171 = vpop.f32.mrb[0].mxu0
  %v1172 = vadd.f32 0.0, %v1171
  %v1173 = vpop.f32.mrb[0].mxu0
  %1174 = vmatprep.mubr.f32.mxu0 0.0
  %1175 = vmatmul.mubr.f32.gmra.mrb[0].mxu0 %v1052
  %v1176 = vpop.f32.mrb[0].mxu0
  %v1177 = vadd.f32 0.0, %v1176
  %v1178 = vpop.f32.mrb[0].mxu0
  %1179 = vmatprep.mubr.f32.mxu0 0.0
  %1180 = vmatmul.mubr.f32.gmra.mrb[0].mxu0 %v1055
  %v1181 = vpop.f32.mrb[0].mxu0
  %v1182 = vadd.f32 0.0, %v1181
  %v1183 = vpop.f32.mrb[0].mxu0
  %1184 = vdwg.mxu0
  %v1186 = vsel %vm65, %v987, 0
  %v1189 = vsel %vm65, %v988, 0
  %v1192 = vsel %vm65, %v989, 0
  %v1195 = vsel %vm65, %v990, 0
  %v1198 = vsel %vm65, %v991, 0
  %v1201 = vsel %vm65, %v992, 0
  %v1204 = vsel %vm65, %v993, 0
  %v1207 = vsel %vm65, %v994, 0
  %v1210 = vsel %vm65, %v995, 0
  %v1213 = vsel %vm65, %v996, 0
  %v1216 = vsel %vm65, %v997, 0
  %v1219 = vsel %vm65, %v998, 0
  %v1222 = vsel %vm102, %v1003, 0
  %1224 = vmatprep.subr.mxu0 0.0
  %1225 = vmatpush1.msra.mxu0 %v1000
  %1226 = vmatprep.subr.mxu0 0.0
  %1227 = vmatpush1.msra.mxu0 %v1001
  %1228 = vmatprep.subr.mxu0 0.0
  %1229 = vmatpush1.msra.mxu0 %v1002
  %1230 = vmatprep.subr.mxu0 0.0
  %1231 = vmatpush1.msra.mxu0 %v1222
  %1232 = vmatprep.subr.mxu0 0.0
  %1233 = vmatpush1.msra.mxu0 0.0
  %1234 = vmatprep.subr.mxu0 0.0
  %1235 = vmatpush1.msra.mxu0 0.0
  %1236 = vmatprep.subr.mxu0 0.0
  %1237 = vmatpush1.msra.mxu0 0.0
  %1238 = vmatprep.subr.mxu0 0.0
  %1239 = vmatpush1.msra.mxu0 0.0
  %1240 = vmatprep.subr.mxu0 0.0
  %1241 = vmatpush1.msra.mxu0 0.0
  %1242 = vmatprep.subr.mxu0 0.0
  %1243 = vmatpush1.msra.mxu0 0.0
  %1244 = vmatprep.subr.mxu0 0.0
  %1245 = vmatpush1.msra.mxu0 0.0
  %1246 = vmatprep.subr.mxu0 0.0
  %1247 = vmatpush1.msra.mxu0 0.0
  %1248 = vmatprep.subr.mxu0 0.0
  %1249 = vmatpush1.msra.mxu0 0.0
  %1250 = vmatprep.subr.mxu0 0.0
  %1251 = vmatpush1.msra.mxu0 0.0
  %1252 = vmatprep.subr.mxu0 0.0
  %1253 = vmatpush1.msra.mxu0 0.0
  %1254 = vmatprep.subr.mxu0 0.0
  %1255 = vmatpush1.msra.mxu0 0.0
  %1256 = vmatprep.subr.mxu0 0.0
  %1257 = vmatpush1.msra.mxu0 0.0
  %1258 = vmatprep.subr.mxu0 0.0
  %1259 = vmatpush1.msra.mxu0 0.0
  %1260 = vmatprep.subr.mxu0 0.0
  %1261 = vmatpush1.msra.mxu0 0.0
  %1262 = vmatprep.subr.mxu0 0.0
  %1263 = vmatpush1.msra.mxu0 0.0
  %1264 = vmatprep.subr.mxu0 0.0
  %1265 = vmatpush1.msra.mxu0 0.0
  %1266 = vmatprep.subr.mxu0 0.0
  %1267 = vmatpush1.msra.mxu0 0.0
  %1268 = vmatprep.subr.mxu0 0.0
  %1269 = vmatpush1.msra.mxu0 0.0
  %1270 = vmatprep.subr.mxu0 0.0
  %1271 = vmatpush1.msra.mxu0 0.0
  %1272 = vmatprep.subr.mxu0 0.0
  %1273 = vmatpush1.msra.mxu0 0.0
  %1274 = vmatprep.subr.mxu0 0.0
  %1275 = vmatpush1.msra.mxu0 0.0
  %1276 = vmatprep.subr.mxu0 0.0
  %1277 = vmatpush1.msra.mxu0 0.0
  %1278 = vmatprep.subr.mxu0 0.0
  %1279 = vmatpush1.msra.mxu0 0.0
  %1280 = vmatprep.subr.mxu0 0.0
  %1281 = vmatpush1.msra.mxu0 0.0
  %1282 = vmatprep.subr.mxu0 0.0
  %1283 = vmatpush1.msra.mxu0 0.0
  %1284 = vmatprep.subr.mxu0 0.0
  %1285 = vmatpush1.msra.mxu0 0.0
  %1286 = vmatprep.subr.mxu0 0.0
  %1287 = vmatpush1.msra.mxu0 0.0
  %1288 = vmatprep.mubr.f32.mxu0 0.0
  %1289 = vmatmul.mubr.f32.gmra.mrb[0].mxu0 %v1186
  %v1290 = vpop.f32.mrb[0].mxu0
  %v1291 = vadd.f32 %v1127, %v1290
  %v1292 = vpop.f32.mrb[0].mxu0
  %1293 = vmatprep.mubr.f32.mxu0 0.0
  %1294 = vmatmul.mubr.f32.gmra.mrb[0].mxu0 %v1189
  %v1295 = vpop.f32.mrb[0].mxu0
  %v1296 = vadd.f32 %v1132, %v1295
  %v1297 = vpop.f32.mrb[0].mxu0
  %1298 = vmatprep.mubr.f32.mxu0 0.0
  %1299 = vmatmul.mubr.f32.gmra.mrb[0].mxu0 %v1192
  %v1300 = vpop.f32.mrb[0].mxu0
  %v1301 = vadd.f32 %v1137, %v1300
  %v1302 = vpop.f32.mrb[0].mxu0
  %1303 = vmatprep.mubr.f32.mxu0 0.0
  %1304 = vmatmul.mubr.f32.gmra.mrb[0].mxu0 %v1195
  %v1305 = vpop.f32.mrb[0].mxu0
  %v1306 = vadd.f32 %v1142, %v1305
  %v1307 = vpop.f32.mrb[0].mxu0
  %1308 = vmatprep.mubr.f32.mxu0 0.0
  %1309 = vmatmul.mubr.f32.gmra.mrb[0].mxu0 %v1198
  %v1310 = vpop.f32.mrb[0].mxu0
  %v1311 = vadd.f32 %v1147, %v1310
  %v1312 = vpop.f32.mrb[0].mxu0
  %1313 = vmatprep.mubr.f32.mxu0 0.0
  %1314 = vmatmul.mubr.f32.gmra.mrb[0].mxu0 %v1201
  %v1315 = vpop.f32.mrb[0].mxu0
  %v1316 = vadd.f32 %v1152, %v1315
  %v1317 = vpop.f32.mrb[0].mxu0
  %1318 = vmatprep.mubr.f32.mxu0 0.0
  %1319 = vmatmul.mubr.f32.gmra.mrb[0].mxu0 %v1204
  %v1320 = vpop.f32.mrb[0].mxu0
  %v1321 = vadd.f32 %v1157, %v1320
  %v1322 = vpop.f32.mrb[0].mxu0
  %1323 = vmatprep.mubr.f32.mxu0 0.0
  %1324 = vmatmul.mubr.f32.gmra.mrb[0].mxu0 %v1207
  %v1325 = vpop.f32.mrb[0].mxu0
  %v1326 = vadd.f32 %v1162, %v1325
  %v1327 = vpop.f32.mrb[0].mxu0
  %1328 = vmatprep.mubr.f32.mxu0 0.0
  %1329 = vmatmul.mubr.f32.gmra.mrb[0].mxu0 %v1210
  %v1330 = vpop.f32.mrb[0].mxu0
  %v1331 = vadd.f32 %v1167, %v1330
  %v1332 = vpop.f32.mrb[0].mxu0
  %1333 = vmatprep.mubr.f32.mxu0 0.0
  %1334 = vmatmul.mubr.f32.gmra.mrb[0].mxu0 %v1213
  %v1335 = vpop.f32.mrb[0].mxu0
  %v1336 = vadd.f32 %v1172, %v1335
  %v1337 = vpop.f32.mrb[0].mxu0
  %1338 = vmatprep.mubr.f32.mxu0 0.0
  %1339 = vmatmul.mubr.f32.gmra.mrb[0].mxu0 %v1216
  %v1340 = vpop.f32.mrb[0].mxu0
  %v1341 = vadd.f32 %v1177, %v1340
  %v1342 = vpop.f32.mrb[0].mxu0
  %1343 = vmatprep.mubr.f32.mxu0 0.0
  %1344 = vmatmul.mubr.f32.gmra.mrb[0].mxu0 %v1219
  %v1345 = vpop.f32.mrb[0].mxu0
  %v1346 = vadd.f32 %v1182, %v1345
  %v1347 = vpop.f32.mrb[0].mxu0
  %1348 = vdwg.mxu0
  %v1349 = vld [vmem:[%s0 + $0x30] sm:$0xff]
  %v1350 = vld [vmem:[%s0 + $0x38] sm:$0xff]
  %v1351 = vld [vmem:[%s0 + $0x40] sm:$0xff]
  %v1352 = vld [vmem:[%s0 + $0x48] sm:$0xff]
  %v1353 = vld [vmem:[%s0 + $0x50] sm:$0xff]
  %v1354 = vld [vmem:[%s0 + $0x58] sm:$0xff]
  %v1355 = vld [vmem:[%s0 + $0x60] sm:$0xff]
  %v1356 = vld [vmem:[%s0 + $0x68] sm:$0xff]
  %v1357 = vld [vmem:[%s0 + $0x70] sm:$0xff]
  %v1358 = vld [vmem:[%s0 + $0x78] sm:$0xff]
  %v1359 = vld [vmem:[%s0 + $0x80] sm:$0xff]
  %v1360 = vld [vmem:[%s0 + $0x88] sm:$0xff]
  %s1361 = scalar_lea.vmem %s1, 224
  %v1362 = vld [vmem:[%s1361] sm:$0xff]
  %v1363 = vld [vmem:[%s1361 + $0x8] sm:$0xff]
  %v1364 = vld [vmem:[%s1361 + $0x10] sm:$0xff]
  %v1365 = vld [vmem:[%s1361 + $0x18] sm:$0xf]
  %v1367 = vsel %vm65, %v1349, 0
  %v1370 = vsel %vm65, %v1350, 0
  %v1373 = vsel %vm65, %v1351, 0
  %v1376 = vsel %vm65, %v1352, 0
  %v1379 = vsel %vm65, %v1353, 0
  %v1382 = vsel %vm65, %v1354, 0
  %v1385 = vsel %vm65, %v1355, 0
  %v1388 = vsel %vm65, %v1356, 0
  %v1391 = vsel %vm65, %v1357, 0
  %v1394 = vsel %vm65, %v1358, 0
  %v1397 = vsel %vm65, %v1359, 0
  %v1400 = vsel %vm65, %v1360, 0
  %v1403 = vsel %vm102, %v1365, 0
  %1405 = vmatprep.subr.mxu0 0.0
  %1406 = vmatpush1.msra.mxu0 %v1362
  %1407 = vmatprep.subr.mxu0 0.0
  %1408 = vmatpush1.msra.mxu0 %v1363
  %1409 = vmatprep.subr.mxu0 0.0
  %1410 = vmatpush1.msra.mxu0 %v1364
  %1411 = vmatprep.subr.mxu0 0.0
  %1412 = vmatpush1.msra.mxu0 %v1403
  %1413 = vmatprep.subr.mxu0 0.0
  %1414 = vmatpush1.msra.mxu0 0.0
  %1415 = vmatprep.subr.mxu0 0.0
  %1416 = vmatpush1.msra.mxu0 0.0
  %1417 = vmatprep.subr.mxu0 0.0
  %1418 = vmatpush1.msra.mxu0 0.0
  %1419 = vmatprep.subr.mxu0 0.0
  %1420 = vmatpush1.msra.mxu0 0.0
  %1421 = vmatprep.subr.mxu0 0.0
  %1422 = vmatpush1.msra.mxu0 0.0
  %1423 = vmatprep.subr.mxu0 0.0
  %1424 = vmatpush1.msra.mxu0 0.0
  %1425 = vmatprep.subr.mxu0 0.0
  %1426 = vmatpush1.msra.mxu0 0.0
  %1427 = vmatprep.subr.mxu0 0.0
  %1428 = vmatpush1.msra.mxu0 0.0
  %1429 = vmatprep.subr.mxu0 0.0
  %1430 = vmatpush1.msra.mxu0 0.0
  %1431 = vmatprep.subr.mxu0 0.0
  %1432 = vmatpush1.msra.mxu0 0.0
  %1433 = vmatprep.subr.mxu0 0.0
  %1434 = vmatpush1.msra.mxu0 0.0
  %1435 = vmatprep.subr.mxu0 0.0
  %1436 = vmatpush1.msra.mxu0 0.0
  %1437 = vmatprep.subr.mxu0 0.0
  %1438 = vmatpush1.msra.mxu0 0.0
  %1439 = vmatprep.subr.mxu0 0.0
  %1440 = vmatpush1.msra.mxu0 0.0
  %1441 = vmatprep.subr.mxu0 0.0
  %1442 = vmatpush1.msra.mxu0 0.0
  %1443 = vmatprep.subr.mxu0 0.0
  %1444 = vmatpush1.msra.mxu0 0.0
  %1445 = vmatprep.subr.mxu0 0.0
  %1446 = vmatpush1.msra.mxu0 0.0
  %1447 = vmatprep.subr.mxu0 0.0
  %1448 = vmatpush1.msra.mxu0 0.0
  %1449 = vmatprep.subr.mxu0 0.0
  %1450 = vmatpush1.msra.mxu0 0.0
  %1451 = vmatprep.subr.mxu0 0.0
  %1452 = vmatpush1.msra.mxu0 0.0
  %1453 = vmatprep.subr.mxu0 0.0
  %1454 = vmatpush1.msra.mxu0 0.0
  %1455 = vmatprep.subr.mxu0 0.0
  %1456 = vmatpush1.msra.mxu0 0.0
  %1457 = vmatprep.subr.mxu0 0.0
  %1458 = vmatpush1.msra.mxu0 0.0
  %1459 = vmatprep.subr.mxu0 0.0
  %1460 = vmatpush1.msra.mxu0 0.0
  %1461 = vmatprep.subr.mxu0 0.0
  %1462 = vmatpush1.msra.mxu0 0.0
  %1463 = vmatprep.subr.mxu0 0.0
  %1464 = vmatpush1.msra.mxu0 0.0
  %1465 = vmatprep.subr.mxu0 0.0
  %1466 = vmatpush1.msra.mxu0 0.0
  %1467 = vmatprep.subr.mxu0 0.0
  %1468 = vmatpush1.msra.mxu0 0.0
  %1469 = vmatprep.mubr.f32.mxu0 0.0
  %1470 = vmatmul.mubr.f32.gmra.mrb[0].mxu0 %v1367
  %v1471 = vpop.f32.mrb[0].mxu0
  %v1472 = vadd.f32 0.0, %v1471
  %v1473 = vpop.f32.mrb[0].mxu0
  %1474 = vmatprep.mubr.f32.mxu0 0.0
  %1475 = vmatmul.mubr.f32.gmra.mrb[0].mxu0 %v1370
  %v1476 = vpop.f32.mrb[0].mxu0
  %v1477 = vadd.f32 0.0, %v1476
  %v1478 = vpop.f32.mrb[0].mxu0
  %1479 = vmatprep.mubr.f32.mxu0 0.0
  %1480 = vmatmul.mubr.f32.gmra.mrb[0].mxu0 %v1373
  %v1481 = vpop.f32.mrb[0].mxu0
  %v1482 = vadd.f32 0.0, %v1481
  %v1483 = vpop.f32.mrb[0].mxu0
  %1484 = vmatprep.mubr.f32.mxu0 0.0
  %1485 = vmatmul.mubr.f32.gmra.mrb[0].mxu0 %v1376
  %v1486 = vpop.f32.mrb[0].mxu0
  %v1487 = vadd.f32 0.0, %v1486
  %v1488 = vpop.f32.mrb[0].mxu0
  %1489 = vmatprep.mubr.f32.mxu0 0.0
  %1490 = vmatmul.mubr.f32.gmra.mrb[0].mxu0 %v1379
  %v1491 = vpop.f32.mrb[0].mxu0
  %v1492 = vadd.f32 0.0, %v1491
  %v1493 = vpop.f32.mrb[0].mxu0
  %1494 = vmatprep.mubr.f32.mxu0 0.0
  %1495 = vmatmul.mubr.f32.gmra.mrb[0].mxu0 %v1382
  %v1496 = vpop.f32.mrb[0].mxu0
  %v1497 = vadd.f32 0.0, %v1496
  %v1498 = vpop.f32.mrb[0].mxu0
  %1499 = vmatprep.mubr.f32.mxu0 0.0
  %1500 = vmatmul.mubr.f32.gmra.mrb[0].mxu0 %v1385
  %v1501 = vpop.f32.mrb[0].mxu0
  %v1502 = vadd.f32 0.0, %v1501
  %v1503 = vpop.f32.mrb[0].mxu0
  %1504 = vmatprep.mubr.f32.mxu0 0.0
  %1505 = vmatmul.mubr.f32.gmra.mrb[0].mxu0 %v1388
  %v1506 = vpop.f32.mrb[0].mxu0
  %v1507 = vadd.f32 0.0, %v1506
  %v1508 = vpop.f32.mrb[0].mxu0
  %1509 = vmatprep.mubr.f32.mxu0 0.0
  %1510 = vmatmul.mubr.f32.gmra.mrb[0].mxu0 %v1391
  %v1511 = vpop.f32.mrb[0].mxu0
  %v1512 = vadd.f32 0.0, %v1511
  %v1513 = vpop.f32.mrb[0].mxu0
  %1514 = vmatprep.mubr.f32.mxu0 0.0
  %1515 = vmatmul.mubr.f32.gmra.mrb[0].mxu0 %v1394
  %v1516 = vpop.f32.mrb[0].mxu0
  %v1517 = vadd.f32 0.0, %v1516
  %v1518 = vpop.f32.mrb[0].mxu0
  %1519 = vmatprep.mubr.f32.mxu0 0.0
  %1520 = vmatmul.mubr.f32.gmra.mrb[0].mxu0 %v1397
  %v1521 = vpop.f32.mrb[0].mxu0
  %v1522 = vadd.f32 0.0, %v1521
  %v1523 = vpop.f32.mrb[0].mxu0
  %1524 = vmatprep.mubr.f32.mxu0 0.0
  %1525 = vmatmul.mubr.f32.gmra.mrb[0].mxu0 %v1400
  %v1526 = vpop.f32.mrb[0].mxu0
  %v1527 = vadd.f32 0.0, %v1526
  %v1528 = vpop.f32.mrb[0].mxu0
  %1529 = vdwg.mxu0
  %v1530 = vadd.f32 %v1291, %v1472
  %v1531 = vadd.f32 %v1296, %v1477
  %v1532 = vadd.f32 %v1301, %v1482
  %v1533 = vadd.f32 %v1306, %v1487
  %v1534 = vadd.f32 %v1311, %v1492
  %v1535 = vadd.f32 %v1316, %v1497
  %v1536 = vadd.f32 %v1321, %v1502
  %v1537 = vadd.f32 %v1326, %v1507
  %v1538 = vadd.f32 %v1331, %v1512
  %v1539 = vadd.f32 %v1336, %v1517
  %v1540 = vadd.f32 %v1341, %v1522
  %v1541 = vadd.f32 %v1346, %v1527
  %v1542 = vld [vmem:[%s0 + $0xf0] sm:$0xff]
  %v1543 = vld [vmem:[%s0 + $0xf8] sm:$0xff]
  %v1544 = vld [vmem:[%s0 + $0x100] sm:$0xff]
  %v1545 = vld [vmem:[%s0 + $0x108] sm:$0xff]
  %v1546 = vld [vmem:[%s0 + $0x110] sm:$0xff]
  %v1547 = vld [vmem:[%s0 + $0x118] sm:$0xff]
  %v1548 = vld [vmem:[%s0 + $0x120] sm:$0xff]
  %v1549 = vld [vmem:[%s0 + $0x128] sm:$0xff]
  %v1550 = vld [vmem:[%s0 + $0x130] sm:$0xff]
  %v1551 = vld [vmem:[%s0 + $0x138] sm:$0xff]
  %v1552 = vld [vmem:[%s0 + $0x140] sm:$0xff]
  %v1553 = vld [vmem:[%s0 + $0x148] sm:$0xff]
  %s1554 = scalar_lea.vmem %s1, 256
  %v1555 = vld [vmem:[%s1554] sm:$0xff]
  %v1556 = vld [vmem:[%s1554 + $0x8] sm:$0xff]
  %v1557 = vld [vmem:[%s1554 + $0x10] sm:$0xff]
  %v1558 = vld [vmem:[%s1554 + $0x18] sm:$0xf]
  %v1560 = vsel %vm65, %v1542, 0
  %v1563 = vsel %vm65, %v1543, 0
  %v1566 = vsel %vm65, %v1544, 0
  %v1569 = vsel %vm65, %v1545, 0
  %v1572 = vsel %vm65, %v1546, 0
  %v1575 = vsel %vm65, %v1547, 0
  %v1578 = vsel %vm65, %v1548, 0
  %v1581 = vsel %vm65, %v1549, 0
  %v1584 = vsel %vm65, %v1550, 0
  %v1587 = vsel %vm65, %v1551, 0
  %v1590 = vsel %vm65, %v1552, 0
  %v1593 = vsel %vm65, %v1553, 0
  %v1596 = vsel %vm102, %v1558, 0
  %1598 = vmatprep.subr.mxu0 0.0
  %1599 = vmatpush1.msra.mxu0 %v1555
  %1600 = vmatprep.subr.mxu0 0.0
  %1601 = vmatpush1.msra.mxu0 %v1556
  %1602 = vmatprep.subr.mxu0 0.0
  %1603 = vmatpush1.msra.mxu0 %v1557
  %1604 = vmatprep.subr.mxu0 0.0
  %1605 = vmatpush1.msra.mxu0 %v1596
  %1606 = vmatprep.subr.mxu0 0.0
  %1607 = vmatpush1.msra.mxu0 0.0
  %1608 = vmatprep.subr.mxu0 0.0
  %1609 = vmatpush1.msra.mxu0 0.0
  %1610 = vmatprep.subr.mxu0 0.0
  %1611 = vmatpush1.msra.mxu0 0.0
  %1612 = vmatprep.subr.mxu0 0.0
  %1613 = vmatpush1.msra.mxu0 0.0
  %1614 = vmatprep.subr.mxu0 0.0
  %1615 = vmatpush1.msra.mxu0 0.0
  %1616 = vmatprep.subr.mxu0 0.0
  %1617 = vmatpush1.msra.mxu0 0.0
  %1618 = vmatprep.subr.mxu0 0.0
  %1619 = vmatpush1.msra.mxu0 0.0
  %1620 = vmatprep.subr.mxu0 0.0
  %1621 = vmatpush1.msra.mxu0 0.0
  %1622 = vmatprep.subr.mxu0 0.0
  %1623 = vmatpush1.msra.mxu0 0.0
  %1624 = vmatprep.subr.mxu0 0.0
  %1625 = vmatpush1.msra.mxu0 0.0
  %1626 = vmatprep.subr.mxu0 0.0
  %1627 = vmatpush1.msra.mxu0 0.0
  %1628 = vmatprep.subr.mxu0 0.0
  %1629 = vmatpush1.msra.mxu0 0.0
  %1630 = vmatprep.subr.mxu0 0.0
  %1631 = vmatpush1.msra.mxu0 0.0
  %1632 = vmatprep.subr.mxu0 0.0
  %1633 = vmatpush1.msra.mxu0 0.0
  %1634 = vmatprep.subr.mxu0 0.0
  %1635 = vmatpush1.msra.mxu0 0.0
  %1636 = vmatprep.subr.mxu0 0.0
  %1637 = vmatpush1.msra.mxu0 0.0
  %1638 = vmatprep.subr.mxu0 0.0
  %1639 = vmatpush1.msra.mxu0 0.0
  %1640 = vmatprep.subr.mxu0 0.0
  %1641 = vmatpush1.msra.mxu0 0.0
  %1642 = vmatprep.subr.mxu0 0.0
  %1643 = vmatpush1.msra.mxu0 0.0
  %1644 = vmatprep.subr.mxu0 0.0
  %1645 = vmatpush1.msra.mxu0 0.0
  %1646 = vmatprep.subr.mxu0 0.0
  %1647 = vmatpush1.msra.mxu0 0.0
  %1648 = vmatprep.subr.mxu0 0.0
  %1649 = vmatpush1.msra.mxu0 0.0
  %1650 = vmatprep.subr.mxu0 0.0
  %1651 = vmatpush1.msra.mxu0 0.0
  %1652 = vmatprep.subr.mxu0 0.0
  %1653 = vmatpush1.msra.mxu0 0.0
  %1654 = vmatprep.subr.mxu0 0.0
  %1655 = vmatpush1.msra.mxu0 0.0
  %1656 = vmatprep.subr.mxu0 0.0
  %1657 = vmatpush1.msra.mxu0 0.0
  %1658 = vmatprep.subr.mxu0 0.0
  %1659 = vmatpush1.msra.mxu0 0.0
  %1660 = vmatprep.subr.mxu0 0.0
  %1661 = vmatpush1.msra.mxu0 0.0
  %1662 = vmatprep.mubr.f32.mxu0 0.0
  %1663 = vmatmul.mubr.f32.gmra.mrb[0].mxu0 %v1560
  %v1664 = vpop.f32.mrb[0].mxu0
  %v1665 = vadd.f32 0.0, %v1664
  %v1666 = vpop.f32.mrb[0].mxu0
  %1667 = vmatprep.mubr.f32.mxu0 0.0
  %1668 = vmatmul.mubr.f32.gmra.mrb[0].mxu0 %v1563
  %v1669 = vpop.f32.mrb[0].mxu0
  %v1670 = vadd.f32 0.0, %v1669
  %v1671 = vpop.f32.mrb[0].mxu0
  %1672 = vmatprep.mubr.f32.mxu0 0.0
  %1673 = vmatmul.mubr.f32.gmra.mrb[0].mxu0 %v1566
  %v1674 = vpop.f32.mrb[0].mxu0
  %v1675 = vadd.f32 0.0, %v1674
  %v1676 = vpop.f32.mrb[0].mxu0
  %1677 = vmatprep.mubr.f32.mxu0 0.0
  %1678 = vmatmul.mubr.f32.gmra.mrb[0].mxu0 %v1569
  %v1679 = vpop.f32.mrb[0].mxu0
  %v1680 = vadd.f32 0.0, %v1679
  %v1681 = vpop.f32.mrb[0].mxu0
  %1682 = vmatprep.mubr.f32.mxu0 0.0
  %1683 = vmatmul.mubr.f32.gmra.mrb[0].mxu0 %v1572
  %v1684 = vpop.f32.mrb[0].mxu0
  %v1685 = vadd.f32 0.0, %v1684
  %v1686 = vpop.f32.mrb[0].mxu0
  %1687 = vmatprep.mubr.f32.mxu0 0.0
  %1688 = vmatmul.mubr.f32.gmra.mrb[0].mxu0 %v1575
  %v1689 = vpop.f32.mrb[0].mxu0
  %v1690 = vadd.f32 0.0, %v1689
  %v1691 = vpop.f32.mrb[0].mxu0
  %1692 = vmatprep.mubr.f32.mxu0 0.0
  %1693 = vmatmul.mubr.f32.gmra.mrb[0].mxu0 %v1578
  %v1694 = vpop.f32.mrb[0].mxu0
  %v1695 = vadd.f32 0.0, %v1694
  %v1696 = vpop.f32.mrb[0].mxu0
  %1697 = vmatprep.mubr.f32.mxu0 0.0
  %1698 = vmatmul.mubr.f32.gmra.mrb[0].mxu0 %v1581
  %v1699 = vpop.f32.mrb[0].mxu0
  %v1700 = vadd.f32 0.0, %v1699
  %v1701 = vpop.f32.mrb[0].mxu0
  %1702 = vmatprep.mubr.f32.mxu0 0.0
  %1703 = vmatmul.mubr.f32.gmra.mrb[0].mxu0 %v1584
  %v1704 = vpop.f32.mrb[0].mxu0
  %v1705 = vadd.f32 0.0, %v1704
  %v1706 = vpop.f32.mrb[0].mxu0
  %1707 = vmatprep.mubr.f32.mxu0 0.0
  %1708 = vmatmul.mubr.f32.gmra.mrb[0].mxu0 %v1587
  %v1709 = vpop.f32.mrb[0].mxu0
  %v1710 = vadd.f32 0.0, %v1709
  %v1711 = vpop.f32.mrb[0].mxu0
  %1712 = vmatprep.mubr.f32.mxu0 0.0
  %1713 = vmatmul.mubr.f32.gmra.mrb[0].mxu0 %v1590
  %v1714 = vpop.f32.mrb[0].mxu0
  %v1715 = vadd.f32 0.0, %v1714
  %v1716 = vpop.f32.mrb[0].mxu0
  %1717 = vmatprep.mubr.f32.mxu0 0.0
  %1718 = vmatmul.mubr.f32.gmra.mrb[0].mxu0 %v1593
  %v1719 = vpop.f32.mrb[0].mxu0
  %v1720 = vadd.f32 0.0, %v1719
  %v1721 = vpop.f32.mrb[0].mxu0
  %1722 = vdwg.mxu0
  %v1723 = vadd.f32 %v1530, %v1665
  %v1724 = vadd.f32 %v1531, %v1670
  %v1725 = vadd.f32 %v1532, %v1675
  %v1726 = vadd.f32 %v1533, %v1680
  %v1727 = vadd.f32 %v1534, %v1685
  %v1728 = vadd.f32 %v1535, %v1690
  %v1729 = vadd.f32 %v1536, %v1695
  %v1730 = vadd.f32 %v1537, %v1700
  %v1731 = vadd.f32 %v1538, %v1705
  %v1732 = vadd.f32 %v1539, %v1710
  %v1733 = vadd.f32 %v1540, %v1715
  %v1734 = vadd.f32 %v1541, %v1720
  %v1735 = vld [vmem:[%s0 + $0x60] sm:$0xff]
  %v1736 = vld [vmem:[%s0 + $0x68] sm:$0xff]
  %v1737 = vld [vmem:[%s0 + $0x70] sm:$0xff]
  %v1738 = vld [vmem:[%s0 + $0x78] sm:$0xff]
  %v1739 = vld [vmem:[%s0 + $0x80] sm:$0xff]
  %v1740 = vld [vmem:[%s0 + $0x88] sm:$0xff]
  %v1741 = vld [vmem:[%s0 + $0x90] sm:$0xff]
  %v1742 = vld [vmem:[%s0 + $0x98] sm:$0xff]
  %v1743 = vld [vmem:[%s0 + $0xa0] sm:$0xff]
  %v1744 = vld [vmem:[%s0 + $0xa8] sm:$0xff]
  %v1745 = vld [vmem:[%s0 + $0xb0] sm:$0xff]
  %v1746 = vld [vmem:[%s0 + $0xb8] sm:$0xff]
  %s1747 = scalar_lea.vmem %s1, 288
  %v1748 = vld [vmem:[%s1747] sm:$0xff]
  %v1749 = vld [vmem:[%s1747 + $0x8] sm:$0xff]
  %v1750 = vld [vmem:[%s1747 + $0x10] sm:$0xff]
  %v1751 = vld [vmem:[%s1747 + $0x18] sm:$0xf]
  %v1753 = vsel %vm65, %v1735, 0
  %v1756 = vsel %vm65, %v1736, 0
  %v1759 = vsel %vm65, %v1737, 0
  %v1762 = vsel %vm65, %v1738, 0
  %v1765 = vsel %vm65, %v1739, 0
  %v1768 = vsel %vm65, %v1740, 0
  %v1771 = vsel %vm65, %v1741, 0
  %v1774 = vsel %vm65, %v1742, 0
  %v1777 = vsel %vm65, %v1743, 0
  %v1780 = vsel %vm65, %v1744, 0
  %v1783 = vsel %vm65, %v1745, 0
  %v1786 = vsel %vm65, %v1746, 0
  %v1789 = vsel %vm102, %v1751, 0
  %1791 = vmatprep.subr.mxu0 0.0
  %1792 = vmatpush1.msra.mxu0 %v1748
  %1793 = vmatprep.subr.mxu0 0.0
  %1794 = vmatpush1.msra.mxu0 %v1749
  %1795 = vmatprep.subr.mxu0 0.0
  %1796 = vmatpush1.msra.mxu0 %v1750
  %1797 = vmatprep.subr.mxu0 0.0
  %1798 = vmatpush1.msra.mxu0 %v1789
  %1799 = vmatprep.subr.mxu0 0.0
  %1800 = vmatpush1.msra.mxu0 0.0
  %1801 = vmatprep.subr.mxu0 0.0
  %1802 = vmatpush1.msra.mxu0 0.0
  %1803 = vmatprep.subr.mxu0 0.0
  %1804 = vmatpush1.msra.mxu0 0.0
  %1805 = vmatprep.subr.mxu0 0.0
  %1806 = vmatpush1.msra.mxu0 0.0
  %1807 = vmatprep.subr.mxu0 0.0
  %1808 = vmatpush1.msra.mxu0 0.0
  %1809 = vmatprep.subr.mxu0 0.0
  %1810 = vmatpush1.msra.mxu0 0.0
  %1811 = vmatprep.subr.mxu0 0.0
  %1812 = vmatpush1.msra.mxu0 0.0
  %1813 = vmatprep.subr.mxu0 0.0
  %1814 = vmatpush1.msra.mxu0 0.0
  %1815 = vmatprep.subr.mxu0 0.0
  %1816 = vmatpush1.msra.mxu0 0.0
  %1817 = vmatprep.subr.mxu0 0.0
  %1818 = vmatpush1.msra.mxu0 0.0
  %1819 = vmatprep.subr.mxu0 0.0
  %1820 = vmatpush1.msra.mxu0 0.0
  %1821 = vmatprep.subr.mxu0 0.0
  %1822 = vmatpush1.msra.mxu0 0.0
  %1823 = vmatprep.subr.mxu0 0.0
  %1824 = vmatpush1.msra.mxu0 0.0
  %1825 = vmatprep.subr.mxu0 0.0
  %1826 = vmatpush1.msra.mxu0 0.0
  %1827 = vmatprep.subr.mxu0 0.0
  %1828 = vmatpush1.msra.mxu0 0.0
  %1829 = vmatprep.subr.mxu0 0.0
  %1830 = vmatpush1.msra.mxu0 0.0
  %1831 = vmatprep.subr.mxu0 0.0
  %1832 = vmatpush1.msra.mxu0 0.0
  %1833 = vmatprep.subr.mxu0 0.0
  %1834 = vmatpush1.msra.mxu0 0.0
  %1835 = vmatprep.subr.mxu0 0.0
  %1836 = vmatpush1.msra.mxu0 0.0
  %1837 = vmatprep.subr.mxu0 0.0
  %1838 = vmatpush1.msra.mxu0 0.0
  %1839 = vmatprep.subr.mxu0 0.0
  %1840 = vmatpush1.msra.mxu0 0.0
  %1841 = vmatprep.subr.mxu0 0.0
  %1842 = vmatpush1.msra.mxu0 0.0
  %1843 = vmatprep.subr.mxu0 0.0
  %1844 = vmatpush1.msra.mxu0 0.0
  %1845 = vmatprep.subr.mxu0 0.0
  %1846 = vmatpush1.msra.mxu0 0.0
  %1847 = vmatprep.subr.mxu0 0.0
  %1848 = vmatpush1.msra.mxu0 0.0
  %1849 = vmatprep.subr.mxu0 0.0
  %1850 = vmatpush1.msra.mxu0 0.0
  %1851 = vmatprep.subr.mxu0 0.0
  %1852 = vmatpush1.msra.mxu0 0.0
  %1853 = vmatprep.subr.mxu0 0.0
  %1854 = vmatpush1.msra.mxu0 0.0
  %1855 = vmatprep.mubr.f32.mxu0 0.0
  %1856 = vmatmul.mubr.f32.gmra.mrb[0].mxu0 %v1753
  %v1857 = vpop.f32.mrb[0].mxu0
  %v1858 = vadd.f32 0.0, %v1857
  %v1859 = vpop.f32.mrb[0].mxu0
  %1860 = vmatprep.mubr.f32.mxu0 0.0
  %1861 = vmatmul.mubr.f32.gmra.mrb[0].mxu0 %v1756
  %v1862 = vpop.f32.mrb[0].mxu0
  %v1863 = vadd.f32 0.0, %v1862
  %v1864 = vpop.f32.mrb[0].mxu0
  %1865 = vmatprep.mubr.f32.mxu0 0.0
  %1866 = vmatmul.mubr.f32.gmra.mrb[0].mxu0 %v1759
  %v1867 = vpop.f32.mrb[0].mxu0
  %v1868 = vadd.f32 0.0, %v1867
  %v1869 = vpop.f32.mrb[0].mxu0
  %1870 = vmatprep.mubr.f32.mxu0 0.0
  %1871 = vmatmul.mubr.f32.gmra.mrb[0].mxu0 %v1762
  %v1872 = vpop.f32.mrb[0].mxu0
  %v1873 = vadd.f32 0.0, %v1872
  %v1874 = vpop.f32.mrb[0].mxu0
  %1875 = vmatprep.mubr.f32.mxu0 0.0
  %1876 = vmatmul.mubr.f32.gmra.mrb[0].mxu0 %v1765
  %v1877 = vpop.f32.mrb[0].mxu0
  %v1878 = vadd.f32 0.0, %v1877
  %v1879 = vpop.f32.mrb[0].mxu0
  %1880 = vmatprep.mubr.f32.mxu0 0.0
  %1881 = vmatmul.mubr.f32.gmra.mrb[0].mxu0 %v1768
  %v1882 = vpop.f32.mrb[0].mxu0
  %v1883 = vadd.f32 0.0, %v1882
  %v1884 = vpop.f32.mrb[0].mxu0
  %1885 = vmatprep.mubr.f32.mxu0 0.0
  %1886 = vmatmul.mubr.f32.gmra.mrb[0].mxu0 %v1771
  %v1887 = vpop.f32.mrb[0].mxu0
  %v1888 = vadd.f32 0.0, %v1887
  %v1889 = vpop.f32.mrb[0].mxu0
  %1890 = vmatprep.mubr.f32.mxu0 0.0
  %1891 = vmatmul.mubr.f32.gmra.mrb[0].mxu0 %v1774
  %v1892 = vpop.f32.mrb[0].mxu0
  %v1893 = vadd.f32 0.0, %v1892
  %v1894 = vpop.f32.mrb[0].mxu0
  %1895 = vmatprep.mubr.f32.mxu0 0.0
  %1896 = vmatmul.mubr.f32.gmra.mrb[0].mxu0 %v1777
  %v1897 = vpop.f32.mrb[0].mxu0
  %v1898 = vadd.f32 0.0, %v1897
  %v1899 = vpop.f32.mrb[0].mxu0
  %1900 = vmatprep.mubr.f32.mxu0 0.0
  %1901 = vmatmul.mubr.f32.gmra.mrb[0].mxu0 %v1780
  %v1902 = vpop.f32.mrb[0].mxu0
  %v1903 = vadd.f32 0.0, %v1902
  %v1904 = vpop.f32.mrb[0].mxu0
  %1905 = vmatprep.mubr.f32.mxu0 0.0
  %1906 = vmatmul.mubr.f32.gmra.mrb[0].mxu0 %v1783
  %v1907 = vpop.f32.mrb[0].mxu0
  %v1908 = vadd.f32 0.0, %v1907
  %v1909 = vpop.f32.mrb[0].mxu0
  %1910 = vmatprep.mubr.f32.mxu0 0.0
  %1911 = vmatmul.mubr.f32.gmra.mrb[0].mxu0 %v1786
  %v1912 = vpop.f32.mrb[0].mxu0
  %v1913 = vadd.f32 0.0, %v1912
  %v1914 = vpop.f32.mrb[0].mxu0
  %1915 = vdwg.mxu0
  %v1916 = vadd.f32 %v1723, %v1858
  %v1917 = vadd.f32 %v1724, %v1863
  %v1918 = vadd.f32 %v1725, %v1868
  %v1919 = vadd.f32 %v1726, %v1873
  %v1920 = vadd.f32 %v1727, %v1878
  %v1921 = vadd.f32 %v1728, %v1883
  %v1922 = vadd.f32 %v1729, %v1888
  %v1923 = vadd.f32 %v1730, %v1893
  %v1924 = vadd.f32 %v1731, %v1898
  %v1925 = vadd.f32 %v1732, %v1903
  %v1926 = vadd.f32 %v1733, %v1908
  %v1927 = vadd.f32 %v1734, %v1913
  %v1928 = vld [vmem:[#allocation2] sm:$0xff]
  %v1929 = vld [vmem:[#allocation2 + $0x8] sm:$0xff]
  %v1930 = vld [vmem:[#allocation2 + $0x10] sm:$0xff]
  %v1931 = vld [vmem:[#allocation2 + $0x18] sm:$0xff]
  %v1932 = vld [vmem:[#allocation2 + $0x20] sm:$0xff]
  %v1933 = vld [vmem:[#allocation2 + $0x28] sm:$0xff]
  %v1934 = vld [vmem:[#allocation2 + $0x30] sm:$0xff]
  %v1935 = vld [vmem:[#allocation2 + $0x38] sm:$0xff]
  %v1936 = vld [vmem:[#allocation2 + $0x40] sm:$0xff]
  %v1937 = vld [vmem:[#allocation2 + $0x48] sm:$0xff]
  %v1938 = vld [vmem:[#allocation2 + $0x50] sm:$0xff]
  %v1939 = vld [vmem:[#allocation2 + $0x58] sm:$0xff]
  %v1940 = vmax.f32 %v1928, %v1916
  %v1941 = vmax.f32 %v1929, %v1917
  %v1942 = vmax.f32 %v1930, %v1918
  %v1943 = vmax.f32 %v1931, %v1919
  %v1944 = vmax.f32 %v1932, %v1920
  %v1945 = vmax.f32 %v1933, %v1921
  %v1946 = vmax.f32 %v1934, %v1922
  %v1947 = vmax.f32 %v1935, %v1923
  %v1948 = vmax.f32 %v1936, %v1924
  %v1949 = vmax.f32 %v1937, %v1925
  %v1950 = vmax.f32 %v1938, %v1926
  %v1951 = vmax.f32 %v1939, %v1927
  %1952 = vst.msk [vmem:[#allocation2] sm:$0xff] %vm974, %v1940
  %1953 = vst.msk [vmem:[#allocation2 + $0x8] sm:$0xff] %vm974, %v1941
  %1954 = vst.msk [vmem:[#allocation2 + $0x10] sm:$0xff] %vm974, %v1942
  %1955 = vst.msk [vmem:[#allocation2 + $0x18] sm:$0xff] %vm974, %v1943
  %1956 = vst.msk [vmem:[#allocation2 + $0x20] sm:$0xff] %vm974, %v1944
  %1957 = vst.msk [vmem:[#allocation2 + $0x28] sm:$0xff] %vm974, %v1945
  %1958 = vst.msk [vmem:[#allocation2 + $0x30] sm:$0xff] %vm974, %v1946
  %1959 = vst.msk [vmem:[#allocation2 + $0x38] sm:$0xff] %vm974, %v1947
  %1960 = vst.msk [vmem:[#allocation2 + $0x40] sm:$0xff] %vm974, %v1948
  %1961 = vst.msk [vmem:[#allocation2 + $0x48] sm:$0xff] %vm974, %v1949
  %1962 = vst.msk [vmem:[#allocation2 + $0x50] sm:$0xff] %vm974, %v1950
  %1963 = vst.msk [vmem:[#allocation2 + $0x58] sm:$0xff] %vm974, %v1951
  %v1964 = vld [vmem:[%s0 + $0xc0] sm:$0xff]
  %v1965 = vld [vmem:[%s0 + $0xc8] sm:$0xff]
  %v1966 = vld [vmem:[%s0 + $0xd0] sm:$0xff]
  %v1967 = vld [vmem:[%s0 + $0xd8] sm:$0xff]
  %v1968 = vld [vmem:[%s0 + $0xe0] sm:$0xff]
  %v1969 = vld [vmem:[%s0 + $0xe8] sm:$0xff]
  %v1970 = vld [vmem:[%s0 + $0xf0] sm:$0xff]
  %v1971 = vld [vmem:[%s0 + $0xf8] sm:$0xff]
  %v1972 = vld [vmem:[%s0 + $0x100] sm:$0xff]
  %v1973 = vld [vmem:[%s0 + $0x108] sm:$0xff]
  %v1974 = vld [vmem:[%s0 + $0x110] sm:$0xff]
  %v1975 = vld [vmem:[%s0 + $0x118] sm:$0xff]
  %v1976 = vld [vmem:[%s1] sm:$0xff]
  %v1977 = vld [vmem:[%s1 + $0x8] sm:$0xff]
  %v1978 = vld [vmem:[%s1 + $0x10] sm:$0xff]
  %v1979 = vld [vmem:[%s1 + $0x18] sm:$0xf]
  %v1980 = vld [vmem:[%s0 + $0x30] sm:$0xff]
  %v1981 = vld [vmem:[%s0 + $0x38] sm:$0xff]
  %v1982 = vld [vmem:[%s0 + $0x40] sm:$0xff]
  %v1983 = vld [vmem:[%s0 + $0x48] sm:$0xff]
  %v1984 = vld [vmem:[%s0 + $0x50] sm:$0xff]
  %v1985 = vld [vmem:[%s0 + $0x58] sm:$0xff]
  %v1986 = vld [vmem:[%s0 + $0x60] sm:$0xff]
  %v1987 = vld [vmem:[%s0 + $0x68] sm:$0xff]
  %v1988 = vld [vmem:[%s0 + $0x70] sm:$0xff]
  %v1989 = vld [vmem:[%s0 + $0x78] sm:$0xff]
  %v1990 = vld [vmem:[%s0 + $0x80] sm:$0xff]
  %v1991 = vld [vmem:[%s0 + $0x88] sm:$0xff]
  %v1992 = vld [vmem:[%s60] sm:$0xff]
  %v1993 = vld [vmem:[%s60 + $0x8] sm:$0xff]
  %v1994 = vld [vmem:[%s60 + $0x10] sm:$0xff]
  %v1995 = vld [vmem:[%s60 + $0x18] sm:$0xf]
  %v1997 = vsel %vm65, %v1980, 0
  %v2000 = vsel %vm65, %v1981, 0
  %v2003 = vsel %vm65, %v1982, 0
  %v2006 = vsel %vm65, %v1983, 0
  %v2009 = vsel %vm65, %v1984, 0
  %v2012 = vsel %vm65, %v1985, 0
  %v2015 = vsel %vm65, %v1986, 0
  %v2018 = vsel %vm65, %v1987, 0
  %v2021 = vsel %vm65, %v1988, 0
  %v2024 = vsel %vm65, %v1989, 0
  %v2027 = vsel %vm65, %v1990, 0
  %v2030 = vsel %vm65, %v1991, 0
  %v2033 = vsel %vm102, %v1995, 0
  %2035 = vmatprep.subr.mxu0 0.0
  %2036 = vmatpush1.msra.mxu0 %v1992
  %2037 = vmatprep.subr.mxu0 0.0
  %2038 = vmatpush1.msra.mxu0 %v1993
  %2039 = vmatprep.subr.mxu0 0.0
  %2040 = vmatpush1.msra.mxu0 %v1994
  %2041 = vmatprep.subr.mxu0 0.0
  %2042 = vmatpush1.msra.mxu0 %v2033
  %2043 = vmatprep.subr.mxu0 0.0
  %2044 = vmatpush1.msra.mxu0 0.0
  %2045 = vmatprep.subr.mxu0 0.0
  %2046 = vmatpush1.msra.mxu0 0.0
  %2047 = vmatprep.subr.mxu0 0.0
  %2048 = vmatpush1.msra.mxu0 0.0
  %2049 = vmatprep.subr.mxu0 0.0
  %2050 = vmatpush1.msra.mxu0 0.0
  %2051 = vmatprep.subr.mxu0 0.0
  %2052 = vmatpush1.msra.mxu0 0.0
  %2053 = vmatprep.subr.mxu0 0.0
  %2054 = vmatpush1.msra.mxu0 0.0
  %2055 = vmatprep.subr.mxu0 0.0
  %2056 = vmatpush1.msra.mxu0 0.0
  %2057 = vmatprep.subr.mxu0 0.0
  %2058 = vmatpush1.msra.mxu0 0.0
  %2059 = vmatprep.subr.mxu0 0.0
  %2060 = vmatpush1.msra.mxu0 0.0
  %2061 = vmatprep.subr.mxu0 0.0
  %2062 = vmatpush1.msra.mxu0 0.0
  %2063 = vmatprep.subr.mxu0 0.0
  %2064 = vmatpush1.msra.mxu0 0.0
  %2065 = vmatprep.subr.mxu0 0.0
  %2066 = vmatpush1.msra.mxu0 0.0
  %2067 = vmatprep.subr.mxu0 0.0
  %2068 = vmatpush1.msra.mxu0 0.0
  %2069 = vmatprep.subr.mxu0 0.0
  %2070 = vmatpush1.msra.mxu0 0.0
  %2071 = vmatprep.subr.mxu0 0.0
  %2072 = vmatpush1.msra.mxu0 0.0
  %2073 = vmatprep.subr.mxu0 0.0
  %2074 = vmatpush1.msra.mxu0 0.0
  %2075 = vmatprep.subr.mxu0 0.0
  %2076 = vmatpush1.msra.mxu0 0.0
  %2077 = vmatprep.subr.mxu0 0.0
  %2078 = vmatpush1.msra.mxu0 0.0
  %2079 = vmatprep.subr.mxu0 0.0
  %2080 = vmatpush1.msra.mxu0 0.0
  %2081 = vmatprep.subr.mxu0 0.0
  %2082 = vmatpush1.msra.mxu0 0.0
  %2083 = vmatprep.subr.mxu0 0.0
  %2084 = vmatpush1.msra.mxu0 0.0
  %2085 = vmatprep.subr.mxu0 0.0
  %2086 = vmatpush1.msra.mxu0 0.0
  %2087 = vmatprep.subr.mxu0 0.0
  %2088 = vmatpush1.msra.mxu0 0.0
  %2089 = vmatprep.subr.mxu0 0.0
  %2090 = vmatpush1.msra.mxu0 0.0
  %2091 = vmatprep.subr.mxu0 0.0
  %2092 = vmatpush1.msra.mxu0 0.0
  %2093 = vmatprep.subr.mxu0 0.0
  %2094 = vmatpush1.msra.mxu0 0.0
  %2095 = vmatprep.subr.mxu0 0.0
  %2096 = vmatpush1.msra.mxu0 0.0
  %2097 = vmatprep.subr.mxu0 0.0
  %2098 = vmatpush1.msra.mxu0 0.0
  %2099 = vmatprep.mubr.f32.mxu0 0.0
  %2100 = vmatmul.mubr.f32.gmra.mrb[0].mxu0 %v1997
  %v2101 = vpop.f32.mrb[0].mxu0
  %v2102 = vadd.f32 0.0, %v2101
  %v2103 = vpop.f32.mrb[0].mxu0
  %2104 = vmatprep.mubr.f32.mxu0 0.0
  %2105 = vmatmul.mubr.f32.gmra.mrb[0].mxu0 %v2000
  %v2106 = vpop.f32.mrb[0].mxu0
  %v2107 = vadd.f32 0.0, %v2106
  %v2108 = vpop.f32.mrb[0].mxu0
  %2109 = vmatprep.mubr.f32.mxu0 0.0
  %2110 = vmatmul.mubr.f32.gmra.mrb[0].mxu0 %v2003
  %v2111 = vpop.f32.mrb[0].mxu0
  %v2112 = vadd.f32 0.0, %v2111
  %v2113 = vpop.f32.mrb[0].mxu0
  %2114 = vmatprep.mubr.f32.mxu0 0.0
  %2115 = vmatmul.mubr.f32.gmra.mrb[0].mxu0 %v2006
  %v2116 = vpop.f32.mrb[0].mxu0
  %v2117 = vadd.f32 0.0, %v2116
  %v2118 = vpop.f32.mrb[0].mxu0
  %2119 = vmatprep.mubr.f32.mxu0 0.0
  %2120 = vmatmul.mubr.f32.gmra.mrb[0].mxu0 %v2009
  %v2121 = vpop.f32.mrb[0].mxu0
  %v2122 = vadd.f32 0.0, %v2121
  %v2123 = vpop.f32.mrb[0].mxu0
  %2124 = vmatprep.mubr.f32.mxu0 0.0
  %2125 = vmatmul.mubr.f32.gmra.mrb[0].mxu0 %v2012
  %v2126 = vpop.f32.mrb[0].mxu0
  %v2127 = vadd.f32 0.0, %v2126
  %v2128 = vpop.f32.mrb[0].mxu0
  %2129 = vmatprep.mubr.f32.mxu0 0.0
  %2130 = vmatmul.mubr.f32.gmra.mrb[0].mxu0 %v2015
  %v2131 = vpop.f32.mrb[0].mxu0
  %v2132 = vadd.f32 0.0, %v2131
  %v2133 = vpop.f32.mrb[0].mxu0
  %2134 = vmatprep.mubr.f32.mxu0 0.0
  %2135 = vmatmul.mubr.f32.gmra.mrb[0].mxu0 %v2018
  %v2136 = vpop.f32.mrb[0].mxu0
  %v2137 = vadd.f32 0.0, %v2136
  %v2138 = vpop.f32.mrb[0].mxu0
  %2139 = vmatprep.mubr.f32.mxu0 0.0
  %2140 = vmatmul.mubr.f32.gmra.mrb[0].mxu0 %v2021
  %v2141 = vpop.f32.mrb[0].mxu0
  %v2142 = vadd.f32 0.0, %v2141
  %v2143 = vpop.f32.mrb[0].mxu0
  %2144 = vmatprep.mubr.f32.mxu0 0.0
  %2145 = vmatmul.mubr.f32.gmra.mrb[0].mxu0 %v2024
  %v2146 = vpop.f32.mrb[0].mxu0
  %v2147 = vadd.f32 0.0, %v2146
  %v2148 = vpop.f32.mrb[0].mxu0
  %2149 = vmatprep.mubr.f32.mxu0 0.0
  %2150 = vmatmul.mubr.f32.gmra.mrb[0].mxu0 %v2027
  %v2151 = vpop.f32.mrb[0].mxu0
  %v2152 = vadd.f32 0.0, %v2151
  %v2153 = vpop.f32.mrb[0].mxu0
  %2154 = vmatprep.mubr.f32.mxu0 0.0
  %2155 = vmatmul.mubr.f32.gmra.mrb[0].mxu0 %v2030
  %v2156 = vpop.f32.mrb[0].mxu0
  %v2157 = vadd.f32 0.0, %v2156
  %v2158 = vpop.f32.mrb[0].mxu0
  %2159 = vdwg.mxu0
  %v2161 = vsel %vm65, %v1964, 0
  %v2164 = vsel %vm65, %v1965, 0
  %v2167 = vsel %vm65, %v1966, 0
  %v2170 = vsel %vm65, %v1967, 0
  %v2173 = vsel %vm65, %v1968, 0
  %v2176 = vsel %vm65, %v1969, 0
  %v2179 = vsel %vm65, %v1970, 0
  %v2182 = vsel %vm65, %v1971, 0
  %v2185 = vsel %vm65, %v1972, 0
  %v2188 = vsel %vm65, %v1973, 0
  %v2191 = vsel %vm65, %v1974, 0
  %v2194 = vsel %vm65, %v1975, 0
  %v2197 = vsel %vm102, %v1979, 0
  %2199 = vmatprep.subr.mxu0 0.0
  %2200 = vmatpush1.msra.mxu0 %v1976
  %2201 = vmatprep.subr.mxu0 0.0
  %2202 = vmatpush1.msra.mxu0 %v1977
  %2203 = vmatprep.subr.mxu0 0.0
  %2204 = vmatpush1.msra.mxu0 %v1978
  %2205 = vmatprep.subr.mxu0 0.0
  %2206 = vmatpush1.msra.mxu0 %v2197
  %2207 = vmatprep.subr.mxu0 0.0
  %2208 = vmatpush1.msra.mxu0 0.0
  %2209 = vmatprep.subr.mxu0 0.0
  %2210 = vmatpush1.msra.mxu0 0.0
  %2211 = vmatprep.subr.mxu0 0.0
  %2212 = vmatpush1.msra.mxu0 0.0
  %2213 = vmatprep.subr.mxu0 0.0
  %2214 = vmatpush1.msra.mxu0 0.0
  %2215 = vmatprep.subr.mxu0 0.0
  %2216 = vmatpush1.msra.mxu0 0.0
  %2217 = vmatprep.subr.mxu0 0.0
  %2218 = vmatpush1.msra.mxu0 0.0
  %2219 = vmatprep.subr.mxu0 0.0
  %2220 = vmatpush1.msra.mxu0 0.0
  %2221 = vmatprep.subr.mxu0 0.0
  %2222 = vmatpush1.msra.mxu0 0.0
  %2223 = vmatprep.subr.mxu0 0.0
  %2224 = vmatpush1.msra.mxu0 0.0
  %2225 = vmatprep.subr.mxu0 0.0
  %2226 = vmatpush1.msra.mxu0 0.0
  %2227 = vmatprep.subr.mxu0 0.0
  %2228 = vmatpush1.msra.mxu0 0.0
  %2229 = vmatprep.subr.mxu0 0.0
  %2230 = vmatpush1.msra.mxu0 0.0
  %2231 = vmatprep.subr.mxu0 0.0
  %2232 = vmatpush1.msra.mxu0 0.0
  %2233 = vmatprep.subr.mxu0 0.0
  %2234 = vmatpush1.msra.mxu0 0.0
  %2235 = vmatprep.subr.mxu0 0.0
  %2236 = vmatpush1.msra.mxu0 0.0
  %2237 = vmatprep.subr.mxu0 0.0
  %2238 = vmatpush1.msra.mxu0 0.0
  %2239 = vmatprep.subr.mxu0 0.0
  %2240 = vmatpush1.msra.mxu0 0.0
  %2241 = vmatprep.subr.mxu0 0.0
  %2242 = vmatpush1.msra.mxu0 0.0
  %2243 = vmatprep.subr.mxu0 0.0
  %2244 = vmatpush1.msra.mxu0 0.0
  %2245 = vmatprep.subr.mxu0 0.0
  %2246 = vmatpush1.msra.mxu0 0.0
  %2247 = vmatprep.subr.mxu0 0.0
  %2248 = vmatpush1.msra.mxu0 0.0
  %2249 = vmatprep.subr.mxu0 0.0
  %2250 = vmatpush1.msra.mxu0 0.0
  %2251 = vmatprep.subr.mxu0 0.0
  %2252 = vmatpush1.msra.mxu0 0.0
  %2253 = vmatprep.subr.mxu0 0.0
  %2254 = vmatpush1.msra.mxu0 0.0
  %2255 = vmatprep.subr.mxu0 0.0
  %2256 = vmatpush1.msra.mxu0 0.0
  %2257 = vmatprep.subr.mxu0 0.0
  %2258 = vmatpush1.msra.mxu0 0.0
  %2259 = vmatprep.subr.mxu0 0.0
  %2260 = vmatpush1.msra.mxu0 0.0
  %2261 = vmatprep.subr.mxu0 0.0
  %2262 = vmatpush1.msra.mxu0 0.0
  %2263 = vmatprep.mubr.f32.mxu0 0.0
  %2264 = vmatmul.mubr.f32.gmra.mrb[0].mxu0 %v2161
  %v2265 = vpop.f32.mrb[0].mxu0
  %v2266 = vadd.f32 %v2102, %v2265
  %v2267 = vpop.f32.mrb[0].mxu0
  %2268 = vmatprep.mubr.f32.mxu0 0.0
  %2269 = vmatmul.mubr.f32.gmra.mrb[0].mxu0 %v2164
  %v2270 = vpop.f32.mrb[0].mxu0
  %v2271 = vadd.f32 %v2107, %v2270
  %v2272 = vpop.f32.mrb[0].mxu0
  %2273 = vmatprep.mubr.f32.mxu0 0.0
  %2274 = vmatmul.mubr.f32.gmra.mrb[0].mxu0 %v2167
  %v2275 = vpop.f32.mrb[0].mxu0
  %v2276 = vadd.f32 %v2112, %v2275
  %v2277 = vpop.f32.mrb[0].mxu0
  %2278 = vmatprep.mubr.f32.mxu0 0.0
  %2279 = vmatmul.mubr.f32.gmra.mrb[0].mxu0 %v2170
  %v2280 = vpop.f32.mrb[0].mxu0
  %v2281 = vadd.f32 %v2117, %v2280
  %v2282 = vpop.f32.mrb[0].mxu0
  %2283 = vmatprep.mubr.f32.mxu0 0.0
  %2284 = vmatmul.mubr.f32.gmra.mrb[0].mxu0 %v2173
  %v2285 = vpop.f32.mrb[0].mxu0
  %v2286 = vadd.f32 %v2122, %v2285
  %v2287 = vpop.f32.mrb[0].mxu0
  %2288 = vmatprep.mubr.f32.mxu0 0.0
  %2289 = vmatmul.mubr.f32.gmra.mrb[0].mxu0 %v2176
  %v2290 = vpop.f32.mrb[0].mxu0
  %v2291 = vadd.f32 %v2127, %v2290
  %v2292 = vpop.f32.mrb[0].mxu0
  %2293 = vmatprep.mubr.f32.mxu0 0.0
  %2294 = vmatmul.mubr.f32.gmra.mrb[0].mxu0 %v2179
  %v2295 = vpop.f32.mrb[0].mxu0
  %v2296 = vadd.f32 %v2132, %v2295
  %v2297 = vpop.f32.mrb[0].mxu0
  %2298 = vmatprep.mubr.f32.mxu0 0.0
  %2299 = vmatmul.mubr.f32.gmra.mrb[0].mxu0 %v2182
  %v2300 = vpop.f32.mrb[0].mxu0
  %v2301 = vadd.f32 %v2137, %v2300
  %v2302 = vpop.f32.mrb[0].mxu0
  %2303 = vmatprep.mubr.f32.mxu0 0.0
  %2304 = vmatmul.mubr.f32.gmra.mrb[0].mxu0 %v2185
  %v2305 = vpop.f32.mrb[0].mxu0
  %v2306 = vadd.f32 %v2142, %v2305
  %v2307 = vpop.f32.mrb[0].mxu0
  %2308 = vmatprep.mubr.f32.mxu0 0.0
  %2309 = vmatmul.mubr.f32.gmra.mrb[0].mxu0 %v2188
  %v2310 = vpop.f32.mrb[0].mxu0
  %v2311 = vadd.f32 %v2147, %v2310
  %v2312 = vpop.f32.mrb[0].mxu0
  %2313 = vmatprep.mubr.f32.mxu0 0.0
  %2314 = vmatmul.mubr.f32.gmra.mrb[0].mxu0 %v2191
  %v2315 = vpop.f32.mrb[0].mxu0
  %v2316 = vadd.f32 %v2152, %v2315
  %v2317 = vpop.f32.mrb[0].mxu0
  %2318 = vmatprep.mubr.f32.mxu0 0.0
  %2319 = vmatmul.mubr.f32.gmra.mrb[0].mxu0 %v2194
  %v2320 = vpop.f32.mrb[0].mxu0
  %v2321 = vadd.f32 %v2157, %v2320
  %v2322 = vpop.f32.mrb[0].mxu0
  %2323 = vdwg.mxu0
  %v2324 = vld [vmem:[%s0 + $0xf0] sm:$0xff]
  %v2325 = vld [vmem:[%s0 + $0xf8] sm:$0xff]
  %v2326 = vld [vmem:[%s0 + $0x100] sm:$0xff]
  %v2327 = vld [vmem:[%s0 + $0x108] sm:$0xff]
  %v2328 = vld [vmem:[%s0 + $0x110] sm:$0xff]
  %v2329 = vld [vmem:[%s0 + $0x118] sm:$0xff]
  %v2330 = vld [vmem:[%s0 + $0x120] sm:$0xff]
  %v2331 = vld [vmem:[%s0 + $0x128] sm:$0xff]
  %v2332 = vld [vmem:[%s0 + $0x130] sm:$0xff]
  %v2333 = vld [vmem:[%s0 + $0x138] sm:$0xff]
  %v2334 = vld [vmem:[%s0 + $0x140] sm:$0xff]
  %v2335 = vld [vmem:[%s0 + $0x148] sm:$0xff]
  %v2336 = vld [vmem:[%s407] sm:$0xff]
  %v2337 = vld [vmem:[%s407 + $0x8] sm:$0xff]
  %v2338 = vld [vmem:[%s407 + $0x10] sm:$0xff]
  %v2339 = vld [vmem:[%s407 + $0x18] sm:$0xf]
  %v2341 = vsel %vm65, %v2324, 0
  %v2344 = vsel %vm65, %v2325, 0
  %v2347 = vsel %vm65, %v2326, 0
  %v2350 = vsel %vm65, %v2327, 0
  %v2353 = vsel %vm65, %v2328, 0
  %v2356 = vsel %vm65, %v2329, 0
  %v2359 = vsel %vm65, %v2330, 0
  %v2362 = vsel %vm65, %v2331, 0
  %v2365 = vsel %vm65, %v2332, 0
  %v2368 = vsel %vm65, %v2333, 0
  %v2371 = vsel %vm65, %v2334, 0
  %v2374 = vsel %vm65, %v2335, 0
  %v2377 = vsel %vm102, %v2339, 0
  %2379 = vmatprep.subr.mxu0 0.0
  %2380 = vmatpush1.msra.mxu0 %v2336
  %2381 = vmatprep.subr.mxu0 0.0
  %2382 = vmatpush1.msra.mxu0 %v2337
  %2383 = vmatprep.subr.mxu0 0.0
  %2384 = vmatpush1.msra.mxu0 %v2338
  %2385 = vmatprep.subr.mxu0 0.0
  %2386 = vmatpush1.msra.mxu0 %v2377
  %2387 = vmatprep.subr.mxu0 0.0
  %2388 = vmatpush1.msra.mxu0 0.0
  %2389 = vmatprep.subr.mxu0 0.0
  %2390 = vmatpush1.msra.mxu0 0.0
  %2391 = vmatprep.subr.mxu0 0.0
  %2392 = vmatpush1.msra.mxu0 0.0
  %2393 = vmatprep.subr.mxu0 0.0
  %2394 = vmatpush1.msra.mxu0 0.0
  %2395 = vmatprep.subr.mxu0 0.0
  %2396 = vmatpush1.msra.mxu0 0.0
  %2397 = vmatprep.subr.mxu0 0.0
  %2398 = vmatpush1.msra.mxu0 0.0
  %2399 = vmatprep.subr.mxu0 0.0
  %2400 = vmatpush1.msra.mxu0 0.0
  %2401 = vmatprep.subr.mxu0 0.0
  %2402 = vmatpush1.msra.mxu0 0.0
  %2403 = vmatprep.subr.mxu0 0.0
  %2404 = vmatpush1.msra.mxu0 0.0
  %2405 = vmatprep.subr.mxu0 0.0
  %2406 = vmatpush1.msra.mxu0 0.0
  %2407 = vmatprep.subr.mxu0 0.0
  %2408 = vmatpush1.msra.mxu0 0.0
  %2409 = vmatprep.subr.mxu0 0.0
  %2410 = vmatpush1.msra.mxu0 0.0
  %2411 = vmatprep.subr.mxu0 0.0
  %2412 = vmatpush1.msra.mxu0 0.0
  %2413 = vmatprep.subr.mxu0 0.0
  %2414 = vmatpush1.msra.mxu0 0.0
  %2415 = vmatprep.subr.mxu0 0.0
  %2416 = vmatpush1.msra.mxu0 0.0
  %2417 = vmatprep.subr.mxu0 0.0
  %2418 = vmatpush1.msra.mxu0 0.0
  %2419 = vmatprep.subr.mxu0 0.0
  %2420 = vmatpush1.msra.mxu0 0.0
  %2421 = vmatprep.subr.mxu0 0.0
  %2422 = vmatpush1.msra.mxu0 0.0
  %2423 = vmatprep.subr.mxu0 0.0
  %2424 = vmatpush1.msra.mxu0 0.0
  %2425 = vmatprep.subr.mxu0 0.0
  %2426 = vmatpush1.msra.mxu0 0.0
  %2427 = vmatprep.subr.mxu0 0.0
  %2428 = vmatpush1.msra.mxu0 0.0
  %2429 = vmatprep.subr.mxu0 0.0
  %2430 = vmatpush1.msra.mxu0 0.0
  %2431 = vmatprep.subr.mxu0 0.0
  %2432 = vmatpush1.msra.mxu0 0.0
  %2433 = vmatprep.subr.mxu0 0.0
  %2434 = vmatpush1.msra.mxu0 0.0
  %2435 = vmatprep.subr.mxu0 0.0
  %2436 = vmatpush1.msra.mxu0 0.0
  %2437 = vmatprep.subr.mxu0 0.0
  %2438 = vmatpush1.msra.mxu0 0.0
  %2439 = vmatprep.subr.mxu0 0.0
  %2440 = vmatpush1.msra.mxu0 0.0
  %2441 = vmatprep.subr.mxu0 0.0
  %2442 = vmatpush1.msra.mxu0 0.0
  %2443 = vmatprep.mubr.f32.mxu0 0.0
  %2444 = vmatmul.mubr.f32.gmra.mrb[0].mxu0 %v2341
  %v2445 = vpop.f32.mrb[0].mxu0
  %v2446 = vadd.f32 0.0, %v2445
  %v2447 = vpop.f32.mrb[0].mxu0
  %2448 = vmatprep.mubr.f32.mxu0 0.0
  %2449 = vmatmul.mubr.f32.gmra.mrb[0].mxu0 %v2344
  %v2450 = vpop.f32.mrb[0].mxu0
  %v2451 = vadd.f32 0.0, %v2450
  %v2452 = vpop.f32.mrb[0].mxu0
  %2453 = vmatprep.mubr.f32.mxu0 0.0
  %2454 = vmatmul.mubr.f32.gmra.mrb[0].mxu0 %v2347
  %v2455 = vpop.f32.mrb[0].mxu0
  %v2456 = vadd.f32 0.0, %v2455
  %v2457 = vpop.f32.mrb[0].mxu0
  %2458 = vmatprep.mubr.f32.mxu0 0.0
  %2459 = vmatmul.mubr.f32.gmra.mrb[0].mxu0 %v2350
  %v2460 = vpop.f32.mrb[0].mxu0
  %v2461 = vadd.f32 0.0, %v2460
  %v2462 = vpop.f32.mrb[0].mxu0
  %2463 = vmatprep.mubr.f32.mxu0 0.0
  %2464 = vmatmul.mubr.f32.gmra.mrb[0].mxu0 %v2353
  %v2465 = vpop.f32.mrb[0].mxu0
  %v2466 = vadd.f32 0.0, %v2465
  %v2467 = vpop.f32.mrb[0].mxu0
  %2468 = vmatprep.mubr.f32.mxu0 0.0
  %2469 = vmatmul.mubr.f32.gmra.mrb[0].mxu0 %v2356
  %v2470 = vpop.f32.mrb[0].mxu0
  %v2471 = vadd.f32 0.0, %v2470
  %v2472 = vpop.f32.mrb[0].mxu0
  %2473 = vmatprep.mubr.f32.mxu0 0.0
  %2474 = vmatmul.mubr.f32.gmra.mrb[0].mxu0 %v2359
  %v2475 = vpop.f32.mrb[0].mxu0
  %v2476 = vadd.f32 0.0, %v2475
  %v2477 = vpop.f32.mrb[0].mxu0
  %2478 = vmatprep.mubr.f32.mxu0 0.0
  %2479 = vmatmul.mubr.f32.gmra.mrb[0].mxu0 %v2362
  %v2480 = vpop.f32.mrb[0].mxu0
  %v2481 = vadd.f32 0.0, %v2480
  %v2482 = vpop.f32.mrb[0].mxu0
  %2483 = vmatprep.mubr.f32.mxu0 0.0
  %2484 = vmatmul.mubr.f32.gmra.mrb[0].mxu0 %v2365
  %v2485 = vpop.f32.mrb[0].mxu0
  %v2486 = vadd.f32 0.0, %v2485
  %v2487 = vpop.f32.mrb[0].mxu0
  %2488 = vmatprep.mubr.f32.mxu0 0.0
  %2489 = vmatmul.mubr.f32.gmra.mrb[0].mxu0 %v2368
  %v2490 = vpop.f32.mrb[0].mxu0
  %v2491 = vadd.f32 0.0, %v2490
  %v2492 = vpop.f32.mrb[0].mxu0
  %2493 = vmatprep.mubr.f32.mxu0 0.0
  %2494 = vmatmul.mubr.f32.gmra.mrb[0].mxu0 %v2371
  %v2495 = vpop.f32.mrb[0].mxu0
  %v2496 = vadd.f32 0.0, %v2495
  %v2497 = vpop.f32.mrb[0].mxu0
  %2498 = vmatprep.mubr.f32.mxu0 0.0
  %2499 = vmatmul.mubr.f32.gmra.mrb[0].mxu0 %v2374
  %v2500 = vpop.f32.mrb[0].mxu0
  %v2501 = vadd.f32 0.0, %v2500
  %v2502 = vpop.f32.mrb[0].mxu0
  %2503 = vdwg.mxu0
  %v2504 = vadd.f32 %v2266, %v2446
  %v2505 = vadd.f32 %v2271, %v2451
  %v2506 = vadd.f32 %v2276, %v2456
  %v2507 = vadd.f32 %v2281, %v2461
  %v2508 = vadd.f32 %v2286, %v2466
  %v2509 = vadd.f32 %v2291, %v2471
  %v2510 = vadd.f32 %v2296, %v2476
  %v2511 = vadd.f32 %v2301, %v2481
  %v2512 = vadd.f32 %v2306, %v2486
  %v2513 = vadd.f32 %v2311, %v2491
  %v2514 = vadd.f32 %v2316, %v2496
  %v2515 = vadd.f32 %v2321, %v2501
  %v2516 = vld [vmem:[%s0 + $0x60] sm:$0xff]
  %v2517 = vld [vmem:[%s0 + $0x68] sm:$0xff]
  %v2518 = vld [vmem:[%s0 + $0x70] sm:$0xff]
  %v2519 = vld [vmem:[%s0 + $0x78] sm:$0xff]
  %v2520 = vld [vmem:[%s0 + $0x80] sm:$0xff]
  %v2521 = vld [vmem:[%s0 + $0x88] sm:$0xff]
  %v2522 = vld [vmem:[%s0 + $0x90] sm:$0xff]
  %v2523 = vld [vmem:[%s0 + $0x98] sm:$0xff]
  %v2524 = vld [vmem:[%s0 + $0xa0] sm:$0xff]
  %v2525 = vld [vmem:[%s0 + $0xa8] sm:$0xff]
  %v2526 = vld [vmem:[%s0 + $0xb0] sm:$0xff]
  %v2527 = vld [vmem:[%s0 + $0xb8] sm:$0xff]
  %v2528 = vld [vmem:[%s600] sm:$0xff]
  %v2529 = vld [vmem:[%s600 + $0x8] sm:$0xff]
  %v2530 = vld [vmem:[%s600 + $0x10] sm:$0xff]
  %v2531 = vld [vmem:[%s600 + $0x18] sm:$0xf]
  %v2533 = vsel %vm65, %v2516, 0
  %v2536 = vsel %vm65, %v2517, 0
  %v2539 = vsel %vm65, %v2518, 0
  %v2542 = vsel %vm65, %v2519, 0
  %v2545 = vsel %vm65, %v2520, 0
  %v2548 = vsel %vm65, %v2521, 0
  %v2551 = vsel %vm65, %v2522, 0
  %v2554 = vsel %vm65, %v2523, 0
  %v2557 = vsel %vm65, %v2524, 0
  %v2560 = vsel %vm65, %v2525, 0
  %v2563 = vsel %vm65, %v2526, 0
  %v2566 = vsel %vm65, %v2527, 0
  %v2569 = vsel %vm102, %v2531, 0
  %2571 = vmatprep.subr.mxu0 0.0
  %2572 = vmatpush1.msra.mxu0 %v2528
  %2573 = vmatprep.subr.mxu0 0.0
  %2574 = vmatpush1.msra.mxu0 %v2529
  %2575 = vmatprep.subr.mxu0 0.0
  %2576 = vmatpush1.msra.mxu0 %v2530
  %2577 = vmatprep.subr.mxu0 0.0
  %2578 = vmatpush1.msra.mxu0 %v2569
  %2579 = vmatprep.subr.mxu0 0.0
  %2580 = vmatpush1.msra.mxu0 0.0
  %2581 = vmatprep.subr.mxu0 0.0
  %2582 = vmatpush1.msra.mxu0 0.0
  %2583 = vmatprep.subr.mxu0 0.0
  %2584 = vmatpush1.msra.mxu0 0.0
  %2585 = vmatprep.subr.mxu0 0.0
  %2586 = vmatpush1.msra.mxu0 0.0
  %2587 = vmatprep.subr.mxu0 0.0
  %2588 = vmatpush1.msra.mxu0 0.0
  %2589 = vmatprep.subr.mxu0 0.0
  %2590 = vmatpush1.msra.mxu0 0.0
  %2591 = vmatprep.subr.mxu0 0.0
  %2592 = vmatpush1.msra.mxu0 0.0
  %2593 = vmatprep.subr.mxu0 0.0
  %2594 = vmatpush1.msra.mxu0 0.0
  %2595 = vmatprep.subr.mxu0 0.0
  %2596 = vmatpush1.msra.mxu0 0.0
  %2597 = vmatprep.subr.mxu0 0.0
  %2598 = vmatpush1.msra.mxu0 0.0
  %2599 = vmatprep.subr.mxu0 0.0
  %2600 = vmatpush1.msra.mxu0 0.0
  %2601 = vmatprep.subr.mxu0 0.0
  %2602 = vmatpush1.msra.mxu0 0.0
  %2603 = vmatprep.subr.mxu0 0.0
  %2604 = vmatpush1.msra.mxu0 0.0
  %2605 = vmatprep.subr.mxu0 0.0
  %2606 = vmatpush1.msra.mxu0 0.0
  %2607 = vmatprep.subr.mxu0 0.0
  %2608 = vmatpush1.msra.mxu0 0.0
  %2609 = vmatprep.subr.mxu0 0.0
  %2610 = vmatpush1.msra.mxu0 0.0
  %2611 = vmatprep.subr.mxu0 0.0
  %2612 = vmatpush1.msra.mxu0 0.0
  %2613 = vmatprep.subr.mxu0 0.0
  %2614 = vmatpush1.msra.mxu0 0.0
  %2615 = vmatprep.subr.mxu0 0.0
  %2616 = vmatpush1.msra.mxu0 0.0
  %2617 = vmatprep.subr.mxu0 0.0
  %2618 = vmatpush1.msra.mxu0 0.0
  %2619 = vmatprep.subr.mxu0 0.0
  %2620 = vmatpush1.msra.mxu0 0.0
  %2621 = vmatprep.subr.mxu0 0.0
  %2622 = vmatpush1.msra.mxu0 0.0
  %2623 = vmatprep.subr.mxu0 0.0
  %2624 = vmatpush1.msra.mxu0 0.0
  %2625 = vmatprep.subr.mxu0 0.0
  %2626 = vmatpush1.msra.mxu0 0.0
  %2627 = vmatprep.subr.mxu0 0.0
  %2628 = vmatpush1.msra.mxu0 0.0
  %2629 = vmatprep.subr.mxu0 0.0
  %2630 = vmatpush1.msra.mxu0 0.0
  %2631 = vmatprep.subr.mxu0 0.0
  %2632 = vmatpush1.msra.mxu0 0.0
  %2633 = vmatprep.subr.mxu0 0.0
  %2634 = vmatpush1.msra.mxu0 0.0
  %2635 = vmatprep.mubr.f32.mxu0 0.0
  %2636 = vmatmul.mubr.f32.gmra.mrb[0].mxu0 %v2533
  %v2637 = vpop.f32.mrb[0].mxu0
  %v2638 = vadd.f32 0.0, %v2637
  %v2639 = vpop.f32.mrb[0].mxu0
  %2640 = vmatprep.mubr.f32.mxu0 0.0
  %2641 = vmatmul.mubr.f32.gmra.mrb[0].mxu0 %v2536
  %v2642 = vpop.f32.mrb[0].mxu0
  %v2643 = vadd.f32 0.0, %v2642
  %v2644 = vpop.f32.mrb[0].mxu0
  %2645 = vmatprep.mubr.f32.mxu0 0.0
  %2646 = vmatmul.mubr.f32.gmra.mrb[0].mxu0 %v2539
  %v2647 = vpop.f32.mrb[0].mxu0
  %v2648 = vadd.f32 0.0, %v2647
  %v2649 = vpop.f32.mrb[0].mxu0
  %2650 = vmatprep.mubr.f32.mxu0 0.0
  %2651 = vmatmul.mubr.f32.gmra.mrb[0].mxu0 %v2542
  %v2652 = vpop.f32.mrb[0].mxu0
  %v2653 = vadd.f32 0.0, %v2652
  %v2654 = vpop.f32.mrb[0].mxu0
  %2655 = vmatprep.mubr.f32.mxu0 0.0
  %2656 = vmatmul.mubr.f32.gmra.mrb[0].mxu0 %v2545
  %v2657 = vpop.f32.mrb[0].mxu0
  %v2658 = vadd.f32 0.0, %v2657
  %v2659 = vpop.f32.mrb[0].mxu0
  %2660 = vmatprep.mubr.f32.mxu0 0.0
  %2661 = vmatmul.mubr.f32.gmra.mrb[0].mxu0 %v2548
  %v2662 = vpop.f32.mrb[0].mxu0
  %v2663 = vadd.f32 0.0, %v2662
  %v2664 = vpop.f32.mrb[0].mxu0
  %2665 = vmatprep.mubr.f32.mxu0 0.0
  %2666 = vmatmul.mubr.f32.gmra.mrb[0].mxu0 %v2551
  %v2667 = vpop.f32.mrb[0].mxu0
  %v2668 = vadd.f32 0.0, %v2667
  %v2669 = vpop.f32.mrb[0].mxu0
  %2670 = vmatprep.mubr.f32.mxu0 0.0
  %2671 = vmatmul.mubr.f32.gmra.mrb[0].mxu0 %v2554
  %v2672 = vpop.f32.mrb[0].mxu0
  %v2673 = vadd.f32 0.0, %v2672
  %v2674 = vpop.f32.mrb[0].mxu0
  %2675 = vmatprep.mubr.f32.mxu0 0.0
  %2676 = vmatmul.mubr.f32.gmra.mrb[0].mxu0 %v2557
  %v2677 = vpop.f32.mrb[0].mxu0
  %v2678 = vadd.f32 0.0, %v2677
  %v2679 = vpop.f32.mrb[0].mxu0
  %2680 = vmatprep.mubr.f32.mxu0 0.0
  %2681 = vmatmul.mubr.f32.gmra.mrb[0].mxu0 %v2560
  %v2682 = vpop.f32.mrb[0].mxu0
  %v2683 = vadd.f32 0.0, %v2682
  %v2684 = vpop.f32.mrb[0].mxu0
  %2685 = vmatprep.mubr.f32.mxu0 0.0
  %2686 = vmatmul.mubr.f32.gmra.mrb[0].mxu0 %v2563
  %v2687 = vpop.f32.mrb[0].mxu0
  %v2688 = vadd.f32 0.0, %v2687
  %v2689 = vpop.f32.mrb[0].mxu0
  %2690 = vmatprep.mubr.f32.mxu0 0.0
  %2691 = vmatmul.mubr.f32.gmra.mrb[0].mxu0 %v2566
  %v2692 = vpop.f32.mrb[0].mxu0
  %v2693 = vadd.f32 0.0, %v2692
  %v2694 = vpop.f32.mrb[0].mxu0
  %2695 = vdwg.mxu0
  %v2696 = vadd.f32 %v2504, %v2638
  %v2697 = vadd.f32 %v2505, %v2643
  %v2698 = vadd.f32 %v2506, %v2648
  %v2699 = vadd.f32 %v2507, %v2653
  %v2700 = vadd.f32 %v2508, %v2658
  %v2701 = vadd.f32 %v2509, %v2663
  %v2702 = vadd.f32 %v2510, %v2668
  %v2703 = vadd.f32 %v2511, %v2673
  %v2704 = vadd.f32 %v2512, %v2678
  %v2705 = vadd.f32 %v2513, %v2683
  %v2706 = vadd.f32 %v2514, %v2688
  %v2707 = vadd.f32 %v2515, %v2693
  %v2708 = vld [vmem:[%s0 + $0x120] sm:$0xff]
  %v2709 = vld [vmem:[%s0 + $0x128] sm:$0xff]
  %v2710 = vld [vmem:[%s0 + $0x130] sm:$0xff]
  %v2711 = vld [vmem:[%s0 + $0x138] sm:$0xff]
  %v2712 = vld [vmem:[%s0 + $0x140] sm:$0xff]
  %v2713 = vld [vmem:[%s0 + $0x148] sm:$0xff]
  %v2714 = vld [vmem:[%s0 + $0x150] sm:$0xff]
  %v2715 = vld [vmem:[%s0 + $0x158] sm:$0xff]
  %v2716 = vld [vmem:[%s0 + $0x160] sm:$0xff]
  %v2717 = vld [vmem:[%s0 + $0x168] sm:$0xff]
  %v2718 = vld [vmem:[%s0 + $0x170] sm:$0xff]
  %v2719 = vld [vmem:[%s0 + $0x178] sm:$0xff]
  %v2720 = vld [vmem:[%s793] sm:$0xff]
  %v2721 = vld [vmem:[%s793 + $0x8] sm:$0xff]
  %v2722 = vld [vmem:[%s793 + $0x10] sm:$0xff]
  %v2723 = vld [vmem:[%s793 + $0x18] sm:$0xf]
  %v2725 = vsel %vm65, %v2708, 0
  %v2728 = vsel %vm65, %v2709, 0
  %v2731 = vsel %vm65, %v2710, 0
  %v2734 = vsel %vm65, %v2711, 0
  %v2737 = vsel %vm65, %v2712, 0
  %v2740 = vsel %vm65, %v2713, 0
  %v2743 = vsel %vm65, %v2714, 0
  %v2746 = vsel %vm65, %v2715, 0
  %v2749 = vsel %vm65, %v2716, 0
  %v2752 = vsel %vm65, %v2717, 0
  %v2755 = vsel %vm65, %v2718, 0
  %v2758 = vsel %vm65, %v2719, 0
  %v2761 = vsel %vm102, %v2723, 0
  %2763 = vmatprep.subr.mxu0 0.0
  %2764 = vmatpush1.msra.mxu0 %v2720
  %2765 = vmatprep.subr.mxu0 0.0
  %2766 = vmatpush1.msra.mxu0 %v2721
  %2767 = vmatprep.subr.mxu0 0.0
  %2768 = vmatpush1.msra.mxu0 %v2722
  %2769 = vmatprep.subr.mxu0 0.0
  %2770 = vmatpush1.msra.mxu0 %v2761
  %2771 = vmatprep.subr.mxu0 0.0
  %2772 = vmatpush1.msra.mxu0 0.0
  %2773 = vmatprep.subr.mxu0 0.0
  %2774 = vmatpush1.msra.mxu0 0.0
  %2775 = vmatprep.subr.mxu0 0.0
  %2776 = vmatpush1.msra.mxu0 0.0
  %2777 = vmatprep.subr.mxu0 0.0
  %2778 = vmatpush1.msra.mxu0 0.0
  %2779 = vmatprep.subr.mxu0 0.0
  %2780 = vmatpush1.msra.mxu0 0.0
  %2781 = vmatprep.subr.mxu0 0.0
  %2782 = vmatpush1.msra.mxu0 0.0
  %2783 = vmatprep.subr.mxu0 0.0
  %2784 = vmatpush1.msra.mxu0 0.0
  %2785 = vmatprep.subr.mxu0 0.0
  %2786 = vmatpush1.msra.mxu0 0.0
  %2787 = vmatprep.subr.mxu0 0.0
  %2788 = vmatpush1.msra.mxu0 0.0
  %2789 = vmatprep.subr.mxu0 0.0
  %2790 = vmatpush1.msra.mxu0 0.0
  %2791 = vmatprep.subr.mxu0 0.0
  %2792 = vmatpush1.msra.mxu0 0.0
  %2793 = vmatprep.subr.mxu0 0.0
  %2794 = vmatpush1.msra.mxu0 0.0
  %2795 = vmatprep.subr.mxu0 0.0
  %2796 = vmatpush1.msra.mxu0 0.0
  %2797 = vmatprep.subr.mxu0 0.0
  %2798 = vmatpush1.msra.mxu0 0.0
  %2799 = vmatprep.subr.mxu0 0.0
  %2800 = vmatpush1.msra.mxu0 0.0
  %2801 = vmatprep.subr.mxu0 0.0
  %2802 = vmatpush1.msra.mxu0 0.0
  %2803 = vmatprep.subr.mxu0 0.0
  %2804 = vmatpush1.msra.mxu0 0.0
  %2805 = vmatprep.subr.mxu0 0.0
  %2806 = vmatpush1.msra.mxu0 0.0
  %2807 = vmatprep.subr.mxu0 0.0
  %2808 = vmatpush1.msra.mxu0 0.0
  %2809 = vmatprep.subr.mxu0 0.0
  %2810 = vmatpush1.msra.mxu0 0.0
  %2811 = vmatprep.subr.mxu0 0.0
  %2812 = vmatpush1.msra.mxu0 0.0
  %2813 = vmatprep.subr.mxu0 0.0
  %2814 = vmatpush1.msra.mxu0 0.0
  %2815 = vmatprep.subr.mxu0 0.0
  %2816 = vmatpush1.msra.mxu0 0.0
  %2817 = vmatprep.subr.mxu0 0.0
  %2818 = vmatpush1.msra.mxu0 0.0
  %2819 = vmatprep.subr.mxu0 0.0
  %2820 = vmatpush1.msra.mxu0 0.0
  %2821 = vmatprep.subr.mxu0 0.0
  %2822 = vmatpush1.msra.mxu0 0.0
  %2823 = vmatprep.subr.mxu0 0.0
  %2824 = vmatpush1.msra.mxu0 0.0
  %2825 = vmatprep.subr.mxu0 0.0
  %2826 = vmatpush1.msra.mxu0 0.0
  %2827 = vmatprep.mubr.f32.mxu0 0.0
  %2828 = vmatmul.mubr.f32.gmra.mrb[0].mxu0 %v2725
  %v2829 = vpop.f32.mrb[0].mxu0
  %v2830 = vadd.f32 0.0, %v2829
  %v2831 = vpop.f32.mrb[0].mxu0
  %2832 = vmatprep.mubr.f32.mxu0 0.0
  %2833 = vmatmul.mubr.f32.gmra.mrb[0].mxu0 %v2728
  %v2834 = vpop.f32.mrb[0].mxu0
  %v2835 = vadd.f32 0.0, %v2834
  %v2836 = vpop.f32.mrb[0].mxu0
  %2837 = vmatprep.mubr.f32.mxu0 0.0
  %2838 = vmatmul.mubr.f32.gmra.mrb[0].mxu0 %v2731
  %v2839 = vpop.f32.mrb[0].mxu0
  %v2840 = vadd.f32 0.0, %v2839
  %v2841 = vpop.f32.mrb[0].mxu0
  %2842 = vmatprep.mubr.f32.mxu0 0.0
  %2843 = vmatmul.mubr.f32.gmra.mrb[0].mxu0 %v2734
  %v2844 = vpop.f32.mrb[0].mxu0
  %v2845 = vadd.f32 0.0, %v2844
  %v2846 = vpop.f32.mrb[0].mxu0
  %2847 = vmatprep.mubr.f32.mxu0 0.0
  %2848 = vmatmul.mubr.f32.gmra.mrb[0].mxu0 %v2737
  %v2849 = vpop.f32.mrb[0].mxu0
  %v2850 = vadd.f32 0.0, %v2849
  %v2851 = vpop.f32.mrb[0].mxu0
  %2852 = vmatprep.mubr.f32.mxu0 0.0
  %2853 = vmatmul.mubr.f32.gmra.mrb[0].mxu0 %v2740
  %v2854 = vpop.f32.mrb[0].mxu0
  %v2855 = vadd.f32 0.0, %v2854
  %v2856 = vpop.f32.mrb[0].mxu0
  %2857 = vmatprep.mubr.f32.mxu0 0.0
  %2858 = vmatmul.mubr.f32.gmra.mrb[0].mxu0 %v2743
  %v2859 = vpop.f32.mrb[0].mxu0
  %v2860 = vadd.f32 0.0, %v2859
  %v2861 = vpop.f32.mrb[0].mxu0
  %2862 = vmatprep.mubr.f32.mxu0 0.0
  %2863 = vmatmul.mubr.f32.gmra.mrb[0].mxu0 %v2746
  %v2864 = vpop.f32.mrb[0].mxu0
  %v2865 = vadd.f32 0.0, %v2864
  %v2866 = vpop.f32.mrb[0].mxu0
  %2867 = vmatprep.mubr.f32.mxu0 0.0
  %2868 = vmatmul.mubr.f32.gmra.mrb[0].mxu0 %v2749
  %v2869 = vpop.f32.mrb[0].mxu0
  %v2870 = vadd.f32 0.0, %v2869
  %v2871 = vpop.f32.mrb[0].mxu0
  %2872 = vmatprep.mubr.f32.mxu0 0.0
  %2873 = vmatmul.mubr.f32.gmra.mrb[0].mxu0 %v2752
  %v2874 = vpop.f32.mrb[0].mxu0
  %v2875 = vadd.f32 0.0, %v2874
  %v2876 = vpop.f32.mrb[0].mxu0
  %2877 = vmatprep.mubr.f32.mxu0 0.0
  %2878 = vmatmul.mubr.f32.gmra.mrb[0].mxu0 %v2755
  %v2879 = vpop.f32.mrb[0].mxu0
  %v2880 = vadd.f32 0.0, %v2879
  %v2881 = vpop.f32.mrb[0].mxu0
  %2882 = vmatprep.mubr.f32.mxu0 0.0
  %2883 = vmatmul.mubr.f32.gmra.mrb[0].mxu0 %v2758
  %v2884 = vpop.f32.mrb[0].mxu0
  %v2885 = vadd.f32 0.0, %v2884
  %v2886 = vpop.f32.mrb[0].mxu0
  %2887 = vdwg.mxu0
  %v2888 = vadd.f32 %v2696, %v2830
  %v2889 = vadd.f32 %v2697, %v2835
  %v2890 = vadd.f32 %v2698, %v2840
  %v2891 = vadd.f32 %v2699, %v2845
  %v2892 = vadd.f32 %v2700, %v2850
  %v2893 = vadd.f32 %v2701, %v2855
  %v2894 = vadd.f32 %v2702, %v2860
  %v2895 = vadd.f32 %v2703, %v2865
  %v2896 = vadd.f32 %v2704, %v2870
  %v2897 = vadd.f32 %v2705, %v2875
  %v2898 = vadd.f32 %v2706, %v2880
  %v2899 = vadd.f32 %v2707, %v2885
  %v2900 = vld [vmem:[#allocation2] sm:$0xff]
  %v2901 = vld [vmem:[#allocation2 + $0x8] sm:$0xff]
  %v2902 = vld [vmem:[#allocation2 + $0x10] sm:$0xff]
  %v2903 = vld [vmem:[#allocation2 + $0x18] sm:$0xff]
  %v2904 = vld [vmem:[#allocation2 + $0x20] sm:$0xff]
  %v2905 = vld [vmem:[#allocation2 + $0x28] sm:$0xff]
  %v2906 = vld [vmem:[#allocation2 + $0x30] sm:$0xff]
  %v2907 = vld [vmem:[#allocation2 + $0x38] sm:$0xff]
  %v2908 = vld [vmem:[#allocation2 + $0x40] sm:$0xff]
  %v2909 = vld [vmem:[#allocation2 + $0x48] sm:$0xff]
  %v2910 = vld [vmem:[#allocation2 + $0x50] sm:$0xff]
  %v2911 = vld [vmem:[#allocation2 + $0x58] sm:$0xff]
  %v2912 = vmax.f32 %v2900, %v2888
  %v2913 = vmax.f32 %v2901, %v2889
  %v2914 = vmax.f32 %v2902, %v2890
  %v2915 = vmax.f32 %v2903, %v2891
  %v2916 = vmax.f32 %v2904, %v2892
  %v2917 = vmax.f32 %v2905, %v2893
  %v2918 = vmax.f32 %v2906, %v2894
  %v2919 = vmax.f32 %v2907, %v2895
  %v2920 = vmax.f32 %v2908, %v2896
  %v2921 = vmax.f32 %v2909, %v2897
  %v2922 = vmax.f32 %v2910, %v2898
  %v2923 = vmax.f32 %v2911, %v2899
  %2924 = vst.msk [vmem:[#allocation2] sm:$0xff] %vm974, %v2912
  %2925 = vst.msk [vmem:[#allocation2 + $0x8] sm:$0xff] %vm974, %v2913
  %2926 = vst.msk [vmem:[#allocation2 + $0x10] sm:$0xff] %vm974, %v2914
  %2927 = vst.msk [vmem:[#allocation2 + $0x18] sm:$0xff] %vm974, %v2915
  %2928 = vst.msk [vmem:[#allocation2 + $0x20] sm:$0xff] %vm974, %v2916
  %2929 = vst.msk [vmem:[#allocation2 + $0x28] sm:$0xff] %vm974, %v2917
  %2930 = vst.msk [vmem:[#allocation2 + $0x30] sm:$0xff] %vm974, %v2918
  %2931 = vst.msk [vmem:[#allocation2 + $0x38] sm:$0xff] %vm974, %v2919
  %2932 = vst.msk [vmem:[#allocation2 + $0x40] sm:$0xff] %vm974, %v2920
  %2933 = vst.msk [vmem:[#allocation2 + $0x48] sm:$0xff] %vm974, %v2921
  %2934 = vst.msk [vmem:[#allocation2 + $0x50] sm:$0xff] %vm974, %v2922
  %2935 = vst.msk [vmem:[#allocation2 + $0x58] sm:$0xff] %vm974, %v2923
  %v2936 = vld [vmem:[%s0 + $0xc0] sm:$0xff]
  %v2937 = vld [vmem:[%s0 + $0xc8] sm:$0xff]
  %v2938 = vld [vmem:[%s0 + $0xd0] sm:$0xff]
  %v2939 = vld [vmem:[%s0 + $0xd8] sm:$0xff]
  %v2940 = vld [vmem:[%s0 + $0xe0] sm:$0xff]
  %v2941 = vld [vmem:[%s0 + $0xe8] sm:$0xff]
  %v2942 = vld [vmem:[%s0 + $0xf0] sm:$0xff]
  %v2943 = vld [vmem:[%s0 + $0xf8] sm:$0xff]
  %v2944 = vld [vmem:[%s0 + $0x100] sm:$0xff]
  %v2945 = vld [vmem:[%s0 + $0x108] sm:$0xff]
  %v2946 = vld [vmem:[%s0 + $0x110] sm:$0xff]
  %v2947 = vld [vmem:[%s0 + $0x118] sm:$0xff]
  %v2948 = vld [vmem:[%s999] sm:$0xff]
  %v2949 = vld [vmem:[%s999 + $0x8] sm:$0xff]
  %v2950 = vld [vmem:[%s999 + $0x10] sm:$0xff]
  %v2951 = vld [vmem:[%s999 + $0x18] sm:$0xf]
  %v2952 = vld [vmem:[%s0 + $0x30] sm:$0xff]
  %v2953 = vld [vmem:[%s0 + $0x38] sm:$0xff]
  %v2954 = vld [vmem:[%s0 + $0x40] sm:$0xff]
  %v2955 = vld [vmem:[%s0 + $0x48] sm:$0xff]
  %v2956 = vld [vmem:[%s0 + $0x50] sm:$0xff]
  %v2957 = vld [vmem:[%s0 + $0x58] sm:$0xff]
  %v2958 = vld [vmem:[%s0 + $0x60] sm:$0xff]
  %v2959 = vld [vmem:[%s0 + $0x68] sm:$0xff]
  %v2960 = vld [vmem:[%s0 + $0x70] sm:$0xff]
  %v2961 = vld [vmem:[%s0 + $0x78] sm:$0xff]
  %v2962 = vld [vmem:[%s0 + $0x80] sm:$0xff]
  %v2963 = vld [vmem:[%s0 + $0x88] sm:$0xff]
  %v2964 = vld [vmem:[%s1016] sm:$0xff]
  %v2965 = vld [vmem:[%s1016 + $0x8] sm:$0xff]
  %v2966 = vld [vmem:[%s1016 + $0x10] sm:$0xff]
  %v2967 = vld [vmem:[%s1016 + $0x18] sm:$0xf]
  %v2969 = vsel %vm65, %v2952, 0
  %v2972 = vsel %vm65, %v2953, 0
  %v2975 = vsel %vm65, %v2954, 0
  %v2978 = vsel %vm65, %v2955, 0
  %v2981 = vsel %vm65, %v2956, 0
  %v2984 = vsel %vm65, %v2957, 0
  %v2987 = vsel %vm65, %v2958, 0
  %v2990 = vsel %vm65, %v2959, 0
  %v2993 = vsel %vm65, %v2960, 0
  %v2996 = vsel %vm65, %v2961, 0
  %v2999 = vsel %vm65, %v2962, 0
  %v3002 = vsel %vm65, %v2963, 0
  %v3005 = vsel %vm102, %v2967, 0
  %3007 = vmatprep.subr.mxu0 0.0
  %3008 = vmatpush1.msra.mxu0 %v2964
  %3009 = vmatprep.subr.mxu0 0.0
  %3010 = vmatpush1.msra.mxu0 %v2965
  %3011 = vmatprep.subr.mxu0 0.0
  %3012 = vmatpush1.msra.mxu0 %v2966
  %3013 = vmatprep.subr.mxu0 0.0
  %3014 = vmatpush1.msra.mxu0 %v3005
  %3015 = vmatprep.subr.mxu0 0.0
  %3016 = vmatpush1.msra.mxu0 0.0
  %3017 = vmatprep.subr.mxu0 0.0
  %3018 = vmatpush1.msra.mxu0 0.0
  %3019 = vmatprep.subr.mxu0 0.0
  %3020 = vmatpush1.msra.mxu0 0.0
  %3021 = vmatprep.subr.mxu0 0.0
  %3022 = vmatpush1.msra.mxu0 0.0
  %3023 = vmatprep.subr.mxu0 0.0
  %3024 = vmatpush1.msra.mxu0 0.0
  %3025 = vmatprep.subr.mxu0 0.0
  %3026 = vmatpush1.msra.mxu0 0.0
  %3027 = vmatprep.subr.mxu0 0.0
  %3028 = vmatpush1.msra.mxu0 0.0
  %3029 = vmatprep.subr.mxu0 0.0
  %3030 = vmatpush1.msra.mxu0 0.0
  %3031 = vmatprep.subr.mxu0 0.0
  %3032 = vmatpush1.msra.mxu0 0.0
  %3033 = vmatprep.subr.mxu0 0.0
  %3034 = vmatpush1.msra.mxu0 0.0
  %3035 = vmatprep.subr.mxu0 0.0
  %3036 = vmatpush1.msra.mxu0 0.0
  %3037 = vmatprep.subr.mxu0 0.0
  %3038 = vmatpush1.msra.mxu0 0.0
  %3039 = vmatprep.subr.mxu0 0.0
  %3040 = vmatpush1.msra.mxu0 0.0
  %3041 = vmatprep.subr.mxu0 0.0
  %3042 = vmatpush1.msra.mxu0 0.0
  %3043 = vmatprep.subr.mxu0 0.0
  %3044 = vmatpush1.msra.mxu0 0.0
  %3045 = vmatprep.subr.mxu0 0.0
  %3046 = vmatpush1.msra.mxu0 0.0
  %3047 = vmatprep.subr.mxu0 0.0
  %3048 = vmatpush1.msra.mxu0 0.0
  %3049 = vmatprep.subr.mxu0 0.0
  %3050 = vmatpush1.msra.mxu0 0.0
  %3051 = vmatprep.subr.mxu0 0.0
  %3052 = vmatpush1.msra.mxu0 0.0
  %3053 = vmatprep.subr.mxu0 0.0
  %3054 = vmatpush1.msra.mxu0 0.0
  %3055 = vmatprep.subr.mxu0 0.0
  %3056 = vmatpush1.msra.mxu0 0.0
  %3057 = vmatprep.subr.mxu0 0.0
  %3058 = vmatpush1.msra.mxu0 0.0
  %3059 = vmatprep.subr.mxu0 0.0
  %3060 = vmatpush1.msra.mxu0 0.0
  %3061 = vmatprep.subr.mxu0 0.0
  %3062 = vmatpush1.msra.mxu0 0.0
  %3063 = vmatprep.subr.mxu0 0.0
  %3064 = vmatpush1.msra.mxu0 0.0
  %3065 = vmatprep.subr.mxu0 0.0
  %3066 = vmatpush1.msra.mxu0 0.0
  %3067 = vmatprep.subr.mxu0 0.0
  %3068 = vmatpush1.msra.mxu0 0.0
  %3069 = vmatprep.subr.mxu0 0.0
  %3070 = vmatpush1.msra.mxu0 0.0
  %3071 = vmatprep.mubr.f32.mxu0 0.0
  %3072 = vmatmul.mubr.f32.gmra.mrb[0].mxu0 %v2969
  %v3073 = vpop.f32.mrb[0].mxu0
  %v3074 = vadd.f32 0.0, %v3073
  %v3075 = vpop.f32.mrb[0].mxu0
  %3076 = vmatprep.mubr.f32.mxu0 0.0
  %3077 = vmatmul.mubr.f32.gmra.mrb[0].mxu0 %v2972
  %v3078 = vpop.f32.mrb[0].mxu0
  %v3079 = vadd.f32 0.0, %v3078
  %v3080 = vpop.f32.mrb[0].mxu0
  %3081 = vmatprep.mubr.f32.mxu0 0.0
  %3082 = vmatmul.mubr.f32.gmra.mrb[0].mxu0 %v2975
  %v3083 = vpop.f32.mrb[0].mxu0
  %v3084 = vadd.f32 0.0, %v3083
  %v3085 = vpop.f32.mrb[0].mxu0
  %3086 = vmatprep.mubr.f32.mxu0 0.0
  %3087 = vmatmul.mubr.f32.gmra.mrb[0].mxu0 %v2978
  %v3088 = vpop.f32.mrb[0].mxu0
  %v3089 = vadd.f32 0.0, %v3088
  %v3090 = vpop.f32.mrb[0].mxu0
  %3091 = vmatprep.mubr.f32.mxu0 0.0
  %3092 = vmatmul.mubr.f32.gmra.mrb[0].mxu0 %v2981
  %v3093 = vpop.f32.mrb[0].mxu0
  %v3094 = vadd.f32 0.0, %v3093
  %v3095 = vpop.f32.mrb[0].mxu0
  %3096 = vmatprep.mubr.f32.mxu0 0.0
  %3097 = vmatmul.mubr.f32.gmra.mrb[0].mxu0 %v2984
  %v3098 = vpop.f32.mrb[0].mxu0
  %v3099 = vadd.f32 0.0, %v3098
  %v3100 = vpop.f32.mrb[0].mxu0
  %3101 = vmatprep.mubr.f32.mxu0 0.0
  %3102 = vmatmul.mubr.f32.gmra.mrb[0].mxu0 %v2987
  %v3103 = vpop.f32.mrb[0].mxu0
  %v3104 = vadd.f32 0.0, %v3103
  %v3105 = vpop.f32.mrb[0].mxu0
  %3106 = vmatprep.mubr.f32.mxu0 0.0
  %3107 = vmatmul.mubr.f32.gmra.mrb[0].mxu0 %v2990
  %v3108 = vpop.f32.mrb[0].mxu0
  %v3109 = vadd.f32 0.0, %v3108
  %v3110 = vpop.f32.mrb[0].mxu0
  %3111 = vmatprep.mubr.f32.mxu0 0.0
  %3112 = vmatmul.mubr.f32.gmra.mrb[0].mxu0 %v2993
  %v3113 = vpop.f32.mrb[0].mxu0
  %v3114 = vadd.f32 0.0, %v3113
  %v3115 = vpop.f32.mrb[0].mxu0
  %3116 = vmatprep.mubr.f32.mxu0 0.0
  %3117 = vmatmul.mubr.f32.gmra.mrb[0].mxu0 %v2996
  %v3118 = vpop.f32.mrb[0].mxu0
  %v3119 = vadd.f32 0.0, %v3118
  %v3120 = vpop.f32.mrb[0].mxu0
  %3121 = vmatprep.mubr.f32.mxu0 0.0
  %3122 = vmatmul.mubr.f32.gmra.mrb[0].mxu0 %v2999
  %v3123 = vpop.f32.mrb[0].mxu0
  %v3124 = vadd.f32 0.0, %v3123
  %v3125 = vpop.f32.mrb[0].mxu0
  %3126 = vmatprep.mubr.f32.mxu0 0.0
  %3127 = vmatmul.mubr.f32.gmra.mrb[0].mxu0 %v3002
  %v3128 = vpop.f32.mrb[0].mxu0
  %v3129 = vadd.f32 0.0, %v3128
  %v3130 = vpop.f32.mrb[0].mxu0
  %3131 = vdwg.mxu0
  %v3133 = vsel %vm65, %v2936, 0
  %v3136 = vsel %vm65, %v2937, 0
  %v3139 = vsel %vm65, %v2938, 0
  %v3142 = vsel %vm65, %v2939, 0
  %v3145 = vsel %vm65, %v2940, 0
  %v3148 = vsel %vm65, %v2941, 0
  %v3151 = vsel %vm65, %v2942, 0
  %v3154 = vsel %vm65, %v2943, 0
  %v3157 = vsel %vm65, %v2944, 0
  %v3160 = vsel %vm65, %v2945, 0
  %v3163 = vsel %vm65, %v2946, 0
  %v3166 = vsel %vm65, %v2947, 0
  %v3169 = vsel %vm102, %v2951, 0
  %3171 = vmatprep.subr.mxu0 0.0
  %3172 = vmatpush1.msra.mxu0 %v2948
  %3173 = vmatprep.subr.mxu0 0.0
  %3174 = vmatpush1.msra.mxu0 %v2949
  %3175 = vmatprep.subr.mxu0 0.0
  %3176 = vmatpush1.msra.mxu0 %v2950
  %3177 = vmatprep.subr.mxu0 0.0
  %3178 = vmatpush1.msra.mxu0 %v3169
  %3179 = vmatprep.subr.mxu0 0.0
  %3180 = vmatpush1.msra.mxu0 0.0
  %3181 = vmatprep.subr.mxu0 0.0
  %3182 = vmatpush1.msra.mxu0 0.0
  %3183 = vmatprep.subr.mxu0 0.0
  %3184 = vmatpush1.msra.mxu0 0.0
  %3185 = vmatprep.subr.mxu0 0.0
  %3186 = vmatpush1.msra.mxu0 0.0
  %3187 = vmatprep.subr.mxu0 0.0
  %3188 = vmatpush1.msra.mxu0 0.0
  %3189 = vmatprep.subr.mxu0 0.0
  %3190 = vmatpush1.msra.mxu0 0.0
  %3191 = vmatprep.subr.mxu0 0.0
  %3192 = vmatpush1.msra.mxu0 0.0
  %3193 = vmatprep.subr.mxu0 0.0
  %3194 = vmatpush1.msra.mxu0 0.0
  %3195 = vmatprep.subr.mxu0 0.0
  %3196 = vmatpush1.msra.mxu0 0.0
  %3197 = vmatprep.subr.mxu0 0.0
  %3198 = vmatpush1.msra.mxu0 0.0
  %3199 = vmatprep.subr.mxu0 0.0
  %3200 = vmatpush1.msra.mxu0 0.0
  %3201 = vmatprep.subr.mxu0 0.0
  %3202 = vmatpush1.msra.mxu0 0.0
  %3203 = vmatprep.subr.mxu0 0.0
  %3204 = vmatpush1.msra.mxu0 0.0
  %3205 = vmatprep.subr.mxu0 0.0
  %3206 = vmatpush1.msra.mxu0 0.0
  %3207 = vmatprep.subr.mxu0 0.0
  %3208 = vmatpush1.msra.mxu0 0.0
  %3209 = vmatprep.subr.mxu0 0.0
  %3210 = vmatpush1.msra.mxu0 0.0
  %3211 = vmatprep.subr.mxu0 0.0
  %3212 = vmatpush1.msra.mxu0 0.0
  %3213 = vmatprep.subr.mxu0 0.0
  %3214 = vmatpush1.msra.mxu0 0.0
  %3215 = vmatprep.subr.mxu0 0.0
  %3216 = vmatpush1.msra.mxu0 0.0
  %3217 = vmatprep.subr.mxu0 0.0
  %3218 = vmatpush1.msra.mxu0 0.0
  %3219 = vmatprep.subr.mxu0 0.0
  %3220 = vmatpush1.msra.mxu0 0.0
  %3221 = vmatprep.subr.mxu0 0.0
  %3222 = vmatpush1.msra.mxu0 0.0
  %3223 = vmatprep.subr.mxu0 0.0
  %3224 = vmatpush1.msra.mxu0 0.0
  %3225 = vmatprep.subr.mxu0 0.0
  %3226 = vmatpush1.msra.mxu0 0.0
  %3227 = vmatprep.subr.mxu0 0.0
  %3228 = vmatpush1.msra.mxu0 0.0
  %3229 = vmatprep.subr.mxu0 0.0
  %3230 = vmatpush1.msra.mxu0 0.0
  %3231 = vmatprep.subr.mxu0 0.0
  %3232 = vmatpush1.msra.mxu0 0.0
  %3233 = vmatprep.subr.mxu0 0.0
  %3234 = vmatpush1.msra.mxu0 0.0
  %3235 = vmatprep.mubr.f32.mxu0 0.0
  %3236 = vmatmul.mubr.f32.gmra.mrb[0].mxu0 %v3133
  %v3237 = vpop.f32.mrb[0].mxu0
  %v3238 = vadd.f32 %v3074, %v3237
  %v3239 = vpop.f32.mrb[0].mxu0
  %3240 = vmatprep.mubr.f32.mxu0 0.0
  %3241 = vmatmul.mubr.f32.gmra.mrb[0].mxu0 %v3136
  %v3242 = vpop.f32.mrb[0].mxu0
  %v3243 = vadd.f32 %v3079, %v3242
  %v3244 = vpop.f32.mrb[0].mxu0
  %3245 = vmatprep.mubr.f32.mxu0 0.0
  %3246 = vmatmul.mubr.f32.gmra.mrb[0].mxu0 %v3139
  %v3247 = vpop.f32.mrb[0].mxu0
  %v3248 = vadd.f32 %v3084, %v3247
  %v3249 = vpop.f32.mrb[0].mxu0
  %3250 = vmatprep.mubr.f32.mxu0 0.0
  %3251 = vmatmul.mubr.f32.gmra.mrb[0].mxu0 %v3142
  %v3252 = vpop.f32.mrb[0].mxu0
  %v3253 = vadd.f32 %v3089, %v3252
  %v3254 = vpop.f32.mrb[0].mxu0
  %3255 = vmatprep.mubr.f32.mxu0 0.0
  %3256 = vmatmul.mubr.f32.gmra.mrb[0].mxu0 %v3145
  %v3257 = vpop.f32.mrb[0].mxu0
  %v3258 = vadd.f32 %v3094, %v3257
  %v3259 = vpop.f32.mrb[0].mxu0
  %3260 = vmatprep.mubr.f32.mxu0 0.0
  %3261 = vmatmul.mubr.f32.gmra.mrb[0].mxu0 %v3148
  %v3262 = vpop.f32.mrb[0].mxu0
  %v3263 = vadd.f32 %v3099, %v3262
  %v3264 = vpop.f32.mrb[0].mxu0
  %3265 = vmatprep.mubr.f32.mxu0 0.0
  %3266 = vmatmul.mubr.f32.gmra.mrb[0].mxu0 %v3151
  %v3267 = vpop.f32.mrb[0].mxu0
  %v3268 = vadd.f32 %v3104, %v3267
  %v3269 = vpop.f32.mrb[0].mxu0
  %3270 = vmatprep.mubr.f32.mxu0 0.0
  %3271 = vmatmul.mubr.f32.gmra.mrb[0].mxu0 %v3154
  %v3272 = vpop.f32.mrb[0].mxu0
  %v3273 = vadd.f32 %v3109, %v3272
  %v3274 = vpop.f32.mrb[0].mxu0
  %3275 = vmatprep.mubr.f32.mxu0 0.0
  %3276 = vmatmul.mubr.f32.gmra.mrb[0].mxu0 %v3157
  %v3277 = vpop.f32.mrb[0].mxu0
  %v3278 = vadd.f32 %v3114, %v3277
  %v3279 = vpop.f32.mrb[0].mxu0
  %3280 = vmatprep.mubr.f32.mxu0 0.0
  %3281 = vmatmul.mubr.f32.gmra.mrb[0].mxu0 %v3160
  %v3282 = vpop.f32.mrb[0].mxu0
  %v3283 = vadd.f32 %v3119, %v3282
  %v3284 = vpop.f32.mrb[0].mxu0
  %3285 = vmatprep.mubr.f32.mxu0 0.0
  %3286 = vmatmul.mubr.f32.gmra.mrb[0].mxu0 %v3163
  %v3287 = vpop.f32.mrb[0].mxu0
  %v3288 = vadd.f32 %v3124, %v3287
  %v3289 = vpop.f32.mrb[0].mxu0
  %3290 = vmatprep.mubr.f32.mxu0 0.0
  %3291 = vmatmul.mubr.f32.gmra.mrb[0].mxu0 %v3166
  %v3292 = vpop.f32.mrb[0].mxu0
  %v3293 = vadd.f32 %v3129, %v3292
  %v3294 = vpop.f32.mrb[0].mxu0
  %3295 = vdwg.mxu0
  %v3296 = vld [vmem:[%s0 + $0xf0] sm:$0xff]
  %v3297 = vld [vmem:[%s0 + $0xf8] sm:$0xff]
  %v3298 = vld [vmem:[%s0 + $0x100] sm:$0xff]
  %v3299 = vld [vmem:[%s0 + $0x108] sm:$0xff]
  %v3300 = vld [vmem:[%s0 + $0x110] sm:$0xff]
  %v3301 = vld [vmem:[%s0 + $0x118] sm:$0xff]
  %v3302 = vld [vmem:[%s0 + $0x120] sm:$0xff]
  %v3303 = vld [vmem:[%s0 + $0x128] sm:$0xff]
  %v3304 = vld [vmem:[%s0 + $0x130] sm:$0xff]
  %v3305 = vld [vmem:[%s0 + $0x138] sm:$0xff]
  %v3306 = vld [vmem:[%s0 + $0x140] sm:$0xff]
  %v3307 = vld [vmem:[%s0 + $0x148] sm:$0xff]
  %v3308 = vld [vmem:[%s1361] sm:$0xff]
  %v3309 = vld [vmem:[%s1361 + $0x8] sm:$0xff]
  %v3310 = vld [vmem:[%s1361 + $0x10] sm:$0xff]
  %v3311 = vld [vmem:[%s1361 + $0x18] sm:$0xf]
  %v3313 = vsel %vm65, %v3296, 0
  %v3316 = vsel %vm65, %v3297, 0
  %v3319 = vsel %vm65, %v3298, 0
  %v3322 = vsel %vm65, %v3299, 0
  %v3325 = vsel %vm65, %v3300, 0
  %v3328 = vsel %vm65, %v3301, 0
  %v3331 = vsel %vm65, %v3302, 0
  %v3334 = vsel %vm65, %v3303, 0
  %v3337 = vsel %vm65, %v3304, 0
  %v3340 = vsel %vm65, %v3305, 0
  %v3343 = vsel %vm65, %v3306, 0
  %v3346 = vsel %vm65, %v3307, 0
  %v3349 = vsel %vm102, %v3311, 0
  %3351 = vmatprep.subr.mxu0 0.0
  %3352 = vmatpush1.msra.mxu0 %v3308
  %3353 = vmatprep.subr.mxu0 0.0
  %3354 = vmatpush1.msra.mxu0 %v3309
  %3355 = vmatprep.subr.mxu0 0.0
  %3356 = vmatpush1.msra.mxu0 %v3310
  %3357 = vmatprep.subr.mxu0 0.0
  %3358 = vmatpush1.msra.mxu0 %v3349
  %3359 = vmatprep.subr.mxu0 0.0
  %3360 = vmatpush1.msra.mxu0 0.0
  %3361 = vmatprep.subr.mxu0 0.0
  %3362 = vmatpush1.msra.mxu0 0.0
  %3363 = vmatprep.subr.mxu0 0.0
  %3364 = vmatpush1.msra.mxu0 0.0
  %3365 = vmatprep.subr.mxu0 0.0
  %3366 = vmatpush1.msra.mxu0 0.0
  %3367 = vmatprep.subr.mxu0 0.0
  %3368 = vmatpush1.msra.mxu0 0.0
  %3369 = vmatprep.subr.mxu0 0.0
  %3370 = vmatpush1.msra.mxu0 0.0
  %3371 = vmatprep.subr.mxu0 0.0
  %3372 = vmatpush1.msra.mxu0 0.0
  %3373 = vmatprep.subr.mxu0 0.0
  %3374 = vmatpush1.msra.mxu0 0.0
  %3375 = vmatprep.subr.mxu0 0.0
  %3376 = vmatpush1.msra.mxu0 0.0
  %3377 = vmatprep.subr.mxu0 0.0
  %3378 = vmatpush1.msra.mxu0 0.0
  %3379 = vmatprep.subr.mxu0 0.0
  %3380 = vmatpush1.msra.mxu0 0.0
  %3381 = vmatprep.subr.mxu0 0.0
  %3382 = vmatpush1.msra.mxu0 0.0
  %3383 = vmatprep.subr.mxu0 0.0
  %3384 = vmatpush1.msra.mxu0 0.0
  %3385 = vmatprep.subr.mxu0 0.0
  %3386 = vmatpush1.msra.mxu0 0.0
  %3387 = vmatprep.subr.mxu0 0.0
  %3388 = vmatpush1.msra.mxu0 0.0
  %3389 = vmatprep.subr.mxu0 0.0
  %3390 = vmatpush1.msra.mxu0 0.0
  %3391 = vmatprep.subr.mxu0 0.0
  %3392 = vmatpush1.msra.mxu0 0.0
  %3393 = vmatprep.subr.mxu0 0.0
  %3394 = vmatpush1.msra.mxu0 0.0
  %3395 = vmatprep.subr.mxu0 0.0
  %3396 = vmatpush1.msra.mxu0 0.0
  %3397 = vmatprep.subr.mxu0 0.0
  %3398 = vmatpush1.msra.mxu0 0.0
  %3399 = vmatprep.subr.mxu0 0.0
  %3400 = vmatpush1.msra.mxu0 0.0
  %3401 = vmatprep.subr.mxu0 0.0
  %3402 = vmatpush1.msra.mxu0 0.0
  %3403 = vmatprep.subr.mxu0 0.0
  %3404 = vmatpush1.msra.mxu0 0.0
  %3405 = vmatprep.subr.mxu0 0.0
  %3406 = vmatpush1.msra.mxu0 0.0
  %3407 = vmatprep.subr.mxu0 0.0
  %3408 = vmatpush1.msra.mxu0 0.0
  %3409 = vmatprep.subr.mxu0 0.0
  %3410 = vmatpush1.msra.mxu0 0.0
  %3411 = vmatprep.subr.mxu0 0.0
  %3412 = vmatpush1.msra.mxu0 0.0
  %3413 = vmatprep.subr.mxu0 0.0
  %3414 = vmatpush1.msra.mxu0 0.0
  %3415 = vmatprep.mubr.f32.mxu0 0.0
  %3416 = vmatmul.mubr.f32.gmra.mrb[0].mxu0 %v3313
  %v3417 = vpop.f32.mrb[0].mxu0
  %v3418 = vadd.f32 0.0, %v3417
  %v3419 = vpop.f32.mrb[0].mxu0
  %3420 = vmatprep.mubr.f32.mxu0 0.0
  %3421 = vmatmul.mubr.f32.gmra.mrb[0].mxu0 %v3316
  %v3422 = vpop.f32.mrb[0].mxu0
  %v3423 = vadd.f32 0.0, %v3422
  %v3424 = vpop.f32.mrb[0].mxu0
  %3425 = vmatprep.mubr.f32.mxu0 0.0
  %3426 = vmatmul.mubr.f32.gmra.mrb[0].mxu0 %v3319
  %v3427 = vpop.f32.mrb[0].mxu0
  %v3428 = vadd.f32 0.0, %v3427
  %v3429 = vpop.f32.mrb[0].mxu0
  %3430 = vmatprep.mubr.f32.mxu0 0.0
  %3431 = vmatmul.mubr.f32.gmra.mrb[0].mxu0 %v3322
  %v3432 = vpop.f32.mrb[0].mxu0
  %v3433 = vadd.f32 0.0, %v3432
  %v3434 = vpop.f32.mrb[0].mxu0
  %3435 = vmatprep.mubr.f32.mxu0 0.0
  %3436 = vmatmul.mubr.f32.gmra.mrb[0].mxu0 %v3325
  %v3437 = vpop.f32.mrb[0].mxu0
  %v3438 = vadd.f32 0.0, %v3437
  %v3439 = vpop.f32.mrb[0].mxu0
  %3440 = vmatprep.mubr.f32.mxu0 0.0
  %3441 = vmatmul.mubr.f32.gmra.mrb[0].mxu0 %v3328
  %v3442 = vpop.f32.mrb[0].mxu0
  %v3443 = vadd.f32 0.0, %v3442
  %v3444 = vpop.f32.mrb[0].mxu0
  %3445 = vmatprep.mubr.f32.mxu0 0.0
  %3446 = vmatmul.mubr.f32.gmra.mrb[0].mxu0 %v3331
  %v3447 = vpop.f32.mrb[0].mxu0
  %v3448 = vadd.f32 0.0, %v3447
  %v3449 = vpop.f32.mrb[0].mxu0
  %3450 = vmatprep.mubr.f32.mxu0 0.0
  %3451 = vmatmul.mubr.f32.gmra.mrb[0].mxu0 %v3334
  %v3452 = vpop.f32.mrb[0].mxu0
  %v3453 = vadd.f32 0.0, %v3452
  %v3454 = vpop.f32.mrb[0].mxu0
  %3455 = vmatprep.mubr.f32.mxu0 0.0
  %3456 = vmatmul.mubr.f32.gmra.mrb[0].mxu0 %v3337
  %v3457 = vpop.f32.mrb[0].mxu0
  %v3458 = vadd.f32 0.0, %v3457
  %v3459 = vpop.f32.mrb[0].mxu0
  %3460 = vmatprep.mubr.f32.mxu0 0.0
  %3461 = vmatmul.mubr.f32.gmra.mrb[0].mxu0 %v3340
  %v3462 = vpop.f32.mrb[0].mxu0
  %v3463 = vadd.f32 0.0, %v3462
  %v3464 = vpop.f32.mrb[0].mxu0
  %3465 = vmatprep.mubr.f32.mxu0 0.0
  %3466 = vmatmul.mubr.f32.gmra.mrb[0].mxu0 %v3343
  %v3467 = vpop.f32.mrb[0].mxu0
  %v3468 = vadd.f32 0.0, %v3467
  %v3469 = vpop.f32.mrb[0].mxu0
  %3470 = vmatprep.mubr.f32.mxu0 0.0
  %3471 = vmatmul.mubr.f32.gmra.mrb[0].mxu0 %v3346
  %v3472 = vpop.f32.mrb[0].mxu0
  %v3473 = vadd.f32 0.0, %v3472
  %v3474 = vpop.f32.mrb[0].mxu0
  %3475 = vdwg.mxu0
  %v3476 = vadd.f32 %v3238, %v3418
  %v3477 = vadd.f32 %v3243, %v3423
  %v3478 = vadd.f32 %v3248, %v3428
  %v3479 = vadd.f32 %v3253, %v3433
  %v3480 = vadd.f32 %v3258, %v3438
  %v3481 = vadd.f32 %v3263, %v3443
  %v3482 = vadd.f32 %v3268, %v3448
  %v3483 = vadd.f32 %v3273, %v3453
  %v3484 = vadd.f32 %v3278, %v3458
  %v3485 = vadd.f32 %v3283, %v3463
  %v3486 = vadd.f32 %v3288, %v3468
  %v3487 = vadd.f32 %v3293, %v3473
  %v3488 = vld [vmem:[%s0 + $0x60] sm:$0xff]
  %v3489 = vld [vmem:[%s0 + $0x68] sm:$0xff]
  %v3490 = vld [vmem:[%s0 + $0x70] sm:$0xff]
  %v3491 = vld [vmem:[%s0 + $0x78] sm:$0xff]
  %v3492 = vld [vmem:[%s0 + $0x80] sm:$0xff]
  %v3493 = vld [vmem:[%s0 + $0x88] sm:$0xff]
  %v3494 = vld [vmem:[%s0 + $0x90] sm:$0xff]
  %v3495 = vld [vmem:[%s0 + $0x98] sm:$0xff]
  %v3496 = vld [vmem:[%s0 + $0xa0] sm:$0xff]
  %v3497 = vld [vmem:[%s0 + $0xa8] sm:$0xff]
  %v3498 = vld [vmem:[%s0 + $0xb0] sm:$0xff]
  %v3499 = vld [vmem:[%s0 + $0xb8] sm:$0xff]
  %v3500 = vld [vmem:[%s1554] sm:$0xff]
  %v3501 = vld [vmem:[%s1554 + $0x8] sm:$0xff]
  %v3502 = vld [vmem:[%s1554 + $0x10] sm:$0xff]
  %v3503 = vld [vmem:[%s1554 + $0x18] sm:$0xf]
  %v3505 = vsel %vm65, %v3488, 0
  %v3508 = vsel %vm65, %v3489, 0
  %v3511 = vsel %vm65, %v3490, 0
  %v3514 = vsel %vm65, %v3491, 0
  %v3517 = vsel %vm65, %v3492, 0
  %v3520 = vsel %vm65, %v3493, 0
  %v3523 = vsel %vm65, %v3494, 0
  %v3526 = vsel %vm65, %v3495, 0
  %v3529 = vsel %vm65, %v3496, 0
  %v3532 = vsel %vm65, %v3497, 0
  %v3535 = vsel %vm65, %v3498, 0
  %v3538 = vsel %vm65, %v3499, 0
  %v3541 = vsel %vm102, %v3503, 0
  %3543 = vmatprep.subr.mxu0 0.0
  %3544 = vmatpush1.msra.mxu0 %v3500
  %3545 = vmatprep.subr.mxu0 0.0
  %3546 = vmatpush1.msra.mxu0 %v3501
  %3547 = vmatprep.subr.mxu0 0.0
  %3548 = vmatpush1.msra.mxu0 %v3502
  %3549 = vmatprep.subr.mxu0 0.0
  %3550 = vmatpush1.msra.mxu0 %v3541
  %3551 = vmatprep.subr.mxu0 0.0
  %3552 = vmatpush1.msra.mxu0 0.0
  %3553 = vmatprep.subr.mxu0 0.0
  %3554 = vmatpush1.msra.mxu0 0.0
  %3555 = vmatprep.subr.mxu0 0.0
  %3556 = vmatpush1.msra.mxu0 0.0
  %3557 = vmatprep.subr.mxu0 0.0
  %3558 = vmatpush1.msra.mxu0 0.0
  %3559 = vmatprep.subr.mxu0 0.0
  %3560 = vmatpush1.msra.mxu0 0.0
  %3561 = vmatprep.subr.mxu0 0.0
  %3562 = vmatpush1.msra.mxu0 0.0
  %3563 = vmatprep.subr.mxu0 0.0
  %3564 = vmatpush1.msra.mxu0 0.0
  %3565 = vmatprep.subr.mxu0 0.0
  %3566 = vmatpush1.msra.mxu0 0.0
  %3567 = vmatprep.subr.mxu0 0.0
  %3568 = vmatpush1.msra.mxu0 0.0
  %3569 = vmatprep.subr.mxu0 0.0
  %3570 = vmatpush1.msra.mxu0 0.0
  %3571 = vmatprep.subr.mxu0 0.0
  %3572 = vmatpush1.msra.mxu0 0.0
  %3573 = vmatprep.subr.mxu0 0.0
  %3574 = vmatpush1.msra.mxu0 0.0
  %3575 = vmatprep.subr.mxu0 0.0
  %3576 = vmatpush1.msra.mxu0 0.0
  %3577 = vmatprep.subr.mxu0 0.0
  %3578 = vmatpush1.msra.mxu0 0.0
  %3579 = vmatprep.subr.mxu0 0.0
  %3580 = vmatpush1.msra.mxu0 0.0
  %3581 = vmatprep.subr.mxu0 0.0
  %3582 = vmatpush1.msra.mxu0 0.0
  %3583 = vmatprep.subr.mxu0 0.0
  %3584 = vmatpush1.msra.mxu0 0.0
  %3585 = vmatprep.subr.mxu0 0.0
  %3586 = vmatpush1.msra.mxu0 0.0
  %3587 = vmatprep.subr.mxu0 0.0
  %3588 = vmatpush1.msra.mxu0 0.0
  %3589 = vmatprep.subr.mxu0 0.0
  %3590 = vmatpush1.msra.mxu0 0.0
  %3591 = vmatprep.subr.mxu0 0.0
  %3592 = vmatpush1.msra.mxu0 0.0
  %3593 = vmatprep.subr.mxu0 0.0
  %3594 = vmatpush1.msra.mxu0 0.0
  %3595 = vmatprep.subr.mxu0 0.0
  %3596 = vmatpush1.msra.mxu0 0.0
  %3597 = vmatprep.subr.mxu0 0.0
  %3598 = vmatpush1.msra.mxu0 0.0
  %3599 = vmatprep.subr.mxu0 0.0
  %3600 = vmatpush1.msra.mxu0 0.0
  %3601 = vmatprep.subr.mxu0 0.0
  %3602 = vmatpush1.msra.mxu0 0.0
  %3603 = vmatprep.subr.mxu0 0.0
  %3604 = vmatpush1.msra.mxu0 0.0
  %3605 = vmatprep.subr.mxu0 0.0
  %3606 = vmatpush1.msra.mxu0 0.0
  %3607 = vmatprep.mubr.f32.mxu0 0.0
  %3608 = vmatmul.mubr.f32.gmra.mrb[0].mxu0 %v3505
  %v3609 = vpop.f32.mrb[0].mxu0
  %v3610 = vadd.f32 0.0, %v3609
  %v3611 = vpop.f32.mrb[0].mxu0
  %3612 = vmatprep.mubr.f32.mxu0 0.0
  %3613 = vmatmul.mubr.f32.gmra.mrb[0].mxu0 %v3508
  %v3614 = vpop.f32.mrb[0].mxu0
  %v3615 = vadd.f32 0.0, %v3614
  %v3616 = vpop.f32.mrb[0].mxu0
  %3617 = vmatprep.mubr.f32.mxu0 0.0
  %3618 = vmatmul.mubr.f32.gmra.mrb[0].mxu0 %v3511
  %v3619 = vpop.f32.mrb[0].mxu0
  %v3620 = vadd.f32 0.0, %v3619
  %v3621 = vpop.f32.mrb[0].mxu0
  %3622 = vmatprep.mubr.f32.mxu0 0.0
  %3623 = vmatmul.mubr.f32.gmra.mrb[0].mxu0 %v3514
  %v3624 = vpop.f32.mrb[0].mxu0
  %v3625 = vadd.f32 0.0, %v3624
  %v3626 = vpop.f32.mrb[0].mxu0
  %3627 = vmatprep.mubr.f32.mxu0 0.0
  %3628 = vmatmul.mubr.f32.gmra.mrb[0].mxu0 %v3517
  %v3629 = vpop.f32.mrb[0].mxu0
  %v3630 = vadd.f32 0.0, %v3629
  %v3631 = vpop.f32.mrb[0].mxu0
  %3632 = vmatprep.mubr.f32.mxu0 0.0
  %3633 = vmatmul.mubr.f32.gmra.mrb[0].mxu0 %v3520
  %v3634 = vpop.f32.mrb[0].mxu0
  %v3635 = vadd.f32 0.0, %v3634
  %v3636 = vpop.f32.mrb[0].mxu0
  %3637 = vmatprep.mubr.f32.mxu0 0.0
  %3638 = vmatmul.mubr.f32.gmra.mrb[0].mxu0 %v3523
  %v3639 = vpop.f32.mrb[0].mxu0
  %v3640 = vadd.f32 0.0, %v3639
  %v3641 = vpop.f32.mrb[0].mxu0
  %3642 = vmatprep.mubr.f32.mxu0 0.0
  %3643 = vmatmul.mubr.f32.gmra.mrb[0].mxu0 %v3526
  %v3644 = vpop.f32.mrb[0].mxu0
  %v3645 = vadd.f32 0.0, %v3644
  %v3646 = vpop.f32.mrb[0].mxu0
  %3647 = vmatprep.mubr.f32.mxu0 0.0
  %3648 = vmatmul.mubr.f32.gmra.mrb[0].mxu0 %v3529
  %v3649 = vpop.f32.mrb[0].mxu0
  %v3650 = vadd.f32 0.0, %v3649
  %v3651 = vpop.f32.mrb[0].mxu0
  %3652 = vmatprep.mubr.f32.mxu0 0.0
  %3653 = vmatmul.mubr.f32.gmra.mrb[0].mxu0 %v3532
  %v3654 = vpop.f32.mrb[0].mxu0
  %v3655 = vadd.f32 0.0, %v3654
  %v3656 = vpop.f32.mrb[0].mxu0
  %3657 = vmatprep.mubr.f32.mxu0 0.0
  %3658 = vmatmul.mubr.f32.gmra.mrb[0].mxu0 %v3535
  %v3659 = vpop.f32.mrb[0].mxu0
  %v3660 = vadd.f32 0.0, %v3659
  %v3661 = vpop.f32.mrb[0].mxu0
  %3662 = vmatprep.mubr.f32.mxu0 0.0
  %3663 = vmatmul.mubr.f32.gmra.mrb[0].mxu0 %v3538
  %v3664 = vpop.f32.mrb[0].mxu0
  %v3665 = vadd.f32 0.0, %v3664
  %v3666 = vpop.f32.mrb[0].mxu0
  %3667 = vdwg.mxu0
  %v3668 = vadd.f32 %v3476, %v3610
  %v3669 = vadd.f32 %v3477, %v3615
  %v3670 = vadd.f32 %v3478, %v3620
  %v3671 = vadd.f32 %v3479, %v3625
  %v3672 = vadd.f32 %v3480, %v3630
  %v3673 = vadd.f32 %v3481, %v3635
  %v3674 = vadd.f32 %v3482, %v3640
  %v3675 = vadd.f32 %v3483, %v3645
  %v3676 = vadd.f32 %v3484, %v3650
  %v3677 = vadd.f32 %v3485, %v3655
  %v3678 = vadd.f32 %v3486, %v3660
  %v3679 = vadd.f32 %v3487, %v3665
  %v3680 = vld [vmem:[%s0 + $0x120] sm:$0xff]
  %v3681 = vld [vmem:[%s0 + $0x128] sm:$0xff]
  %v3682 = vld [vmem:[%s0 + $0x130] sm:$0xff]
  %v3683 = vld [vmem:[%s0 + $0x138] sm:$0xff]
  %v3684 = vld [vmem:[%s0 + $0x140] sm:$0xff]
  %v3685 = vld [vmem:[%s0 + $0x148] sm:$0xff]
  %v3686 = vld [vmem:[%s0 + $0x150] sm:$0xff]
  %v3687 = vld [vmem:[%s0 + $0x158] sm:$0xff]
  %v3688 = vld [vmem:[%s0 + $0x160] sm:$0xff]
  %v3689 = vld [vmem:[%s0 + $0x168] sm:$0xff]
  %v3690 = vld [vmem:[%s0 + $0x170] sm:$0xff]
  %v3691 = vld [vmem:[%s0 + $0x178] sm:$0xff]
  %v3692 = vld [vmem:[%s1747] sm:$0xff]
  %v3693 = vld [vmem:[%s1747 + $0x8] sm:$0xff]
  %v3694 = vld [vmem:[%s1747 + $0x10] sm:$0xff]
  %v3695 = vld [vmem:[%s1747 + $0x18] sm:$0xf]
  %v3697 = vsel %vm65, %v3680, 0
  %v3700 = vsel %vm65, %v3681, 0
  %v3703 = vsel %vm65, %v3682, 0
  %v3706 = vsel %vm65, %v3683, 0
  %v3709 = vsel %vm65, %v3684, 0
  %v3712 = vsel %vm65, %v3685, 0
  %v3715 = vsel %vm65, %v3686, 0
  %v3718 = vsel %vm65, %v3687, 0
  %v3721 = vsel %vm65, %v3688, 0
  %v3724 = vsel %vm65, %v3689, 0
  %v3727 = vsel %vm65, %v3690, 0
  %v3730 = vsel %vm65, %v3691, 0
  %v3733 = vsel %vm102, %v3695, 0
  %3735 = vmatprep.subr.mxu0 0.0
  %3736 = vmatpush1.msra.mxu0 %v3692
  %3737 = vmatprep.subr.mxu0 0.0
  %3738 = vmatpush1.msra.mxu0 %v3693
  %3739 = vmatprep.subr.mxu0 0.0
  %3740 = vmatpush1.msra.mxu0 %v3694
  %3741 = vmatprep.subr.mxu0 0.0
  %3742 = vmatpush1.msra.mxu0 %v3733
  %3743 = vmatprep.subr.mxu0 0.0
  %3744 = vmatpush1.msra.mxu0 0.0
  %3745 = vmatprep.subr.mxu0 0.0
  %3746 = vmatpush1.msra.mxu0 0.0
  %3747 = vmatprep.subr.mxu0 0.0
  %3748 = vmatpush1.msra.mxu0 0.0
  %3749 = vmatprep.subr.mxu0 0.0
  %3750 = vmatpush1.msra.mxu0 0.0
  %3751 = vmatprep.subr.mxu0 0.0
  %3752 = vmatpush1.msra.mxu0 0.0
  %3753 = vmatprep.subr.mxu0 0.0
  %3754 = vmatpush1.msra.mxu0 0.0
  %3755 = vmatprep.subr.mxu0 0.0
  %3756 = vmatpush1.msra.mxu0 0.0
  %3757 = vmatprep.subr.mxu0 0.0
  %3758 = vmatpush1.msra.mxu0 0.0
  %3759 = vmatprep.subr.mxu0 0.0
  %3760 = vmatpush1.msra.mxu0 0.0
  %3761 = vmatprep.subr.mxu0 0.0
  %3762 = vmatpush1.msra.mxu0 0.0
  %3763 = vmatprep.subr.mxu0 0.0
  %3764 = vmatpush1.msra.mxu0 0.0
  %3765 = vmatprep.subr.mxu0 0.0
  %3766 = vmatpush1.msra.mxu0 0.0
  %3767 = vmatprep.subr.mxu0 0.0
  %3768 = vmatpush1.msra.mxu0 0.0
  %3769 = vmatprep.subr.mxu0 0.0
  %3770 = vmatpush1.msra.mxu0 0.0
  %3771 = vmatprep.subr.mxu0 0.0
  %3772 = vmatpush1.msra.mxu0 0.0
  %3773 = vmatprep.subr.mxu0 0.0
  %3774 = vmatpush1.msra.mxu0 0.0
  %3775 = vmatprep.subr.mxu0 0.0
  %3776 = vmatpush1.msra.mxu0 0.0
  %3777 = vmatprep.subr.mxu0 0.0
  %3778 = vmatpush1.msra.mxu0 0.0
  %3779 = vmatprep.subr.mxu0 0.0
  %3780 = vmatpush1.msra.mxu0 0.0
  %3781 = vmatprep.subr.mxu0 0.0
  %3782 = vmatpush1.msra.mxu0 0.0
  %3783 = vmatprep.subr.mxu0 0.0
  %3784 = vmatpush1.msra.mxu0 0.0
  %3785 = vmatprep.subr.mxu0 0.0
  %3786 = vmatpush1.msra.mxu0 0.0
  %3787 = vmatprep.subr.mxu0 0.0
  %3788 = vmatpush1.msra.mxu0 0.0
  %3789 = vmatprep.subr.mxu0 0.0
  %3790 = vmatpush1.msra.mxu0 0.0
  %3791 = vmatprep.subr.mxu0 0.0
  %3792 = vmatpush1.msra.mxu0 0.0
  %3793 = vmatprep.subr.mxu0 0.0
  %3794 = vmatpush1.msra.mxu0 0.0
  %3795 = vmatprep.subr.mxu0 0.0
  %3796 = vmatpush1.msra.mxu0 0.0
  %3797 = vmatprep.subr.mxu0 0.0
  %3798 = vmatpush1.msra.mxu0 0.0
  %3799 = vmatprep.mubr.f32.mxu0 0.0
  %3800 = vmatmul.mubr.f32.gmra.mrb[0].mxu0 %v3697
  %v3801 = vpop.f32.mrb[0].mxu0
  %v3802 = vadd.f32 0.0, %v3801
  %v3803 = vpop.f32.mrb[0].mxu0
  %3804 = vmatprep.mubr.f32.mxu0 0.0
  %3805 = vmatmul.mubr.f32.gmra.mrb[0].mxu0 %v3700
  %v3806 = vpop.f32.mrb[0].mxu0
  %v3807 = vadd.f32 0.0, %v3806
  %v3808 = vpop.f32.mrb[0].mxu0
  %3809 = vmatprep.mubr.f32.mxu0 0.0
  %3810 = vmatmul.mubr.f32.gmra.mrb[0].mxu0 %v3703
  %v3811 = vpop.f32.mrb[0].mxu0
  %v3812 = vadd.f32 0.0, %v3811
  %v3813 = vpop.f32.mrb[0].mxu0
  %3814 = vmatprep.mubr.f32.mxu0 0.0
  %3815 = vmatmul.mubr.f32.gmra.mrb[0].mxu0 %v3706
  %v3816 = vpop.f32.mrb[0].mxu0
  %v3817 = vadd.f32 0.0, %v3816
  %v3818 = vpop.f32.mrb[0].mxu0
  %3819 = vmatprep.mubr.f32.mxu0 0.0
  %3820 = vmatmul.mubr.f32.gmra.mrb[0].mxu0 %v3709
  %v3821 = vpop.f32.mrb[0].mxu0
  %v3822 = vadd.f32 0.0, %v3821
  %v3823 = vpop.f32.mrb[0].mxu0
  %3824 = vmatprep.mubr.f32.mxu0 0.0
  %3825 = vmatmul.mubr.f32.gmra.mrb[0].mxu0 %v3712
  %v3826 = vpop.f32.mrb[0].mxu0
  %v3827 = vadd.f32 0.0, %v3826
  %v3828 = vpop.f32.mrb[0].mxu0
  %3829 = vmatprep.mubr.f32.mxu0 0.0
  %3830 = vmatmul.mubr.f32.gmra.mrb[0].mxu0 %v3715
  %v3831 = vpop.f32.mrb[0].mxu0
  %v3832 = vadd.f32 0.0, %v3831
  %v3833 = vpop.f32.mrb[0].mxu0
  %3834 = vmatprep.mubr.f32.mxu0 0.0
  %3835 = vmatmul.mubr.f32.gmra.mrb[0].mxu0 %v3718
  %v3836 = vpop.f32.mrb[0].mxu0
  %v3837 = vadd.f32 0.0, %v3836
  %v3838 = vpop.f32.mrb[0].mxu0
  %3839 = vmatprep.mubr.f32.mxu0 0.0
  %3840 = vmatmul.mubr.f32.gmra.mrb[0].mxu0 %v3721
  %v3841 = vpop.f32.mrb[0].mxu0
  %v3842 = vadd.f32 0.0, %v3841
  %v3843 = vpop.f32.mrb[0].mxu0
  %3844 = vmatprep.mubr.f32.mxu0 0.0
  %3845 = vmatmul.mubr.f32.gmra.mrb[0].mxu0 %v3724
  %v3846 = vpop.f32.mrb[0].mxu0
  %v3847 = vadd.f32 0.0, %v3846
  %v3848 = vpop.f32.mrb[0].mxu0
  %3849 = vmatprep.mubr.f32.mxu0 0.0
  %3850 = vmatmul.mubr.f32.gmra.mrb[0].mxu0 %v3727
  %v3851 = vpop.f32.mrb[0].mxu0
  %v3852 = vadd.f32 0.0, %v3851
  %v3853 = vpop.f32.mrb[0].mxu0
  %3854 = vmatprep.mubr.f32.mxu0 0.0
  %3855 = vmatmul.mubr.f32.gmra.mrb[0].mxu0 %v3730
  %v3856 = vpop.f32.mrb[0].mxu0
  %v3857 = vadd.f32 0.0, %v3856
  %v3858 = vpop.f32.mrb[0].mxu0
  %3859 = vdwg.mxu0
  %v3860 = vadd.f32 %v3668, %v3802
  %v3861 = vadd.f32 %v3669, %v3807
  %v3862 = vadd.f32 %v3670, %v3812
  %v3863 = vadd.f32 %v3671, %v3817
  %v3864 = vadd.f32 %v3672, %v3822
  %v3865 = vadd.f32 %v3673, %v3827
  %v3866 = vadd.f32 %v3674, %v3832
  %v3867 = vadd.f32 %v3675, %v3837
  %v3868 = vadd.f32 %v3676, %v3842
  %v3869 = vadd.f32 %v3677, %v3847
  %v3870 = vadd.f32 %v3678, %v3852
  %v3871 = vadd.f32 %v3679, %v3857
  %v3872 = vld [vmem:[#allocation2] sm:$0xff]
  %v3873 = vld [vmem:[#allocation2 + $0x8] sm:$0xff]
  %v3874 = vld [vmem:[#allocation2 + $0x10] sm:$0xff]
  %v3875 = vld [vmem:[#allocation2 + $0x18] sm:$0xff]
  %v3876 = vld [vmem:[#allocation2 + $0x20] sm:$0xff]
  %v3877 = vld [vmem:[#allocation2 + $0x28] sm:$0xff]
  %v3878 = vld [vmem:[#allocation2 + $0x30] sm:$0xff]
  %v3879 = vld [vmem:[#allocation2 + $0x38] sm:$0xff]
  %v3880 = vld [vmem:[#allocation2 + $0x40] sm:$0xff]
  %v3881 = vld [vmem:[#allocation2 + $0x48] sm:$0xff]
  %v3882 = vld [vmem:[#allocation2 + $0x50] sm:$0xff]
  %v3883 = vld [vmem:[#allocation2 + $0x58] sm:$0xff]
  %v3884 = vmax.f32 %v3872, %v3860
  %v3885 = vmax.f32 %v3873, %v3861
  %v3886 = vmax.f32 %v3874, %v3862
  %v3887 = vmax.f32 %v3875, %v3863
  %v3888 = vmax.f32 %v3876, %v3864
  %v3889 = vmax.f32 %v3877, %v3865
  %v3890 = vmax.f32 %v3878, %v3866
  %v3891 = vmax.f32 %v3879, %v3867
  %v3892 = vmax.f32 %v3880, %v3868
  %v3893 = vmax.f32 %v3881, %v3869
  %v3894 = vmax.f32 %v3882, %v3870
  %v3895 = vmax.f32 %v3883, %v3871
  %3896 = vst.msk [vmem:[#allocation2] sm:$0xff] %vm974, %v3884
  %3897 = vst.msk [vmem:[#allocation2 + $0x8] sm:$0xff] %vm974, %v3885
  %3898 = vst.msk [vmem:[#allocation2 + $0x10] sm:$0xff] %vm974, %v3886
  %3899 = vst.msk [vmem:[#allocation2 + $0x18] sm:$0xff] %vm974, %v3887
  %3900 = vst.msk [vmem:[#allocation2 + $0x20] sm:$0xff] %vm974, %v3888
  %3901 = vst.msk [vmem:[#allocation2 + $0x28] sm:$0xff] %vm974, %v3889
  %3902 = vst.msk [vmem:[#allocation2 + $0x30] sm:$0xff] %vm974, %v3890
  %3903 = vst.msk [vmem:[#allocation2 + $0x38] sm:$0xff] %vm974, %v3891
  %3904 = vst.msk [vmem:[#allocation2 + $0x40] sm:$0xff] %vm974, %v3892
  %3905 = vst.msk [vmem:[#allocation2 + $0x48] sm:$0xff] %vm974, %v3893
  %3906 = vst.msk [vmem:[#allocation2 + $0x50] sm:$0xff] %vm974, %v3894
  %3907 = vst.msk [vmem:[#allocation2 + $0x58] sm:$0xff] %vm974, %v3895
  %v3908 = vld [vmem:[#allocation2] sm:$0xff]
  %v3909 = vld [vmem:[#allocation2 + $0x8] sm:$0xff]
  %v3910 = vld [vmem:[#allocation2 + $0x10] sm:$0xff]
  %v3911 = vld [vmem:[#allocation2 + $0x18] sm:$0xff]
  %v3912 = vld [vmem:[#allocation2 + $0x20] sm:$0xff]
  %v3913 = vld [vmem:[#allocation2 + $0x28] sm:$0xff]
  %v3914 = vld [vmem:[#allocation2 + $0x30] sm:$0xff]
  %v3915 = vld [vmem:[#allocation2 + $0x38] sm:$0xff]
  %v3916 = vld [vmem:[#allocation2 + $0x40] sm:$0xff]
  %v3917 = vld [vmem:[#allocation2 + $0x48] sm:$0xff]
  %v3918 = vld [vmem:[#allocation2 + $0x50] sm:$0xff]
  %v3919 = vld [vmem:[#allocation2 + $0x58] sm:$0xff]
  %v3920 = vld [vmem:[%s2] sm:$0x1]
  %v3922 = vlaneseq
  %v3923 = vshrl.u32 %v3922, 7
  %v3924 = vsub.s32 0, %v3923
  %v3925 = vrot.slane %v3920, %v3924
  %v3927 = vadd.f32 %v3908, %v3925
  %v3928 = vadd.f32 %v3909, %v3925
  %v3929 = vadd.f32 %v3910, %v3925
  %v3930 = vadd.f32 %v3911, %v3925
  %v3931 = vadd.f32 %v3912, %v3925
  %v3932 = vadd.f32 %v3913, %v3925
  %v3933 = vadd.f32 %v3914, %v3925
  %v3934 = vadd.f32 %v3915, %v3925
  %v3935 = vadd.f32 %v3916, %v3925
  %v3936 = vadd.f32 %v3917, %v3925
  %v3937 = vadd.f32 %v3918, %v3925
  %v3938 = vadd.f32 %v3919, %v3925
  %v3939 = vmax.f32 %v3927, 0.0
  %v3940 = vmax.f32 %v3928, 0.0
  %v3941 = vmax.f32 %v3929, 0.0
  %v3942 = vmax.f32 %v3930, 0.0
  %v3943 = vmax.f32 %v3931, 0.0
  %v3944 = vmax.f32 %v3932, 0.0
  %v3945 = vmax.f32 %v3933, 0.0
  %v3946 = vmax.f32 %v3934, 0.0
  %v3947 = vmax.f32 %v3935, 0.0
  %v3948 = vmax.f32 %v3936, 0.0
  %v3949 = vmax.f32 %v3937, 0.0
  %v3950 = vmax.f32 %v3938, 0.0
  %3951 = vst.msk [vmem:[#allocation2] sm:$0xff] %vm974, %v3939
  %3952 = vst.msk [vmem:[#allocation2 + $0x8] sm:$0xff] %vm974, %v3940
  %3953 = vst.msk [vmem:[#allocation2 + $0x10] sm:$0xff] %vm974, %v3941
  %3954 = vst.msk [vmem:[#allocation2 + $0x18] sm:$0xff] %vm974, %v3942
  %3955 = vst.msk [vmem:[#allocation2 + $0x20] sm:$0xff] %vm974, %v3943
  %3956 = vst.msk [vmem:[#allocation2 + $0x28] sm:$0xff] %vm974, %v3944
  %3957 = vst.msk [vmem:[#allocation2 + $0x30] sm:$0xff] %vm974, %v3945
  %3958 = vst.msk [vmem:[#allocation2 + $0x38] sm:$0xff] %vm974, %v3946
  %3959 = vst.msk [vmem:[#allocation2 + $0x40] sm:$0xff] %vm974, %v3947
  %3960 = vst.msk [vmem:[#allocation2 + $0x48] sm:$0xff] %vm974, %v3948
  %3961 = vst.msk [vmem:[#allocation2 + $0x50] sm:$0xff] %vm974, %v3949
  %3962 = vst.msk [vmem:[#allocation2 + $0x58] sm:$0xff] %vm974, %v3950
  %v3963 = vld [vmem:[#allocation2] sm:$0xff]
  %v3964 = vld [vmem:[#allocation2 + $0x8] sm:$0xff]
  %v3965 = vld [vmem:[#allocation2 + $0x10] sm:$0xff]
  %v3966 = vld [vmem:[#allocation2 + $0x18] sm:$0xff]
  %v3967 = vld [vmem:[%s3] sm:$0xff]
  %v3968 = vld [vmem:[%s3 + $0x8] sm:$0xff]
  %v3969 = vld [vmem:[%s3 + $0x10] sm:$0xff]
  %v3970 = vld [vmem:[%s3 + $0x18] sm:$0xff]
  %v3971 = vld [vmem:[%s3 + $0x20] sm:$0xff]
  %v3972 = vld [vmem:[%s3 + $0x28] sm:$0xff]
  %v3973 = vld [vmem:[%s3 + $0x30] sm:$0xff]
  %v3974 = vld [vmem:[%s3 + $0x38] sm:$0xff]
  %v3975 = vld [vmem:[%s3 + $0x40] sm:$0xff]
  %v3976 = vld [vmem:[%s3 + $0x48] sm:$0xff]
  %v3977 = vld [vmem:[%s3 + $0x50] sm:$0xff]
  %v3978 = vld [vmem:[%s3 + $0x58] sm:$0xff]
  %v3979 = vld [vmem:[%s3 + $0x60] sm:$0xff]
  %v3980 = vld [vmem:[%s3 + $0x68] sm:$0xff]
  %v3981 = vld [vmem:[%s3 + $0x70] sm:$0xff]
  %v3982 = vld [vmem:[#allocation2 + $0x30] sm:$0xff]
  %v3983 = vld [vmem:[#allocation2 + $0x38] sm:$0xff]
  %v3984 = vld [vmem:[#allocation2 + $0x40] sm:$0xff]
  %v3985 = vld [vmem:[#allocation2 + $0x48] sm:$0xff]
  %s3986 = scalar_lea.vmem %s3, 240
  %v3987 = vld [vmem:[%s3986] sm:$0xff]
  %v3988 = vld [vmem:[%s3986 + $0x8] sm:$0xff]
  %v3989 = vld [vmem:[%s3986 + $0x10] sm:$0xff]
  %v3990 = vld [vmem:[%s3986 + $0x18] sm:$0xff]
  %v3991 = vld [vmem:[%s3986 + $0x20] sm:$0xff]
  %v3992 = vld [vmem:[%s3986 + $0x28] sm:$0xff]
  %v3993 = vld [vmem:[%s3986 + $0x30] sm:$0xff]
  %v3994 = vld [vmem:[%s3986 + $0x38] sm:$0xff]
  %v3995 = vld [vmem:[%s3986 + $0x40] sm:$0xff]
  %v3996 = vld [vmem:[%s3986 + $0x48] sm:$0xff]
  %v3997 = vld [vmem:[%s3986 + $0x50] sm:$0xff]
  %v3998 = vld [vmem:[%s3986 + $0x58] sm:$0xff]
  %v3999 = vld [vmem:[%s3986 + $0x60] sm:$0xff]
  %v4000 = vld [vmem:[%s3986 + $0x68] sm:$0xff]
  %v4001 = vld [vmem:[%s3986 + $0x70] sm:$0xff]
  %v4003 = vsel %vm974, %v3982, 0
  %v4006 = vsel %vm974, %v3983, 0
  %v4009 = vsel %vm974, %v3984, 0
  %v4012 = vsel %vm974, %v3985, 0
  %4014 = vmatprep.subr.mxu0 0.0
  %4015 = vmatpush1.msra.mxu0 %v3987
  %4016 = vmatprep.subr.mxu0 0.0
  %4017 = vmatpush1.msra.mxu0 %v3988
  %4018 = vmatprep.subr.mxu0 0.0
  %4019 = vmatpush1.msra.mxu0 %v3989
  %4020 = vmatprep.subr.mxu0 0.0
  %4021 = vmatpush1.msra.mxu0 %v3990
  %4022 = vmatprep.subr.mxu0 0.0
  %4023 = vmatpush1.msra.mxu0 %v3991
  %4024 = vmatprep.subr.mxu0 0.0
  %4025 = vmatpush1.msra.mxu0 %v3992
  %4026 = vmatprep.subr.mxu0 0.0
  %4027 = vmatpush1.msra.mxu0 %v3993
  %4028 = vmatprep.subr.mxu0 0.0
  %4029 = vmatpush1.msra.mxu0 %v3994
  %4030 = vmatprep.subr.mxu0 0.0
  %4031 = vmatpush1.msra.mxu0 %v3995
  %4032 = vmatprep.subr.mxu0 0.0
  %4033 = vmatpush1.msra.mxu0 %v3996
  %4034 = vmatprep.subr.mxu0 0.0
  %4035 = vmatpush1.msra.mxu0 %v3997
  %4036 = vmatprep.subr.mxu0 0.0
  %4037 = vmatpush1.msra.mxu0 %v3998
  %4038 = vmatprep.subr.mxu0 0.0
  %4039 = vmatpush1.msra.mxu0 %v3999
  %4040 = vmatprep.subr.mxu0 0.0
  %4041 = vmatpush1.msra.mxu0 %v4000
  %4042 = vmatprep.subr.mxu0 0.0
  %4043 = vmatpush1.msra.mxu0 %v4001
  %4044 = vmatprep.subr.mxu0 0.0
  %4045 = vmatpush1.msra.mxu0 0.0
  %4046 = vmatprep.subr.mxu0 0.0
  %4047 = vmatpush1.msra.mxu0 0.0
  %4048 = vmatprep.subr.mxu0 0.0
  %4049 = vmatpush1.msra.mxu0 0.0
  %4050 = vmatprep.subr.mxu0 0.0
  %4051 = vmatpush1.msra.mxu0 0.0
  %4052 = vmatprep.subr.mxu0 0.0
  %4053 = vmatpush1.msra.mxu0 0.0
  %4054 = vmatprep.subr.mxu0 0.0
  %4055 = vmatpush1.msra.mxu0 0.0
  %4056 = vmatprep.subr.mxu0 0.0
  %4057 = vmatpush1.msra.mxu0 0.0
  %4058 = vmatprep.subr.mxu0 0.0
  %4059 = vmatpush1.msra.mxu0 0.0
  %4060 = vmatprep.subr.mxu0 0.0
  %4061 = vmatpush1.msra.mxu0 0.0
  %4062 = vmatprep.subr.mxu0 0.0
  %4063 = vmatpush1.msra.mxu0 0.0
  %4064 = vmatprep.subr.mxu0 0.0
  %4065 = vmatpush1.msra.mxu0 0.0
  %4066 = vmatprep.subr.mxu0 0.0
  %4067 = vmatpush1.msra.mxu0 0.0
  %4068 = vmatprep.subr.mxu0 0.0
  %4069 = vmatpush1.msra.mxu0 0.0
  %4070 = vmatprep.subr.mxu0 0.0
  %4071 = vmatpush1.msra.mxu0 0.0
  %4072 = vmatprep.subr.mxu0 0.0
  %4073 = vmatpush1.msra.mxu0 0.0
  %4074 = vmatprep.subr.mxu0 0.0
  %4075 = vmatpush1.msra.mxu0 0.0
  %4076 = vmatprep.subr.mxu0 0.0
  %4077 = vmatpush1.msra.mxu0 0.0
  %4078 = vmatprep.mubr.f32.mxu0 0.0
  %4079 = vmatmul.mubr.f32.gmra.mrb[0].mxu0 %v4003
  %v4080 = vpop.f32.mrb[0].mxu0
  %v4081 = vadd.f32 0.0, %v4080
  %v4082 = vpop.f32.mrb[0].mxu0
  %4083 = vmatprep.mubr.f32.mxu0 0.0
  %4084 = vmatmul.mubr.f32.gmra.mrb[0].mxu0 %v4006
  %v4085 = vpop.f32.mrb[0].mxu0
  %v4086 = vadd.f32 0.0, %v4085
  %v4087 = vpop.f32.mrb[0].mxu0
  %4088 = vmatprep.mubr.f32.mxu0 0.0
  %4089 = vmatmul.mubr.f32.gmra.mrb[0].mxu0 %v4009
  %v4090 = vpop.f32.mrb[0].mxu0
  %v4091 = vadd.f32 0.0, %v4090
  %v4092 = vpop.f32.mrb[0].mxu0
  %4093 = vmatprep.mubr.f32.mxu0 0.0
  %4094 = vmatmul.mubr.f32.gmra.mrb[0].mxu0 %v4012
  %v4095 = vpop.f32.mrb[0].mxu0
  %v4096 = vadd.f32 0.0, %v4095
  %v4097 = vpop.f32.mrb[0].mxu0
  %4098 = vdwg.mxu0
  %v4100 = vsel %vm974, %v3963, 0
  %v4103 = vsel %vm974, %v3964, 0
  %v4106 = vsel %vm974, %v3965, 0
  %v4109 = vsel %vm974, %v3966, 0
  %4111 = vmatprep.subr.mxu0 0.0
  %4112 = vmatpush1.msra.mxu0 %v3967
  %4113 = vmatprep.subr.mxu0 0.0
  %4114 = vmatpush1.msra.mxu0 %v3968
  %4115 = vmatprep.subr.mxu0 0.0
  %4116 = vmatpush1.msra.mxu0 %v3969
  %4117 = vmatprep.subr.mxu0 0.0
  %4118 = vmatpush1.msra.mxu0 %v3970
  %4119 = vmatprep.subr.mxu0 0.0
  %4120 = vmatpush1.msra.mxu0 %v3971
  %4121 = vmatprep.subr.mxu0 0.0
  %4122 = vmatpush1.msra.mxu0 %v3972
  %4123 = vmatprep.subr.mxu0 0.0
  %4124 = vmatpush1.msra.mxu0 %v3973
  %4125 = vmatprep.subr.mxu0 0.0
  %4126 = vmatpush1.msra.mxu0 %v3974
  %4127 = vmatprep.subr.mxu0 0.0
  %4128 = vmatpush1.msra.mxu0 %v3975
  %4129 = vmatprep.subr.mxu0 0.0
  %4130 = vmatpush1.msra.mxu0 %v3976
  %4131 = vmatprep.subr.mxu0 0.0
  %4132 = vmatpush1.msra.mxu0 %v3977
  %4133 = vmatprep.subr.mxu0 0.0
  %4134 = vmatpush1.msra.mxu0 %v3978
  %4135 = vmatprep.subr.mxu0 0.0
  %4136 = vmatpush1.msra.mxu0 %v3979
  %4137 = vmatprep.subr.mxu0 0.0
  %4138 = vmatpush1.msra.mxu0 %v3980
  %4139 = vmatprep.subr.mxu0 0.0
  %4140 = vmatpush1.msra.mxu0 %v3981
  %4141 = vmatprep.subr.mxu0 0.0
  %4142 = vmatpush1.msra.mxu0 0.0
  %4143 = vmatprep.subr.mxu0 0.0
  %4144 = vmatpush1.msra.mxu0 0.0
  %4145 = vmatprep.subr.mxu0 0.0
  %4146 = vmatpush1.msra.mxu0 0.0
  %4147 = vmatprep.subr.mxu0 0.0
  %4148 = vmatpush1.msra.mxu0 0.0
  %4149 = vmatprep.subr.mxu0 0.0
  %4150 = vmatpush1.msra.mxu0 0.0
  %4151 = vmatprep.subr.mxu0 0.0
  %4152 = vmatpush1.msra.mxu0 0.0
  %4153 = vmatprep.subr.mxu0 0.0
  %4154 = vmatpush1.msra.mxu0 0.0
  %4155 = vmatprep.subr.mxu0 0.0
  %4156 = vmatpush1.msra.mxu0 0.0
  %4157 = vmatprep.subr.mxu0 0.0
  %4158 = vmatpush1.msra.mxu0 0.0
  %4159 = vmatprep.subr.mxu0 0.0
  %4160 = vmatpush1.msra.mxu0 0.0
  %4161 = vmatprep.subr.mxu0 0.0
  %4162 = vmatpush1.msra.mxu0 0.0
  %4163 = vmatprep.subr.mxu0 0.0
  %4164 = vmatpush1.msra.mxu0 0.0
  %4165 = vmatprep.subr.mxu0 0.0
  %4166 = vmatpush1.msra.mxu0 0.0
  %4167 = vmatprep.subr.mxu0 0.0
  %4168 = vmatpush1.msra.mxu0 0.0
  %4169 = vmatprep.subr.mxu0 0.0
  %4170 = vmatpush1.msra.mxu0 0.0
  %4171 = vmatprep.subr.mxu0 0.0
  %4172 = vmatpush1.msra.mxu0 0.0
  %4173 = vmatprep.subr.mxu0 0.0
  %4174 = vmatpush1.msra.mxu0 0.0
  %4175 = vmatprep.mubr.f32.mxu0 0.0
  %4176 = vmatmul.mubr.f32.gmra.mrb[0].mxu0 %v4100
  %v4177 = vpop.f32.mrb[0].mxu0
  %v4178 = vadd.f32 %v4081, %v4177
  %v4179 = vpop.f32.mrb[0].mxu0
  %4180 = vmatprep.mubr.f32.mxu0 0.0
  %4181 = vmatmul.mubr.f32.gmra.mrb[0].mxu0 %v4103
  %v4182 = vpop.f32.mrb[0].mxu0
  %v4183 = vadd.f32 %v4086, %v4182
  %v4184 = vpop.f32.mrb[0].mxu0
  %4185 = vmatprep.mubr.f32.mxu0 0.0
  %4186 = vmatmul.mubr.f32.gmra.mrb[0].mxu0 %v4106
  %v4187 = vpop.f32.mrb[0].mxu0
  %v4188 = vadd.f32 %v4091, %v4187
  %v4189 = vpop.f32.mrb[0].mxu0
  %4190 = vmatprep.mubr.f32.mxu0 0.0
  %4191 = vmatmul.mubr.f32.gmra.mrb[0].mxu0 %v4109
  %v4192 = vpop.f32.mrb[0].mxu0
  %v4193 = vadd.f32 %v4096, %v4192
  %v4194 = vpop.f32.mrb[0].mxu0
  %4195 = vdwg.mxu0
  %v4196 = vld [vmem:[#allocation2 + $0x8] sm:$0xff]
  %v4197 = vld [vmem:[#allocation2 + $0x10] sm:$0xff]
  %v4198 = vld [vmem:[#allocation2 + $0x18] sm:$0xff]
  %v4199 = vld [vmem:[#allocation2 + $0x20] sm:$0xff]
  %s4200 = scalar_lea.vmem %s3, 480
  %v4201 = vld [vmem:[%s4200] sm:$0xff]
  %v4202 = vld [vmem:[%s4200 + $0x8] sm:$0xff]
  %v4203 = vld [vmem:[%s4200 + $0x10] sm:$0xff]
  %v4204 = vld [vmem:[%s4200 + $0x18] sm:$0xff]
  %v4205 = vld [vmem:[%s4200 + $0x20] sm:$0xff]
  %v4206 = vld [vmem:[%s4200 + $0x28] sm:$0xff]
  %v4207 = vld [vmem:[%s4200 + $0x30] sm:$0xff]
  %v4208 = vld [vmem:[%s4200 + $0x38] sm:$0xff]
  %v4209 = vld [vmem:[%s4200 + $0x40] sm:$0xff]
  %v4210 = vld [vmem:[%s4200 + $0x48] sm:$0xff]
  %v4211 = vld [vmem:[%s4200 + $0x50] sm:$0xff]
  %v4212 = vld [vmem:[%s4200 + $0x58] sm:$0xff]
  %v4213 = vld [vmem:[%s4200 + $0x60] sm:$0xff]
  %v4214 = vld [vmem:[%s4200 + $0x68] sm:$0xff]
  %v4215 = vld [vmem:[%s4200 + $0x70] sm:$0xff]
  %v4217 = vsel %vm974, %v4196, 0
  %v4220 = vsel %vm974, %v4197, 0
  %v4223 = vsel %vm974, %v4198, 0
  %v4226 = vsel %vm974, %v4199, 0
  %4228 = vmatprep.subr.mxu0 0.0
  %4229 = vmatpush1.msra.mxu0 %v4201
  %4230 = vmatprep.subr.mxu0 0.0
  %4231 = vmatpush1.msra.mxu0 %v4202
  %4232 = vmatprep.subr.mxu0 0.0
  %4233 = vmatpush1.msra.mxu0 %v4203
  %4234 = vmatprep.subr.mxu0 0.0
  %4235 = vmatpush1.msra.mxu0 %v4204
  %4236 = vmatprep.subr.mxu0 0.0
  %4237 = vmatpush1.msra.mxu0 %v4205
  %4238 = vmatprep.subr.mxu0 0.0
  %4239 = vmatpush1.msra.mxu0 %v4206
  %4240 = vmatprep.subr.mxu0 0.0
  %4241 = vmatpush1.msra.mxu0 %v4207
  %4242 = vmatprep.subr.mxu0 0.0
  %4243 = vmatpush1.msra.mxu0 %v4208
  %4244 = vmatprep.subr.mxu0 0.0
  %4245 = vmatpush1.msra.mxu0 %v4209
  %4246 = vmatprep.subr.mxu0 0.0
  %4247 = vmatpush1.msra.mxu0 %v4210
  %4248 = vmatprep.subr.mxu0 0.0
  %4249 = vmatpush1.msra.mxu0 %v4211
  %4250 = vmatprep.subr.mxu0 0.0
  %4251 = vmatpush1.msra.mxu0 %v4212
  %4252 = vmatprep.subr.mxu0 0.0
  %4253 = vmatpush1.msra.mxu0 %v4213
  %4254 = vmatprep.subr.mxu0 0.0
  %4255 = vmatpush1.msra.mxu0 %v4214
  %4256 = vmatprep.subr.mxu0 0.0
  %4257 = vmatpush1.msra.mxu0 %v4215
  %4258 = vmatprep.subr.mxu0 0.0
  %4259 = vmatpush1.msra.mxu0 0.0
  %4260 = vmatprep.subr.mxu0 0.0
  %4261 = vmatpush1.msra.mxu0 0.0
  %4262 = vmatprep.subr.mxu0 0.0
  %4263 = vmatpush1.msra.mxu0 0.0
  %4264 = vmatprep.subr.mxu0 0.0
  %4265 = vmatpush1.msra.mxu0 0.0
  %4266 = vmatprep.subr.mxu0 0.0
  %4267 = vmatpush1.msra.mxu0 0.0
  %4268 = vmatprep.subr.mxu0 0.0
  %4269 = vmatpush1.msra.mxu0 0.0
  %4270 = vmatprep.subr.mxu0 0.0
  %4271 = vmatpush1.msra.mxu0 0.0
  %4272 = vmatprep.subr.mxu0 0.0
  %4273 = vmatpush1.msra.mxu0 0.0
  %4274 = vmatprep.subr.mxu0 0.0
  %4275 = vmatpush1.msra.mxu0 0.0
  %4276 = vmatprep.subr.mxu0 0.0
  %4277 = vmatpush1.msra.mxu0 0.0
  %4278 = vmatprep.subr.mxu0 0.0
  %4279 = vmatpush1.msra.mxu0 0.0
  %4280 = vmatprep.subr.mxu0 0.0
  %4281 = vmatpush1.msra.mxu0 0.0
  %4282 = vmatprep.subr.mxu0 0.0
  %4283 = vmatpush1.msra.mxu0 0.0
  %4284 = vmatprep.subr.mxu0 0.0
  %4285 = vmatpush1.msra.mxu0 0.0
  %4286 = vmatprep.subr.mxu0 0.0
  %4287 = vmatpush1.msra.mxu0 0.0
  %4288 = vmatprep.subr.mxu0 0.0
  %4289 = vmatpush1.msra.mxu0 0.0
  %4290 = vmatprep.subr.mxu0 0.0
  %4291 = vmatpush1.msra.mxu0 0.0
  %4292 = vmatprep.mubr.f32.mxu0 0.0
  %4293 = vmatmul.mubr.f32.gmra.mrb[0].mxu0 %v4217
  %v4294 = vpop.f32.mrb[0].mxu0
  %v4295 = vadd.f32 0.0, %v4294
  %v4296 = vpop.f32.mrb[0].mxu0
  %4297 = vmatprep.mubr.f32.mxu0 0.0
  %4298 = vmatmul.mubr.f32.gmra.mrb[0].mxu0 %v4220
  %v4299 = vpop.f32.mrb[0].mxu0
  %v4300 = vadd.f32 0.0, %v4299
  %v4301 = vpop.f32.mrb[0].mxu0
  %4302 = vmatprep.mubr.f32.mxu0 0.0
  %4303 = vmatmul.mubr.f32.gmra.mrb[0].mxu0 %v4223
  %v4304 = vpop.f32.mrb[0].mxu0
  %v4305 = vadd.f32 0.0, %v4304
  %v4306 = vpop.f32.mrb[0].mxu0
  %4307 = vmatprep.mubr.f32.mxu0 0.0
  %4308 = vmatmul.mubr.f32.gmra.mrb[0].mxu0 %v4226
  %v4309 = vpop.f32.mrb[0].mxu0
  %v4310 = vadd.f32 0.0, %v4309
  %v4311 = vpop.f32.mrb[0].mxu0
  %4312 = vdwg.mxu0
  %v4313 = vadd.f32 %v4178, %v4295
  %v4314 = vadd.f32 %v4183, %v4300
  %v4315 = vadd.f32 %v4188, %v4305
  %v4316 = vadd.f32 %v4193, %v4310
  %v4317 = vld [vmem:[#allocation2 + $0x38] sm:$0xff]
  %v4318 = vld [vmem:[#allocation2 + $0x40] sm:$0xff]
  %v4319 = vld [vmem:[#allocation2 + $0x48] sm:$0xff]
  %v4320 = vld [vmem:[#allocation2 + $0x50] sm:$0xff]
  %s4321 = scalar_lea.vmem %s3, 720
  %v4322 = vld [vmem:[%s4321] sm:$0xff]
  %v4323 = vld [vmem:[%s4321 + $0x8] sm:$0xff]
  %v4324 = vld [vmem:[%s4321 + $0x10] sm:$0xff]
  %v4325 = vld [vmem:[%s4321 + $0x18] sm:$0xff]
  %v4326 = vld [vmem:[%s4321 + $0x20] sm:$0xff]
  %v4327 = vld [vmem:[%s4321 + $0x28] sm:$0xff]
  %v4328 = vld [vmem:[%s4321 + $0x30] sm:$0xff]
  %v4329 = vld [vmem:[%s4321 + $0x38] sm:$0xff]
  %v4330 = vld [vmem:[%s4321 + $0x40] sm:$0xff]
  %v4331 = vld [vmem:[%s4321 + $0x48] sm:$0xff]
  %v4332 = vld [vmem:[%s4321 + $0x50] sm:$0xff]
  %v4333 = vld [vmem:[%s4321 + $0x58] sm:$0xff]
  %v4334 = vld [vmem:[%s4321 + $0x60] sm:$0xff]
  %v4335 = vld [vmem:[%s4321 + $0x68] sm:$0xff]
  %v4336 = vld [vmem:[%s4321 + $0x70] sm:$0xff]
  %v4338 = vsel %vm974, %v4317, 0
  %v4341 = vsel %vm974, %v4318, 0
  %v4344 = vsel %vm974, %v4319, 0
  %v4347 = vsel %vm974, %v4320, 0
  %4349 = vmatprep.subr.mxu0 0.0
  %4350 = vmatpush1.msra.mxu0 %v4322
  %4351 = vmatprep.subr.mxu0 0.0
  %4352 = vmatpush1.msra.mxu0 %v4323
  %4353 = vmatprep.subr.mxu0 0.0
  %4354 = vmatpush1.msra.mxu0 %v4324
  %4355 = vmatprep.subr.mxu0 0.0
  %4356 = vmatpush1.msra.mxu0 %v4325
  %4357 = vmatprep.subr.mxu0 0.0
  %4358 = vmatpush1.msra.mxu0 %v4326
  %4359 = vmatprep.subr.mxu0 0.0
  %4360 = vmatpush1.msra.mxu0 %v4327
  %4361 = vmatprep.subr.mxu0 0.0
  %4362 = vmatpush1.msra.mxu0 %v4328
  %4363 = vmatprep.subr.mxu0 0.0
  %4364 = vmatpush1.msra.mxu0 %v4329
  %4365 = vmatprep.subr.mxu0 0.0
  %4366 = vmatpush1.msra.mxu0 %v4330
  %4367 = vmatprep.subr.mxu0 0.0
  %4368 = vmatpush1.msra.mxu0 %v4331
  %4369 = vmatprep.subr.mxu0 0.0
  %4370 = vmatpush1.msra.mxu0 %v4332
  %4371 = vmatprep.subr.mxu0 0.0
  %4372 = vmatpush1.msra.mxu0 %v4333
  %4373 = vmatprep.subr.mxu0 0.0
  %4374 = vmatpush1.msra.mxu0 %v4334
  %4375 = vmatprep.subr.mxu0 0.0
  %4376 = vmatpush1.msra.mxu0 %v4335
  %4377 = vmatprep.subr.mxu0 0.0
  %4378 = vmatpush1.msra.mxu0 %v4336
  %4379 = vmatprep.subr.mxu0 0.0
  %4380 = vmatpush1.msra.mxu0 0.0
  %4381 = vmatprep.subr.mxu0 0.0
  %4382 = vmatpush1.msra.mxu0 0.0
  %4383 = vmatprep.subr.mxu0 0.0
  %4384 = vmatpush1.msra.mxu0 0.0
  %4385 = vmatprep.subr.mxu0 0.0
  %4386 = vmatpush1.msra.mxu0 0.0
  %4387 = vmatprep.subr.mxu0 0.0
  %4388 = vmatpush1.msra.mxu0 0.0
  %4389 = vmatprep.subr.mxu0 0.0
  %4390 = vmatpush1.msra.mxu0 0.0
  %4391 = vmatprep.subr.mxu0 0.0
  %4392 = vmatpush1.msra.mxu0 0.0
  %4393 = vmatprep.subr.mxu0 0.0
  %4394 = vmatpush1.msra.mxu0 0.0
  %4395 = vmatprep.subr.mxu0 0.0
  %4396 = vmatpush1.msra.mxu0 0.0
  %4397 = vmatprep.subr.mxu0 0.0
  %4398 = vmatpush1.msra.mxu0 0.0
  %4399 = vmatprep.subr.mxu0 0.0
  %4400 = vmatpush1.msra.mxu0 0.0
  %4401 = vmatprep.subr.mxu0 0.0
  %4402 = vmatpush1.msra.mxu0 0.0
  %4403 = vmatprep.subr.mxu0 0.0
  %4404 = vmatpush1.msra.mxu0 0.0
  %4405 = vmatprep.subr.mxu0 0.0
  %4406 = vmatpush1.msra.mxu0 0.0
  %4407 = vmatprep.subr.mxu0 0.0
  %4408 = vmatpush1.msra.mxu0 0.0
  %4409 = vmatprep.subr.mxu0 0.0
  %4410 = vmatpush1.msra.mxu0 0.0
  %4411 = vmatprep.subr.mxu0 0.0
  %4412 = vmatpush1.msra.mxu0 0.0
  %4413 = vmatprep.mubr.f32.mxu0 0.0
  %4414 = vmatmul.mubr.f32.gmra.mrb[0].mxu0 %v4338
  %v4415 = vpop.f32.mrb[0].mxu0
  %v4416 = vadd.f32 0.0, %v4415
  %v4417 = vpop.f32.mrb[0].mxu0
  %4418 = vmatprep.mubr.f32.mxu0 0.0
  %4419 = vmatmul.mubr.f32.gmra.mrb[0].mxu0 %v4341
  %v4420 = vpop.f32.mrb[0].mxu0
  %v4421 = vadd.f32 0.0, %v4420
  %v4422 = vpop.f32.mrb[0].mxu0
  %4423 = vmatprep.mubr.f32.mxu0 0.0
  %4424 = vmatmul.mubr.f32.gmra.mrb[0].mxu0 %v4344
  %v4425 = vpop.f32.mrb[0].mxu0
  %v4426 = vadd.f32 0.0, %v4425
  %v4427 = vpop.f32.mrb[0].mxu0
  %4428 = vmatprep.mubr.f32.mxu0 0.0
  %4429 = vmatmul.mubr.f32.gmra.mrb[0].mxu0 %v4347
  %v4430 = vpop.f32.mrb[0].mxu0
  %v4431 = vadd.f32 0.0, %v4430
  %v4432 = vpop.f32.mrb[0].mxu0
  %4433 = vdwg.mxu0
  %v4434 = vadd.f32 %v4313, %v4416
  %v4435 = vadd.f32 %v4314, %v4421
  %v4436 = vadd.f32 %v4315, %v4426
  %v4437 = vadd.f32 %v4316, %v4431
  %v4438 = vld [vmem:[#allocation2 + $0x10] sm:$0xff]
  %v4439 = vld [vmem:[#allocation2 + $0x18] sm:$0xff]
  %v4440 = vld [vmem:[#allocation2 + $0x20] sm:$0xff]
  %v4441 = vld [vmem:[#allocation2 + $0x28] sm:$0xff]
  %s4442 = scalar_lea.vmem %s3, 960
  %v4443 = vld [vmem:[%s4442] sm:$0xff]
  %v4444 = vld [vmem:[%s4442 + $0x8] sm:$0xff]
  %v4445 = vld [vmem:[%s4442 + $0x10] sm:$0xff]
  %v4446 = vld [vmem:[%s4442 + $0x18] sm:$0xff]
  %v4447 = vld [vmem:[%s4442 + $0x20] sm:$0xff]
  %v4448 = vld [vmem:[%s4442 + $0x28] sm:$0xff]
  %v4449 = vld [vmem:[%s4442 + $0x30] sm:$0xff]
  %v4450 = vld [vmem:[%s4442 + $0x38] sm:$0xff]
  %v4451 = vld [vmem:[%s4442 + $0x40] sm:$0xff]
  %v4452 = vld [vmem:[%s4442 + $0x48] sm:$0xff]
  %v4453 = vld [vmem:[%s4442 + $0x50] sm:$0xff]
  %v4454 = vld [vmem:[%s4442 + $0x58] sm:$0xff]
  %v4455 = vld [vmem:[%s4442 + $0x60] sm:$0xff]
  %v4456 = vld [vmem:[%s4442 + $0x68] sm:$0xff]
  %v4457 = vld [vmem:[%s4442 + $0x70] sm:$0xff]
  %v4459 = vsel %vm974, %v4438, 0
  %v4462 = vsel %vm974, %v4439, 0
  %v4465 = vsel %vm974, %v4440, 0
  %v4468 = vsel %vm974, %v4441, 0
  %4470 = vmatprep.subr.mxu0 0.0
  %4471 = vmatpush1.msra.mxu0 %v4443
  %4472 = vmatprep.subr.mxu0 0.0
  %4473 = vmatpush1.msra.mxu0 %v4444
  %4474 = vmatprep.subr.mxu0 0.0
  %4475 = vmatpush1.msra.mxu0 %v4445
  %4476 = vmatprep.subr.mxu0 0.0
  %4477 = vmatpush1.msra.mxu0 %v4446
  %4478 = vmatprep.subr.mxu0 0.0
  %4479 = vmatpush1.msra.mxu0 %v4447
  %4480 = vmatprep.subr.mxu0 0.0
  %4481 = vmatpush1.msra.mxu0 %v4448
  %4482 = vmatprep.subr.mxu0 0.0
  %4483 = vmatpush1.msra.mxu0 %v4449
  %4484 = vmatprep.subr.mxu0 0.0
  %4485 = vmatpush1.msra.mxu0 %v4450
  %4486 = vmatprep.subr.mxu0 0.0
  %4487 = vmatpush1.msra.mxu0 %v4451
  %4488 = vmatprep.subr.mxu0 0.0
  %4489 = vmatpush1.msra.mxu0 %v4452
  %4490 = vmatprep.subr.mxu0 0.0
  %4491 = vmatpush1.msra.mxu0 %v4453
  %4492 = vmatprep.subr.mxu0 0.0
  %4493 = vmatpush1.msra.mxu0 %v4454
  %4494 = vmatprep.subr.mxu0 0.0
  %4495 = vmatpush1.msra.mxu0 %v4455
  %4496 = vmatprep.subr.mxu0 0.0
  %4497 = vmatpush1.msra.mxu0 %v4456
  %4498 = vmatprep.subr.mxu0 0.0
  %4499 = vmatpush1.msra.mxu0 %v4457
  %4500 = vmatprep.subr.mxu0 0.0
  %4501 = vmatpush1.msra.mxu0 0.0
  %4502 = vmatprep.subr.mxu0 0.0
  %4503 = vmatpush1.msra.mxu0 0.0
  %4504 = vmatprep.subr.mxu0 0.0
  %4505 = vmatpush1.msra.mxu0 0.0
  %4506 = vmatprep.subr.mxu0 0.0
  %4507 = vmatpush1.msra.mxu0 0.0
  %4508 = vmatprep.subr.mxu0 0.0
  %4509 = vmatpush1.msra.mxu0 0.0
  %4510 = vmatprep.subr.mxu0 0.0
  %4511 = vmatpush1.msra.mxu0 0.0
  %4512 = vmatprep.subr.mxu0 0.0
  %4513 = vmatpush1.msra.mxu0 0.0
  %4514 = vmatprep.subr.mxu0 0.0
  %4515 = vmatpush1.msra.mxu0 0.0
  %4516 = vmatprep.subr.mxu0 0.0
  %4517 = vmatpush1.msra.mxu0 0.0
  %4518 = vmatprep.subr.mxu0 0.0
  %4519 = vmatpush1.msra.mxu0 0.0
  %4520 = vmatprep.subr.mxu0 0.0
  %4521 = vmatpush1.msra.mxu0 0.0
  %4522 = vmatprep.subr.mxu0 0.0
  %4523 = vmatpush1.msra.mxu0 0.0
  %4524 = vmatprep.subr.mxu0 0.0
  %4525 = vmatpush1.msra.mxu0 0.0
  %4526 = vmatprep.subr.mxu0 0.0
  %4527 = vmatpush1.msra.mxu0 0.0
  %4528 = vmatprep.subr.mxu0 0.0
  %4529 = vmatpush1.msra.mxu0 0.0
  %4530 = vmatprep.subr.mxu0 0.0
  %4531 = vmatpush1.msra.mxu0 0.0
  %4532 = vmatprep.subr.mxu0 0.0
  %4533 = vmatpush1.msra.mxu0 0.0
  %4534 = vmatprep.mubr.f32.mxu0 0.0
  %4535 = vmatmul.mubr.f32.gmra.mrb[0].mxu0 %v4459
  %v4536 = vpop.f32.mrb[0].mxu0
  %v4537 = vadd.f32 0.0, %v4536
  %v4538 = vpop.f32.mrb[0].mxu0
  %4539 = vmatprep.mubr.f32.mxu0 0.0
  %4540 = vmatmul.mubr.f32.gmra.mrb[0].mxu0 %v4462
  %v4541 = vpop.f32.mrb[0].mxu0
  %v4542 = vadd.f32 0.0, %v4541
  %v4543 = vpop.f32.mrb[0].mxu0
  %4544 = vmatprep.mubr.f32.mxu0 0.0
  %4545 = vmatmul.mubr.f32.gmra.mrb[0].mxu0 %v4465
  %v4546 = vpop.f32.mrb[0].mxu0
  %v4547 = vadd.f32 0.0, %v4546
  %v4548 = vpop.f32.mrb[0].mxu0
  %4549 = vmatprep.mubr.f32.mxu0 0.0
  %4550 = vmatmul.mubr.f32.gmra.mrb[0].mxu0 %v4468
  %v4551 = vpop.f32.mrb[0].mxu0
  %v4552 = vadd.f32 0.0, %v4551
  %v4553 = vpop.f32.mrb[0].mxu0
  %4554 = vdwg.mxu0
  %v4555 = vadd.f32 %v4434, %v4537
  %v4556 = vadd.f32 %v4435, %v4542
  %v4557 = vadd.f32 %v4436, %v4547
  %v4558 = vadd.f32 %v4437, %v4552
  %vm4559 = vcmask 654336
  %4560 = vst.msk [vmem:[#allocation3] sm:$0xff] %vm4559, %v4555
  %4561 = vst.msk [vmem:[#allocation3 + $0x8] sm:$0xff] %vm4559, %v4556
  %4562 = vst.msk [vmem:[#allocation3 + $0x10] sm:$0xff] %vm4559, %v4557
  %4563 = vst.msk [vmem:[#allocation3 + $0x18] sm:$0xff] %vm4559, %v4558
  %v4564 = vld [vmem:[#allocation2] sm:$0xff]
  %v4565 = vld [vmem:[#allocation2 + $0x8] sm:$0xff]
  %v4566 = vld [vmem:[#allocation2 + $0x10] sm:$0xff]
  %v4567 = vld [vmem:[#allocation2 + $0x18] sm:$0xff]
  %s4568 = scalar_lea.vmem %s3, 120
  %v4569 = vld [vmem:[%s4568] sm:$0xff]
  %v4570 = vld [vmem:[%s4568 + $0x8] sm:$0xff]
  %v4571 = vld [vmem:[%s4568 + $0x10] sm:$0xff]
  %v4572 = vld [vmem:[%s4568 + $0x18] sm:$0xff]
  %v4573 = vld [vmem:[%s4568 + $0x20] sm:$0xff]
  %v4574 = vld [vmem:[%s4568 + $0x28] sm:$0xff]
  %v4575 = vld [vmem:[%s4568 + $0x30] sm:$0xff]
  %v4576 = vld [vmem:[%s4568 + $0x38] sm:$0xff]
  %v4577 = vld [vmem:[%s4568 + $0x40] sm:$0xff]
  %v4578 = vld [vmem:[%s4568 + $0x48] sm:$0xff]
  %v4579 = vld [vmem:[%s4568 + $0x50] sm:$0xff]
  %v4580 = vld [vmem:[%s4568 + $0x58] sm:$0xff]
  %v4581 = vld [vmem:[%s4568 + $0x60] sm:$0xff]
  %v4582 = vld [vmem:[%s4568 + $0x68] sm:$0xff]
  %v4583 = vld [vmem:[%s4568 + $0x70] sm:$0xff]
  %v4584 = vld [vmem:[#allocation2 + $0x30] sm:$0xff]
  %v4585 = vld [vmem:[#allocation2 + $0x38] sm:$0xff]
  %v4586 = vld [vmem:[#allocation2 + $0x40] sm:$0xff]
  %v4587 = vld [vmem:[#allocation2 + $0x48] sm:$0xff]
  %s4588 = scalar_lea.vmem %s3, 360
  %v4589 = vld [vmem:[%s4588] sm:$0xff]
  %v4590 = vld [vmem:[%s4588 + $0x8] sm:$0xff]
  %v4591 = vld [vmem:[%s4588 + $0x10] sm:$0xff]
  %v4592 = vld [vmem:[%s4588 + $0x18] sm:$0xff]
  %v4593 = vld [vmem:[%s4588 + $0x20] sm:$0xff]
  %v4594 = vld [vmem:[%s4588 + $0x28] sm:$0xff]
  %v4595 = vld [vmem:[%s4588 + $0x30] sm:$0xff]
  %v4596 = vld [vmem:[%s4588 + $0x38] sm:$0xff]
  %v4597 = vld [vmem:[%s4588 + $0x40] sm:$0xff]
  %v4598 = vld [vmem:[%s4588 + $0x48] sm:$0xff]
  %v4599 = vld [vmem:[%s4588 + $0x50] sm:$0xff]
  %v4600 = vld [vmem:[%s4588 + $0x58] sm:$0xff]
  %v4601 = vld [vmem:[%s4588 + $0x60] sm:$0xff]
  %v4602 = vld [vmem:[%s4588 + $0x68] sm:$0xff]
  %v4603 = vld [vmem:[%s4588 + $0x70] sm:$0xff]
  %v4605 = vsel %vm974, %v4584, 0
  %v4608 = vsel %vm974, %v4585, 0
  %v4611 = vsel %vm974, %v4586, 0
  %v4614 = vsel %vm974, %v4587, 0
  %4616 = vmatprep.subr.mxu0 0.0
  %4617 = vmatpush1.msra.mxu0 %v4589
  %4618 = vmatprep.subr.mxu0 0.0
  %4619 = vmatpush1.msra.mxu0 %v4590
  %4620 = vmatprep.subr.mxu0 0.0
  %4621 = vmatpush1.msra.mxu0 %v4591
  %4622 = vmatprep.subr.mxu0 0.0
  %4623 = vmatpush1.msra.mxu0 %v4592
  %4624 = vmatprep.subr.mxu0 0.0
  %4625 = vmatpush1.msra.mxu0 %v4593
  %4626 = vmatprep.subr.mxu0 0.0
  %4627 = vmatpush1.msra.mxu0 %v4594
  %4628 = vmatprep.subr.mxu0 0.0
  %4629 = vmatpush1.msra.mxu0 %v4595
  %4630 = vmatprep.subr.mxu0 0.0
  %4631 = vmatpush1.msra.mxu0 %v4596
  %4632 = vmatprep.subr.mxu0 0.0
  %4633 = vmatpush1.msra.mxu0 %v4597
  %4634 = vmatprep.subr.mxu0 0.0
  %4635 = vmatpush1.msra.mxu0 %v4598
  %4636 = vmatprep.subr.mxu0 0.0
  %4637 = vmatpush1.msra.mxu0 %v4599
  %4638 = vmatprep.subr.mxu0 0.0
  %4639 = vmatpush1.msra.mxu0 %v4600
  %4640 = vmatprep.subr.mxu0 0.0
  %4641 = vmatpush1.msra.mxu0 %v4601
  %4642 = vmatprep.subr.mxu0 0.0
  %4643 = vmatpush1.msra.mxu0 %v4602
  %4644 = vmatprep.subr.mxu0 0.0
  %4645 = vmatpush1.msra.mxu0 %v4603
  %4646 = vmatprep.subr.mxu0 0.0
  %4647 = vmatpush1.msra.mxu0 0.0
  %4648 = vmatprep.subr.mxu0 0.0
  %4649 = vmatpush1.msra.mxu0 0.0
  %4650 = vmatprep.subr.mxu0 0.0
  %4651 = vmatpush1.msra.mxu0 0.0
  %4652 = vmatprep.subr.mxu0 0.0
  %4653 = vmatpush1.msra.mxu0 0.0
  %4654 = vmatprep.subr.mxu0 0.0
  %4655 = vmatpush1.msra.mxu0 0.0
  %4656 = vmatprep.subr.mxu0 0.0
  %4657 = vmatpush1.msra.mxu0 0.0
  %4658 = vmatprep.subr.mxu0 0.0
  %4659 = vmatpush1.msra.mxu0 0.0
  %4660 = vmatprep.subr.mxu0 0.0
  %4661 = vmatpush1.msra.mxu0 0.0
  %4662 = vmatprep.subr.mxu0 0.0
  %4663 = vmatpush1.msra.mxu0 0.0
  %4664 = vmatprep.subr.mxu0 0.0
  %4665 = vmatpush1.msra.mxu0 0.0
  %4666 = vmatprep.subr.mxu0 0.0
  %4667 = vmatpush1.msra.mxu0 0.0
  %4668 = vmatprep.subr.mxu0 0.0
  %4669 = vmatpush1.msra.mxu0 0.0
  %4670 = vmatprep.subr.mxu0 0.0
  %4671 = vmatpush1.msra.mxu0 0.0
  %4672 = vmatprep.subr.mxu0 0.0
  %4673 = vmatpush1.msra.mxu0 0.0
  %4674 = vmatprep.subr.mxu0 0.0
  %4675 = vmatpush1.msra.mxu0 0.0
  %4676 = vmatprep.subr.mxu0 0.0
  %4677 = vmatpush1.msra.mxu0 0.0
  %4678 = vmatprep.subr.mxu0 0.0
  %4679 = vmatpush1.msra.mxu0 0.0
  %4680 = vmatprep.mubr.f32.mxu0 0.0
  %4681 = vmatmul.mubr.f32.gmra.mrb[0].mxu0 %v4605
  %v4682 = vpop.f32.mrb[0].mxu0
  %v4683 = vadd.f32 0.0, %v4682
  %v4684 = vpop.f32.mrb[0].mxu0
  %4685 = vmatprep.mubr.f32.mxu0 0.0
  %4686 = vmatmul.mubr.f32.gmra.mrb[0].mxu0 %v4608
  %v4687 = vpop.f32.mrb[0].mxu0
  %v4688 = vadd.f32 0.0, %v4687
  %v4689 = vpop.f32.mrb[0].mxu0
  %4690 = vmatprep.mubr.f32.mxu0 0.0
  %4691 = vmatmul.mubr.f32.gmra.mrb[0].mxu0 %v4611
  %v4692 = vpop.f32.mrb[0].mxu0
  %v4693 = vadd.f32 0.0, %v4692
  %v4694 = vpop.f32.mrb[0].mxu0
  %4695 = vmatprep.mubr.f32.mxu0 0.0
  %4696 = vmatmul.mubr.f32.gmra.mrb[0].mxu0 %v4614
  %v4697 = vpop.f32.mrb[0].mxu0
  %v4698 = vadd.f32 0.0, %v4697
  %v4699 = vpop.f32.mrb[0].mxu0
  %4700 = vdwg.mxu0
  %v4702 = vsel %vm974, %v4564, 0
  %v4705 = vsel %vm974, %v4565, 0
  %v4708 = vsel %vm974, %v4566, 0
  %v4711 = vsel %vm974, %v4567, 0
  %4713 = vmatprep.subr.mxu0 0.0
  %4714 = vmatpush1.msra.mxu0 %v4569
  %4715 = vmatprep.subr.mxu0 0.0
  %4716 = vmatpush1.msra.mxu0 %v4570
  %4717 = vmatprep.subr.mxu0 0.0
  %4718 = vmatpush1.msra.mxu0 %v4571
  %4719 = vmatprep.subr.mxu0 0.0
  %4720 = vmatpush1.msra.mxu0 %v4572
  %4721 = vmatprep.subr.mxu0 0.0
  %4722 = vmatpush1.msra.mxu0 %v4573
  %4723 = vmatprep.subr.mxu0 0.0
  %4724 = vmatpush1.msra.mxu0 %v4574
  %4725 = vmatprep.subr.mxu0 0.0
  %4726 = vmatpush1.msra.mxu0 %v4575
  %4727 = vmatprep.subr.mxu0 0.0
  %4728 = vmatpush1.msra.mxu0 %v4576
  %4729 = vmatprep.subr.mxu0 0.0
  %4730 = vmatpush1.msra.mxu0 %v4577
  %4731 = vmatprep.subr.mxu0 0.0
  %4732 = vmatpush1.msra.mxu0 %v4578
  %4733 = vmatprep.subr.mxu0 0.0
  %4734 = vmatpush1.msra.mxu0 %v4579
  %4735 = vmatprep.subr.mxu0 0.0
  %4736 = vmatpush1.msra.mxu0 %v4580
  %4737 = vmatprep.subr.mxu0 0.0
  %4738 = vmatpush1.msra.mxu0 %v4581
  %4739 = vmatprep.subr.mxu0 0.0
  %4740 = vmatpush1.msra.mxu0 %v4582
  %4741 = vmatprep.subr.mxu0 0.0
  %4742 = vmatpush1.msra.mxu0 %v4583
  %4743 = vmatprep.subr.mxu0 0.0
  %4744 = vmatpush1.msra.mxu0 0.0
  %4745 = vmatprep.subr.mxu0 0.0
  %4746 = vmatpush1.msra.mxu0 0.0
  %4747 = vmatprep.subr.mxu0 0.0
  %4748 = vmatpush1.msra.mxu0 0.0
  %4749 = vmatprep.subr.mxu0 0.0
  %4750 = vmatpush1.msra.mxu0 0.0
  %4751 = vmatprep.subr.mxu0 0.0
  %4752 = vmatpush1.msra.mxu0 0.0
  %4753 = vmatprep.subr.mxu0 0.0
  %4754 = vmatpush1.msra.mxu0 0.0
  %4755 = vmatprep.subr.mxu0 0.0
  %4756 = vmatpush1.msra.mxu0 0.0
  %4757 = vmatprep.subr.mxu0 0.0
  %4758 = vmatpush1.msra.mxu0 0.0
  %4759 = vmatprep.subr.mxu0 0.0
  %4760 = vmatpush1.msra.mxu0 0.0
  %4761 = vmatprep.subr.mxu0 0.0
  %4762 = vmatpush1.msra.mxu0 0.0
  %4763 = vmatprep.subr.mxu0 0.0
  %4764 = vmatpush1.msra.mxu0 0.0
  %4765 = vmatprep.subr.mxu0 0.0
  %4766 = vmatpush1.msra.mxu0 0.0
  %4767 = vmatprep.subr.mxu0 0.0
  %4768 = vmatpush1.msra.mxu0 0.0
  %4769 = vmatprep.subr.mxu0 0.0
  %4770 = vmatpush1.msra.mxu0 0.0
  %4771 = vmatprep.subr.mxu0 0.0
  %4772 = vmatpush1.msra.mxu0 0.0
  %4773 = vmatprep.subr.mxu0 0.0
  %4774 = vmatpush1.msra.mxu0 0.0
  %4775 = vmatprep.subr.mxu0 0.0
  %4776 = vmatpush1.msra.mxu0 0.0
  %4777 = vmatprep.mubr.f32.mxu0 0.0
  %4778 = vmatmul.mubr.f32.gmra.mrb[0].mxu0 %v4702
  %v4779 = vpop.f32.mrb[0].mxu0
  %v4780 = vadd.f32 %v4683, %v4779
  %v4781 = vpop.f32.mrb[0].mxu0
  %4782 = vmatprep.mubr.f32.mxu0 0.0
  %4783 = vmatmul.mubr.f32.gmra.mrb[0].mxu0 %v4705
  %v4784 = vpop.f32.mrb[0].mxu0
  %v4785 = vadd.f32 %v4688, %v4784
  %v4786 = vpop.f32.mrb[0].mxu0
  %4787 = vmatprep.mubr.f32.mxu0 0.0
  %4788 = vmatmul.mubr.f32.gmra.mrb[0].mxu0 %v4708
  %v4789 = vpop.f32.mrb[0].mxu0
  %v4790 = vadd.f32 %v4693, %v4789
  %v4791 = vpop.f32.mrb[0].mxu0
  %4792 = vmatprep.mubr.f32.mxu0 0.0
  %4793 = vmatmul.mubr.f32.gmra.mrb[0].mxu0 %v4711
  %v4794 = vpop.f32.mrb[0].mxu0
  %v4795 = vadd.f32 %v4698, %v4794
  %v4796 = vpop.f32.mrb[0].mxu0
  %4797 = vdwg.mxu0
  %v4798 = vld [vmem:[#allocation2 + $0x8] sm:$0xff]
  %v4799 = vld [vmem:[#allocation2 + $0x10] sm:$0xff]
  %v4800 = vld [vmem:[#allocation2 + $0x18] sm:$0xff]
  %v4801 = vld [vmem:[#allocation2 + $0x20] sm:$0xff]
  %s4802 = scalar_lea.vmem %s3, 600
  %v4803 = vld [vmem:[%s4802] sm:$0xff]
  %v4804 = vld [vmem:[%s4802 + $0x8] sm:$0xff]
  %v4805 = vld [vmem:[%s4802 + $0x10] sm:$0xff]
  %v4806 = vld [vmem:[%s4802 + $0x18] sm:$0xff]
  %v4807 = vld [vmem:[%s4802 + $0x20] sm:$0xff]
  %v4808 = vld [vmem:[%s4802 + $0x28] sm:$0xff]
  %v4809 = vld [vmem:[%s4802 + $0x30] sm:$0xff]
  %v4810 = vld [vmem:[%s4802 + $0x38] sm:$0xff]
  %v4811 = vld [vmem:[%s4802 + $0x40] sm:$0xff]
  %v4812 = vld [vmem:[%s4802 + $0x48] sm:$0xff]
  %v4813 = vld [vmem:[%s4802 + $0x50] sm:$0xff]
  %v4814 = vld [vmem:[%s4802 + $0x58] sm:$0xff]
  %v4815 = vld [vmem:[%s4802 + $0x60] sm:$0xff]
  %v4816 = vld [vmem:[%s4802 + $0x68] sm:$0xff]
  %v4817 = vld [vmem:[%s4802 + $0x70] sm:$0xff]
  %v4819 = vsel %vm974, %v4798, 0
  %v4822 = vsel %vm974, %v4799, 0
  %v4825 = vsel %vm974, %v4800, 0
  %v4828 = vsel %vm974, %v4801, 0
  %4830 = vmatprep.subr.mxu0 0.0
  %4831 = vmatpush1.msra.mxu0 %v4803
  %4832 = vmatprep.subr.mxu0 0.0
  %4833 = vmatpush1.msra.mxu0 %v4804
  %4834 = vmatprep.subr.mxu0 0.0
  %4835 = vmatpush1.msra.mxu0 %v4805
  %4836 = vmatprep.subr.mxu0 0.0
  %4837 = vmatpush1.msra.mxu0 %v4806
  %4838 = vmatprep.subr.mxu0 0.0
  %4839 = vmatpush1.msra.mxu0 %v4807
  %4840 = vmatprep.subr.mxu0 0.0
  %4841 = vmatpush1.msra.mxu0 %v4808
  %4842 = vmatprep.subr.mxu0 0.0
  %4843 = vmatpush1.msra.mxu0 %v4809
  %4844 = vmatprep.subr.mxu0 0.0
  %4845 = vmatpush1.msra.mxu0 %v4810
  %4846 = vmatprep.subr.mxu0 0.0
  %4847 = vmatpush1.msra.mxu0 %v4811
  %4848 = vmatprep.subr.mxu0 0.0
  %4849 = vmatpush1.msra.mxu0 %v4812
  %4850 = vmatprep.subr.mxu0 0.0
  %4851 = vmatpush1.msra.mxu0 %v4813
  %4852 = vmatprep.subr.mxu0 0.0
  %4853 = vmatpush1.msra.mxu0 %v4814
  %4854 = vmatprep.subr.mxu0 0.0
  %4855 = vmatpush1.msra.mxu0 %v4815
  %4856 = vmatprep.subr.mxu0 0.0
  %4857 = vmatpush1.msra.mxu0 %v4816
  %4858 = vmatprep.subr.mxu0 0.0
  %4859 = vmatpush1.msra.mxu0 %v4817
  %4860 = vmatprep.subr.mxu0 0.0
  %4861 = vmatpush1.msra.mxu0 0.0
  %4862 = vmatprep.subr.mxu0 0.0
  %4863 = vmatpush1.msra.mxu0 0.0
  %4864 = vmatprep.subr.mxu0 0.0
  %4865 = vmatpush1.msra.mxu0 0.0
  %4866 = vmatprep.subr.mxu0 0.0
  %4867 = vmatpush1.msra.mxu0 0.0
  %4868 = vmatprep.subr.mxu0 0.0
  %4869 = vmatpush1.msra.mxu0 0.0
  %4870 = vmatprep.subr.mxu0 0.0
  %4871 = vmatpush1.msra.mxu0 0.0
  %4872 = vmatprep.subr.mxu0 0.0
  %4873 = vmatpush1.msra.mxu0 0.0
  %4874 = vmatprep.subr.mxu0 0.0
  %4875 = vmatpush1.msra.mxu0 0.0
  %4876 = vmatprep.subr.mxu0 0.0
  %4877 = vmatpush1.msra.mxu0 0.0
  %4878 = vmatprep.subr.mxu0 0.0
  %4879 = vmatpush1.msra.mxu0 0.0
  %4880 = vmatprep.subr.mxu0 0.0
  %4881 = vmatpush1.msra.mxu0 0.0
  %4882 = vmatprep.subr.mxu0 0.0
  %4883 = vmatpush1.msra.mxu0 0.0
  %4884 = vmatprep.subr.mxu0 0.0
  %4885 = vmatpush1.msra.mxu0 0.0
  %4886 = vmatprep.subr.mxu0 0.0
  %4887 = vmatpush1.msra.mxu0 0.0
  %4888 = vmatprep.subr.mxu0 0.0
  %4889 = vmatpush1.msra.mxu0 0.0
  %4890 = vmatprep.subr.mxu0 0.0
  %4891 = vmatpush1.msra.mxu0 0.0
  %4892 = vmatprep.subr.mxu0 0.0
  %4893 = vmatpush1.msra.mxu0 0.0
  %4894 = vmatprep.mubr.f32.mxu0 0.0
  %4895 = vmatmul.mubr.f32.gmra.mrb[0].mxu0 %v4819
  %v4896 = vpop.f32.mrb[0].mxu0
  %v4897 = vadd.f32 0.0, %v4896
  %v4898 = vpop.f32.mrb[0].mxu0
  %4899 = vmatprep.mubr.f32.mxu0 0.0
  %4900 = vmatmul.mubr.f32.gmra.mrb[0].mxu0 %v4822
  %v4901 = vpop.f32.mrb[0].mxu0
  %v4902 = vadd.f32 0.0, %v4901
  %v4903 = vpop.f32.mrb[0].mxu0
  %4904 = vmatprep.mubr.f32.mxu0 0.0
  %4905 = vmatmul.mubr.f32.gmra.mrb[0].mxu0 %v4825
  %v4906 = vpop.f32.mrb[0].mxu0
  %v4907 = vadd.f32 0.0, %v4906
  %v4908 = vpop.f32.mrb[0].mxu0
  %4909 = vmatprep.mubr.f32.mxu0 0.0
  %4910 = vmatmul.mubr.f32.gmra.mrb[0].mxu0 %v4828
  %v4911 = vpop.f32.mrb[0].mxu0
  %v4912 = vadd.f32 0.0, %v4911
  %v4913 = vpop.f32.mrb[0].mxu0
  %4914 = vdwg.mxu0
  %v4915 = vadd.f32 %v4780, %v4897
  %v4916 = vadd.f32 %v4785, %v4902
  %v4917 = vadd.f32 %v4790, %v4907
  %v4918 = vadd.f32 %v4795, %v4912
  %v4919 = vld [vmem:[#allocation2 + $0x38] sm:$0xff]
  %v4920 = vld [vmem:[#allocation2 + $0x40] sm:$0xff]
  %v4921 = vld [vmem:[#allocation2 + $0x48] sm:$0xff]
  %v4922 = vld [vmem:[#allocation2 + $0x50] sm:$0xff]
  %s4923 = scalar_lea.vmem %s3, 840
  %v4924 = vld [vmem:[%s4923] sm:$0xff]
  %v4925 = vld [vmem:[%s4923 + $0x8] sm:$0xff]
  %v4926 = vld [vmem:[%s4923 + $0x10] sm:$0xff]
  %v4927 = vld [vmem:[%s4923 + $0x18] sm:$0xff]
  %v4928 = vld [vmem:[%s4923 + $0x20] sm:$0xff]
  %v4929 = vld [vmem:[%s4923 + $0x28] sm:$0xff]
  %v4930 = vld [vmem:[%s4923 + $0x30] sm:$0xff]
  %v4931 = vld [vmem:[%s4923 + $0x38] sm:$0xff]
  %v4932 = vld [vmem:[%s4923 + $0x40] sm:$0xff]
  %v4933 = vld [vmem:[%s4923 + $0x48] sm:$0xff]
  %v4934 = vld [vmem:[%s4923 + $0x50] sm:$0xff]
  %v4935 = vld [vmem:[%s4923 + $0x58] sm:$0xff]
  %v4936 = vld [vmem:[%s4923 + $0x60] sm:$0xff]
  %v4937 = vld [vmem:[%s4923 + $0x68] sm:$0xff]
  %v4938 = vld [vmem:[%s4923 + $0x70] sm:$0xff]
  %v4940 = vsel %vm974, %v4919, 0
  %v4943 = vsel %vm974, %v4920, 0
  %v4946 = vsel %vm974, %v4921, 0
  %v4949 = vsel %vm974, %v4922, 0
  %4951 = vmatprep.subr.mxu0 0.0
  %4952 = vmatpush1.msra.mxu0 %v4924
  %4953 = vmatprep.subr.mxu0 0.0
  %4954 = vmatpush1.msra.mxu0 %v4925
  %4955 = vmatprep.subr.mxu0 0.0
  %4956 = vmatpush1.msra.mxu0 %v4926
  %4957 = vmatprep.subr.mxu0 0.0
  %4958 = vmatpush1.msra.mxu0 %v4927
  %4959 = vmatprep.subr.mxu0 0.0
  %4960 = vmatpush1.msra.mxu0 %v4928
  %4961 = vmatprep.subr.mxu0 0.0
  %4962 = vmatpush1.msra.mxu0 %v4929
  %4963 = vmatprep.subr.mxu0 0.0
  %4964 = vmatpush1.msra.mxu0 %v4930
  %4965 = vmatprep.subr.mxu0 0.0
  %4966 = vmatpush1.msra.mxu0 %v4931
  %4967 = vmatprep.subr.mxu0 0.0
  %4968 = vmatpush1.msra.mxu0 %v4932
  %4969 = vmatprep.subr.mxu0 0.0
  %4970 = vmatpush1.msra.mxu0 %v4933
  %4971 = vmatprep.subr.mxu0 0.0
  %4972 = vmatpush1.msra.mxu0 %v4934
  %4973 = vmatprep.subr.mxu0 0.0
  %4974 = vmatpush1.msra.mxu0 %v4935
  %4975 = vmatprep.subr.mxu0 0.0
  %4976 = vmatpush1.msra.mxu0 %v4936
  %4977 = vmatprep.subr.mxu0 0.0
  %4978 = vmatpush1.msra.mxu0 %v4937
  %4979 = vmatprep.subr.mxu0 0.0
  %4980 = vmatpush1.msra.mxu0 %v4938
  %4981 = vmatprep.subr.mxu0 0.0
  %4982 = vmatpush1.msra.mxu0 0.0
  %4983 = vmatprep.subr.mxu0 0.0
  %4984 = vmatpush1.msra.mxu0 0.0
  %4985 = vmatprep.subr.mxu0 0.0
  %4986 = vmatpush1.msra.mxu0 0.0
  %4987 = vmatprep.subr.mxu0 0.0
  %4988 = vmatpush1.msra.mxu0 0.0
  %4989 = vmatprep.subr.mxu0 0.0
  %4990 = vmatpush1.msra.mxu0 0.0
  %4991 = vmatprep.subr.mxu0 0.0
  %4992 = vmatpush1.msra.mxu0 0.0
  %4993 = vmatprep.subr.mxu0 0.0
  %4994 = vmatpush1.msra.mxu0 0.0
  %4995 = vmatprep.subr.mxu0 0.0
  %4996 = vmatpush1.msra.mxu0 0.0
  %4997 = vmatprep.subr.mxu0 0.0
  %4998 = vmatpush1.msra.mxu0 0.0
  %4999 = vmatprep.subr.mxu0 0.0
  %5000 = vmatpush1.msra.mxu0 0.0
  %5001 = vmatprep.subr.mxu0 0.0
  %5002 = vmatpush1.msra.mxu0 0.0
  %5003 = vmatprep.subr.mxu0 0.0
  %5004 = vmatpush1.msra.mxu0 0.0
  %5005 = vmatprep.subr.mxu0 0.0
  %5006 = vmatpush1.msra.mxu0 0.0
  %5007 = vmatprep.subr.mxu0 0.0
  %5008 = vmatpush1.msra.mxu0 0.0
  %5009 = vmatprep.subr.mxu0 0.0
  %5010 = vmatpush1.msra.mxu0 0.0
  %5011 = vmatprep.subr.mxu0 0.0
  %5012 = vmatpush1.msra.mxu0 0.0
  %5013 = vmatprep.subr.mxu0 0.0
  %5014 = vmatpush1.msra.mxu0 0.0
  %5015 = vmatprep.mubr.f32.mxu0 0.0
  %5016 = vmatmul.mubr.f32.gmra.mrb[0].mxu0 %v4940
  %v5017 = vpop.f32.mrb[0].mxu0
  %v5018 = vadd.f32 0.0, %v5017
  %v5019 = vpop.f32.mrb[0].mxu0
  %5020 = vmatprep.mubr.f32.mxu0 0.0
  %5021 = vmatmul.mubr.f32.gmra.mrb[0].mxu0 %v4943
  %v5022 = vpop.f32.mrb[0].mxu0
  %v5023 = vadd.f32 0.0, %v5022
  %v5024 = vpop.f32.mrb[0].mxu0
  %5025 = vmatprep.mubr.f32.mxu0 0.0
  %5026 = vmatmul.mubr.f32.gmra.mrb[0].mxu0 %v4946
  %v5027 = vpop.f32.mrb[0].mxu0
  %v5028 = vadd.f32 0.0, %v5027
  %v5029 = vpop.f32.mrb[0].mxu0
  %5030 = vmatprep.mubr.f32.mxu0 0.0
  %5031 = vmatmul.mubr.f32.gmra.mrb[0].mxu0 %v4949
  %v5032 = vpop.f32.mrb[0].mxu0
  %v5033 = vadd.f32 0.0, %v5032
  %v5034 = vpop.f32.mrb[0].mxu0
  %5035 = vdwg.mxu0
  %v5036 = vadd.f32 %v4915, %v5018
  %v5037 = vadd.f32 %v4916, %v5023
  %v5038 = vadd.f32 %v4917, %v5028
  %v5039 = vadd.f32 %v4918, %v5033
  %v5040 = vld [vmem:[#allocation2 + $0x10] sm:$0xff]
  %v5041 = vld [vmem:[#allocation2 + $0x18] sm:$0xff]
  %v5042 = vld [vmem:[#allocation2 + $0x20] sm:$0xff]
  %v5043 = vld [vmem:[#allocation2 + $0x28] sm:$0xff]
  %s5044 = scalar_lea.vmem %s3, 1080
  %v5045 = vld [vmem:[%s5044] sm:$0xff]
  %v5046 = vld [vmem:[%s5044 + $0x8] sm:$0xff]
  %v5047 = vld [vmem:[%s5044 + $0x10] sm:$0xff]
  %v5048 = vld [vmem:[%s5044 + $0x18] sm:$0xff]
  %v5049 = vld [vmem:[%s5044 + $0x20] sm:$0xff]
  %v5050 = vld [vmem:[%s5044 + $0x28] sm:$0xff]
  %v5051 = vld [vmem:[%s5044 + $0x30] sm:$0xff]
  %v5052 = vld [vmem:[%s5044 + $0x38] sm:$0xff]
  %v5053 = vld [vmem:[%s5044 + $0x40] sm:$0xff]
  %v5054 = vld [vmem:[%s5044 + $0x48] sm:$0xff]
  %v5055 = vld [vmem:[%s5044 + $0x50] sm:$0xff]
  %v5056 = vld [vmem:[%s5044 + $0x58] sm:$0xff]
  %v5057 = vld [vmem:[%s5044 + $0x60] sm:$0xff]
  %v5058 = vld [vmem:[%s5044 + $0x68] sm:$0xff]
  %v5059 = vld [vmem:[%s5044 + $0x70] sm:$0xff]
  %v5061 = vsel %vm974, %v5040, 0
  %v5064 = vsel %vm974, %v5041, 0
  %v5067 = vsel %vm974, %v5042, 0
  %v5070 = vsel %vm974, %v5043, 0
  %5072 = vmatprep.subr.mxu0 0.0
  %5073 = vmatpush1.msra.mxu0 %v5045
  %5074 = vmatprep.subr.mxu0 0.0
  %5075 = vmatpush1.msra.mxu0 %v5046
  %5076 = vmatprep.subr.mxu0 0.0
  %5077 = vmatpush1.msra.mxu0 %v5047
  %5078 = vmatprep.subr.mxu0 0.0
  %5079 = vmatpush1.msra.mxu0 %v5048
  %5080 = vmatprep.subr.mxu0 0.0
  %5081 = vmatpush1.msra.mxu0 %v5049
  %5082 = vmatprep.subr.mxu0 0.0
  %5083 = vmatpush1.msra.mxu0 %v5050
  %5084 = vmatprep.subr.mxu0 0.0
  %5085 = vmatpush1.msra.mxu0 %v5051
  %5086 = vmatprep.subr.mxu0 0.0
  %5087 = vmatpush1.msra.mxu0 %v5052
  %5088 = vmatprep.subr.mxu0 0.0
  %5089 = vmatpush1.msra.mxu0 %v5053
  %5090 = vmatprep.subr.mxu0 0.0
  %5091 = vmatpush1.msra.mxu0 %v5054
  %5092 = vmatprep.subr.mxu0 0.0
  %5093 = vmatpush1.msra.mxu0 %v5055
  %5094 = vmatprep.subr.mxu0 0.0
  %5095 = vmatpush1.msra.mxu0 %v5056
  %5096 = vmatprep.subr.mxu0 0.0
  %5097 = vmatpush1.msra.mxu0 %v5057
  %5098 = vmatprep.subr.mxu0 0.0
  %5099 = vmatpush1.msra.mxu0 %v5058
  %5100 = vmatprep.subr.mxu0 0.0
  %5101 = vmatpush1.msra.mxu0 %v5059
  %5102 = vmatprep.subr.mxu0 0.0
  %5103 = vmatpush1.msra.mxu0 0.0
  %5104 = vmatprep.subr.mxu0 0.0
  %5105 = vmatpush1.msra.mxu0 0.0
  %5106 = vmatprep.subr.mxu0 0.0
  %5107 = vmatpush1.msra.mxu0 0.0
  %5108 = vmatprep.subr.mxu0 0.0
  %5109 = vmatpush1.msra.mxu0 0.0
  %5110 = vmatprep.subr.mxu0 0.0
  %5111 = vmatpush1.msra.mxu0 0.0
  %5112 = vmatprep.subr.mxu0 0.0
  %5113 = vmatpush1.msra.mxu0 0.0
  %5114 = vmatprep.subr.mxu0 0.0
  %5115 = vmatpush1.msra.mxu0 0.0
  %5116 = vmatprep.subr.mxu0 0.0
  %5117 = vmatpush1.msra.mxu0 0.0
  %5118 = vmatprep.subr.mxu0 0.0
  %5119 = vmatpush1.msra.mxu0 0.0
  %5120 = vmatprep.subr.mxu0 0.0
  %5121 = vmatpush1.msra.mxu0 0.0
  %5122 = vmatprep.subr.mxu0 0.0
  %5123 = vmatpush1.msra.mxu0 0.0
  %5124 = vmatprep.subr.mxu0 0.0
  %5125 = vmatpush1.msra.mxu0 0.0
  %5126 = vmatprep.subr.mxu0 0.0
  %5127 = vmatpush1.msra.mxu0 0.0
  %5128 = vmatprep.subr.mxu0 0.0
  %5129 = vmatpush1.msra.mxu0 0.0
  %5130 = vmatprep.subr.mxu0 0.0
  %5131 = vmatpush1.msra.mxu0 0.0
  %5132 = vmatprep.subr.mxu0 0.0
  %5133 = vmatpush1.msra.mxu0 0.0
  %5134 = vmatprep.subr.mxu0 0.0
  %5135 = vmatpush1.msra.mxu0 0.0
  %5136 = vmatprep.mubr.f32.mxu0 0.0
  %5137 = vmatmul.mubr.f32.gmra.mrb[0].mxu0 %v5061
  %v5138 = vpop.f32.mrb[0].mxu0
  %v5139 = vadd.f32 0.0, %v5138
  %v5140 = vpop.f32.mrb[0].mxu0
  %5141 = vmatprep.mubr.f32.mxu0 0.0
  %5142 = vmatmul.mubr.f32.gmra.mrb[0].mxu0 %v5064
  %v5143 = vpop.f32.mrb[0].mxu0
  %v5144 = vadd.f32 0.0, %v5143
  %v5145 = vpop.f32.mrb[0].mxu0
  %5146 = vmatprep.mubr.f32.mxu0 0.0
  %5147 = vmatmul.mubr.f32.gmra.mrb[0].mxu0 %v5067
  %v5148 = vpop.f32.mrb[0].mxu0
  %v5149 = vadd.f32 0.0, %v5148
  %v5150 = vpop.f32.mrb[0].mxu0
  %5151 = vmatprep.mubr.f32.mxu0 0.0
  %5152 = vmatmul.mubr.f32.gmra.mrb[0].mxu0 %v5070
  %v5153 = vpop.f32.mrb[0].mxu0
  %v5154 = vadd.f32 0.0, %v5153
  %v5155 = vpop.f32.mrb[0].mxu0
  %5156 = vdwg.mxu0
  %v5157 = vadd.f32 %v5036, %v5139
  %v5158 = vadd.f32 %v5037, %v5144
  %v5159 = vadd.f32 %v5038, %v5149
  %v5160 = vadd.f32 %v5039, %v5154
  %v5161 = vld [vmem:[#allocation3] sm:$0xff]
  %v5162 = vld [vmem:[#allocation3 + $0x8] sm:$0xff]
  %v5163 = vld [vmem:[#allocation3 + $0x10] sm:$0xff]
  %v5164 = vld [vmem:[#allocation3 + $0x18] sm:$0xff]
  %v5165 = vmax.f32 %v5161, %v5157
  %v5166 = vmax.f32 %v5162, %v5158
  %v5167 = vmax.f32 %v5163, %v5159
  %v5168 = vmax.f32 %v5164, %v5160
  %5169 = vst.msk [vmem:[#allocation3] sm:$0xff] %vm4559, %v5165
  %5170 = vst.msk [vmem:[#allocation3 + $0x8] sm:$0xff] %vm4559, %v5166
  %5171 = vst.msk [vmem:[#allocation3 + $0x10] sm:$0xff] %vm4559, %v5167
  %5172 = vst.msk [vmem:[#allocation3 + $0x18] sm:$0xff] %vm4559, %v5168
  %v5173 = vld [vmem:[#allocation2 + $0x30] sm:$0xff]
  %v5174 = vld [vmem:[#allocation2 + $0x38] sm:$0xff]
  %v5175 = vld [vmem:[#allocation2 + $0x40] sm:$0xff]
  %v5176 = vld [vmem:[#allocation2 + $0x48] sm:$0xff]
  %v5177 = vld [vmem:[%s3] sm:$0xff]
  %v5178 = vld [vmem:[%s3 + $0x8] sm:$0xff]
  %v5179 = vld [vmem:[%s3 + $0x10] sm:$0xff]
  %v5180 = vld [vmem:[%s3 + $0x18] sm:$0xff]
  %v5181 = vld [vmem:[%s3 + $0x20] sm:$0xff]
  %v5182 = vld [vmem:[%s3 + $0x28] sm:$0xff]
  %v5183 = vld [vmem:[%s3 + $0x30] sm:$0xff]
  %v5184 = vld [vmem:[%s3 + $0x38] sm:$0xff]
  %v5185 = vld [vmem:[%s3 + $0x40] sm:$0xff]
  %v5186 = vld [vmem:[%s3 + $0x48] sm:$0xff]
  %v5187 = vld [vmem:[%s3 + $0x50] sm:$0xff]
  %v5188 = vld [vmem:[%s3 + $0x58] sm:$0xff]
  %v5189 = vld [vmem:[%s3 + $0x60] sm:$0xff]
  %v5190 = vld [vmem:[%s3 + $0x68] sm:$0xff]
  %v5191 = vld [vmem:[%s3 + $0x70] sm:$0xff]
  %v5192 = vld [vmem:[#allocation2 + $0x8] sm:$0xff]
  %v5193 = vld [vmem:[#allocation2 + $0x10] sm:$0xff]
  %v5194 = vld [vmem:[#allocation2 + $0x18] sm:$0xff]
  %v5195 = vld [vmem:[#allocation2 + $0x20] sm:$0xff]
  %v5196 = vld [vmem:[%s3986] sm:$0xff]
  %v5197 = vld [vmem:[%s3986 + $0x8] sm:$0xff]
  %v5198 = vld [vmem:[%s3986 + $0x10] sm:$0xff]
  %v5199 = vld [vmem:[%s3986 + $0x18] sm:$0xff]
  %v5200 = vld [vmem:[%s3986 + $0x20] sm:$0xff]
  %v5201 = vld [vmem:[%s3986 + $0x28] sm:$0xff]
  %v5202 = vld [vmem:[%s3986 + $0x30] sm:$0xff]
  %v5203 = vld [vmem:[%s3986 + $0x38] sm:$0xff]
  %v5204 = vld [vmem:[%s3986 + $0x40] sm:$0xff]
  %v5205 = vld [vmem:[%s3986 + $0x48] sm:$0xff]
  %v5206 = vld [vmem:[%s3986 + $0x50] sm:$0xff]
  %v5207 = vld [vmem:[%s3986 + $0x58] sm:$0xff]
  %v5208 = vld [vmem:[%s3986 + $0x60] sm:$0xff]
  %v5209 = vld [vmem:[%s3986 + $0x68] sm:$0xff]
  %v5210 = vld [vmem:[%s3986 + $0x70] sm:$0xff]
  %v5212 = vsel %vm974, %v5192, 0
  %v5215 = vsel %vm974, %v5193, 0
  %v5218 = vsel %vm974, %v5194, 0
  %v5221 = vsel %vm974, %v5195, 0
  %5223 = vmatprep.subr.mxu0 0.0
  %5224 = vmatpush1.msra.mxu0 %v5196
  %5225 = vmatprep.subr.mxu0 0.0
  %5226 = vmatpush1.msra.mxu0 %v5197
  %5227 = vmatprep.subr.mxu0 0.0
  %5228 = vmatpush1.msra.mxu0 %v5198
  %5229 = vmatprep.subr.mxu0 0.0
  %5230 = vmatpush1.msra.mxu0 %v5199
  %5231 = vmatprep.subr.mxu0 0.0
  %5232 = vmatpush1.msra.mxu0 %v5200
  %5233 = vmatprep.subr.mxu0 0.0
  %5234 = vmatpush1.msra.mxu0 %v5201
  %5235 = vmatprep.subr.mxu0 0.0
  %5236 = vmatpush1.msra.mxu0 %v5202
  %5237 = vmatprep.subr.mxu0 0.0
  %5238 = vmatpush1.msra.mxu0 %v5203
  %5239 = vmatprep.subr.mxu0 0.0
  %5240 = vmatpush1.msra.mxu0 %v5204
  %5241 = vmatprep.subr.mxu0 0.0
  %5242 = vmatpush1.msra.mxu0 %v5205
  %5243 = vmatprep.subr.mxu0 0.0
  %5244 = vmatpush1.msra.mxu0 %v5206
  %5245 = vmatprep.subr.mxu0 0.0
  %5246 = vmatpush1.msra.mxu0 %v5207
  %5247 = vmatprep.subr.mxu0 0.0
  %5248 = vmatpush1.msra.mxu0 %v5208
  %5249 = vmatprep.subr.mxu0 0.0
  %5250 = vmatpush1.msra.mxu0 %v5209
  %5251 = vmatprep.subr.mxu0 0.0
  %5252 = vmatpush1.msra.mxu0 %v5210
  %5253 = vmatprep.subr.mxu0 0.0
  %5254 = vmatpush1.msra.mxu0 0.0
  %5255 = vmatprep.subr.mxu0 0.0
  %5256 = vmatpush1.msra.mxu0 0.0
  %5257 = vmatprep.subr.mxu0 0.0
  %5258 = vmatpush1.msra.mxu0 0.0
  %5259 = vmatprep.subr.mxu0 0.0
  %5260 = vmatpush1.msra.mxu0 0.0
  %5261 = vmatprep.subr.mxu0 0.0
  %5262 = vmatpush1.msra.mxu0 0.0
  %5263 = vmatprep.subr.mxu0 0.0
  %5264 = vmatpush1.msra.mxu0 0.0
  %5265 = vmatprep.subr.mxu0 0.0
  %5266 = vmatpush1.msra.mxu0 0.0
  %5267 = vmatprep.subr.mxu0 0.0
  %5268 = vmatpush1.msra.mxu0 0.0
  %5269 = vmatprep.subr.mxu0 0.0
  %5270 = vmatpush1.msra.mxu0 0.0
  %5271 = vmatprep.subr.mxu0 0.0
  %5272 = vmatpush1.msra.mxu0 0.0
  %5273 = vmatprep.subr.mxu0 0.0
  %5274 = vmatpush1.msra.mxu0 0.0
  %5275 = vmatprep.subr.mxu0 0.0
  %5276 = vmatpush1.msra.mxu0 0.0
  %5277 = vmatprep.subr.mxu0 0.0
  %5278 = vmatpush1.msra.mxu0 0.0
  %5279 = vmatprep.subr.mxu0 0.0
  %5280 = vmatpush1.msra.mxu0 0.0
  %5281 = vmatprep.subr.mxu0 0.0
  %5282 = vmatpush1.msra.mxu0 0.0
  %5283 = vmatprep.subr.mxu0 0.0
  %5284 = vmatpush1.msra.mxu0 0.0
  %5285 = vmatprep.subr.mxu0 0.0
  %5286 = vmatpush1.msra.mxu0 0.0
  %5287 = vmatprep.mubr.f32.mxu0 0.0
  %5288 = vmatmul.mubr.f32.gmra.mrb[0].mxu0 %v5212
  %v5289 = vpop.f32.mrb[0].mxu0
  %v5290 = vadd.f32 0.0, %v5289
  %v5291 = vpop.f32.mrb[0].mxu0
  %5292 = vmatprep.mubr.f32.mxu0 0.0
  %5293 = vmatmul.mubr.f32.gmra.mrb[0].mxu0 %v5215
  %v5294 = vpop.f32.mrb[0].mxu0
  %v5295 = vadd.f32 0.0, %v5294
  %v5296 = vpop.f32.mrb[0].mxu0
  %5297 = vmatprep.mubr.f32.mxu0 0.0
  %5298 = vmatmul.mubr.f32.gmra.mrb[0].mxu0 %v5218
  %v5299 = vpop.f32.mrb[0].mxu0
  %v5300 = vadd.f32 0.0, %v5299
  %v5301 = vpop.f32.mrb[0].mxu0
  %5302 = vmatprep.mubr.f32.mxu0 0.0
  %5303 = vmatmul.mubr.f32.gmra.mrb[0].mxu0 %v5221
  %v5304 = vpop.f32.mrb[0].mxu0
  %v5305 = vadd.f32 0.0, %v5304
  %v5306 = vpop.f32.mrb[0].mxu0
  %5307 = vdwg.mxu0
  %v5309 = vsel %vm974, %v5173, 0
  %v5312 = vsel %vm974, %v5174, 0
  %v5315 = vsel %vm974, %v5175, 0
  %v5318 = vsel %vm974, %v5176, 0
  %5320 = vmatprep.subr.mxu0 0.0
  %5321 = vmatpush1.msra.mxu0 %v5177
  %5322 = vmatprep.subr.mxu0 0.0
  %5323 = vmatpush1.msra.mxu0 %v5178
  %5324 = vmatprep.subr.mxu0 0.0
  %5325 = vmatpush1.msra.mxu0 %v5179
  %5326 = vmatprep.subr.mxu0 0.0
  %5327 = vmatpush1.msra.mxu0 %v5180
  %5328 = vmatprep.subr.mxu0 0.0
  %5329 = vmatpush1.msra.mxu0 %v5181
  %5330 = vmatprep.subr.mxu0 0.0
  %5331 = vmatpush1.msra.mxu0 %v5182
  %5332 = vmatprep.subr.mxu0 0.0
  %5333 = vmatpush1.msra.mxu0 %v5183
  %5334 = vmatprep.subr.mxu0 0.0
  %5335 = vmatpush1.msra.mxu0 %v5184
  %5336 = vmatprep.subr.mxu0 0.0
  %5337 = vmatpush1.msra.mxu0 %v5185
  %5338 = vmatprep.subr.mxu0 0.0
  %5339 = vmatpush1.msra.mxu0 %v5186
  %5340 = vmatprep.subr.mxu0 0.0
  %5341 = vmatpush1.msra.mxu0 %v5187
  %5342 = vmatprep.subr.mxu0 0.0
  %5343 = vmatpush1.msra.mxu0 %v5188
  %5344 = vmatprep.subr.mxu0 0.0
  %5345 = vmatpush1.msra.mxu0 %v5189
  %5346 = vmatprep.subr.mxu0 0.0
  %5347 = vmatpush1.msra.mxu0 %v5190
  %5348 = vmatprep.subr.mxu0 0.0
  %5349 = vmatpush1.msra.mxu0 %v5191
  %5350 = vmatprep.subr.mxu0 0.0
  %5351 = vmatpush1.msra.mxu0 0.0
  %5352 = vmatprep.subr.mxu0 0.0
  %5353 = vmatpush1.msra.mxu0 0.0
  %5354 = vmatprep.subr.mxu0 0.0
  %5355 = vmatpush1.msra.mxu0 0.0
  %5356 = vmatprep.subr.mxu0 0.0
  %5357 = vmatpush1.msra.mxu0 0.0
  %5358 = vmatprep.subr.mxu0 0.0
  %5359 = vmatpush1.msra.mxu0 0.0
  %5360 = vmatprep.subr.mxu0 0.0
  %5361 = vmatpush1.msra.mxu0 0.0
  %5362 = vmatprep.subr.mxu0 0.0
  %5363 = vmatpush1.msra.mxu0 0.0
  %5364 = vmatprep.subr.mxu0 0.0
  %5365 = vmatpush1.msra.mxu0 0.0
  %5366 = vmatprep.subr.mxu0 0.0
  %5367 = vmatpush1.msra.mxu0 0.0
  %5368 = vmatprep.subr.mxu0 0.0
  %5369 = vmatpush1.msra.mxu0 0.0
  %5370 = vmatprep.subr.mxu0 0.0
  %5371 = vmatpush1.msra.mxu0 0.0
  %5372 = vmatprep.subr.mxu0 0.0
  %5373 = vmatpush1.msra.mxu0 0.0
  %5374 = vmatprep.subr.mxu0 0.0
  %5375 = vmatpush1.msra.mxu0 0.0
  %5376 = vmatprep.subr.mxu0 0.0
  %5377 = vmatpush1.msra.mxu0 0.0
  %5378 = vmatprep.subr.mxu0 0.0
  %5379 = vmatpush1.msra.mxu0 0.0
  %5380 = vmatprep.subr.mxu0 0.0
  %5381 = vmatpush1.msra.mxu0 0.0
  %5382 = vmatprep.subr.mxu0 0.0
  %5383 = vmatpush1.msra.mxu0 0.0
  %5384 = vmatprep.mubr.f32.mxu0 0.0
  %5385 = vmatmul.mubr.f32.gmra.mrb[0].mxu0 %v5309
  %v5386 = vpop.f32.mrb[0].mxu0
  %v5387 = vadd.f32 %v5290, %v5386
  %v5388 = vpop.f32.mrb[0].mxu0
  %5389 = vmatprep.mubr.f32.mxu0 0.0
  %5390 = vmatmul.mubr.f32.gmra.mrb[0].mxu0 %v5312
  %v5391 = vpop.f32.mrb[0].mxu0
  %v5392 = vadd.f32 %v5295, %v5391
  %v5393 = vpop.f32.mrb[0].mxu0
  %5394 = vmatprep.mubr.f32.mxu0 0.0
  %5395 = vmatmul.mubr.f32.gmra.mrb[0].mxu0 %v5315
  %v5396 = vpop.f32.mrb[0].mxu0
  %v5397 = vadd.f32 %v5300, %v5396
  %v5398 = vpop.f32.mrb[0].mxu0
  %5399 = vmatprep.mubr.f32.mxu0 0.0
  %5400 = vmatmul.mubr.f32.gmra.mrb[0].mxu0 %v5318
  %v5401 = vpop.f32.mrb[0].mxu0
  %v5402 = vadd.f32 %v5305, %v5401
  %v5403 = vpop.f32.mrb[0].mxu0
  %5404 = vdwg.mxu0
  %v5405 = vld [vmem:[#allocation2 + $0x38] sm:$0xff]
  %v5406 = vld [vmem:[#allocation2 + $0x40] sm:$0xff]
  %v5407 = vld [vmem:[#allocation2 + $0x48] sm:$0xff]
  %v5408 = vld [vmem:[#allocation2 + $0x50] sm:$0xff]
  %v5409 = vld [vmem:[%s4200] sm:$0xff]
  %v5410 = vld [vmem:[%s4200 + $0x8] sm:$0xff]
  %v5411 = vld [vmem:[%s4200 + $0x10] sm:$0xff]
  %v5412 = vld [vmem:[%s4200 + $0x18] sm:$0xff]
  %v5413 = vld [vmem:[%s4200 + $0x20] sm:$0xff]
  %v5414 = vld [vmem:[%s4200 + $0x28] sm:$0xff]
  %v5415 = vld [vmem:[%s4200 + $0x30] sm:$0xff]
  %v5416 = vld [vmem:[%s4200 + $0x38] sm:$0xff]
  %v5417 = vld [vmem:[%s4200 + $0x40] sm:$0xff]
  %v5418 = vld [vmem:[%s4200 + $0x48] sm:$0xff]
  %v5419 = vld [vmem:[%s4200 + $0x50] sm:$0xff]
  %v5420 = vld [vmem:[%s4200 + $0x58] sm:$0xff]
  %v5421 = vld [vmem:[%s4200 + $0x60] sm:$0xff]
  %v5422 = vld [vmem:[%s4200 + $0x68] sm:$0xff]
  %v5423 = vld [vmem:[%s4200 + $0x70] sm:$0xff]
  %v5425 = vsel %vm974, %v5405, 0
  %v5428 = vsel %vm974, %v5406, 0
  %v5431 = vsel %vm974, %v5407, 0
  %v5434 = vsel %vm974, %v5408, 0
  %5436 = vmatprep.subr.mxu0 0.0
  %5437 = vmatpush1.msra.mxu0 %v5409
  %5438 = vmatprep.subr.mxu0 0.0
  %5439 = vmatpush1.msra.mxu0 %v5410
  %5440 = vmatprep.subr.mxu0 0.0
  %5441 = vmatpush1.msra.mxu0 %v5411
  %5442 = vmatprep.subr.mxu0 0.0
  %5443 = vmatpush1.msra.mxu0 %v5412
  %5444 = vmatprep.subr.mxu0 0.0
  %5445 = vmatpush1.msra.mxu0 %v5413
  %5446 = vmatprep.subr.mxu0 0.0
  %5447 = vmatpush1.msra.mxu0 %v5414
  %5448 = vmatprep.subr.mxu0 0.0
  %5449 = vmatpush1.msra.mxu0 %v5415
  %5450 = vmatprep.subr.mxu0 0.0
  %5451 = vmatpush1.msra.mxu0 %v5416
  %5452 = vmatprep.subr.mxu0 0.0
  %5453 = vmatpush1.msra.mxu0 %v5417
  %5454 = vmatprep.subr.mxu0 0.0
  %5455 = vmatpush1.msra.mxu0 %v5418
  %5456 = vmatprep.subr.mxu0 0.0
  %5457 = vmatpush1.msra.mxu0 %v5419
  %5458 = vmatprep.subr.mxu0 0.0
  %5459 = vmatpush1.msra.mxu0 %v5420
  %5460 = vmatprep.subr.mxu0 0.0
  %5461 = vmatpush1.msra.mxu0 %v5421
  %5462 = vmatprep.subr.mxu0 0.0
  %5463 = vmatpush1.msra.mxu0 %v5422
  %5464 = vmatprep.subr.mxu0 0.0
  %5465 = vmatpush1.msra.mxu0 %v5423
  %5466 = vmatprep.subr.mxu0 0.0
  %5467 = vmatpush1.msra.mxu0 0.0
  %5468 = vmatprep.subr.mxu0 0.0
  %5469 = vmatpush1.msra.mxu0 0.0
  %5470 = vmatprep.subr.mxu0 0.0
  %5471 = vmatpush1.msra.mxu0 0.0
  %5472 = vmatprep.subr.mxu0 0.0
  %5473 = vmatpush1.msra.mxu0 0.0
  %5474 = vmatprep.subr.mxu0 0.0
  %5475 = vmatpush1.msra.mxu0 0.0
  %5476 = vmatprep.subr.mxu0 0.0
  %5477 = vmatpush1.msra.mxu0 0.0
  %5478 = vmatprep.subr.mxu0 0.0
  %5479 = vmatpush1.msra.mxu0 0.0
  %5480 = vmatprep.subr.mxu0 0.0
  %5481 = vmatpush1.msra.mxu0 0.0
  %5482 = vmatprep.subr.mxu0 0.0
  %5483 = vmatpush1.msra.mxu0 0.0
  %5484 = vmatprep.subr.mxu0 0.0
  %5485 = vmatpush1.msra.mxu0 0.0
  %5486 = vmatprep.subr.mxu0 0.0
  %5487 = vmatpush1.msra.mxu0 0.0
  %5488 = vmatprep.subr.mxu0 0.0
  %5489 = vmatpush1.msra.mxu0 0.0
  %5490 = vmatprep.subr.mxu0 0.0
  %5491 = vmatpush1.msra.mxu0 0.0
  %5492 = vmatprep.subr.mxu0 0.0
  %5493 = vmatpush1.msra.mxu0 0.0
  %5494 = vmatprep.subr.mxu0 0.0
  %5495 = vmatpush1.msra.mxu0 0.0
  %5496 = vmatprep.subr.mxu0 0.0
  %5497 = vmatpush1.msra.mxu0 0.0
  %5498 = vmatprep.subr.mxu0 0.0
  %5499 = vmatpush1.msra.mxu0 0.0
  %5500 = vmatprep.mubr.f32.mxu0 0.0
  %5501 = vmatmul.mubr.f32.gmra.mrb[0].mxu0 %v5425
  %v5502 = vpop.f32.mrb[0].mxu0
  %v5503 = vadd.f32 0.0, %v5502
  %v5504 = vpop.f32.mrb[0].mxu0
  %5505 = vmatprep.mubr.f32.mxu0 0.0
  %5506 = vmatmul.mubr.f32.gmra.mrb[0].mxu0 %v5428
  %v5507 = vpop.f32.mrb[0].mxu0
  %v5508 = vadd.f32 0.0, %v5507
  %v5509 = vpop.f32.mrb[0].mxu0
  %5510 = vmatprep.mubr.f32.mxu0 0.0
  %5511 = vmatmul.mubr.f32.gmra.mrb[0].mxu0 %v5431
  %v5512 = vpop.f32.mrb[0].mxu0
  %v5513 = vadd.f32 0.0, %v5512
  %v5514 = vpop.f32.mrb[0].mxu0
  %5515 = vmatprep.mubr.f32.mxu0 0.0
  %5516 = vmatmul.mubr.f32.gmra.mrb[0].mxu0 %v5434
  %v5517 = vpop.f32.mrb[0].mxu0
  %v5518 = vadd.f32 0.0, %v5517
  %v5519 = vpop.f32.mrb[0].mxu0
  %5520 = vdwg.mxu0
  %v5521 = vadd.f32 %v5387, %v5503
  %v5522 = vadd.f32 %v5392, %v5508
  %v5523 = vadd.f32 %v5397, %v5513
  %v5524 = vadd.f32 %v5402, %v5518
  %v5525 = vld [vmem:[#allocation2 + $0x10] sm:$0xff]
  %v5526 = vld [vmem:[#allocation2 + $0x18] sm:$0xff]
  %v5527 = vld [vmem:[#allocation2 + $0x20] sm:$0xff]
  %v5528 = vld [vmem:[#allocation2 + $0x28] sm:$0xff]
  %v5529 = vld [vmem:[%s4321] sm:$0xff]
  %v5530 = vld [vmem:[%s4321 + $0x8] sm:$0xff]
  %v5531 = vld [vmem:[%s4321 + $0x10] sm:$0xff]
  %v5532 = vld [vmem:[%s4321 + $0x18] sm:$0xff]
  %v5533 = vld [vmem:[%s4321 + $0x20] sm:$0xff]
  %v5534 = vld [vmem:[%s4321 + $0x28] sm:$0xff]
  %v5535 = vld [vmem:[%s4321 + $0x30] sm:$0xff]
  %v5536 = vld [vmem:[%s4321 + $0x38] sm:$0xff]
  %v5537 = vld [vmem:[%s4321 + $0x40] sm:$0xff]
  %v5538 = vld [vmem:[%s4321 + $0x48] sm:$0xff]
  %v5539 = vld [vmem:[%s4321 + $0x50] sm:$0xff]
  %v5540 = vld [vmem:[%s4321 + $0x58] sm:$0xff]
  %v5541 = vld [vmem:[%s4321 + $0x60] sm:$0xff]
  %v5542 = vld [vmem:[%s4321 + $0x68] sm:$0xff]
  %v5543 = vld [vmem:[%s4321 + $0x70] sm:$0xff]
  %v5545 = vsel %vm974, %v5525, 0
  %v5548 = vsel %vm974, %v5526, 0
  %v5551 = vsel %vm974, %v5527, 0
  %v5554 = vsel %vm974, %v5528, 0
  %5556 = vmatprep.subr.mxu0 0.0
  %5557 = vmatpush1.msra.mxu0 %v5529
  %5558 = vmatprep.subr.mxu0 0.0
  %5559 = vmatpush1.msra.mxu0 %v5530
  %5560 = vmatprep.subr.mxu0 0.0
  %5561 = vmatpush1.msra.mxu0 %v5531
  %5562 = vmatprep.subr.mxu0 0.0
  %5563 = vmatpush1.msra.mxu0 %v5532
  %5564 = vmatprep.subr.mxu0 0.0
  %5565 = vmatpush1.msra.mxu0 %v5533
  %5566 = vmatprep.subr.mxu0 0.0
  %5567 = vmatpush1.msra.mxu0 %v5534
  %5568 = vmatprep.subr.mxu0 0.0
  %5569 = vmatpush1.msra.mxu0 %v5535
  %5570 = vmatprep.subr.mxu0 0.0
  %5571 = vmatpush1.msra.mxu0 %v5536
  %5572 = vmatprep.subr.mxu0 0.0
  %5573 = vmatpush1.msra.mxu0 %v5537
  %5574 = vmatprep.subr.mxu0 0.0
  %5575 = vmatpush1.msra.mxu0 %v5538
  %5576 = vmatprep.subr.mxu0 0.0
  %5577 = vmatpush1.msra.mxu0 %v5539
  %5578 = vmatprep.subr.mxu0 0.0
  %5579 = vmatpush1.msra.mxu0 %v5540
  %5580 = vmatprep.subr.mxu0 0.0
  %5581 = vmatpush1.msra.mxu0 %v5541
  %5582 = vmatprep.subr.mxu0 0.0
  %5583 = vmatpush1.msra.mxu0 %v5542
  %5584 = vmatprep.subr.mxu0 0.0
  %5585 = vmatpush1.msra.mxu0 %v5543
  %5586 = vmatprep.subr.mxu0 0.0
  %5587 = vmatpush1.msra.mxu0 0.0
  %5588 = vmatprep.subr.mxu0 0.0
  %5589 = vmatpush1.msra.mxu0 0.0
  %5590 = vmatprep.subr.mxu0 0.0
  %5591 = vmatpush1.msra.mxu0 0.0
  %5592 = vmatprep.subr.mxu0 0.0
  %5593 = vmatpush1.msra.mxu0 0.0
  %5594 = vmatprep.subr.mxu0 0.0
  %5595 = vmatpush1.msra.mxu0 0.0
  %5596 = vmatprep.subr.mxu0 0.0
  %5597 = vmatpush1.msra.mxu0 0.0
  %5598 = vmatprep.subr.mxu0 0.0
  %5599 = vmatpush1.msra.mxu0 0.0
  %5600 = vmatprep.subr.mxu0 0.0
  %5601 = vmatpush1.msra.mxu0 0.0
  %5602 = vmatprep.subr.mxu0 0.0
  %5603 = vmatpush1.msra.mxu0 0.0
  %5604 = vmatprep.subr.mxu0 0.0
  %5605 = vmatpush1.msra.mxu0 0.0
  %5606 = vmatprep.subr.mxu0 0.0
  %5607 = vmatpush1.msra.mxu0 0.0
  %5608 = vmatprep.subr.mxu0 0.0
  %5609 = vmatpush1.msra.mxu0 0.0
  %5610 = vmatprep.subr.mxu0 0.0
  %5611 = vmatpush1.msra.mxu0 0.0
  %5612 = vmatprep.subr.mxu0 0.0
  %5613 = vmatpush1.msra.mxu0 0.0
  %5614 = vmatprep.subr.mxu0 0.0
  %5615 = vmatpush1.msra.mxu0 0.0
  %5616 = vmatprep.subr.mxu0 0.0
  %5617 = vmatpush1.msra.mxu0 0.0
  %5618 = vmatprep.subr.mxu0 0.0
  %5619 = vmatpush1.msra.mxu0 0.0
  %5620 = vmatprep.mubr.f32.mxu0 0.0
  %5621 = vmatmul.mubr.f32.gmra.mrb[0].mxu0 %v5545
  %v5622 = vpop.f32.mrb[0].mxu0
  %v5623 = vadd.f32 0.0, %v5622
  %v5624 = vpop.f32.mrb[0].mxu0
  %5625 = vmatprep.mubr.f32.mxu0 0.0
  %5626 = vmatmul.mubr.f32.gmra.mrb[0].mxu0 %v5548
  %v5627 = vpop.f32.mrb[0].mxu0
  %v5628 = vadd.f32 0.0, %v5627
  %v5629 = vpop.f32.mrb[0].mxu0
  %5630 = vmatprep.mubr.f32.mxu0 0.0
  %5631 = vmatmul.mubr.f32.gmra.mrb[0].mxu0 %v5551
  %v5632 = vpop.f32.mrb[0].mxu0
  %v5633 = vadd.f32 0.0, %v5632
  %v5634 = vpop.f32.mrb[0].mxu0
  %5635 = vmatprep.mubr.f32.mxu0 0.0
  %5636 = vmatmul.mubr.f32.gmra.mrb[0].mxu0 %v5554
  %v5637 = vpop.f32.mrb[0].mxu0
  %v5638 = vadd.f32 0.0, %v5637
  %v5639 = vpop.f32.mrb[0].mxu0
  %5640 = vdwg.mxu0
  %v5641 = vadd.f32 %v5521, %v5623
  %v5642 = vadd.f32 %v5522, %v5628
  %v5643 = vadd.f32 %v5523, %v5633
  %v5644 = vadd.f32 %v5524, %v5638
  %v5645 = vld [vmem:[#allocation2 + $0x40] sm:$0xff]
  %v5646 = vld [vmem:[#allocation2 + $0x48] sm:$0xff]
  %v5647 = vld [vmem:[#allocation2 + $0x50] sm:$0xff]
  %v5648 = vld [vmem:[#allocation2 + $0x58] sm:$0xff]
  %v5649 = vld [vmem:[%s4442] sm:$0xff]
  %v5650 = vld [vmem:[%s4442 + $0x8] sm:$0xff]
  %v5651 = vld [vmem:[%s4442 + $0x10] sm:$0xff]
  %v5652 = vld [vmem:[%s4442 + $0x18] sm:$0xff]
  %v5653 = vld [vmem:[%s4442 + $0x20] sm:$0xff]
  %v5654 = vld [vmem:[%s4442 + $0x28] sm:$0xff]
  %v5655 = vld [vmem:[%s4442 + $0x30] sm:$0xff]
  %v5656 = vld [vmem:[%s4442 + $0x38] sm:$0xff]
  %v5657 = vld [vmem:[%s4442 + $0x40] sm:$0xff]
  %v5658 = vld [vmem:[%s4442 + $0x48] sm:$0xff]
  %v5659 = vld [vmem:[%s4442 + $0x50] sm:$0xff]
  %v5660 = vld [vmem:[%s4442 + $0x58] sm:$0xff]
  %v5661 = vld [vmem:[%s4442 + $0x60] sm:$0xff]
  %v5662 = vld [vmem:[%s4442 + $0x68] sm:$0xff]
  %v5663 = vld [vmem:[%s4442 + $0x70] sm:$0xff]
  %v5665 = vsel %vm974, %v5645, 0
  %v5668 = vsel %vm974, %v5646, 0
  %v5671 = vsel %vm974, %v5647, 0
  %v5674 = vsel %vm974, %v5648, 0
  %5676 = vmatprep.subr.mxu0 0.0
  %5677 = vmatpush1.msra.mxu0 %v5649
  %5678 = vmatprep.subr.mxu0 0.0
  %5679 = vmatpush1.msra.mxu0 %v5650
  %5680 = vmatprep.subr.mxu0 0.0
  %5681 = vmatpush1.msra.mxu0 %v5651
  %5682 = vmatprep.subr.mxu0 0.0
  %5683 = vmatpush1.msra.mxu0 %v5652
  %5684 = vmatprep.subr.mxu0 0.0
  %5685 = vmatpush1.msra.mxu0 %v5653
  %5686 = vmatprep.subr.mxu0 0.0
  %5687 = vmatpush1.msra.mxu0 %v5654
  %5688 = vmatprep.subr.mxu0 0.0
  %5689 = vmatpush1.msra.mxu0 %v5655
  %5690 = vmatprep.subr.mxu0 0.0
  %5691 = vmatpush1.msra.mxu0 %v5656
  %5692 = vmatprep.subr.mxu0 0.0
  %5693 = vmatpush1.msra.mxu0 %v5657
  %5694 = vmatprep.subr.mxu0 0.0
  %5695 = vmatpush1.msra.mxu0 %v5658
  %5696 = vmatprep.subr.mxu0 0.0
  %5697 = vmatpush1.msra.mxu0 %v5659
  %5698 = vmatprep.subr.mxu0 0.0
  %5699 = vmatpush1.msra.mxu0 %v5660
  %5700 = vmatprep.subr.mxu0 0.0
  %5701 = vmatpush1.msra.mxu0 %v5661
  %5702 = vmatprep.subr.mxu0 0.0
  %5703 = vmatpush1.msra.mxu0 %v5662
  %5704 = vmatprep.subr.mxu0 0.0
  %5705 = vmatpush1.msra.mxu0 %v5663
  %5706 = vmatprep.subr.mxu0 0.0
  %5707 = vmatpush1.msra.mxu0 0.0
  %5708 = vmatprep.subr.mxu0 0.0
  %5709 = vmatpush1.msra.mxu0 0.0
  %5710 = vmatprep.subr.mxu0 0.0
  %5711 = vmatpush1.msra.mxu0 0.0
  %5712 = vmatprep.subr.mxu0 0.0
  %5713 = vmatpush1.msra.mxu0 0.0
  %5714 = vmatprep.subr.mxu0 0.0
  %5715 = vmatpush1.msra.mxu0 0.0
  %5716 = vmatprep.subr.mxu0 0.0
  %5717 = vmatpush1.msra.mxu0 0.0
  %5718 = vmatprep.subr.mxu0 0.0
  %5719 = vmatpush1.msra.mxu0 0.0
  %5720 = vmatprep.subr.mxu0 0.0
  %5721 = vmatpush1.msra.mxu0 0.0
  %5722 = vmatprep.subr.mxu0 0.0
  %5723 = vmatpush1.msra.mxu0 0.0
  %5724 = vmatprep.subr.mxu0 0.0
  %5725 = vmatpush1.msra.mxu0 0.0
  %5726 = vmatprep.subr.mxu0 0.0
  %5727 = vmatpush1.msra.mxu0 0.0
  %5728 = vmatprep.subr.mxu0 0.0
  %5729 = vmatpush1.msra.mxu0 0.0
  %5730 = vmatprep.subr.mxu0 0.0
  %5731 = vmatpush1.msra.mxu0 0.0
  %5732 = vmatprep.subr.mxu0 0.0
  %5733 = vmatpush1.msra.mxu0 0.0
  %5734 = vmatprep.subr.mxu0 0.0
  %5735 = vmatpush1.msra.mxu0 0.0
  %5736 = vmatprep.subr.mxu0 0.0
  %5737 = vmatpush1.msra.mxu0 0.0
  %5738 = vmatprep.subr.mxu0 0.0
  %5739 = vmatpush1.msra.mxu0 0.0
  %5740 = vmatprep.mubr.f32.mxu0 0.0
  %5741 = vmatmul.mubr.f32.gmra.mrb[0].mxu0 %v5665
  %v5742 = vpop.f32.mrb[0].mxu0
  %v5743 = vadd.f32 0.0, %v5742
  %v5744 = vpop.f32.mrb[0].mxu0
  %5745 = vmatprep.mubr.f32.mxu0 0.0
  %5746 = vmatmul.mubr.f32.gmra.mrb[0].mxu0 %v5668
  %v5747 = vpop.f32.mrb[0].mxu0
  %v5748 = vadd.f32 0.0, %v5747
  %v5749 = vpop.f32.mrb[0].mxu0
  %5750 = vmatprep.mubr.f32.mxu0 0.0
  %5751 = vmatmul.mubr.f32.gmra.mrb[0].mxu0 %v5671
  %v5752 = vpop.f32.mrb[0].mxu0
  %v5753 = vadd.f32 0.0, %v5752
  %v5754 = vpop.f32.mrb[0].mxu0
  %5755 = vmatprep.mubr.f32.mxu0 0.0
  %5756 = vmatmul.mubr.f32.gmra.mrb[0].mxu0 %v5674
  %v5757 = vpop.f32.mrb[0].mxu0
  %v5758 = vadd.f32 0.0, %v5757
  %v5759 = vpop.f32.mrb[0].mxu0
  %5760 = vdwg.mxu0
  %v5761 = vadd.f32 %v5641, %v5743
  %v5762 = vadd.f32 %v5642, %v5748
  %v5763 = vadd.f32 %v5643, %v5753
  %v5764 = vadd.f32 %v5644, %v5758
  %v5765 = vld [vmem:[#allocation3] sm:$0xff]
  %v5766 = vld [vmem:[#allocation3 + $0x8] sm:$0xff]
  %v5767 = vld [vmem:[#allocation3 + $0x10] sm:$0xff]
  %v5768 = vld [vmem:[#allocation3 + $0x18] sm:$0xff]
  %v5769 = vmax.f32 %v5765, %v5761
  %v5770 = vmax.f32 %v5766, %v5762
  %v5771 = vmax.f32 %v5767, %v5763
  %v5772 = vmax.f32 %v5768, %v5764
  %5773 = vst.msk [vmem:[#allocation3] sm:$0xff] %vm4559, %v5769
  %5774 = vst.msk [vmem:[#allocation3 + $0x8] sm:$0xff] %vm4559, %v5770
  %5775 = vst.msk [vmem:[#allocation3 + $0x10] sm:$0xff] %vm4559, %v5771
  %5776 = vst.msk [vmem:[#allocation3 + $0x18] sm:$0xff] %vm4559, %v5772
  %v5777 = vld [vmem:[#allocation2 + $0x30] sm:$0xff]
  %v5778 = vld [vmem:[#allocation2 + $0x38] sm:$0xff]
  %v5779 = vld [vmem:[#allocation2 + $0x40] sm:$0xff]
  %v5780 = vld [vmem:[#allocation2 + $0x48] sm:$0xff]
  %v5781 = vld [vmem:[%s4568] sm:$0xff]
  %v5782 = vld [vmem:[%s4568 + $0x8] sm:$0xff]
  %v5783 = vld [vmem:[%s4568 + $0x10] sm:$0xff]
  %v5784 = vld [vmem:[%s4568 + $0x18] sm:$0xff]
  %v5785 = vld [vmem:[%s4568 + $0x20] sm:$0xff]
  %v5786 = vld [vmem:[%s4568 + $0x28] sm:$0xff]
  %v5787 = vld [vmem:[%s4568 + $0x30] sm:$0xff]
  %v5788 = vld [vmem:[%s4568 + $0x38] sm:$0xff]
  %v5789 = vld [vmem:[%s4568 + $0x40] sm:$0xff]
  %v5790 = vld [vmem:[%s4568 + $0x48] sm:$0xff]
  %v5791 = vld [vmem:[%s4568 + $0x50] sm:$0xff]
  %v5792 = vld [vmem:[%s4568 + $0x58] sm:$0xff]
  %v5793 = vld [vmem:[%s4568 + $0x60] sm:$0xff]
  %v5794 = vld [vmem:[%s4568 + $0x68] sm:$0xff]
  %v5795 = vld [vmem:[%s4568 + $0x70] sm:$0xff]
  %v5796 = vld [vmem:[#allocation2 + $0x8] sm:$0xff]
  %v5797 = vld [vmem:[#allocation2 + $0x10] sm:$0xff]
  %v5798 = vld [vmem:[#allocation2 + $0x18] sm:$0xff]
  %v5799 = vld [vmem:[#allocation2 + $0x20] sm:$0xff]
  %v5800 = vld [vmem:[%s4588] sm:$0xff]
  %v5801 = vld [vmem:[%s4588 + $0x8] sm:$0xff]
  %v5802 = vld [vmem:[%s4588 + $0x10] sm:$0xff]
  %v5803 = vld [vmem:[%s4588 + $0x18] sm:$0xff]
  %v5804 = vld [vmem:[%s4588 + $0x20] sm:$0xff]
  %v5805 = vld [vmem:[%s4588 + $0x28] sm:$0xff]
  %v5806 = vld [vmem:[%s4588 + $0x30] sm:$0xff]
  %v5807 = vld [vmem:[%s4588 + $0x38] sm:$0xff]
  %v5808 = vld [vmem:[%s4588 + $0x40] sm:$0xff]
  %v5809 = vld [vmem:[%s4588 + $0x48] sm:$0xff]
  %v5810 = vld [vmem:[%s4588 + $0x50] sm:$0xff]
  %v5811 = vld [vmem:[%s4588 + $0x58] sm:$0xff]
  %v5812 = vld [vmem:[%s4588 + $0x60] sm:$0xff]
  %v5813 = vld [vmem:[%s4588 + $0x68] sm:$0xff]
  %v5814 = vld [vmem:[%s4588 + $0x70] sm:$0xff]
  %v5816 = vsel %vm974, %v5796, 0
  %v5819 = vsel %vm974, %v5797, 0
  %v5822 = vsel %vm974, %v5798, 0
  %v5825 = vsel %vm974, %v5799, 0
  %5827 = vmatprep.subr.mxu0 0.0
  %5828 = vmatpush1.msra.mxu0 %v5800
  %5829 = vmatprep.subr.mxu0 0.0
  %5830 = vmatpush1.msra.mxu0 %v5801
  %5831 = vmatprep.subr.mxu0 0.0
  %5832 = vmatpush1.msra.mxu0 %v5802
  %5833 = vmatprep.subr.mxu0 0.0
  %5834 = vmatpush1.msra.mxu0 %v5803
  %5835 = vmatprep.subr.mxu0 0.0
  %5836 = vmatpush1.msra.mxu0 %v5804
  %5837 = vmatprep.subr.mxu0 0.0
  %5838 = vmatpush1.msra.mxu0 %v5805
  %5839 = vmatprep.subr.mxu0 0.0
  %5840 = vmatpush1.msra.mxu0 %v5806
  %5841 = vmatprep.subr.mxu0 0.0
  %5842 = vmatpush1.msra.mxu0 %v5807
  %5843 = vmatprep.subr.mxu0 0.0
  %5844 = vmatpush1.msra.mxu0 %v5808
  %5845 = vmatprep.subr.mxu0 0.0
  %5846 = vmatpush1.msra.mxu0 %v5809
  %5847 = vmatprep.subr.mxu0 0.0
  %5848 = vmatpush1.msra.mxu0 %v5810
  %5849 = vmatprep.subr.mxu0 0.0
  %5850 = vmatpush1.msra.mxu0 %v5811
  %5851 = vmatprep.subr.mxu0 0.0
  %5852 = vmatpush1.msra.mxu0 %v5812
  %5853 = vmatprep.subr.mxu0 0.0
  %5854 = vmatpush1.msra.mxu0 %v5813
  %5855 = vmatprep.subr.mxu0 0.0
  %5856 = vmatpush1.msra.mxu0 %v5814
  %5857 = vmatprep.subr.mxu0 0.0
  %5858 = vmatpush1.msra.mxu0 0.0
  %5859 = vmatprep.subr.mxu0 0.0
  %5860 = vmatpush1.msra.mxu0 0.0
  %5861 = vmatprep.subr.mxu0 0.0
  %5862 = vmatpush1.msra.mxu0 0.0
  %5863 = vmatprep.subr.mxu0 0.0
  %5864 = vmatpush1.msra.mxu0 0.0
  %5865 = vmatprep.subr.mxu0 0.0
  %5866 = vmatpush1.msra.mxu0 0.0
  %5867 = vmatprep.subr.mxu0 0.0
  %5868 = vmatpush1.msra.mxu0 0.0
  %5869 = vmatprep.subr.mxu0 0.0
  %5870 = vmatpush1.msra.mxu0 0.0
  %5871 = vmatprep.subr.mxu0 0.0
  %5872 = vmatpush1.msra.mxu0 0.0
  %5873 = vmatprep.subr.mxu0 0.0
  %5874 = vmatpush1.msra.mxu0 0.0
  %5875 = vmatprep.subr.mxu0 0.0
  %5876 = vmatpush1.msra.mxu0 0.0
  %5877 = vmatprep.subr.mxu0 0.0
  %5878 = vmatpush1.msra.mxu0 0.0
  %5879 = vmatprep.subr.mxu0 0.0
  %5880 = vmatpush1.msra.mxu0 0.0
  %5881 = vmatprep.subr.mxu0 0.0
  %5882 = vmatpush1.msra.mxu0 0.0
  %5883 = vmatprep.subr.mxu0 0.0
  %5884 = vmatpush1.msra.mxu0 0.0
  %5885 = vmatprep.subr.mxu0 0.0
  %5886 = vmatpush1.msra.mxu0 0.0
  %5887 = vmatprep.subr.mxu0 0.0
  %5888 = vmatpush1.msra.mxu0 0.0
  %5889 = vmatprep.subr.mxu0 0.0
  %5890 = vmatpush1.msra.mxu0 0.0
  %5891 = vmatprep.mubr.f32.mxu0 0.0
  %5892 = vmatmul.mubr.f32.gmra.mrb[0].mxu0 %v5816
  %v5893 = vpop.f32.mrb[0].mxu0
  %v5894 = vadd.f32 0.0, %v5893
  %v5895 = vpop.f32.mrb[0].mxu0
  %5896 = vmatprep.mubr.f32.mxu0 0.0
  %5897 = vmatmul.mubr.f32.gmra.mrb[0].mxu0 %v5819
  %v5898 = vpop.f32.mrb[0].mxu0
  %v5899 = vadd.f32 0.0, %v5898
  %v5900 = vpop.f32.mrb[0].mxu0
  %5901 = vmatprep.mubr.f32.mxu0 0.0
  %5902 = vmatmul.mubr.f32.gmra.mrb[0].mxu0 %v5822
  %v5903 = vpop.f32.mrb[0].mxu0
  %v5904 = vadd.f32 0.0, %v5903
  %v5905 = vpop.f32.mrb[0].mxu0
  %5906 = vmatprep.mubr.f32.mxu0 0.0
  %5907 = vmatmul.mubr.f32.gmra.mrb[0].mxu0 %v5825
  %v5908 = vpop.f32.mrb[0].mxu0
  %v5909 = vadd.f32 0.0, %v5908
  %v5910 = vpop.f32.mrb[0].mxu0
  %5911 = vdwg.mxu0
  %v5913 = vsel %vm974, %v5777, 0
  %v5916 = vsel %vm974, %v5778, 0
  %v5919 = vsel %vm974, %v5779, 0
  %v5922 = vsel %vm974, %v5780, 0
  %5924 = vmatprep.subr.mxu0 0.0
  %5925 = vmatpush1.msra.mxu0 %v5781
  %5926 = vmatprep.subr.mxu0 0.0
  %5927 = vmatpush1.msra.mxu0 %v5782
  %5928 = vmatprep.subr.mxu0 0.0
  %5929 = vmatpush1.msra.mxu0 %v5783
  %5930 = vmatprep.subr.mxu0 0.0
  %5931 = vmatpush1.msra.mxu0 %v5784
  %5932 = vmatprep.subr.mxu0 0.0
  %5933 = vmatpush1.msra.mxu0 %v5785
  %5934 = vmatprep.subr.mxu0 0.0
  %5935 = vmatpush1.msra.mxu0 %v5786
  %5936 = vmatprep.subr.mxu0 0.0
  %5937 = vmatpush1.msra.mxu0 %v5787
  %5938 = vmatprep.subr.mxu0 0.0
  %5939 = vmatpush1.msra.mxu0 %v5788
  %5940 = vmatprep.subr.mxu0 0.0
  %5941 = vmatpush1.msra.mxu0 %v5789
  %5942 = vmatprep.subr.mxu0 0.0
  %5943 = vmatpush1.msra.mxu0 %v5790
  %5944 = vmatprep.subr.mxu0 0.0
  %5945 = vmatpush1.msra.mxu0 %v5791
  %5946 = vmatprep.subr.mxu0 0.0
  %5947 = vmatpush1.msra.mxu0 %v5792
  %5948 = vmatprep.subr.mxu0 0.0
  %5949 = vmatpush1.msra.mxu0 %v5793
  %5950 = vmatprep.subr.mxu0 0.0
  %5951 = vmatpush1.msra.mxu0 %v5794
  %5952 = vmatprep.subr.mxu0 0.0
  %5953 = vmatpush1.msra.mxu0 %v5795
  %5954 = vmatprep.subr.mxu0 0.0
  %5955 = vmatpush1.msra.mxu0 0.0
  %5956 = vmatprep.subr.mxu0 0.0
  %5957 = vmatpush1.msra.mxu0 0.0
  %5958 = vmatprep.subr.mxu0 0.0
  %5959 = vmatpush1.msra.mxu0 0.0
  %5960 = vmatprep.subr.mxu0 0.0
  %5961 = vmatpush1.msra.mxu0 0.0
  %5962 = vmatprep.subr.mxu0 0.0
  %5963 = vmatpush1.msra.mxu0 0.0
  %5964 = vmatprep.subr.mxu0 0.0
  %5965 = vmatpush1.msra.mxu0 0.0
  %5966 = vmatprep.subr.mxu0 0.0
  %5967 = vmatpush1.msra.mxu0 0.0
  %5968 = vmatprep.subr.mxu0 0.0
  %5969 = vmatpush1.msra.mxu0 0.0
  %5970 = vmatprep.subr.mxu0 0.0
  %5971 = vmatpush1.msra.mxu0 0.0
  %5972 = vmatprep.subr.mxu0 0.0
  %5973 = vmatpush1.msra.mxu0 0.0
  %5974 = vmatprep.subr.mxu0 0.0
  %5975 = vmatpush1.msra.mxu0 0.0
  %5976 = vmatprep.subr.mxu0 0.0
  %5977 = vmatpush1.msra.mxu0 0.0
  %5978 = vmatprep.subr.mxu0 0.0
  %5979 = vmatpush1.msra.mxu0 0.0
  %5980 = vmatprep.subr.mxu0 0.0
  %5981 = vmatpush1.msra.mxu0 0.0
  %5982 = vmatprep.subr.mxu0 0.0
  %5983 = vmatpush1.msra.mxu0 0.0
  %5984 = vmatprep.subr.mxu0 0.0
  %5985 = vmatpush1.msra.mxu0 0.0
  %5986 = vmatprep.subr.mxu0 0.0
  %5987 = vmatpush1.msra.mxu0 0.0
  %5988 = vmatprep.mubr.f32.mxu0 0.0
  %5989 = vmatmul.mubr.f32.gmra.mrb[0].mxu0 %v5913
  %v5990 = vpop.f32.mrb[0].mxu0
  %v5991 = vadd.f32 %v5894, %v5990
  %v5992 = vpop.f32.mrb[0].mxu0
  %5993 = vmatprep.mubr.f32.mxu0 0.0
  %5994 = vmatmul.mubr.f32.gmra.mrb[0].mxu0 %v5916
  %v5995 = vpop.f32.mrb[0].mxu0
  %v5996 = vadd.f32 %v5899, %v5995
  %v5997 = vpop.f32.mrb[0].mxu0
  %5998 = vmatprep.mubr.f32.mxu0 0.0
  %5999 = vmatmul.mubr.f32.gmra.mrb[0].mxu0 %v5919
  %v6000 = vpop.f32.mrb[0].mxu0
  %v6001 = vadd.f32 %v5904, %v6000
  %v6002 = vpop.f32.mrb[0].mxu0
  %6003 = vmatprep.mubr.f32.mxu0 0.0
  %6004 = vmatmul.mubr.f32.gmra.mrb[0].mxu0 %v5922
  %v6005 = vpop.f32.mrb[0].mxu0
  %v6006 = vadd.f32 %v5909, %v6005
  %v6007 = vpop.f32.mrb[0].mxu0
  %6008 = vdwg.mxu0
  %v6009 = vld [vmem:[#allocation2 + $0x38] sm:$0xff]
  %v6010 = vld [vmem:[#allocation2 + $0x40] sm:$0xff]
  %v6011 = vld [vmem:[#allocation2 + $0x48] sm:$0xff]
  %v6012 = vld [vmem:[#allocation2 + $0x50] sm:$0xff]
  %v6013 = vld [vmem:[%s4802] sm:$0xff]
  %v6014 = vld [vmem:[%s4802 + $0x8] sm:$0xff]
  %v6015 = vld [vmem:[%s4802 + $0x10] sm:$0xff]
  %v6016 = vld [vmem:[%s4802 + $0x18] sm:$0xff]
  %v6017 = vld [vmem:[%s4802 + $0x20] sm:$0xff]
  %v6018 = vld [vmem:[%s4802 + $0x28] sm:$0xff]
  %v6019 = vld [vmem:[%s4802 + $0x30] sm:$0xff]
  %v6020 = vld [vmem:[%s4802 + $0x38] sm:$0xff]
  %v6021 = vld [vmem:[%s4802 + $0x40] sm:$0xff]
  %v6022 = vld [vmem:[%s4802 + $0x48] sm:$0xff]
  %v6023 = vld [vmem:[%s4802 + $0x50] sm:$0xff]
  %v6024 = vld [vmem:[%s4802 + $0x58] sm:$0xff]
  %v6025 = vld [vmem:[%s4802 + $0x60] sm:$0xff]
  %v6026 = vld [vmem:[%s4802 + $0x68] sm:$0xff]
  %v6027 = vld [vmem:[%s4802 + $0x70] sm:$0xff]
  %v6029 = vsel %vm974, %v6009, 0
  %v6032 = vsel %vm974, %v6010, 0
  %v6035 = vsel %vm974, %v6011, 0
  %v6038 = vsel %vm974, %v6012, 0
  %6040 = vmatprep.subr.mxu0 0.0
  %6041 = vmatpush1.msra.mxu0 %v6013
  %6042 = vmatprep.subr.mxu0 0.0
  %6043 = vmatpush1.msra.mxu0 %v6014
  %6044 = vmatprep.subr.mxu0 0.0
  %6045 = vmatpush1.msra.mxu0 %v6015
  %6046 = vmatprep.subr.mxu0 0.0
  %6047 = vmatpush1.msra.mxu0 %v6016
  %6048 = vmatprep.subr.mxu0 0.0
  %6049 = vmatpush1.msra.mxu0 %v6017
  %6050 = vmatprep.subr.mxu0 0.0
  %6051 = vmatpush1.msra.mxu0 %v6018
  %6052 = vmatprep.subr.mxu0 0.0
  %6053 = vmatpush1.msra.mxu0 %v6019
  %6054 = vmatprep.subr.mxu0 0.0
  %6055 = vmatpush1.msra.mxu0 %v6020
  %6056 = vmatprep.subr.mxu0 0.0
  %6057 = vmatpush1.msra.mxu0 %v6021
  %6058 = vmatprep.subr.mxu0 0.0
  %6059 = vmatpush1.msra.mxu0 %v6022
  %6060 = vmatprep.subr.mxu0 0.0
  %6061 = vmatpush1.msra.mxu0 %v6023
  %6062 = vmatprep.subr.mxu0 0.0
  %6063 = vmatpush1.msra.mxu0 %v6024
  %6064 = vmatprep.subr.mxu0 0.0
  %6065 = vmatpush1.msra.mxu0 %v6025
  %6066 = vmatprep.subr.mxu0 0.0
  %6067 = vmatpush1.msra.mxu0 %v6026
  %6068 = vmatprep.subr.mxu0 0.0
  %6069 = vmatpush1.msra.mxu0 %v6027
  %6070 = vmatprep.subr.mxu0 0.0
  %6071 = vmatpush1.msra.mxu0 0.0
  %6072 = vmatprep.subr.mxu0 0.0
  %6073 = vmatpush1.msra.mxu0 0.0
  %6074 = vmatprep.subr.mxu0 0.0
  %6075 = vmatpush1.msra.mxu0 0.0
  %6076 = vmatprep.subr.mxu0 0.0
  %6077 = vmatpush1.msra.mxu0 0.0
  %6078 = vmatprep.subr.mxu0 0.0
  %6079 = vmatpush1.msra.mxu0 0.0
  %6080 = vmatprep.subr.mxu0 0.0
  %6081 = vmatpush1.msra.mxu0 0.0
  %6082 = vmatprep.subr.mxu0 0.0
  %6083 = vmatpush1.msra.mxu0 0.0
  %6084 = vmatprep.subr.mxu0 0.0
  %6085 = vmatpush1.msra.mxu0 0.0
  %6086 = vmatprep.subr.mxu0 0.0
  %6087 = vmatpush1.msra.mxu0 0.0
  %6088 = vmatprep.subr.mxu0 0.0
  %6089 = vmatpush1.msra.mxu0 0.0
  %6090 = vmatprep.subr.mxu0 0.0
  %6091 = vmatpush1.msra.mxu0 0.0
  %6092 = vmatprep.subr.mxu0 0.0
  %6093 = vmatpush1.msra.mxu0 0.0
  %6094 = vmatprep.subr.mxu0 0.0
  %6095 = vmatpush1.msra.mxu0 0.0
  %6096 = vmatprep.subr.mxu0 0.0
  %6097 = vmatpush1.msra.mxu0 0.0
  %6098 = vmatprep.subr.mxu0 0.0
  %6099 = vmatpush1.msra.mxu0 0.0
  %6100 = vmatprep.subr.mxu0 0.0
  %6101 = vmatpush1.msra.mxu0 0.0
  %6102 = vmatprep.subr.mxu0 0.0
  %6103 = vmatpush1.msra.mxu0 0.0
  %6104 = vmatprep.mubr.f32.mxu0 0.0
  %6105 = vmatmul.mubr.f32.gmra.mrb[0].mxu0 %v6029
  %v6106 = vpop.f32.mrb[0].mxu0
  %v6107 = vadd.f32 0.0, %v6106
  %v6108 = vpop.f32.mrb[0].mxu0
  %6109 = vmatprep.mubr.f32.mxu0 0.0
  %6110 = vmatmul.mubr.f32.gmra.mrb[0].mxu0 %v6032
  %v6111 = vpop.f32.mrb[0].mxu0
  %v6112 = vadd.f32 0.0, %v6111
  %v6113 = vpop.f32.mrb[0].mxu0
  %6114 = vmatprep.mubr.f32.mxu0 0.0
  %6115 = vmatmul.mubr.f32.gmra.mrb[0].mxu0 %v6035
  %v6116 = vpop.f32.mrb[0].mxu0
  %v6117 = vadd.f32 0.0, %v6116
  %v6118 = vpop.f32.mrb[0].mxu0
  %6119 = vmatprep.mubr.f32.mxu0 0.0
  %6120 = vmatmul.mubr.f32.gmra.mrb[0].mxu0 %v6038
  %v6121 = vpop.f32.mrb[0].mxu0
  %v6122 = vadd.f32 0.0, %v6121
  %v6123 = vpop.f32.mrb[0].mxu0
  %6124 = vdwg.mxu0
  %v6125 = vadd.f32 %v5991, %v6107
  %v6126 = vadd.f32 %v5996, %v6112
  %v6127 = vadd.f32 %v6001, %v6117
  %v6128 = vadd.f32 %v6006, %v6122
  %v6129 = vld [vmem:[#allocation2 + $0x10] sm:$0xff]
  %v6130 = vld [vmem:[#allocation2 + $0x18] sm:$0xff]
  %v6131 = vld [vmem:[#allocation2 + $0x20] sm:$0xff]
  %v6132 = vld [vmem:[#allocation2 + $0x28] sm:$0xff]
  %v6133 = vld [vmem:[%s4923] sm:$0xff]
  %v6134 = vld [vmem:[%s4923 + $0x8] sm:$0xff]
  %v6135 = vld [vmem:[%s4923 + $0x10] sm:$0xff]
  %v6136 = vld [vmem:[%s4923 + $0x18] sm:$0xff]
  %v6137 = vld [vmem:[%s4923 + $0x20] sm:$0xff]
  %v6138 = vld [vmem:[%s4923 + $0x28] sm:$0xff]
  %v6139 = vld [vmem:[%s4923 + $0x30] sm:$0xff]
  %v6140 = vld [vmem:[%s4923 + $0x38] sm:$0xff]
  %v6141 = vld [vmem:[%s4923 + $0x40] sm:$0xff]
  %v6142 = vld [vmem:[%s4923 + $0x48] sm:$0xff]
  %v6143 = vld [vmem:[%s4923 + $0x50] sm:$0xff]
  %v6144 = vld [vmem:[%s4923 + $0x58] sm:$0xff]
  %v6145 = vld [vmem:[%s4923 + $0x60] sm:$0xff]
  %v6146 = vld [vmem:[%s4923 + $0x68] sm:$0xff]
  %v6147 = vld [vmem:[%s4923 + $0x70] sm:$0xff]
  %v6149 = vsel %vm974, %v6129, 0
  %v6152 = vsel %vm974, %v6130, 0
  %v6155 = vsel %vm974, %v6131, 0
  %v6158 = vsel %vm974, %v6132, 0
  %6160 = vmatprep.subr.mxu0 0.0
  %6161 = vmatpush1.msra.mxu0 %v6133
  %6162 = vmatprep.subr.mxu0 0.0
  %6163 = vmatpush1.msra.mxu0 %v6134
  %6164 = vmatprep.subr.mxu0 0.0
  %6165 = vmatpush1.msra.mxu0 %v6135
  %6166 = vmatprep.subr.mxu0 0.0
  %6167 = vmatpush1.msra.mxu0 %v6136
  %6168 = vmatprep.subr.mxu0 0.0
  %6169 = vmatpush1.msra.mxu0 %v6137
  %6170 = vmatprep.subr.mxu0 0.0
  %6171 = vmatpush1.msra.mxu0 %v6138
  %6172 = vmatprep.subr.mxu0 0.0
  %6173 = vmatpush1.msra.mxu0 %v6139
  %6174 = vmatprep.subr.mxu0 0.0
  %6175 = vmatpush1.msra.mxu0 %v6140
  %6176 = vmatprep.subr.mxu0 0.0
  %6177 = vmatpush1.msra.mxu0 %v6141
  %6178 = vmatprep.subr.mxu0 0.0
  %6179 = vmatpush1.msra.mxu0 %v6142
  %6180 = vmatprep.subr.mxu0 0.0
  %6181 = vmatpush1.msra.mxu0 %v6143
  %6182 = vmatprep.subr.mxu0 0.0
  %6183 = vmatpush1.msra.mxu0 %v6144
  %6184 = vmatprep.subr.mxu0 0.0
  %6185 = vmatpush1.msra.mxu0 %v6145
  %6186 = vmatprep.subr.mxu0 0.0
  %6187 = vmatpush1.msra.mxu0 %v6146
  %6188 = vmatprep.subr.mxu0 0.0
  %6189 = vmatpush1.msra.mxu0 %v6147
  %6190 = vmatprep.subr.mxu0 0.0
  %6191 = vmatpush1.msra.mxu0 0.0
  %6192 = vmatprep.subr.mxu0 0.0
  %6193 = vmatpush1.msra.mxu0 0.0
  %6194 = vmatprep.subr.mxu0 0.0
  %6195 = vmatpush1.msra.mxu0 0.0
  %6196 = vmatprep.subr.mxu0 0.0
  %6197 = vmatpush1.msra.mxu0 0.0
  %6198 = vmatprep.subr.mxu0 0.0
  %6199 = vmatpush1.msra.mxu0 0.0
  %6200 = vmatprep.subr.mxu0 0.0
  %6201 = vmatpush1.msra.mxu0 0.0
  %6202 = vmatprep.subr.mxu0 0.0
  %6203 = vmatpush1.msra.mxu0 0.0
  %6204 = vmatprep.subr.mxu0 0.0
  %6205 = vmatpush1.msra.mxu0 0.0
  %6206 = vmatprep.subr.mxu0 0.0
  %6207 = vmatpush1.msra.mxu0 0.0
  %6208 = vmatprep.subr.mxu0 0.0
  %6209 = vmatpush1.msra.mxu0 0.0
  %6210 = vmatprep.subr.mxu0 0.0
  %6211 = vmatpush1.msra.mxu0 0.0
  %6212 = vmatprep.subr.mxu0 0.0
  %6213 = vmatpush1.msra.mxu0 0.0
  %6214 = vmatprep.subr.mxu0 0.0
  %6215 = vmatpush1.msra.mxu0 0.0
  %6216 = vmatprep.subr.mxu0 0.0
  %6217 = vmatpush1.msra.mxu0 0.0
  %6218 = vmatprep.subr.mxu0 0.0
  %6219 = vmatpush1.msra.mxu0 0.0
  %6220 = vmatprep.subr.mxu0 0.0
  %6221 = vmatpush1.msra.mxu0 0.0
  %6222 = vmatprep.subr.mxu0 0.0
  %6223 = vmatpush1.msra.mxu0 0.0
  %6224 = vmatprep.mubr.f32.mxu0 0.0
  %6225 = vmatmul.mubr.f32.gmra.mrb[0].mxu0 %v6149
  %v6226 = vpop.f32.mrb[0].mxu0
  %v6227 = vadd.f32 0.0, %v6226
  %v6228 = vpop.f32.mrb[0].mxu0
  %6229 = vmatprep.mubr.f32.mxu0 0.0
  %6230 = vmatmul.mubr.f32.gmra.mrb[0].mxu0 %v6152
  %v6231 = vpop.f32.mrb[0].mxu0
  %v6232 = vadd.f32 0.0, %v6231
  %v6233 = vpop.f32.mrb[0].mxu0
  %6234 = vmatprep.mubr.f32.mxu0 0.0
  %6235 = vmatmul.mubr.f32.gmra.mrb[0].mxu0 %v6155
  %v6236 = vpop.f32.mrb[0].mxu0
  %v6237 = vadd.f32 0.0, %v6236
  %v6238 = vpop.f32.mrb[0].mxu0
  %6239 = vmatprep.mubr.f32.mxu0 0.0
  %6240 = vmatmul.mubr.f32.gmra.mrb[0].mxu0 %v6158
  %v6241 = vpop.f32.mrb[0].mxu0
  %v6242 = vadd.f32 0.0, %v6241
  %v6243 = vpop.f32.mrb[0].mxu0
  %6244 = vdwg.mxu0
  %v6245 = vadd.f32 %v6125, %v6227
  %v6246 = vadd.f32 %v6126, %v6232
  %v6247 = vadd.f32 %v6127, %v6237
  %v6248 = vadd.f32 %v6128, %v6242
  %v6249 = vld [vmem:[#allocation2 + $0x40] sm:$0xff]
  %v6250 = vld [vmem:[#allocation2 + $0x48] sm:$0xff]
  %v6251 = vld [vmem:[#allocation2 + $0x50] sm:$0xff]
  %v6252 = vld [vmem:[#allocation2 + $0x58] sm:$0xff]
  %v6253 = vld [vmem:[%s5044] sm:$0xff]
  %v6254 = vld [vmem:[%s5044 + $0x8] sm:$0xff]
  %v6255 = vld [vmem:[%s5044 + $0x10] sm:$0xff]
  %v6256 = vld [vmem:[%s5044 + $0x18] sm:$0xff]
  %v6257 = vld [vmem:[%s5044 + $0x20] sm:$0xff]
  %v6258 = vld [vmem:[%s5044 + $0x28] sm:$0xff]
  %v6259 = vld [vmem:[%s5044 + $0x30] sm:$0xff]
  %v6260 = vld [vmem:[%s5044 + $0x38] sm:$0xff]
  %v6261 = vld [vmem:[%s5044 + $0x40] sm:$0xff]
  %v6262 = vld [vmem:[%s5044 + $0x48] sm:$0xff]
  %v6263 = vld [vmem:[%s5044 + $0x50] sm:$0xff]
  %v6264 = vld [vmem:[%s5044 + $0x58] sm:$0xff]
  %v6265 = vld [vmem:[%s5044 + $0x60] sm:$0xff]
  %v6266 = vld [vmem:[%s5044 + $0x68] sm:$0xff]
  %v6267 = vld [vmem:[%s5044 + $0x70] sm:$0xff]
  %v6269 = vsel %vm974, %v6249, 0
  %v6272 = vsel %vm974, %v6250, 0
  %v6275 = vsel %vm974, %v6251, 0
  %v6278 = vsel %vm974, %v6252, 0
  %6280 = vmatprep.subr.mxu0 0.0
  %6281 = vmatpush1.msra.mxu0 %v6253
  %6282 = vmatprep.subr.mxu0 0.0
  %6283 = vmatpush1.msra.mxu0 %v6254
  %6284 = vmatprep.subr.mxu0 0.0
  %6285 = vmatpush1.msra.mxu0 %v6255
  %6286 = vmatprep.subr.mxu0 0.0
  %6287 = vmatpush1.msra.mxu0 %v6256
  %6288 = vmatprep.subr.mxu0 0.0
  %6289 = vmatpush1.msra.mxu0 %v6257
  %6290 = vmatprep.subr.mxu0 0.0
  %6291 = vmatpush1.msra.mxu0 %v6258
  %6292 = vmatprep.subr.mxu0 0.0
  %6293 = vmatpush1.msra.mxu0 %v6259
  %6294 = vmatprep.subr.mxu0 0.0
  %6295 = vmatpush1.msra.mxu0 %v6260
  %6296 = vmatprep.subr.mxu0 0.0
  %6297 = vmatpush1.msra.mxu0 %v6261
  %6298 = vmatprep.subr.mxu0 0.0
  %6299 = vmatpush1.msra.mxu0 %v6262
  %6300 = vmatprep.subr.mxu0 0.0
  %6301 = vmatpush1.msra.mxu0 %v6263
  %6302 = vmatprep.subr.mxu0 0.0
  %6303 = vmatpush1.msra.mxu0 %v6264
  %6304 = vmatprep.subr.mxu0 0.0
  %6305 = vmatpush1.msra.mxu0 %v6265
  %6306 = vmatprep.subr.mxu0 0.0
  %6307 = vmatpush1.msra.mxu0 %v6266
  %6308 = vmatprep.subr.mxu0 0.0
  %6309 = vmatpush1.msra.mxu0 %v6267
  %6310 = vmatprep.subr.mxu0 0.0
  %6311 = vmatpush1.msra.mxu0 0.0
  %6312 = vmatprep.subr.mxu0 0.0
  %6313 = vmatpush1.msra.mxu0 0.0
  %6314 = vmatprep.subr.mxu0 0.0
  %6315 = vmatpush1.msra.mxu0 0.0
  %6316 = vmatprep.subr.mxu0 0.0
  %6317 = vmatpush1.msra.mxu0 0.0
  %6318 = vmatprep.subr.mxu0 0.0
  %6319 = vmatpush1.msra.mxu0 0.0
  %6320 = vmatprep.subr.mxu0 0.0
  %6321 = vmatpush1.msra.mxu0 0.0
  %6322 = vmatprep.subr.mxu0 0.0
  %6323 = vmatpush1.msra.mxu0 0.0
  %6324 = vmatprep.subr.mxu0 0.0
  %6325 = vmatpush1.msra.mxu0 0.0
  %6326 = vmatprep.subr.mxu0 0.0
  %6327 = vmatpush1.msra.mxu0 0.0
  %6328 = vmatprep.subr.mxu0 0.0
  %6329 = vmatpush1.msra.mxu0 0.0
  %6330 = vmatprep.subr.mxu0 0.0
  %6331 = vmatpush1.msra.mxu0 0.0
  %6332 = vmatprep.subr.mxu0 0.0
  %6333 = vmatpush1.msra.mxu0 0.0
  %6334 = vmatprep.subr.mxu0 0.0
  %6335 = vmatpush1.msra.mxu0 0.0
  %6336 = vmatprep.subr.mxu0 0.0
  %6337 = vmatpush1.msra.mxu0 0.0
  %6338 = vmatprep.subr.mxu0 0.0
  %6339 = vmatpush1.msra.mxu0 0.0
  %6340 = vmatprep.subr.mxu0 0.0
  %6341 = vmatpush1.msra.mxu0 0.0
  %6342 = vmatprep.subr.mxu0 0.0
  %6343 = vmatpush1.msra.mxu0 0.0
  %6344 = vmatprep.mubr.f32.mxu0 0.0
  %6345 = vmatmul.mubr.f32.gmra.mrb[0].mxu0 %v6269
  %v6346 = vpop.f32.mrb[0].mxu0
  %v6347 = vadd.f32 0.0, %v6346
  %v6348 = vpop.f32.mrb[0].mxu0
  %6349 = vmatprep.mubr.f32.mxu0 0.0
  %6350 = vmatmul.mubr.f32.gmra.mrb[0].mxu0 %v6272
  %v6351 = vpop.f32.mrb[0].mxu0
  %v6352 = vadd.f32 0.0, %v6351
  %v6353 = vpop.f32.mrb[0].mxu0
  %6354 = vmatprep.mubr.f32.mxu0 0.0
  %6355 = vmatmul.mubr.f32.gmra.mrb[0].mxu0 %v6275
  %v6356 = vpop.f32.mrb[0].mxu0
  %v6357 = vadd.f32 0.0, %v6356
  %v6358 = vpop.f32.mrb[0].mxu0
  %6359 = vmatprep.mubr.f32.mxu0 0.0
  %6360 = vmatmul.mubr.f32.gmra.mrb[0].mxu0 %v6278
  %v6361 = vpop.f32.mrb[0].mxu0
  %v6362 = vadd.f32 0.0, %v6361
  %v6363 = vpop.f32.mrb[0].mxu0
  %6364 = vdwg.mxu0
  %v6365 = vadd.f32 %v6245, %v6347
  %v6366 = vadd.f32 %v6246, %v6352
  %v6367 = vadd.f32 %v6247, %v6357
  %v6368 = vadd.f32 %v6248, %v6362
  %v6369 = vld [vmem:[#allocation3] sm:$0xff]
  %v6370 = vld [vmem:[#allocation3 + $0x8] sm:$0xff]
  %v6371 = vld [vmem:[#allocation3 + $0x10] sm:$0xff]
  %v6372 = vld [vmem:[#allocation3 + $0x18] sm:$0xff]
  %v6373 = vmax.f32 %v6369, %v6365
  %v6374 = vmax.f32 %v6370, %v6366
  %v6375 = vmax.f32 %v6371, %v6367
  %v6376 = vmax.f32 %v6372, %v6368
  %6377 = vst.msk [vmem:[#allocation3] sm:$0xff] %vm4559, %v6373
  %6378 = vst.msk [vmem:[#allocation3 + $0x8] sm:$0xff] %vm4559, %v6374
  %6379 = vst.msk [vmem:[#allocation3 + $0x10] sm:$0xff] %vm4559, %v6375
  %6380 = vst.msk [vmem:[#allocation3 + $0x18] sm:$0xff] %vm4559, %v6376
  %v6381 = vld [vmem:[#allocation3] sm:$0xff]
  %v6382 = vld [vmem:[#allocation3 + $0x8] sm:$0xff]
  %v6383 = vld [vmem:[#allocation3 + $0x10] sm:$0xff]
  %v6384 = vld [vmem:[#allocation3 + $0x18] sm:$0xff]
  %v6385 = vld [vmem:[%s4] sm:$0x1]
  %v6387 = vlaneseq
  %v6388 = vshrl.u32 %v6387, 7
  %v6389 = vsub.s32 0, %v6388
  %v6390 = vrot.slane %v6385, %v6389
  %v6392 = vadd.f32 %v6381, %v6390
  %v6393 = vadd.f32 %v6382, %v6390
  %v6394 = vadd.f32 %v6383, %v6390
  %v6395 = vadd.f32 %v6384, %v6390
  %v6396 = vmax.f32 %v6392, 0.0
  %v6397 = vmax.f32 %v6393, 0.0
  %v6398 = vmax.f32 %v6394, 0.0
  %v6399 = vmax.f32 %v6395, 0.0
  %6400 = vst.msk [vmem:[#allocation3] sm:$0xff] %vm4559, %v6396
  %6401 = vst.msk [vmem:[#allocation3 + $0x8] sm:$0xff] %vm4559, %v6397
  %6402 = vst.msk [vmem:[#allocation3 + $0x10] sm:$0xff] %vm4559, %v6398
  %6403 = vst.msk [vmem:[#allocation3 + $0x18] sm:$0xff] %vm4559, %v6399
  %v6404 = vld [vmem:[#allocation3] sm:$0xff]
  %v6405 = vld [vmem:[%s5] sm:$0xff]
  %v6406 = vld [vmem:[%s5 + $0x8] sm:$0xff]
  %v6407 = vld [vmem:[%s5 + $0x10] sm:$0xff]
  %v6408 = vld [vmem:[%s5 + $0x18] sm:$0xff]
  %v6409 = vld [vmem:[%s5 + $0x20] sm:$0xff]
  %v6410 = vld [vmem:[%s5 + $0x28] sm:$0xff]
  %v6411 = vld [vmem:[%s5 + $0x30] sm:$0xff]
  %v6412 = vld [vmem:[%s5 + $0x38] sm:$0xff]
  %v6413 = vld [vmem:[%s5 + $0x40] sm:$0xff]
  %v6414 = vld [vmem:[%s5 + $0x48] sm:$0xff]
  %v6415 = vld [vmem:[#allocation3 + $0x8] sm:$0xff]
  %s6416 = scalar_lea.vmem %s5, 80
  %v6417 = vld [vmem:[%s6416] sm:$0xff]
  %v6418 = vld [vmem:[%s6416 + $0x8] sm:$0xff]
  %v6419 = vld [vmem:[%s6416 + $0x10] sm:$0xff]
  %v6420 = vld [vmem:[%s6416 + $0x18] sm:$0xff]
  %v6421 = vld [vmem:[%s6416 + $0x20] sm:$0xff]
  %v6422 = vld [vmem:[%s6416 + $0x28] sm:$0xff]
  %v6423 = vld [vmem:[%s6416 + $0x30] sm:$0xff]
  %v6424 = vld [vmem:[%s6416 + $0x38] sm:$0xff]
  %v6425 = vld [vmem:[%s6416 + $0x40] sm:$0xff]
  %v6426 = vld [vmem:[%s6416 + $0x48] sm:$0xff]
  %v6428 = vsel %vm4559, %v6415, 0
  %6430 = vmatprep.subr.mxu0 0.0
  %6431 = vmatpush1.msra.mxu0 %v6417
  %6432 = vmatprep.subr.mxu0 0.0
  %6433 = vmatpush1.msra.mxu0 %v6418
  %6434 = vmatprep.subr.mxu0 0.0
  %6435 = vmatpush1.msra.mxu0 %v6419
  %6436 = vmatprep.subr.mxu0 0.0
  %6437 = vmatpush1.msra.mxu0 %v6420
  %6438 = vmatprep.subr.mxu0 0.0
  %6439 = vmatpush1.msra.mxu0 %v6421
  %6440 = vmatprep.subr.mxu0 0.0
  %6441 = vmatpush1.msra.mxu0 %v6422
  %6442 = vmatprep.subr.mxu0 0.0
  %6443 = vmatpush1.msra.mxu0 %v6423
  %6444 = vmatprep.subr.mxu0 0.0
  %6445 = vmatpush1.msra.mxu0 %v6424
  %6446 = vmatprep.subr.mxu0 0.0
  %6447 = vmatpush1.msra.mxu0 %v6425
  %6448 = vmatprep.subr.mxu0 0.0
  %6449 = vmatpush1.msra.mxu0 %v6426
  %6450 = vmatprep.subr.mxu0 0.0
  %6451 = vmatpush1.msra.mxu0 0.0
  %6452 = vmatprep.subr.mxu0 0.0
  %6453 = vmatpush1.msra.mxu0 0.0
  %6454 = vmatprep.subr.mxu0 0.0
  %6455 = vmatpush1.msra.mxu0 0.0
  %6456 = vmatprep.subr.mxu0 0.0
  %6457 = vmatpush1.msra.mxu0 0.0
  %6458 = vmatprep.subr.mxu0 0.0
  %6459 = vmatpush1.msra.mxu0 0.0
  %6460 = vmatprep.subr.mxu0 0.0
  %6461 = vmatpush1.msra.mxu0 0.0
  %6462 = vmatprep.subr.mxu0 0.0
  %6463 = vmatpush1.msra.mxu0 0.0
  %6464 = vmatprep.subr.mxu0 0.0
  %6465 = vmatpush1.msra.mxu0 0.0
  %6466 = vmatprep.subr.mxu0 0.0
  %6467 = vmatpush1.msra.mxu0 0.0
  %6468 = vmatprep.subr.mxu0 0.0
  %6469 = vmatpush1.msra.mxu0 0.0
  %6470 = vmatprep.subr.mxu0 0.0
  %6471 = vmatpush1.msra.mxu0 0.0
  %6472 = vmatprep.subr.mxu0 0.0
  %6473 = vmatpush1.msra.mxu0 0.0
  %6474 = vmatprep.subr.mxu0 0.0
  %6475 = vmatpush1.msra.mxu0 0.0
  %6476 = vmatprep.subr.mxu0 0.0
  %6477 = vmatpush1.msra.mxu0 0.0
  %6478 = vmatprep.subr.mxu0 0.0
  %6479 = vmatpush1.msra.mxu0 0.0
  %6480 = vmatprep.subr.mxu0 0.0
  %6481 = vmatpush1.msra.mxu0 0.0
  %6482 = vmatprep.subr.mxu0 0.0
  %6483 = vmatpush1.msra.mxu0 0.0
  %6484 = vmatprep.subr.mxu0 0.0
  %6485 = vmatpush1.msra.mxu0 0.0
  %6486 = vmatprep.subr.mxu0 0.0
  %6487 = vmatpush1.msra.mxu0 0.0
  %6488 = vmatprep.subr.mxu0 0.0
  %6489 = vmatpush1.msra.mxu0 0.0
  %6490 = vmatprep.subr.mxu0 0.0
  %6491 = vmatpush1.msra.mxu0 0.0
  %6492 = vmatprep.subr.mxu0 0.0
  %6493 = vmatpush1.msra.mxu0 0.0
  %6494 = vmatprep.mubr.f32.mxu0 0.0
  %6495 = vmatmul.mubr.f32.gmra.mrb[0].mxu0 %v6428
  %v6496 = vpop.f32.mrb[0].mxu0
  %v6497 = vadd.f32 0.0, %v6496
  %v6498 = vpop.f32.mrb[0].mxu0
  %6499 = vdwg.mxu0
  %v6501 = vsel %vm4559, %v6404, 0
  %6503 = vmatprep.subr.mxu0 0.0
  %6504 = vmatpush1.msra.mxu0 %v6405
  %6505 = vmatprep.subr.mxu0 0.0
  %6506 = vmatpush1.msra.mxu0 %v6406
  %6507 = vmatprep.subr.mxu0 0.0
  %6508 = vmatpush1.msra.mxu0 %v6407
  %6509 = vmatprep.subr.mxu0 0.0
  %6510 = vmatpush1.msra.mxu0 %v6408
  %6511 = vmatprep.subr.mxu0 0.0
  %6512 = vmatpush1.msra.mxu0 %v6409
  %6513 = vmatprep.subr.mxu0 0.0
  %6514 = vmatpush1.msra.mxu0 %v6410
  %6515 = vmatprep.subr.mxu0 0.0
  %6516 = vmatpush1.msra.mxu0 %v6411
  %6517 = vmatprep.subr.mxu0 0.0
  %6518 = vmatpush1.msra.mxu0 %v6412
  %6519 = vmatprep.subr.mxu0 0.0
  %6520 = vmatpush1.msra.mxu0 %v6413
  %6521 = vmatprep.subr.mxu0 0.0
  %6522 = vmatpush1.msra.mxu0 %v6414
  %6523 = vmatprep.subr.mxu0 0.0
  %6524 = vmatpush1.msra.mxu0 0.0
  %6525 = vmatprep.subr.mxu0 0.0
  %6526 = vmatpush1.msra.mxu0 0.0
  %6527 = vmatprep.subr.mxu0 0.0
  %6528 = vmatpush1.msra.mxu0 0.0
  %6529 = vmatprep.subr.mxu0 0.0
  %6530 = vmatpush1.msra.mxu0 0.0
  %6531 = vmatprep.subr.mxu0 0.0
  %6532 = vmatpush1.msra.mxu0 0.0
  %6533 = vmatprep.subr.mxu0 0.0
  %6534 = vmatpush1.msra.mxu0 0.0
  %6535 = vmatprep.subr.mxu0 0.0
  %6536 = vmatpush1.msra.mxu0 0.0
  %6537 = vmatprep.subr.mxu0 0.0
  %6538 = vmatpush1.msra.mxu0 0.0
  %6539 = vmatprep.subr.mxu0 0.0
  %6540 = vmatpush1.msra.mxu0 0.0
  %6541 = vmatprep.subr.mxu0 0.0
  %6542 = vmatpush1.msra.mxu0 0.0
  %6543 = vmatprep.subr.mxu0 0.0
  %6544 = vmatpush1.msra.mxu0 0.0
  %6545 = vmatprep.subr.mxu0 0.0
  %6546 = vmatpush1.msra.mxu0 0.0
  %6547 = vmatprep.subr.mxu0 0.0
  %6548 = vmatpush1.msra.mxu0 0.0
  %6549 = vmatprep.subr.mxu0 0.0
  %6550 = vmatpush1.msra.mxu0 0.0
  %6551 = vmatprep.subr.mxu0 0.0
  %6552 = vmatpush1.msra.mxu0 0.0
  %6553 = vmatprep.subr.mxu0 0.0
  %6554 = vmatpush1.msra.mxu0 0.0
  %6555 = vmatprep.subr.mxu0 0.0
  %6556 = vmatpush1.msra.mxu0 0.0
  %6557 = vmatprep.subr.mxu0 0.0
  %6558 = vmatpush1.msra.mxu0 0.0
  %6559 = vmatprep.subr.mxu0 0.0
  %6560 = vmatpush1.msra.mxu0 0.0
  %6561 = vmatprep.subr.mxu0 0.0
  %6562 = vmatpush1.msra.mxu0 0.0
  %6563 = vmatprep.subr.mxu0 0.0
  %6564 = vmatpush1.msra.mxu0 0.0
  %6565 = vmatprep.subr.mxu0 0.0
  %6566 = vmatpush1.msra.mxu0 0.0
  %6567 = vmatprep.mubr.f32.mxu0 0.0
  %6568 = vmatmul.mubr.f32.gmra.mrb[0].mxu0 %v6501
  %v6569 = vpop.f32.mrb[0].mxu0
  %v6570 = vadd.f32 %v6497, %v6569
  %v6571 = vpop.f32.mrb[0].mxu0
  %6572 = vdwg.mxu0
  %v6573 = vld [vmem:[#allocation3 + $0x10] sm:$0xff]
  %s6574 = scalar_lea.vmem %s5, 160
  %v6575 = vld [vmem:[%s6574] sm:$0xff]
  %v6576 = vld [vmem:[%s6574 + $0x8] sm:$0xff]
  %v6577 = vld [vmem:[%s6574 + $0x10] sm:$0xff]
  %v6578 = vld [vmem:[%s6574 + $0x18] sm:$0xff]
  %v6579 = vld [vmem:[%s6574 + $0x20] sm:$0xff]
  %v6580 = vld [vmem:[%s6574 + $0x28] sm:$0xff]
  %v6581 = vld [vmem:[%s6574 + $0x30] sm:$0xff]
  %v6582 = vld [vmem:[%s6574 + $0x38] sm:$0xff]
  %v6583 = vld [vmem:[%s6574 + $0x40] sm:$0xff]
  %v6584 = vld [vmem:[%s6574 + $0x48] sm:$0xff]
  %v6586 = vsel %vm4559, %v6573, 0
  %6588 = vmatprep.subr.mxu0 0.0
  %6589 = vmatpush1.msra.mxu0 %v6575
  %6590 = vmatprep.subr.mxu0 0.0
  %6591 = vmatpush1.msra.mxu0 %v6576
  %6592 = vmatprep.subr.mxu0 0.0
  %6593 = vmatpush1.msra.mxu0 %v6577
  %6594 = vmatprep.subr.mxu0 0.0
  %6595 = vmatpush1.msra.mxu0 %v6578
  %6596 = vmatprep.subr.mxu0 0.0
  %6597 = vmatpush1.msra.mxu0 %v6579
  %6598 = vmatprep.subr.mxu0 0.0
  %6599 = vmatpush1.msra.mxu0 %v6580
  %6600 = vmatprep.subr.mxu0 0.0
  %6601 = vmatpush1.msra.mxu0 %v6581
  %6602 = vmatprep.subr.mxu0 0.0
  %6603 = vmatpush1.msra.mxu0 %v6582
  %6604 = vmatprep.subr.mxu0 0.0
  %6605 = vmatpush1.msra.mxu0 %v6583
  %6606 = vmatprep.subr.mxu0 0.0
  %6607 = vmatpush1.msra.mxu0 %v6584
  %6608 = vmatprep.subr.mxu0 0.0
  %6609 = vmatpush1.msra.mxu0 0.0
  %6610 = vmatprep.subr.mxu0 0.0
  %6611 = vmatpush1.msra.mxu0 0.0
  %6612 = vmatprep.subr.mxu0 0.0
  %6613 = vmatpush1.msra.mxu0 0.0
  %6614 = vmatprep.subr.mxu0 0.0
  %6615 = vmatpush1.msra.mxu0 0.0
  %6616 = vmatprep.subr.mxu0 0.0
  %6617 = vmatpush1.msra.mxu0 0.0
  %6618 = vmatprep.subr.mxu0 0.0
  %6619 = vmatpush1.msra.mxu0 0.0
  %6620 = vmatprep.subr.mxu0 0.0
  %6621 = vmatpush1.msra.mxu0 0.0
  %6622 = vmatprep.subr.mxu0 0.0
  %6623 = vmatpush1.msra.mxu0 0.0
  %6624 = vmatprep.subr.mxu0 0.0
  %6625 = vmatpush1.msra.mxu0 0.0
  %6626 = vmatprep.subr.mxu0 0.0
  %6627 = vmatpush1.msra.mxu0 0.0
  %6628 = vmatprep.subr.mxu0 0.0
  %6629 = vmatpush1.msra.mxu0 0.0
  %6630 = vmatprep.subr.mxu0 0.0
  %6631 = vmatpush1.msra.mxu0 0.0
  %6632 = vmatprep.subr.mxu0 0.0
  %6633 = vmatpush1.msra.mxu0 0.0
  %6634 = vmatprep.subr.mxu0 0.0
  %6635 = vmatpush1.msra.mxu0 0.0
  %6636 = vmatprep.subr.mxu0 0.0
  %6637 = vmatpush1.msra.mxu0 0.0
  %6638 = vmatprep.subr.mxu0 0.0
  %6639 = vmatpush1.msra.mxu0 0.0
  %6640 = vmatprep.subr.mxu0 0.0
  %6641 = vmatpush1.msra.mxu0 0.0
  %6642 = vmatprep.subr.mxu0 0.0
  %6643 = vmatpush1.msra.mxu0 0.0
  %6644 = vmatprep.subr.mxu0 0.0
  %6645 = vmatpush1.msra.mxu0 0.0
  %6646 = vmatprep.subr.mxu0 0.0
  %6647 = vmatpush1.msra.mxu0 0.0
  %6648 = vmatprep.subr.mxu0 0.0
  %6649 = vmatpush1.msra.mxu0 0.0
  %6650 = vmatprep.subr.mxu0 0.0
  %6651 = vmatpush1.msra.mxu0 0.0
  %6652 = vmatprep.mubr.f32.mxu0 0.0
  %6653 = vmatmul.mubr.f32.gmra.mrb[0].mxu0 %v6586
  %v6654 = vpop.f32.mrb[0].mxu0
  %v6655 = vadd.f32 0.0, %v6654
  %v6656 = vpop.f32.mrb[0].mxu0
  %6657 = vdwg.mxu0
  %v6658 = vadd.f32 %v6570, %v6655
  %v6659 = vld [vmem:[#allocation3 + $0x18] sm:$0xff]
  %s6660 = scalar_lea.vmem %s5, 240
  %v6661 = vld [vmem:[%s6660] sm:$0xff]
  %v6662 = vld [vmem:[%s6660 + $0x8] sm:$0xff]
  %v6663 = vld [vmem:[%s6660 + $0x10] sm:$0xff]
  %v6664 = vld [vmem:[%s6660 + $0x18] sm:$0xff]
  %v6665 = vld [vmem:[%s6660 + $0x20] sm:$0xff]
  %v6666 = vld [vmem:[%s6660 + $0x28] sm:$0xff]
  %v6667 = vld [vmem:[%s6660 + $0x30] sm:$0xff]
  %v6668 = vld [vmem:[%s6660 + $0x38] sm:$0xff]
  %v6669 = vld [vmem:[%s6660 + $0x40] sm:$0xff]
  %v6670 = vld [vmem:[%s6660 + $0x48] sm:$0xff]
  %v6672 = vsel %vm4559, %v6659, 0
  %6674 = vmatprep.subr.mxu0 0.0
  %6675 = vmatpush1.msra.mxu0 %v6661
  %6676 = vmatprep.subr.mxu0 0.0
  %6677 = vmatpush1.msra.mxu0 %v6662
  %6678 = vmatprep.subr.mxu0 0.0
  %6679 = vmatpush1.msra.mxu0 %v6663
  %6680 = vmatprep.subr.mxu0 0.0
  %6681 = vmatpush1.msra.mxu0 %v6664
  %6682 = vmatprep.subr.mxu0 0.0
  %6683 = vmatpush1.msra.mxu0 %v6665
  %6684 = vmatprep.subr.mxu0 0.0
  %6685 = vmatpush1.msra.mxu0 %v6666
  %6686 = vmatprep.subr.mxu0 0.0
  %6687 = vmatpush1.msra.mxu0 %v6667
  %6688 = vmatprep.subr.mxu0 0.0
  %6689 = vmatpush1.msra.mxu0 %v6668
  %6690 = vmatprep.subr.mxu0 0.0
  %6691 = vmatpush1.msra.mxu0 %v6669
  %6692 = vmatprep.subr.mxu0 0.0
  %6693 = vmatpush1.msra.mxu0 %v6670
  %6694 = vmatprep.subr.mxu0 0.0
  %6695 = vmatpush1.msra.mxu0 0.0
  %6696 = vmatprep.subr.mxu0 0.0
  %6697 = vmatpush1.msra.mxu0 0.0
  %6698 = vmatprep.subr.mxu0 0.0
  %6699 = vmatpush1.msra.mxu0 0.0
  %6700 = vmatprep.subr.mxu0 0.0
  %6701 = vmatpush1.msra.mxu0 0.0
  %6702 = vmatprep.subr.mxu0 0.0
  %6703 = vmatpush1.msra.mxu0 0.0
  %6704 = vmatprep.subr.mxu0 0.0
  %6705 = vmatpush1.msra.mxu0 0.0
  %6706 = vmatprep.subr.mxu0 0.0
  %6707 = vmatpush1.msra.mxu0 0.0
  %6708 = vmatprep.subr.mxu0 0.0
  %6709 = vmatpush1.msra.mxu0 0.0
  %6710 = vmatprep.subr.mxu0 0.0
  %6711 = vmatpush1.msra.mxu0 0.0
  %6712 = vmatprep.subr.mxu0 0.0
  %6713 = vmatpush1.msra.mxu0 0.0
  %6714 = vmatprep.subr.mxu0 0.0
  %6715 = vmatpush1.msra.mxu0 0.0
  %6716 = vmatprep.subr.mxu0 0.0
  %6717 = vmatpush1.msra.mxu0 0.0
  %6718 = vmatprep.subr.mxu0 0.0
  %6719 = vmatpush1.msra.mxu0 0.0
  %6720 = vmatprep.subr.mxu0 0.0
  %6721 = vmatpush1.msra.mxu0 0.0
  %6722 = vmatprep.subr.mxu0 0.0
  %6723 = vmatpush1.msra.mxu0 0.0
  %6724 = vmatprep.subr.mxu0 0.0
  %6725 = vmatpush1.msra.mxu0 0.0
  %6726 = vmatprep.subr.mxu0 0.0
  %6727 = vmatpush1.msra.mxu0 0.0
  %6728 = vmatprep.subr.mxu0 0.0
  %6729 = vmatpush1.msra.mxu0 0.0
  %6730 = vmatprep.subr.mxu0 0.0
  %6731 = vmatpush1.msra.mxu0 0.0
  %6732 = vmatprep.subr.mxu0 0.0
  %6733 = vmatpush1.msra.mxu0 0.0
  %6734 = vmatprep.subr.mxu0 0.0
  %6735 = vmatpush1.msra.mxu0 0.0
  %6736 = vmatprep.subr.mxu0 0.0
  %6737 = vmatpush1.msra.mxu0 0.0
  %6738 = vmatprep.mubr.f32.mxu0 0.0
  %6739 = vmatmul.mubr.f32.gmra.mrb[0].mxu0 %v6672
  %v6740 = vpop.f32.mrb[0].mxu0
  %v6741 = vadd.f32 0.0, %v6740
  %v6742 = vpop.f32.mrb[0].mxu0
  %6743 = vdwg.mxu0
  %v6744 = vadd.f32 %v6658, %v6741
  %v6745 = vld [vmem:[%s6] sm:$0x1]
  %v6747 = vlaneseq
  %v6748 = vshrl.u32 %v6747, 7
  %v6749 = vsub.s32 0, %v6748
  %v6750 = vrot.slane %v6745, %v6749
  %v6752 = vadd.f32 %v6744, %v6750
  %v6753 = vmax.f32 %v6752, 0.0
  %v6754 = vld [vmem:[%s7] sm:$0xff]
  %v6755 = vld [vmem:[%s7 + $0x8] sm:$0xff]
  %v6756 = vld [vmem:[%s7 + $0x10] sm:$0xff]
  %v6757 = vld [vmem:[%s7 + $0x18] sm:$0xff]
  %v6758 = vld [vmem:[%s7 + $0x20] sm:$0xff]
  %v6759 = vld [vmem:[%s7 + $0x28] sm:$0xff]
  %v6760 = vld [vmem:[%s7 + $0x30] sm:$0x3]
  %v6761 = vld [vmem:[%s8] sm:$0x1]
  %v6763 = vlaneseq
  %v6764 = vshrl.u32 %v6763, 7
  %v6765 = vsub.s32 0, %v6764
  %v6766 = vrot.slane %v6761, %v6765
  %vm6768 = vcmask 408576
  %v6770 = vsel %vm6768, %v6753, 0
  %vm6772 = vcmask 1041408
  %v6774 = vsel %vm6772, %v6760, 0
  %6776 = vmatprep.subr.mxu0 0.0
  %6777 = vmatpush1.msra.mxu0 %v6754
  %6778 = vmatprep.subr.mxu0 0.0
  %6779 = vmatpush1.msra.mxu0 %v6755
  %6780 = vmatprep.subr.mxu0 0.0
  %6781 = vmatpush1.msra.mxu0 %v6756
  %6782 = vmatprep.subr.mxu0 0.0
  %6783 = vmatpush1.msra.mxu0 %v6757
  %6784 = vmatprep.subr.mxu0 0.0
  %6785 = vmatpush1.msra.mxu0 %v6758
  %6786 = vmatprep.subr.mxu0 0.0
  %6787 = vmatpush1.msra.mxu0 %v6759
  %6788 = vmatprep.subr.mxu0 0.0
  %6789 = vmatpush1.msra.mxu0 %v6774
  %6790 = vmatprep.subr.mxu0 0.0
  %6791 = vmatpush1.msra.mxu0 0.0
  %6792 = vmatprep.subr.mxu0 0.0
  %6793 = vmatpush1.msra.mxu0 0.0
  %6794 = vmatprep.subr.mxu0 0.0
  %6795 = vmatpush1.msra.mxu0 0.0
  %6796 = vmatprep.subr.mxu0 0.0
  %6797 = vmatpush1.msra.mxu0 0.0
  %6798 = vmatprep.subr.mxu0 0.0
  %6799 = vmatpush1.msra.mxu0 0.0
  %6800 = vmatprep.subr.mxu0 0.0
  %6801 = vmatpush1.msra.mxu0 0.0
  %6802 = vmatprep.subr.mxu0 0.0
  %6803 = vmatpush1.msra.mxu0 0.0
  %6804 = vmatprep.subr.mxu0 0.0
  %6805 = vmatpush1.msra.mxu0 0.0
  %6806 = vmatprep.subr.mxu0 0.0
  %6807 = vmatpush1.msra.mxu0 0.0
  %6808 = vmatprep.subr.mxu0 0.0
  %6809 = vmatpush1.msra.mxu0 0.0
  %6810 = vmatprep.subr.mxu0 0.0
  %6811 = vmatpush1.msra.mxu0 0.0
  %6812 = vmatprep.subr.mxu0 0.0
  %6813 = vmatpush1.msra.mxu0 0.0
  %6814 = vmatprep.subr.mxu0 0.0
  %6815 = vmatpush1.msra.mxu0 0.0
  %6816 = vmatprep.subr.mxu0 0.0
  %6817 = vmatpush1.msra.mxu0 0.0
  %6818 = vmatprep.subr.mxu0 0.0
  %6819 = vmatpush1.msra.mxu0 0.0
  %6820 = vmatprep.subr.mxu0 0.0
  %6821 = vmatpush1.msra.mxu0 0.0
  %6822 = vmatprep.subr.mxu0 0.0
  %6823 = vmatpush1.msra.mxu0 0.0
  %6824 = vmatprep.subr.mxu0 0.0
  %6825 = vmatpush1.msra.mxu0 0.0
  %6826 = vmatprep.subr.mxu0 0.0
  %6827 = vmatpush1.msra.mxu0 0.0
  %6828 = vmatprep.subr.mxu0 0.0
  %6829 = vmatpush1.msra.mxu0 0.0
  %6830 = vmatprep.subr.mxu0 0.0
  %6831 = vmatpush1.msra.mxu0 0.0
  %6832 = vmatprep.subr.mxu0 0.0
  %6833 = vmatpush1.msra.mxu0 0.0
  %6834 = vmatprep.subr.mxu0 0.0
  %6835 = vmatpush1.msra.mxu0 0.0
  %6836 = vmatprep.subr.mxu0 0.0
  %6837 = vmatpush1.msra.mxu0 0.0
  %6838 = vmatprep.subr.mxu0 0.0
  %6839 = vmatpush1.msra.mxu0 0.0
  %6840 = vmatprep.mubr.f32.mxu0 0.0
  %6841 = vmatmul.mubr.f32.gmra.mrb[0].mxu0 %v6770
  %v6842 = vpop.f32.mrb[0].mxu0
  %v6843 = vadd.f32 %v6766, %v6842
  %v6844 = vpop.f32.mrb[0].mxu0
  %6845 = vdwg.mxu0
  %vm6846 = vcmask 80896
  %v6847 = vsel %vm6846, %v6843, -inf
  %6848 = vmax.xlane.f32.xlu0 %v6847
  %v6849 = vpop.xlane.xlu0 %6848
  %v6850 = vsub.f32 %v6843, %v6849
  %v6851 = vmul.f32 %v6850, 1.442695
  %v6852 = vpow.pop %v6851
  %v6853 = vsel %vm6846, %v6852, 0.0
  %6854 = vadd.xlane.f32.xlu0 %v6853
  %v6855 = vpop.xlane.xlu0 %6854
  %v6856 = vlog2.pop %v6855
  %v6857 = vmul.f32 %v6856, 0.6931472
  %v6858 = vadd.f32 %v6857, %v6849
  %v6859 = vsub.f32 %v6843, %v6858
  %6860 = vst.msk [vmem:[%s9] sm:$0xff] %vm6846, %v6859
  // Predicated region
  $region38: #{net_forward.1} parent=0 // pred_check
    _
  $region39: #{net_forward.1} parent=0 // pred_check_branch
    %6862 = sbr.rel (0) target = $region41
  $region40: #{net_forward.1} parent=0 // pred_region
    _
  $region41: #{net_forward.1} parent=0 // pred_fallthru
    _
  // Predicated region
  $region42: #{net_forward.1} parent=0 // pred_check
    _
  $region43: #{net_forward.1} parent=0 // pred_check_branch
    %6864 = sbr.rel (0) target = $region45
  $region44: #{net_forward.1} parent=0 // pred_region
    _
  $region45: #{net_forward.1} parent=0 // pred_fallthru
    _

</llo_original>
